<compile_context>
chip_gen: v6e
topology: v6e:2x2x1
jax: 0.10.0
libtpu: 0.0.40
codegen_flags: <defaults>
</compile_context>

<pallas_src>
import functools
import math

import jax
import jax.numpy as jnp
import numpy as np
from jax.experimental import pallas as pl
from jax.experimental.pallas import tpu as pltpu

_EPS = 1e-12


# --------------------------------------------------------------------------
# in-kernel helpers
# --------------------------------------------------------------------------
def _ln(x, g, b, eps=_EPS):
    mu = jnp.mean(x, axis=-1, keepdims=True)
    var = jnp.mean((x - mu) ** 2, axis=-1, keepdims=True)
    return (x - mu) * jax.lax.rsqrt(var + eps) * g + b


def _bf16(x):
    return x.astype(jnp.bfloat16)


def _run_encoder_layer(x, add_mask, ctx_ref,
                       wqkv, bqkv, wo, bo, ln1g, ln1b,
                       w1, b1, w2, b2, ln2g, ln2b,
                       *, B, L, num_heads, eps):
    """One BERT-style encoder layer on a flattened (B*L, H) f32 block.

    add_mask: (B, L) additive key mask.  ctx_ref: VMEM scratch (B*L, H) f32.
    Weights wqkv/wo/w1/w2 are bf16; biases / LN params are f32.
    """
    H = x.shape[-1]
    dh = H // num_heads
    scale = 1.0 / math.sqrt(dh)

    # Fused QKV projection: one bf16 MXU matmul, output lane width 3H.
    qkv = jnp.dot(_bf16(x), wqkv, preferred_element_type=jnp.float32) + bqkv

    # Per-batch, per-head attention; ctx_h written to VMEM scratch at lane
    # offset h*dh so the head merge + output projection is ONE K=H matmul.
    for b in range(B):                       # B tiny & static
        q = qkv[b * L:(b + 1) * L, 0:H]
        k = qkv[b * L:(b + 1) * L, H:2 * H]
        v = qkv[b * L:(b + 1) * L, 2 * H:3 * H]
        m = add_mask[b:b + 1, :]             # (1, L) additive key mask
        for h in range(num_heads):           # static unroll, tiny head count
            qh = _bf16(q[:, h * dh:(h + 1) * dh])
            kh = _bf16(k[:, h * dh:(h + 1) * dh])
            vh = _bf16(v[:, h * dh:(h + 1) * dh])
            s = jax.lax.dot_general(qh, kh, (((1,), (1,)), ((), ())),
                                    preferred_element_type=jnp.float32)
            s = s * scale + m
            s = s - jnp.max(s, axis=-1, keepdims=True)
            e = jnp.exp(s)
            p = e * pl.reciprocal(jnp.sum(e, axis=-1, keepdims=True), approx=True)
            ctx_ref[b * L:(b + 1) * L, h * dh:(h + 1) * dh] = jnp.dot(
                _bf16(p), vh, preferred_element_type=jnp.float32)

    attn = jnp.dot(_bf16(ctx_ref[...]), wo,
                   preferred_element_type=jnp.float32) + bo       # (B*L, H)
    h1 = _ln(x + attn, ln1g, ln1b, eps)

    ff = jnp.dot(_bf16(h1), w1, preferred_element_type=jnp.float32) + b1
    # TODO(synk): PyTorch BERT uses exact erf GELU; tanh approximation kept for
    # guaranteed Mosaic lowering (tiny numeric drift).
    ff = jax.nn.gelu(ff)
    ff = jnp.dot(_bf16(ff), w2, preferred_element_type=jnp.float32) + b2
    return _ln(h1 + ff, ln2g, ln2b, eps)


# --------------------------------------------------------------------------
# fused encoder-layer kernels (optional front-end prologue fused in)
# --------------------------------------------------------------------------
def _fused_layer_kernel(*refs, mode, B, L, num_heads, eps):
    *ins, o_ref, ctx_ref = refs
    if mode == "text_first":
        # embedding post-processing (pos add + LN) fused into layer 0
        emb_ref, pos_ref, eg_ref, eb_ref, mask_ref = ins[:5]
        layer = ins[5:]
        x = _ln(emb_ref[...] + pos_ref[...], eg_ref[...], eb_ref[...], eps)
    elif mode == "audio_first":
        # audio_linear + pos add + LN fused into layer 0
        a_ref, alw_ref, alb_ref, pos_ref, eg_ref, eb_ref, mask_ref = ins[:7]
        layer = ins[7:]
        h = jnp.dot(_bf16(a_ref[...]), alw_ref[...],
                    preferred_element_type=jnp.float32) + alb_ref[...]
        x = _ln(h + pos_ref[...], eg_ref[...], eb_ref[...], eps)
    else:  # "mid": plain encoder layer
        x_ref, mask_ref = ins[:2]
        layer = ins[2:]
        x = x_ref[...]
    lw = [r[...] for r in layer]              # 12 per-layer weight tensors
    o_ref[...] = _run_encoder_layer(x, mask_ref[...], ctx_ref, *lw,
                                    B=B, L=L, num_heads=num_heads, eps=eps)


def _layer_cost(B, L, H, FF, heads):
    flops = (2 * B * L * H * 3 * H           # qkv projection
             + 2 * 2 * B * L * L * H          # scores + context
             + 2 * B * L * H * H              # output projection
             + 2 * 2 * B * L * H * FF)        # FFN
    transcendentals = B * heads * L * L + B * L * FF + 4 * B * L
    bytes_accessed = (4 * 2 * B * L * H                         # act in/out f32
                      + 2 * (3 * H * H + H * H + 2 * H * FF)    # bf16 weights
                      + 4 * (B * L + 8 * H))                    # mask, biases, LN
    return pl.CostEstimate(flops=int(flops), transcendentals=int(transcendentals),
                           bytes_accessed=int(bytes_accessed))


def _layer_list(lp):
    return [lp["wqkv"], lp["bqkv"], lp["wo"], lp["bo"],
            lp["ln1_g"], lp["ln1_b"],
            lp["w1"], lp["b1"], lp["w2"], lp["b2"],
            lp["ln2_g"], lp["ln2_b"]]


def _call_fused_layer(mode, inputs, B, L, H, FF, num_heads):
    # TODO(synk): at real RoBERTa sizes (H=768, L=512, FF=3072) add an FF-axis
    # grid marked "arbitrary" with a VMEM accumulator, single-buffered weight
    # specs (pipeline_mode=pl.Buffered(1)), explicit vmem_limit_bytes, and a
    # "parallel" batch/sequence grid axis for the v7x megacore; the toy shapes
    # fit a single VMEM block on v5e/v6e/v7x.
    return pl.pallas_call(
        functools.partial(_fused_layer_kernel, mode=mode, B=B, L=L,
                          num_heads=num_heads, eps=_EPS),
        out_shape=jax.ShapeDtypeStruct((B * L, H), jnp.float32),
        scratch_shapes=[pltpu.VMEM((B * L, H), jnp.float32)],
        cost_estimate=_layer_cost(B, L, H, FF, num_heads),
    )(*inputs)


# --------------------------------------------------------------------------
# fused classification head:
#   additive-attention pool (text, full-seq with utterance mask, text_linear
#   folded) + additive-attention pool (audio; shared weights, as in the
#   original module) + concat + multimodal_linear + classifier
# --------------------------------------------------------------------------
def _head_kernel(th_ref, tmask_ref, ah_ref, amask_ref,
                 tfw_ref, tfb_ref, tw_ref, tb_ref,
                 aw_ref, ab_ref, av_ref,
                 wm_ref, bm_ref, wc_ref, bc_ref,
                 o_ref, *, B, Lt, La):
    tfw, tfb = tfw_ref[...], tfb_ref[...]      # folded text score proj (Hr,Hm)
    tw, tb = tw_ref[...], tb_ref[...]          # text_linear (Hr,Hm) bf16
    aw, ab, av = aw_ref[...], ab_ref[...], av_ref[...]
    wm, bm = wm_ref[...], bm_ref[...]
    wc, bc = wc_ref[...], bc_ref[...]
    Hm = aw.shape[0]
    wm_text = wm[:Hm, :]                       # concat realised as split weight
    wm_audio = wm[Hm:, :]

    def pool(h, mask, w_score, b_score):
        # AdditiveAttention: alpha = softmax_masked(v . tanh(W h + b)); out = alpha^T h
        proj = jnp.tanh(jnp.dot(_bf16(h), w_score,
                                preferred_element_type=jnp.float32) + b_score)
        scores = jnp.sum(proj * av, axis=-1, keepdims=True)        # (L, 1)
        scores = jnp.where(mask > 0.5, scores, jnp.float32(-1e9))
        scores = scores - jnp.max(scores, axis=0, keepdims=True)
        e = jnp.exp(scores)
        alpha = e * pl.reciprocal(jnp.sum(e, axis=0, keepdims=True), approx=True)
        # mask*h reproduces the reference's zero-padding outside the utterance.
        return jnp.sum(alpha * (mask * h), axis=0, keepdims=True)  # (1, D)

    for i in range(B):                         # B tiny and static
        t = th_ref[i * Lt:(i + 1) * Lt, :]                         # (Lt, Hr)
        # text scores use text_linear folded into attn_w (exact algebra);
        # text_linear itself is applied to the single pooled vector only.
        t_pool_raw = pool(t, tmask_ref[i], tfw, tfb)               # (1, Hr)
        t_pool = jnp.dot(_bf16(t_pool_raw), tw,
                         preferred_element_type=jnp.float32) + tb  # (1, Hm)
        a_pool = pool(ah_ref[i * La:(i + 1) * La, :], amask_ref[i], aw, ab)
        mm = (jnp.dot(_bf16(t_pool), wm_text, preferred_element_type=jnp.float32)
              + jnp.dot(_bf16(a_pool), wm_audio, preferred_element_type=jnp.float32)
              + bm)                                                # (1, Hm)
        o_ref[i:i + 1, :] = (jnp.dot(_bf16(mm), wc,
                                     preferred_element_type=jnp.float32) + bc)


def pallas_head(text2d, utt_mask3, audio2d, audio_mask3,
                tfw, tfb, tw, tb, aw, ab, av, wm, bm, wc, bc, *, B, Lt, La):
    Hr, Hm = tw.shape
    NL = wc.shape[1]
    flops = B * (2 * Lt * Hr * Hm + 2 * La * Hm * Hm + 2 * Hr * Hm
                 + 2 * 2 * Hm * Hm + 2 * Hm * NL)
    trans = B * (Lt * Hm + La * Hm + Lt + La)
    byts = (4 * B * (Lt * Hr + La * Hm + Lt + La)
            + 2 * (2 * Hr * Hm + 3 * Hm * Hm + Hm * NL) + 4 * B * NL)
    return pl.pallas_call(
        functools.partial(_head_kernel, B=B, Lt=Lt, La=La),
        out_shape=jax.ShapeDtypeStruct((B, NL), jnp.float32),
        cost_estimate=pl.CostEstimate(flops=int(flops), transcendentals=int(trans),
                                      bytes_accessed=int(byts)),
    )(text2d, utt_mask3, audio2d, audio_mask3,
      tfw, tfb, tw, tb, aw, ab, av, wm, bm, wc, bc)


# --------------------------------------------------------------------------
# utterance-window mask (tiny scalar XLA; replaces host-side extraction loop)
# --------------------------------------------------------------------------
def compute_utt_mask(sep_mask, utt_idx, max_len):
    """mask[i, j] = 1 iff token j belongs to utterance utt_idx[i] (first
    max_len tokens between the previous SEP and that utterance's SEP).
    Pooling the full sequence with this mask is identical to extracting the
    window first (masked scores underflow to exactly-zero softmax weight)."""
    B, Lt = sep_mask.shape

    def one(mask, uidx):
        idxs = jnp.arange(Lt, dtype=jnp.int32)
        cum = jnp.cumsum(mask.astype(jnp.int32))
        order = jnp.where(mask > 0.5, cum - 1, -1)           # 0-based SEP order
        curr_sep = jnp.sum(jnp.where(order == uidx, idxs, 0))
        prev_sep = jnp.sum(jnp.where(order == uidx - 1, idxs, 0))
        start = jnp.where(uidx == 0, 1, prev_sep + 1)        # skip CLS for utt 0
        curr_len = jnp.clip(curr_sep - start, 0, max_len)
        # TODO(synk): if utt_idx exceeds the number of SEPs the reference
        # produces an all-zero utterance; here the all-masked pool averages the
        # zeroed (mask*h) rows, matching that degenerate output.
        valid = (idxs >= start) & (idxs < start + curr_len)
        return valid.astype(jnp.float32)

    return jax.vmap(one)(sep_mask, utt_idx)                  # (B, Lt)


# --------------------------------------------------------------------------
# parameter initialization (deterministic, synthetic stand-in weights)
# --------------------------------------------------------------------------
def _init_linear(key, fan_in, fan_out):
    k1, k2 = jax.random.split(key)
    w = jax.random.normal(k1, (fan_in, fan_out), jnp.float32) * 0.02
    b = jax.random.normal(k2, (fan_out,), jnp.float32) * 0.02
    return w, b


def _init_layer(key, H, ff):
    ks = jax.random.split(key, 6)
    wq, bq = _init_linear(ks[0], H, H)
    wk, bk = _init_linear(ks[1], H, H)
    wv, bv = _init_linear(ks[2], H, H)
    wo, bo = _init_linear(ks[3], H, H)
    w1, b1 = _init_linear(ks[4], H, ff)
    w2, b2 = _init_linear(ks[5], ff, H)
    return dict(
        wqkv=jnp.concatenate([wq, wk, wv], axis=1).astype(jnp.bfloat16),
        bqkv=jnp.concatenate([bq, bk, bv]).reshape(1, 3 * H),
        wo=wo.astype(jnp.bfloat16), bo=bo.reshape(1, H),
        w1=w1.astype(jnp.bfloat16), b1=b1.reshape(1, ff),
        w2=w2.astype(jnp.bfloat16), b2=b2.reshape(1, H),
        ln1_g=jnp.ones((1, H), jnp.float32), ln1_b=jnp.zeros((1, H), jnp.float32),
        ln2_g=jnp.ones((1, H), jnp.float32), ln2_b=jnp.zeros((1, H), jnp.float32))


def init_params(key, cfg):
    keys = jax.random.split(key, 12)
    Hr, Hm = cfg["roberta_hidden"], cfg["hidden_size"]
    roberta = dict(
        word_emb=jax.random.normal(keys[0], (cfg["vocab_size"], Hr), jnp.float32) * 0.02,
        pos_emb=jax.random.normal(keys[1], (cfg["text_seq_len"], Hr), jnp.float32) * 0.02,
        emb_ln_g=jnp.ones((1, Hr), jnp.float32), emb_ln_b=jnp.zeros((1, Hr), jnp.float32),
        layers=[_init_layer(k, Hr, cfg["roberta_ff"])
                for k in jax.random.split(keys[2], cfg["roberta_layers"])],
    )
    audio_trans = dict(
        pos_emb=jax.random.normal(keys[3], (cfg["get_audio_utt_max_lens"], Hm),
                                  jnp.float32) * 0.02,
        emb_ln_g=jnp.ones((1, Hm), jnp.float32), emb_ln_b=jnp.zeros((1, Hm), jnp.float32),
        layers=[_init_layer(k, Hm, cfg["meld_ff"])
                for k in jax.random.split(keys[4], cfg["audio_utt_Transformernum"])],
    )
    tw, tb = _init_linear(keys[5], Hr, Hm)
    alw, alb = _init_linear(keys[6], cfg["audio_featExtr_dim"], Hm)
    aw, ab = _init_linear(keys[7], Hm, Hm)
    av = jax.random.normal(keys[8], (1, Hm), jnp.float32) * 0.02
    mw, mb = _init_linear(keys[9], 2 * Hm, Hm)
    cw, cb = _init_linear(keys[10], Hm, cfg["num_labels"])
    return dict(
        roberta=roberta,
        text_linear_w=tw.astype(jnp.bfloat16), text_linear_w_f32=tw,
        text_linear_b=tb.reshape(1, Hm),
        audio_linear_w=alw.astype(jnp.bfloat16), audio_linear_b=alb.reshape(1, Hm),
        audio_trans=audio_trans,
        attn_w=aw.astype(jnp.bfloat16), attn_w_f32=aw,
        attn_b=ab.reshape(1, Hm), attn_v=av,          # shared across modalities
        multimodal_w=mw.astype(jnp.bfloat16), multimodal_b=mb.reshape(1, Hm),
        classifier_w=cw.astype(jnp.bfloat16), classifier_b=cb.reshape(1, cfg["num_labels"]),
    )


# --------------------------------------------------------------------------
# forward pass (T+A, concat fusion, eval mode)
# --------------------------------------------------------------------------
def forward(params, cfg, text_ids, text_mask, sep_mask,
            audio_inputs, audio_mask, utt_idx):
    rp, ap = params["roberta"], params["audio_trans"]
    B, Lt = text_ids.shape
    Hr, Hm = cfg["roberta_hidden"], cfg["hidden_size"]
    La, Da = cfg["get_audio_utt_max_lens"], cfg["audio_featExtr_dim"]

    # 1) text through synthetic "roberta": embedding gather (XLA, data-dependent)
    #    then fused (pos + LN + encoder layer) kernels on one (B*Lt, Hr) block.
    emb2d = rp["word_emb"][text_ids].reshape(B * Lt, Hr)
    pos_t = jnp.tile(rp["pos_emb"], (B, 1))                        # (B*Lt, Hr)
    text_add_mask = (1.0 - text_mask) * -10000.0                   # (B, Lt)
    x = _call_fused_layer(
        "text_first",
        [emb2d, pos_t, rp["emb_ln_g"], rp["emb_ln_b"], text_add_mask]
        + _layer_list(rp["layers"][0]),
        B, Lt, Hr, cfg["roberta_ff"], cfg["roberta_heads"])
    for lp in rp["layers"][1:]:
        x = _call_fused_layer("mid", [x, text_add_mask] + _layer_list(lp),
                              B, Lt, Hr, cfg["roberta_ff"], cfg["roberta_heads"])

    # 2) audio: fused (audio_linear + pos + LN + encoder layer), then plain layers
    a2d = audio_inputs.reshape(B * La, Da)
    pos_a = jnp.tile(ap["pos_emb"], (B, 1))                        # (B*La, Hm)
    audio_add_mask = (1.0 - audio_mask) * -10000.0                 # (B, La)
    a = _call_fused_layer(
        "audio_first",
        [a2d, params["audio_linear_w"], params["audio_linear_b"],
         pos_a, ap["emb_ln_g"], ap["emb_ln_b"], audio_add_mask]
        + _layer_list(ap["layers"][0]),
        B, La, Hm, cfg["meld_ff"], cfg["meld_heads"])
    for lp in ap["layers"][1:]:
        a = _call_fused_layer("mid", [a, audio_add_mask] + _layer_list(lp),
                              B, La, Hm, cfg["meld_ff"], cfg["meld_heads"])

    # 3) utterance window mask (replaces the host-side extraction loop/gather)
    utt_mask = compute_utt_mask(sep_mask, utt_idx, cfg["get_text_utt_max_lens"])

    # 4) fold text_linear into the additive-attention score projection (exact):
    #    v.tanh(Wa(Wt t + bt) + ba) == v.tanh((Wt@Wa) t + (bt@Wa + ba))
    #    and sum_j alpha_j (Wt t_j + bt) == Wt (sum_j alpha_j t_j) + bt.
    tfw = (params["text_linear_w_f32"] @ params["attn_w_f32"]).astype(jnp.bfloat16)
    tfb = params["text_linear_b"] @ params["attn_w_f32"] + params["attn_b"]

    # 5) fused head: dual additive-attention pooling (shared weights) + concat +
    #    multimodal_linear + dropout(identity, eval) + classifier
    logits = pallas_head(
        x, utt_mask[..., None],
        a, audio_mask[..., None],
        tfw, tfb, params["text_linear_w"], params["text_linear_b"],
        params["attn_w"], params["attn_b"], params["attn_v"],
        params["multimodal_w"], params["multimodal_b"],
        params["classifier_w"], params["classifier_b"],
        B=B, Lt=Lt, La=La)
    return logits


# --------------------------------------------------------------------------
if __name__ == "__main__":
    cfg = dict(
        num_labels=4,
        hidden_size=32,
        meld_heads=4,
        meld_ff=64,
        get_text_utt_max_lens=10,
        get_audio_utt_max_lens=8,
        audio_featExtr_dim=24,
        audio_utt_Transformernum=1,
        vocab_size=100,
        text_seq_len=24,
        roberta_hidden=64,
        roberta_heads=4,
        roberta_ff=128,
        roberta_layers=1,
    )

    key = jax.random.PRNGKey(0)
    pkey, dkey = jax.random.split(key)
    params = init_params(pkey, cfg)

    B, Lt = 2, cfg["text_seq_len"]
    La, Da = cfg["get_audio_utt_max_lens"], cfg["audio_featExtr_dim"]

    k1, k2 = jax.random.split(dkey)
    text_ids = jax.random.randint(k1, (B, Lt), 0, cfg["vocab_size"], jnp.int32)
    text_mask = jnp.ones((B, Lt), jnp.float32)

    # SEP mask marking utterance boundaries inside each dialogue
    sep_np = np.zeros((B, Lt), np.float32)
    sep_np[0, [6, 13, 20]] = 1.0      # row 0: utterance 0 -> tokens 1..5
    sep_np[1, [5, 11, 18]] = 1.0      # row 1: utterance 1 -> tokens 6..10
    sep_mask = jnp.asarray(sep_np)
    utt_idx = jnp.asarray([0, 1], jnp.int32)

    audio_inputs = jax.random.normal(k2, (B, La, Da), jnp.float32)
    audio_np = np.zeros((B, La), np.float32)
    audio_np[0, :6] = 1.0
    audio_np[1, :8] = 1.0
    audio_mask = jnp.asarray(audio_np)

    fwd = jax.jit(lambda *xs: forward(params, cfg, *xs))
    logits = fwd(text_ids, text_mask, sep_mask, audio_inputs, audio_mask, utt_idx)
    logits = jax.block_until_ready(logits)
    assert logits.shape == (B, cfg["num_labels"])
    print("KERNEL_OK")
</pallas_src>

<mosaic_0001>
module attributes {stable_mosaic.version = 11 : i64} {
  func.func @_fused_layer_kernel(%arg0: memref<48x64xf32, #tpu.memory_space<vmem>>, %arg1: memref<48x64xf32, #tpu.memory_space<vmem>>, %arg2: memref<1x64xf32, #tpu.memory_space<vmem>>, %arg3: memref<1x64xf32, #tpu.memory_space<vmem>>, %arg4: memref<2x24xf32, #tpu.memory_space<vmem>>, %arg5: memref<64x192xbf16, #tpu.memory_space<vmem>>, %arg6: memref<1x192xf32, #tpu.memory_space<vmem>>, %arg7: memref<64x64xbf16, #tpu.memory_space<vmem>>, %arg8: memref<1x64xf32, #tpu.memory_space<vmem>>, %arg9: memref<1x64xf32, #tpu.memory_space<vmem>>, %arg10: memref<1x64xf32, #tpu.memory_space<vmem>>, %arg11: memref<64x128xbf16, #tpu.memory_space<vmem>>, %arg12: memref<1x128xf32, #tpu.memory_space<vmem>>, %arg13: memref<128x64xbf16, #tpu.memory_space<vmem>>, %arg14: memref<1x64xf32, #tpu.memory_space<vmem>>, %arg15: memref<1x64xf32, #tpu.memory_space<vmem>>, %arg16: memref<1x64xf32, #tpu.memory_space<vmem>>, %arg17: memref<48x64xf32, #tpu.memory_space<vmem>>, %arg18: memref<48x64xf32, #tpu.memory_space<vmem>>) attributes {dimension_semantics = [], scalar_prefetch = 0 : i64, scratch_operands = 1 : i64, tpu.core_type = #tpu.core_type<tc>} {
    %c0 = arith.constant 0 : index
    %c0_0 = arith.constant 0 : index
    %0 = vector.load %arg0[%c0, %c0_0] : memref<48x64xf32, #tpu.memory_space<vmem>>, vector<48x64xf32>
    %c0_1 = arith.constant 0 : index
    %c0_2 = arith.constant 0 : index
    %1 = vector.load %arg1[%c0_1, %c0_2] : memref<48x64xf32, #tpu.memory_space<vmem>>, vector<48x64xf32>
    %2 = arith.addf %0, %1 : vector<48x64xf32>
    %c0_3 = arith.constant 0 : index
    %c0_4 = arith.constant 0 : index
    %3 = vector.load %arg2[%c0_3, %c0_4] : memref<1x64xf32, #tpu.memory_space<vmem>>, vector<1x64xf32>
    %c0_5 = arith.constant 0 : index
    %c0_6 = arith.constant 0 : index
    %4 = vector.load %arg3[%c0_5, %c0_6] : memref<1x64xf32, #tpu.memory_space<vmem>>, vector<1x64xf32>
    %cst = arith.constant dense<0.000000e+00> : vector<48xf32>
    %5 = vector.multi_reduction <add>, %2, %cst [1] : vector<48x64xf32> to vector<48xf32>
    %6 = vector.shape_cast %5 : vector<48xf32> to vector<48x1xf32>
    %cst_7 = arith.constant 6.400000e+01 : f32
    %7 = vector.broadcast %cst_7 : f32 to vector<48x1xf32>
    %8 = arith.divf %6, %7 : vector<48x1xf32>
    %9 = vector.broadcast %8 : vector<48x1xf32> to vector<48x64xf32>
    %10 = arith.subf %2, %9 : vector<48x64xf32>
    %11 = arith.mulf %10, %10 : vector<48x64xf32>
    %cst_8 = arith.constant dense<0.000000e+00> : vector<48xf32>
    %12 = vector.multi_reduction <add>, %11, %cst_8 [1] : vector<48x64xf32> to vector<48xf32>
    %13 = vector.shape_cast %12 : vector<48xf32> to vector<48x1xf32>
    %cst_9 = arith.constant 6.400000e+01 : f32
    %14 = vector.broadcast %cst_9 : f32 to vector<48x1xf32>
    %15 = arith.divf %13, %14 : vector<48x1xf32>
    %16 = vector.broadcast %8 : vector<48x1xf32> to vector<48x64xf32>
    %17 = arith.subf %2, %16 : vector<48x64xf32>
    %cst_10 = arith.constant 9.99999996E-13 : f32
    %18 = vector.broadcast %cst_10 : f32 to vector<48x1xf32>
    %19 = arith.addf %15, %18 : vector<48x1xf32>
    %20 = math.rsqrt %19 : vector<48x1xf32>
    %21 = vector.broadcast %20 : vector<48x1xf32> to vector<48x64xf32>
    %22 = arith.mulf %17, %21 : vector<48x64xf32>
    %23 = vector.broadcast %3 : vector<1x64xf32> to vector<48x64xf32>
    %24 = arith.mulf %22, %23 : vector<48x64xf32>
    %25 = vector.broadcast %4 : vector<1x64xf32> to vector<48x64xf32>
    %26 = arith.addf %24, %25 : vector<48x64xf32>
    %c0_11 = arith.constant 0 : index
    %c0_12 = arith.constant 0 : index
    %27 = vector.load %arg5[%c0_11, %c0_12] : memref<64x192xbf16, #tpu.memory_space<vmem>>, vector<64x192xbf16>
    %c0_13 = arith.constant 0 : index
    %c0_14 = arith.constant 0 : index
    %28 = vector.load %arg6[%c0_13, %c0_14] : memref<1x192xf32, #tpu.memory_space<vmem>>, vector<1x192xf32>
    %c0_15 = arith.constant 0 : index
    %c0_16 = arith.constant 0 : index
    %29 = vector.load %arg7[%c0_15, %c0_16] : memref<64x64xbf16, #tpu.memory_space<vmem>>, vector<64x64xbf16>
    %c0_17 = arith.constant 0 : index
    %c0_18 = arith.constant 0 : index
    %30 = vector.load %arg8[%c0_17, %c0_18] : memref<1x64xf32, #tpu.memory_space<vmem>>, vector<1x64xf32>
    %c0_19 = arith.constant 0 : index
    %c0_20 = arith.constant 0 : index
    %31 = vector.load %arg9[%c0_19, %c0_20] : memref<1x64xf32, #tpu.memory_space<vmem>>, vector<1x64xf32>
    %c0_21 = arith.constant 0 : index
    %c0_22 = arith.constant 0 : index
    %32 = vector.load %arg10[%c0_21, %c0_22] : memref<1x64xf32, #tpu.memory_space<vmem>>, vector<1x64xf32>
    %c0_23 = arith.constant 0 : index
    %c0_24 = arith.constant 0 : index
    %33 = vector.load %arg11[%c0_23, %c0_24] : memref<64x128xbf16, #tpu.memory_space<vmem>>, vector<64x128xbf16>
    %c0_25 = arith.constant 0 : index
    %c0_26 = arith.constant 0 : index
    %34 = vector.load %arg12[%c0_25, %c0_26] : memref<1x128xf32, #tpu.memory_space<vmem>>, vector<1x128xf32>
    %c0_27 = arith.constant 0 : index
    %c0_28 = arith.constant 0 : index
    %35 = vector.load %arg13[%c0_27, %c0_28] : memref<128x64xbf16, #tpu.memory_space<vmem>>, vector<128x64xbf16>
    %c0_29 = arith.constant 0 : index
    %c0_30 = arith.constant 0 : index
    %36 = vector.load %arg14[%c0_29, %c0_30] : memref<1x64xf32, #tpu.memory_space<vmem>>, vector<1x64xf32>
    %c0_31 = arith.constant 0 : index
    %c0_32 = arith.constant 0 : index
    %37 = vector.load %arg15[%c0_31, %c0_32] : memref<1x64xf32, #tpu.memory_space<vmem>>, vector<1x64xf32>
    %c0_33 = arith.constant 0 : index
    %c0_34 = arith.constant 0 : index
    %38 = vector.load %arg16[%c0_33, %c0_34] : memref<1x64xf32, #tpu.memory_space<vmem>>, vector<1x64xf32>
    %c0_35 = arith.constant 0 : index
    %c0_36 = arith.constant 0 : index
    %39 = vector.load %arg4[%c0_35, %c0_36] : memref<2x24xf32, #tpu.memory_space<vmem>>, vector<2x24xf32>
    %40 = arith.truncf %26 : vector<48x64xf32> to vector<48x64xbf16>
    %cst_37 = arith.constant dense<0.000000e+00> : vector<48x192xf32>
    %41 = tpu.matmul %40, %27, %cst_37 {dimension_numbers = #tpu.dot_dimension_numbers<[1], [0], [0], [1], [0, 0, 1, 1], [], []>} : vector<48x64xbf16>, vector<64x192xbf16>, vector<48x192xf32> -> vector<48x192xf32>
    %42 = vector.broadcast %28 : vector<1x192xf32> to vector<48x192xf32>
    %43 = arith.addf %41, %42 : vector<48x192xf32>
    %44 = vector.extract_strided_slice %43 {offsets = [0, 0], sizes = [24, 64], strides = [1, 1]} : vector<48x192xf32> to vector<24x64xf32>
    %45 = vector.extract_strided_slice %43 {offsets = [0, 64], sizes = [24, 64], strides = [1, 1]} : vector<48x192xf32> to vector<24x64xf32>
    %46 = vector.extract_strided_slice %43 {offsets = [0, 128], sizes = [24, 64], strides = [1, 1]} : vector<48x192xf32> to vector<24x64xf32>
    %47 = vector.extract_strided_slice %39 {offsets = [0, 0], sizes = [1, 24], strides = [1, 1]} : vector<2x24xf32> to vector<1x24xf32>
    %48 = vector.extract_strided_slice %44 {offsets = [0, 0], sizes = [24, 16], strides = [1, 1]} : vector<24x64xf32> to vector<24x16xf32>
    %49 = arith.truncf %48 : vector<24x16xf32> to vector<24x16xbf16>
    %50 = vector.extract_strided_slice %45 {offsets = [0, 0], sizes = [24, 16], strides = [1, 1]} : vector<24x64xf32> to vector<24x16xf32>
    %51 = arith.truncf %50 : vector<24x16xf32> to vector<24x16xbf16>
    %52 = vector.extract_strided_slice %46 {offsets = [0, 0], sizes = [24, 16], strides = [1, 1]} : vector<24x64xf32> to vector<24x16xf32>
    %53 = arith.truncf %52 : vector<24x16xf32> to vector<24x16xbf16>
    %cst_38 = arith.constant dense<0.000000e+00> : vector<24x24xf32>
    %54 = tpu.matmul %49, %51, %cst_38 {dimension_numbers = #tpu.dot_dimension_numbers<[1], [1], [0], [0], [0, 0, 1, 0], [], []>} : vector<24x16xbf16>, vector<24x16xbf16>, vector<24x24xf32> -> vector<24x24xf32>
    %cst_39 = arith.constant 2.500000e-01 : f32
    %55 = vector.broadcast %cst_39 : f32 to vector<24x24xf32>
    %56 = arith.mulf %54, %55 : vector<24x24xf32>
    %57 = vector.broadcast %47 : vector<1x24xf32> to vector<24x24xf32>
    %58 = arith.addf %56, %57 : vector<24x24xf32>
    %cst_40 = arith.constant dense<0xFF800000> : vector<24xf32>
    %59 = vector.multi_reduction <maximumf>, %58, %cst_40 [1] : vector<24x24xf32> to vector<24xf32>
    %60 = vector.shape_cast %59 : vector<24xf32> to vector<24x1xf32>
    %61 = vector.broadcast %60 : vector<24x1xf32> to vector<24x24xf32>
    %62 = arith.subf %58, %61 : vector<24x24xf32>
    %63 = math.exp %62 : vector<24x24xf32>
    %cst_41 = arith.constant dense<0.000000e+00> : vector<24xf32>
    %64 = vector.multi_reduction <add>, %63, %cst_41 [1] : vector<24x24xf32> to vector<24xf32>
    %65 = vector.shape_cast %64 : vector<24xf32> to vector<24x1xf32>
    %66 = tpu.reciprocal %65 {approx = true} : vector<24x1xf32> -> vector<24x1xf32>
    %67 = vector.broadcast %66 : vector<24x1xf32> to vector<24x24xf32>
    %68 = arith.mulf %63, %67 : vector<24x24xf32>
    %69 = arith.truncf %68 : vector<24x24xf32> to vector<24x24xbf16>
    %cst_42 = arith.constant dense<0.000000e+00> : vector<24x16xf32>
    %70 = tpu.matmul %69, %53, %cst_42 {dimension_numbers = #tpu.dot_dimension_numbers<[1], [0], [0], [1], [0, 0, 1, 1], [], []>} : vector<24x24xbf16>, vector<24x16xbf16>, vector<24x16xf32> -> vector<24x16xf32>
    %c0_43 = arith.constant 0 : index
    %c0_44 = arith.constant 0 : index
    %71 = vector.load %arg18[%c0_43, %c0_44] : memref<48x64xf32, #tpu.memory_space<vmem>>, vector<24x16xf32>
    tpu.vector_store %arg18[%c0_43, %c0_44], %70 {strides = array<i32>} : memref<48x64xf32, #tpu.memory_space<vmem>>, vector<24x16xf32>,
    %72 = vector.extract_strided_slice %44 {offsets = [0, 16], sizes = [24, 16], strides = [1, 1]} : vector<24x64xf32> to vector<24x16xf32>
    %73 = arith.truncf %72 : vector<24x16xf32> to vector<24x16xbf16>
    %74 = vector.extract_strided_slice %45 {offsets = [0, 16], sizes = [24, 16], strides = [1, 1]} : vector<24x64xf32> to vector<24x16xf32>
    %75 = arith.truncf %74 : vector<24x16xf32> to vector<24x16xbf16>
    %76 = vector.extract_strided_slice %46 {offsets = [0, 16], sizes = [24, 16], strides = [1, 1]} : vector<24x64xf32> to vector<24x16xf32>
    %77 = arith.truncf %76 : vector<24x16xf32> to vector<24x16xbf16>
    %cst_45 = arith.constant dense<0.000000e+00> : vector<24x24xf32>
    %78 = tpu.matmul %73, %75, %cst_45 {dimension_numbers = #tpu.dot_dimension_numbers<[1], [1], [0], [0], [0, 0, 1, 0], [], []>} : vector<24x16xbf16>, vector<24x16xbf16>, vector<24x24xf32> -> vector<24x24xf32>
    %cst_46 = arith.constant 2.500000e-01 : f32
    %79 = vector.broadcast %cst_46 : f32 to vector<24x24xf32>
    %80 = arith.mulf %78, %79 : vector<24x24xf32>
    %81 = vector.broadcast %47 : vector<1x24xf32> to vector<24x24xf32>
    %82 = arith.addf %80, %81 : vector<24x24xf32>
    %cst_47 = arith.constant dense<0xFF800000> : vector<24xf32>
    %83 = vector.multi_reduction <maximumf>, %82, %cst_47 [1] : vector<24x24xf32> to vector<24xf32>
    %84 = vector.shape_cast %83 : vector<24xf32> to vector<24x1xf32>
    %85 = vector.broadcast %84 : vector<24x1xf32> to vector<24x24xf32>
    %86 = arith.subf %82, %85 : vector<24x24xf32>
    %87 = math.exp %86 : vector<24x24xf32>
    %cst_48 = arith.constant dense<0.000000e+00> : vector<24xf32>
    %88 = vector.multi_reduction <add>, %87, %cst_48 [1] : vector<24x24xf32> to vector<24xf32>
    %89 = vector.shape_cast %88 : vector<24xf32> to vector<24x1xf32>
    %90 = tpu.reciprocal %89 {approx = true} : vector<24x1xf32> -> vector<24x1xf32>
    %91 = vector.broadcast %90 : vector<24x1xf32> to vector<24x24xf32>
    %92 = arith.mulf %87, %91 : vector<24x24xf32>
    %93 = arith.truncf %92 : vector<24x24xf32> to vector<24x24xbf16>
    %cst_49 = arith.constant dense<0.000000e+00> : vector<24x16xf32>
    %94 = tpu.matmul %93, %77, %cst_49 {dimension_numbers = #tpu.dot_dimension_numbers<[1], [0], [0], [1], [0, 0, 1, 1], [], []>} : vector<24x24xbf16>, vector<24x16xbf16>, vector<24x16xf32> -> vector<24x16xf32>
    %c0_50 = arith.constant 0 : index
    %c16 = arith.constant 16 : index
    %95 = vector.load %arg18[%c0_50, %c16] : memref<48x64xf32, #tpu.memory_space<vmem>>, vector<24x16xf32>
    tpu.vector_store %arg18[%c0_50, %c16], %94 {strides = array<i32>} : memref<48x64xf32, #tpu.memory_space<vmem>>, vector<24x16xf32>,
    %96 = vector.extract_strided_slice %44 {offsets = [0, 32], sizes = [24, 16], strides = [1, 1]} : vector<24x64xf32> to vector<24x16xf32>
    %97 = arith.truncf %96 : vector<24x16xf32> to vector<24x16xbf16>
    %98 = vector.extract_strided_slice %45 {offsets = [0, 32], sizes = [24, 16], strides = [1, 1]} : vector<24x64xf32> to vector<24x16xf32>
    %99 = arith.truncf %98 : vector<24x16xf32> to vector<24x16xbf16>
    %100 = vector.extract_strided_slice %46 {offsets = [0, 32], sizes = [24, 16], strides = [1, 1]} : vector<24x64xf32> to vector<24x16xf32>
    %101 = arith.truncf %100 : vector<24x16xf32> to vector<24x16xbf16>
    %cst_51 = arith.constant dense<0.000000e+00> : vector<24x24xf32>
    %102 = tpu.matmul %97, %99, %cst_51 {dimension_numbers = #tpu.dot_dimension_numbers<[1], [1], [0], [0], [0, 0, 1, 0], [], []>} : vector<24x16xbf16>, vector<24x16xbf16>, vector<24x24xf32> -> vector<24x24xf32>
    %cst_52 = arith.constant 2.500000e-01 : f32
    %103 = vector.broadcast %cst_52 : f32 to vector<24x24xf32>
    %104 = arith.mulf %102, %103 : vector<24x24xf32>
    %105 = vector.broadcast %47 : vector<1x24xf32> to vector<24x24xf32>
    %106 = arith.addf %104, %105 : vector<24x24xf32>
    %cst_53 = arith.constant dense<0xFF800000> : vector<24xf32>
    %107 = vector.multi_reduction <maximumf>, %106, %cst_53 [1] : vector<24x24xf32> to vector<24xf32>
    %108 = vector.shape_cast %107 : vector<24xf32> to vector<24x1xf32>
    %109 = vector.broadcast %108 : vector<24x1xf32> to vector<24x24xf32>
    %110 = arith.subf %106, %109 : vector<24x24xf32>
    %111 = math.exp %110 : vector<24x24xf32>
    %cst_54 = arith.constant dense<0.000000e+00> : vector<24xf32>
    %112 = vector.multi_reduction <add>, %111, %cst_54 [1] : vector<24x24xf32> to vector<24xf32>
    %113 = vector.shape_cast %112 : vector<24xf32> to vector<24x1xf32>
    %114 = tpu.reciprocal %113 {approx = true} : vector<24x1xf32> -> vector<24x1xf32>
    %115 = vector.broadcast %114 : vector<24x1xf32> to vector<24x24xf32>
    %116 = arith.mulf %111, %115 : vector<24x24xf32>
    %117 = arith.truncf %116 : vector<24x24xf32> to vector<24x24xbf16>
    %cst_55 = arith.constant dense<0.000000e+00> : vector<24x16xf32>
    %118 = tpu.matmul %117, %101, %cst_55 {dimension_numbers = #tpu.dot_dimension_numbers<[1], [0], [0], [1], [0, 0, 1, 1], [], []>} : vector<24x24xbf16>, vector<24x16xbf16>, vector<24x16xf32> -> vector<24x16xf32>
    %c0_56 = arith.constant 0 : index
    %c32 = arith.constant 32 : index
    %119 = vector.load %arg18[%c0_56, %c32] : memref<48x64xf32, #tpu.memory_space<vmem>>, vector<24x16xf32>
    tpu.vector_store %arg18[%c0_56, %c32], %118 {strides = array<i32>} : memref<48x64xf32, #tpu.memory_space<vmem>>, vector<24x16xf32>,
    %120 = vector.extract_strided_slice %44 {offsets = [0, 48], sizes = [24, 16], strides = [1, 1]} : vector<24x64xf32> to vector<24x16xf32>
    %121 = arith.truncf %120 : vector<24x16xf32> to vector<24x16xbf16>
    %122 = vector.extract_strided_slice %45 {offsets = [0, 48], sizes = [24, 16], strides = [1, 1]} : vector<24x64xf32> to vector<24x16xf32>
    %123 = arith.truncf %122 : vector<24x16xf32> to vector<24x16xbf16>
    %124 = vector.extract_strided_slice %46 {offsets = [0, 48], sizes = [24, 16], strides = [1, 1]} : vector<24x64xf32> to vector<24x16xf32>
    %125 = arith.truncf %124 : vector<24x16xf32> to vector<24x16xbf16>
    %cst_57 = arith.constant dense<0.000000e+00> : vector<24x24xf32>
    %126 = tpu.matmul %121, %123, %cst_57 {dimension_numbers = #tpu.dot_dimension_numbers<[1], [1], [0], [0], [0, 0, 1, 0], [], []>} : vector<24x16xbf16>, vector<24x16xbf16>, vector<24x24xf32> -> vector<24x24xf32>
    %cst_58 = arith.constant 2.500000e-01 : f32
    %127 = vector.broadcast %cst_58 : f32 to vector<24x24xf32>
    %128 = arith.mulf %126, %127 : vector<24x24xf32>
    %129 = vector.broadcast %47 : vector<1x24xf32> to vector<24x24xf32>
    %130 = arith.addf %128, %129 : vector<24x24xf32>
    %cst_59 = arith.constant dense<0xFF800000> : vector<24xf32>
    %131 = vector.multi_reduction <maximumf>, %130, %cst_59 [1] : vector<24x24xf32> to vector<24xf32>
    %132 = vector.shape_cast %131 : vector<24xf32> to vector<24x1xf32>
    %133 = vector.broadcast %132 : vector<24x1xf32> to vector<24x24xf32>
    %134 = arith.subf %130, %133 : vector<24x24xf32>
    %135 = math.exp %134 : vector<24x24xf32>
    %cst_60 = arith.constant dense<0.000000e+00> : vector<24xf32>
    %136 = vector.multi_reduction <add>, %135, %cst_60 [1] : vector<24x24xf32> to vector<24xf32>
    %137 = vector.shape_cast %136 : vector<24xf32> to vector<24x1xf32>
    %138 = tpu.reciprocal %137 {approx = true} : vector<24x1xf32> -> vector<24x1xf32>
    %139 = vector.broadcast %138 : vector<24x1xf32> to vector<24x24xf32>
    %140 = arith.mulf %135, %139 : vector<24x24xf32>
    %141 = arith.truncf %140 : vector<24x24xf32> to vector<24x24xbf16>
    %cst_61 = arith.constant dense<0.000000e+00> : vector<24x16xf32>
    %142 = tpu.matmul %141, %125, %cst_61 {dimension_numbers = #tpu.dot_dimension_numbers<[1], [0], [0], [1], [0, 0, 1, 1], [], []>} : vector<24x24xbf16>, vector<24x16xbf16>, vector<24x16xf32> -> vector<24x16xf32>
    %c0_62 = arith.constant 0 : index
    %c48 = arith.constant 48 : index
    %143 = vector.load %arg18[%c0_62, %c48] : memref<48x64xf32, #tpu.memory_space<vmem>>, vector<24x16xf32>
    tpu.vector_store %arg18[%c0_62, %c48], %142 {strides = array<i32>} : memref<48x64xf32, #tpu.memory_space<vmem>>, vector<24x16xf32>,
    %144 = vector.extract_strided_slice %43 {offsets = [24, 0], sizes = [24, 64], strides = [1, 1]} : vector<48x192xf32> to vector<24x64xf32>
    %145 = vector.extract_strided_slice %43 {offsets = [24, 64], sizes = [24, 64], strides = [1, 1]} : vector<48x192xf32> to vector<24x64xf32>
    %146 = vector.extract_strided_slice %43 {offsets = [24, 128], sizes = [24, 64], strides = [1, 1]} : vector<48x192xf32> to vector<24x64xf32>
    %147 = vector.extract_strided_slice %39 {offsets = [1, 0], sizes = [1, 24], strides = [1, 1]} : vector<2x24xf32> to vector<1x24xf32>
    %148 = vector.extract_strided_slice %144 {offsets = [0, 0], sizes = [24, 16], strides = [1, 1]} : vector<24x64xf32> to vector<24x16xf32>
    %149 = arith.truncf %148 : vector<24x16xf32> to vector<24x16xbf16>
    %150 = vector.extract_strided_slice %145 {offsets = [0, 0], sizes = [24, 16], strides = [1, 1]} : vector<24x64xf32> to vector<24x16xf32>
    %151 = arith.truncf %150 : vector<24x16xf32> to vector<24x16xbf16>
    %152 = vector.extract_strided_slice %146 {offsets = [0, 0], sizes = [24, 16], strides = [1, 1]} : vector<24x64xf32> to vector<24x16xf32>
    %153 = arith.truncf %152 : vector<24x16xf32> to vector<24x16xbf16>
    %cst_63 = arith.constant dense<0.000000e+00> : vector<24x24xf32>
    %154 = tpu.matmul %149, %151, %cst_63 {dimension_numbers = #tpu.dot_dimension_numbers<[1], [1], [0], [0], [0, 0, 1, 0], [], []>} : vector<24x16xbf16>, vector<24x16xbf16>, vector<24x24xf32> -> vector<24x24xf32>
    %cst_64 = arith.constant 2.500000e-01 : f32
    %155 = vector.broadcast %cst_64 : f32 to vector<24x24xf32>
    %156 = arith.mulf %154, %155 : vector<24x24xf32>
    %157 = vector.broadcast %147 : vector<1x24xf32> to vector<24x24xf32>
    %158 = arith.addf %156, %157 : vector<24x24xf32>
    %cst_65 = arith.constant dense<0xFF800000> : vector<24xf32>
    %159 = vector.multi_reduction <maximumf>, %158, %cst_65 [1] : vector<24x24xf32> to vector<24xf32>
    %160 = vector.shape_cast %159 : vector<24xf32> to vector<24x1xf32>
    %161 = vector.broadcast %160 : vector<24x1xf32> to vector<24x24xf32>
    %162 = arith.subf %158, %161 : vector<24x24xf32>
    %163 = math.exp %162 : vector<24x24xf32>
    %cst_66 = arith.constant dense<0.000000e+00> : vector<24xf32>
    %164 = vector.multi_reduction <add>, %163, %cst_66 [1] : vector<24x24xf32> to vector<24xf32>
    %165 = vector.shape_cast %164 : vector<24xf32> to vector<24x1xf32>
    %166 = tpu.reciprocal %165 {approx = true} : vector<24x1xf32> -> vector<24x1xf32>
    %167 = vector.broadcast %166 : vector<24x1xf32> to vector<24x24xf32>
    %168 = arith.mulf %163, %167 : vector<24x24xf32>
    %169 = arith.truncf %168 : vector<24x24xf32> to vector<24x24xbf16>
    %cst_67 = arith.constant dense<0.000000e+00> : vector<24x16xf32>
    %170 = tpu.matmul %169, %153, %cst_67 {dimension_numbers = #tpu.dot_dimension_numbers<[1], [0], [0], [1], [0, 0, 1, 1], [], []>} : vector<24x24xbf16>, vector<24x16xbf16>, vector<24x16xf32> -> vector<24x16xf32>
    %c24 = arith.constant 24 : index
    %c0_68 = arith.constant 0 : index
    %171 = vector.load %arg18[%c24, %c0_68] : memref<48x64xf32, #tpu.memory_space<vmem>>, vector<24x16xf32>
    tpu.vector_store %arg18[%c24, %c0_68], %170 {strides = array<i32>} : memref<48x64xf32, #tpu.memory_space<vmem>>, vector<24x16xf32>,
    %172 = vector.extract_strided_slice %144 {offsets = [0, 16], sizes = [24, 16], strides = [1, 1]} : vector<24x64xf32> to vector<24x16xf32>
    %173 = arith.truncf %172 : vector<24x16xf32> to vector<24x16xbf16>
    %174 = vector.extract_strided_slice %145 {offsets = [0, 16], sizes = [24, 16], strides = [1, 1]} : vector<24x64xf32> to vector<24x16xf32>
    %175 = arith.truncf %174 : vector<24x16xf32> to vector<24x16xbf16>
    %176 = vector.extract_strided_slice %146 {offsets = [0, 16], sizes = [24, 16], strides = [1, 1]} : vector<24x64xf32> to vector<24x16xf32>
    %177 = arith.truncf %176 : vector<24x16xf32> to vector<24x16xbf16>
    %cst_69 = arith.constant dense<0.000000e+00> : vector<24x24xf32>
    %178 = tpu.matmul %173, %175, %cst_69 {dimension_numbers = #tpu.dot_dimension_numbers<[1], [1], [0], [0], [0, 0, 1, 0], [], []>} : vector<24x16xbf16>, vector<24x16xbf16>, vector<24x24xf32> -> vector<24x24xf32>
    %cst_70 = arith.constant 2.500000e-01 : f32
    %179 = vector.broadcast %cst_70 : f32 to vector<24x24xf32>
    %180 = arith.mulf %178, %179 : vector<24x24xf32>
    %181 = vector.broadcast %147 : vector<1x24xf32> to vector<24x24xf32>
    %182 = arith.addf %180, %181 : vector<24x24xf32>
    %cst_71 = arith.constant dense<0xFF800000> : vector<24xf32>
    %183 = vector.multi_reduction <maximumf>, %182, %cst_71 [1] : vector<24x24xf32> to vector<24xf32>
    %184 = vector.shape_cast %183 : vector<24xf32> to vector<24x1xf32>
    %185 = vector.broadcast %184 : vector<24x1xf32> to vector<24x24xf32>
    %186 = arith.subf %182, %185 : vector<24x24xf32>
    %187 = math.exp %186 : vector<24x24xf32>
    %cst_72 = arith.constant dense<0.000000e+00> : vector<24xf32>
    %188 = vector.multi_reduction <add>, %187, %cst_72 [1] : vector<24x24xf32> to vector<24xf32>
    %189 = vector.shape_cast %188 : vector<24xf32> to vector<24x1xf32>
    %190 = tpu.reciprocal %189 {approx = true} : vector<24x1xf32> -> vector<24x1xf32>
    %191 = vector.broadcast %190 : vector<24x1xf32> to vector<24x24xf32>
    %192 = arith.mulf %187, %191 : vector<24x24xf32>
    %193 = arith.truncf %192 : vector<24x24xf32> to vector<24x24xbf16>
    %cst_73 = arith.constant dense<0.000000e+00> : vector<24x16xf32>
    %194 = tpu.matmul %193, %177, %cst_73 {dimension_numbers = #tpu.dot_dimension_numbers<[1], [0], [0], [1], [0, 0, 1, 1], [], []>} : vector<24x24xbf16>, vector<24x16xbf16>, vector<24x16xf32> -> vector<24x16xf32>
    %c24_74 = arith.constant 24 : index
    %c16_75 = arith.constant 16 : index
    %195 = vector.load %arg18[%c24_74, %c16_75] : memref<48x64xf32, #tpu.memory_space<vmem>>, vector<24x16xf32>
    tpu.vector_store %arg18[%c24_74, %c16_75], %194 {strides = array<i32>} : memref<48x64xf32, #tpu.memory_space<vmem>>, vector<24x16xf32>,
    %196 = vector.extract_strided_slice %144 {offsets = [0, 32], sizes = [24, 16], strides = [1, 1]} : vector<24x64xf32> to vector<24x16xf32>
    %197 = arith.truncf %196 : vector<24x16xf32> to vector<24x16xbf16>
    %198 = vector.extract_strided_slice %145 {offsets = [0, 32], sizes = [24, 16], strides = [1, 1]} : vector<24x64xf32> to vector<24x16xf32>
    %199 = arith.truncf %198 : vector<24x16xf32> to vector<24x16xbf16>
    %200 = vector.extract_strided_slice %146 {offsets = [0, 32], sizes = [24, 16], strides = [1, 1]} : vector<24x64xf32> to vector<24x16xf32>
    %201 = arith.truncf %200 : vector<24x16xf32> to vector<24x16xbf16>
    %cst_76 = arith.constant dense<0.000000e+00> : vector<24x24xf32>
    %202 = tpu.matmul %197, %199, %cst_76 {dimension_numbers = #tpu.dot_dimension_numbers<[1], [1], [0], [0], [0, 0, 1, 0], [], []>} : vector<24x16xbf16>, vector<24x16xbf16>, vector<24x24xf32> -> vector<24x24xf32>
    %cst_77 = arith.constant 2.500000e-01 : f32
    %203 = vector.broadcast %cst_77 : f32 to vector<24x24xf32>
    %204 = arith.mulf %202, %203 : vector<24x24xf32>
    %205 = vector.broadcast %147 : vector<1x24xf32> to vector<24x24xf32>
    %206 = arith.addf %204, %205 : vector<24x24xf32>
    %cst_78 = arith.constant dense<0xFF800000> : vector<24xf32>
    %207 = vector.multi_reduction <maximumf>, %206, %cst_78 [1] : vector<24x24xf32> to vector<24xf32>
    %208 = vector.shape_cast %207 : vector<24xf32> to vector<24x1xf32>
    %209 = vector.broadcast %208 : vector<24x1xf32> to vector<24x24xf32>
    %210 = arith.subf %206, %209 : vector<24x24xf32>
    %211 = math.exp %210 : vector<24x24xf32>
    %cst_79 = arith.constant dense<0.000000e+00> : vector<24xf32>
    %212 = vector.multi_reduction <add>, %211, %cst_79 [1] : vector<24x24xf32> to vector<24xf32>
    %213 = vector.shape_cast %212 : vector<24xf32> to vector<24x1xf32>
    %214 = tpu.reciprocal %213 {approx = true} : vector<24x1xf32> -> vector<24x1xf32>
    %215 = vector.broadcast %214 : vector<24x1xf32> to vector<24x24xf32>
    %216 = arith.mulf %211, %215 : vector<24x24xf32>
    %217 = arith.truncf %216 : vector<24x24xf32> to vector<24x24xbf16>
    %cst_80 = arith.constant dense<0.000000e+00> : vector<24x16xf32>
    %218 = tpu.matmul %217, %201, %cst_80 {dimension_numbers = #tpu.dot_dimension_numbers<[1], [0], [0], [1], [0, 0, 1, 1], [], []>} : vector<24x24xbf16>, vector<24x16xbf16>, vector<24x16xf32> -> vector<24x16xf32>
    %c24_81 = arith.constant 24 : index
    %c32_82 = arith.constant 32 : index
    %219 = vector.load %arg18[%c24_81, %c32_82] : memref<48x64xf32, #tpu.memory_space<vmem>>, vector<24x16xf32>
    tpu.vector_store %arg18[%c24_81, %c32_82], %218 {strides = array<i32>} : memref<48x64xf32, #tpu.memory_space<vmem>>, vector<24x16xf32>,
    %220 = vector.extract_strided_slice %144 {offsets = [0, 48], sizes = [24, 16], strides = [1, 1]} : vector<24x64xf32> to vector<24x16xf32>
    %221 = arith.truncf %220 : vector<24x16xf32> to vector<24x16xbf16>
    %222 = vector.extract_strided_slice %145 {offsets = [0, 48], sizes = [24, 16], strides = [1, 1]} : vector<24x64xf32> to vector<24x16xf32>
    %223 = arith.truncf %222 : vector<24x16xf32> to vector<24x16xbf16>
    %224 = vector.extract_strided_slice %146 {offsets = [0, 48], sizes = [24, 16], strides = [1, 1]} : vector<24x64xf32> to vector<24x16xf32>
    %225 = arith.truncf %224 : vector<24x16xf32> to vector<24x16xbf16>
    %cst_83 = arith.constant dense<0.000000e+00> : vector<24x24xf32>
    %226 = tpu.matmul %221, %223, %cst_83 {dimension_numbers = #tpu.dot_dimension_numbers<[1], [1], [0], [0], [0, 0, 1, 0], [], []>} : vector<24x16xbf16>, vector<24x16xbf16>, vector<24x24xf32> -> vector<24x24xf32>
    %cst_84 = arith.constant 2.500000e-01 : f32
    %227 = vector.broadcast %cst_84 : f32 to vector<24x24xf32>
    %228 = arith.mulf %226, %227 : vector<24x24xf32>
    %229 = vector.broadcast %147 : vector<1x24xf32> to vector<24x24xf32>
    %230 = arith.addf %228, %229 : vector<24x24xf32>
    %cst_85 = arith.constant dense<0xFF800000> : vector<24xf32>
    %231 = vector.multi_reduction <maximumf>, %230, %cst_85 [1] : vector<24x24xf32> to vector<24xf32>
    %232 = vector.shape_cast %231 : vector<24xf32> to vector<24x1xf32>
    %233 = vector.broadcast %232 : vector<24x1xf32> to vector<24x24xf32>
    %234 = arith.subf %230, %233 : vector<24x24xf32>
    %235 = math.exp %234 : vector<24x24xf32>
    %cst_86 = arith.constant dense<0.000000e+00> : vector<24xf32>
    %236 = vector.multi_reduction <add>, %235, %cst_86 [1] : vector<24x24xf32> to vector<24xf32>
    %237 = vector.shape_cast %236 : vector<24xf32> to vector<24x1xf32>
    %238 = tpu.reciprocal %237 {approx = true} : vector<24x1xf32> -> vector<24x1xf32>
    %239 = vector.broadcast %238 : vector<24x1xf32> to vector<24x24xf32>
    %240 = arith.mulf %235, %239 : vector<24x24xf32>
    %241 = arith.truncf %240 : vector<24x24xf32> to vector<24x24xbf16>
    %cst_87 = arith.constant dense<0.000000e+00> : vector<24x16xf32>
    %242 = tpu.matmul %241, %225, %cst_87 {dimension_numbers = #tpu.dot_dimension_numbers<[1], [0], [0], [1], [0, 0, 1, 1], [], []>} : vector<24x24xbf16>, vector<24x16xbf16>, vector<24x16xf32> -> vector<24x16xf32>
    %c24_88 = arith.constant 24 : index
    %c48_89 = arith.constant 48 : index
    %243 = vector.load %arg18[%c24_88, %c48_89] : memref<48x64xf32, #tpu.memory_space<vmem>>, vector<24x16xf32>
    tpu.vector_store %arg18[%c24_88, %c48_89], %242 {strides = array<i32>} : memref<48x64xf32, #tpu.memory_space<vmem>>, vector<24x16xf32>,
    %c0_90 = arith.constant 0 : index
    %c0_91 = arith.constant 0 : index
    %244 = vector.load %arg18[%c0_90, %c0_91] : memref<48x64xf32, #tpu.memory_space<vmem>>, vector<48x64xf32>
    %245 = arith.truncf %244 : vector<48x64xf32> to vector<48x64xbf16>
    %cst_92 = arith.constant dense<0.000000e+00> : vector<48x64xf32>
    %246 = tpu.matmul %245, %29, %cst_92 {dimension_numbers = #tpu.dot_dimension_numbers<[1], [0], [0], [1], [0, 0, 1, 1], [], []>} : vector<48x64xbf16>, vector<64x64xbf16>, vector<48x64xf32> -> vector<48x64xf32>
    %247 = vector.broadcast %30 : vector<1x64xf32> to vector<48x64xf32>
    %248 = arith.addf %246, %247 : vector<48x64xf32>
    %249 = arith.addf %26, %248 : vector<48x64xf32>
    %cst_93 = arith.constant dense<0.000000e+00> : vector<48xf32>
    %250 = vector.multi_reduction <add>, %249, %cst_93 [1] : vector<48x64xf32> to vector<48xf32>
    %251 = vector.shape_cast %250 : vector<48xf32> to vector<48x1xf32>
    %cst_94 = arith.constant 6.400000e+01 : f32
    %252 = vector.broadcast %cst_94 : f32 to vector<48x1xf32>
    %253 = arith.divf %251, %252 : vector<48x1xf32>
    %254 = vector.broadcast %253 : vector<48x1xf32> to vector<48x64xf32>
    %255 = arith.subf %249, %254 : vector<48x64xf32>
    %256 = arith.mulf %255, %255 : vector<48x64xf32>
    %cst_95 = arith.constant dense<0.000000e+00> : vector<48xf32>
    %257 = vector.multi_reduction <add>, %256, %cst_95 [1] : vector<48x64xf32> to vector<48xf32>
    %258 = vector.shape_cast %257 : vector<48xf32> to vector<48x1xf32>
    %cst_96 = arith.constant 6.400000e+01 : f32
    %259 = vector.broadcast %cst_96 : f32 to vector<48x1xf32>
    %260 = arith.divf %258, %259 : vector<48x1xf32>
    %261 = vector.broadcast %253 : vector<48x1xf32> to vector<48x64xf32>
    %262 = arith.subf %249, %261 : vector<48x64xf32>
    %cst_97 = arith.constant 9.99999996E-13 : f32
    %263 = vector.broadcast %cst_97 : f32 to vector<48x1xf32>
    %264 = arith.addf %260, %263 : vector<48x1xf32>
    %265 = math.rsqrt %264 : vector<48x1xf32>
    %266 = vector.broadcast %265 : vector<48x1xf32> to vector<48x64xf32>
    %267 = arith.mulf %262, %266 : vector<48x64xf32>
    %268 = vector.broadcast %31 : vector<1x64xf32> to vector<48x64xf32>
    %269 = arith.mulf %267, %268 : vector<48x64xf32>
    %270 = vector.broadcast %32 : vector<1x64xf32> to vector<48x64xf32>
    %271 = arith.addf %269, %270 : vector<48x64xf32>
    %272 = arith.truncf %271 : vector<48x64xf32> to vector<48x64xbf16>
    %cst_98 = arith.constant dense<0.000000e+00> : vector<48x128xf32>
    %273 = tpu.matmul %272, %33, %cst_98 {dimension_numbers = #tpu.dot_dimension_numbers<[1], [0], [0], [1], [0, 0, 1, 1], [], []>} : vector<48x64xbf16>, vector<64x128xbf16>, vector<48x128xf32> -> vector<48x128xf32>
    %274 = vector.broadcast %34 : vector<1x128xf32> to vector<48x128xf32>
    %275 = arith.addf %273, %274 : vector<48x128xf32>
    %276 = arith.mulf %275, %275 : vector<48x128xf32>
    %277 = arith.mulf %275, %276 : vector<48x128xf32>
    %cst_99 = arith.constant 4.471500e-02 : f32
    %278 = vector.broadcast %cst_99 : f32 to vector<48x128xf32>
    %279 = arith.mulf %278, %277 : vector<48x128xf32>
    %280 = arith.addf %275, %279 : vector<48x128xf32>
    %cst_100 = arith.constant 0.797884583 : f32
    %281 = vector.broadcast %cst_100 : f32 to vector<48x128xf32>
    %282 = arith.mulf %281, %280 : vector<48x128xf32>
    %283 = math.tanh %282 : vector<48x128xf32>
    %cst_101 = arith.constant 1.000000e+00 : f32
    %284 = vector.broadcast %cst_101 : f32 to vector<48x128xf32>
    %285 = arith.addf %284, %283 : vector<48x128xf32>
    %cst_102 = arith.constant 5.000000e-01 : f32
    %286 = vector.broadcast %cst_102 : f32 to vector<48x128xf32>
    %287 = arith.mulf %286, %285 : vector<48x128xf32>
    %288 = arith.mulf %275, %287 : vector<48x128xf32>
    %289 = arith.truncf %288 : vector<48x128xf32> to vector<48x128xbf16>
    %cst_103 = arith.constant dense<0.000000e+00> : vector<48x64xf32>
    %290 = tpu.matmul %289, %35, %cst_103 {dimension_numbers = #tpu.dot_dimension_numbers<[1], [0], [0], [1], [0, 0, 1, 1], [], []>} : vector<48x128xbf16>, vector<128x64xbf16>, vector<48x64xf32> -> vector<48x64xf32>
    %291 = vector.broadcast %36 : vector<1x64xf32> to vector<48x64xf32>
    %292 = arith.addf %290, %291 : vector<48x64xf32>
    %293 = arith.addf %271, %292 : vector<48x64xf32>
    %cst_104 = arith.constant dense<0.000000e+00> : vector<48xf32>
    %294 = vector.multi_reduction <add>, %293, %cst_104 [1] : vector<48x64xf32> to vector<48xf32>
    %295 = vector.shape_cast %294 : vector<48xf32> to vector<48x1xf32>
    %cst_105 = arith.constant 6.400000e+01 : f32
    %296 = vector.broadcast %cst_105 : f32 to vector<48x1xf32>
    %297 = arith.divf %295, %296 : vector<48x1xf32>
    %298 = vector.broadcast %297 : vector<48x1xf32> to vector<48x64xf32>
    %299 = arith.subf %293, %298 : vector<48x64xf32>
    %300 = arith.mulf %299, %299 : vector<48x64xf32>
    %cst_106 = arith.constant dense<0.000000e+00> : vector<48xf32>
    %301 = vector.multi_reduction <add>, %300, %cst_106 [1] : vector<48x64xf32> to vector<48xf32>
    %302 = vector.shape_cast %301 : vector<48xf32> to vector<48x1xf32>
    %cst_107 = arith.constant 6.400000e+01 : f32
    %303 = vector.broadcast %cst_107 : f32 to vector<48x1xf32>
    %304 = arith.divf %302, %303 : vector<48x1xf32>
    %305 = vector.broadcast %297 : vector<48x1xf32> to vector<48x64xf32>
    %306 = arith.subf %293, %305 : vector<48x64xf32>
    %cst_108 = arith.constant 9.99999996E-13 : f32
    %307 = vector.broadcast %cst_108 : f32 to vector<48x1xf32>
    %308 = arith.addf %304, %307 : vector<48x1xf32>
    %309 = math.rsqrt %308 : vector<48x1xf32>
    %310 = vector.broadcast %309 : vector<48x1xf32> to vector<48x64xf32>
    %311 = arith.mulf %306, %310 : vector<48x64xf32>
    %312 = vector.broadcast %37 : vector<1x64xf32> to vector<48x64xf32>
    %313 = arith.mulf %311, %312 : vector<48x64xf32>
    %314 = vector.broadcast %38 : vector<1x64xf32> to vector<48x64xf32>
    %315 = arith.addf %313, %314 : vector<48x64xf32>
    %c0_109 = arith.constant 0 : index
    %c0_110 = arith.constant 0 : index
    %316 = vector.load %arg17[%c0_109, %c0_110] : memref<48x64xf32, #tpu.memory_space<vmem>>, vector<48x64xf32>
    tpu.vector_store %arg17[%c0_109, %c0_110], %315 {strides = array<i32>} : memref<48x64xf32, #tpu.memory_space<vmem>>, vector<48x64xf32>,
    return
  }
}

module attributes {stable_mosaic.version = 11 : i64} {
  func.func @_fused_layer_kernel(%arg0: memref<16x24xf32, #tpu.memory_space<vmem>>, %arg1: memref<24x32xbf16, #tpu.memory_space<vmem>>, %arg2: memref<1x32xf32, #tpu.memory_space<vmem>>, %arg3: memref<16x32xf32, #tpu.memory_space<vmem>>, %arg4: memref<1x32xf32, #tpu.memory_space<vmem>>, %arg5: memref<1x32xf32, #tpu.memory_space<vmem>>, %arg6: memref<2x8xf32, #tpu.memory_space<vmem>>, %arg7: memref<32x96xbf16, #tpu.memory_space<vmem>>, %arg8: memref<1x96xf32, #tpu.memory_space<vmem>>, %arg9: memref<32x32xbf16, #tpu.memory_space<vmem>>, %arg10: memref<1x32xf32, #tpu.memory_space<vmem>>, %arg11: memref<1x32xf32, #tpu.memory_space<vmem>>, %arg12: memref<1x32xf32, #tpu.memory_space<vmem>>, %arg13: memref<32x64xbf16, #tpu.memory_space<vmem>>, %arg14: memref<1x64xf32, #tpu.memory_space<vmem>>, %arg15: memref<64x32xbf16, #tpu.memory_space<vmem>>, %arg16: memref<1x32xf32, #tpu.memory_space<vmem>>, %arg17: memref<1x32xf32, #tpu.memory_space<vmem>>, %arg18: memref<1x32xf32, #tpu.memory_space<vmem>>, %arg19: memref<16x32xf32, #tpu.memory_space<vmem>>, %arg20: memref<16x32xf32, #tpu.memory_space<vmem>>) attributes {dimension_semantics = [], scalar_prefetch = 0 : i64, scratch_operands = 1 : i64, tpu.core_type = #tpu.core_type<tc>} {
    %c0 = arith.constant 0 : index
    %c0_0 = arith.constant 0 : index
    %0 = vector.load %arg0[%c0, %c0_0] : memref<16x24xf32, #tpu.memory_space<vmem>>, vector<16x24xf32>
    %1 = arith.truncf %0 : vector<16x24xf32> to vector<16x24xbf16>
    %c0_1 = arith.constant 0 : index
    %c0_2 = arith.constant 0 : index
    %2 = vector.load %arg1[%c0_1, %c0_2] : memref<24x32xbf16, #tpu.memory_space<vmem>>, vector<24x32xbf16>
    %cst = arith.constant dense<0.000000e+00> : vector<16x32xf32>
    %3 = tpu.matmul %1, %2, %cst {dimension_numbers = #tpu.dot_dimension_numbers<[1], [0], [0], [1], [0, 0, 1, 1], [], []>} : vector<16x24xbf16>, vector<24x32xbf16>, vector<16x32xf32> -> vector<16x32xf32>
    %c0_3 = arith.constant 0 : index
    %c0_4 = arith.constant 0 : index
    %4 = vector.load %arg2[%c0_3, %c0_4] : memref<1x32xf32, #tpu.memory_space<vmem>>, vector<1x32xf32>
    %5 = vector.broadcast %4 : vector<1x32xf32> to vector<16x32xf32>
    %6 = arith.addf %3, %5 : vector<16x32xf32>
    %c0_5 = arith.constant 0 : index
    %c0_6 = arith.constant 0 : index
    %7 = vector.load %arg3[%c0_5, %c0_6] : memref<16x32xf32, #tpu.memory_space<vmem>>, vector<16x32xf32>
    %8 = arith.addf %6, %7 : vector<16x32xf32>
    %c0_7 = arith.constant 0 : index
    %c0_8 = arith.constant 0 : index
    %9 = vector.load %arg4[%c0_7, %c0_8] : memref<1x32xf32, #tpu.memory_space<vmem>>, vector<1x32xf32>
    %c0_9 = arith.constant 0 : index
    %c0_10 = arith.constant 0 : index
    %10 = vector.load %arg5[%c0_9, %c0_10] : memref<1x32xf32, #tpu.memory_space<vmem>>, vector<1x32xf32>
    %cst_11 = arith.constant dense<0.000000e+00> : vector<16xf32>
    %11 = vector.multi_reduction <add>, %8, %cst_11 [1] : vector<16x32xf32> to vector<16xf32>
    %12 = vector.shape_cast %11 : vector<16xf32> to vector<16x1xf32>
    %cst_12 = arith.constant 3.200000e+01 : f32
    %13 = vector.broadcast %cst_12 : f32 to vector<16x1xf32>
    %14 = arith.divf %12, %13 : vector<16x1xf32>
    %15 = vector.broadcast %14 : vector<16x1xf32> to vector<16x32xf32>
    %16 = arith.subf %8, %15 : vector<16x32xf32>
    %17 = arith.mulf %16, %16 : vector<16x32xf32>
    %cst_13 = arith.constant dense<0.000000e+00> : vector<16xf32>
    %18 = vector.multi_reduction <add>, %17, %cst_13 [1] : vector<16x32xf32> to vector<16xf32>
    %19 = vector.shape_cast %18 : vector<16xf32> to vector<16x1xf32>
    %cst_14 = arith.constant 3.200000e+01 : f32
    %20 = vector.broadcast %cst_14 : f32 to vector<16x1xf32>
    %21 = arith.divf %19, %20 : vector<16x1xf32>
    %22 = vector.broadcast %14 : vector<16x1xf32> to vector<16x32xf32>
    %23 = arith.subf %8, %22 : vector<16x32xf32>
    %cst_15 = arith.constant 9.99999996E-13 : f32
    %24 = vector.broadcast %cst_15 : f32 to vector<16x1xf32>
    %25 = arith.addf %21, %24 : vector<16x1xf32>
    %26 = math.rsqrt %25 : vector<16x1xf32>
    %27 = vector.broadcast %26 : vector<16x1xf32> to vector<16x32xf32>
    %28 = arith.mulf %23, %27 : vector<16x32xf32>
    %29 = vector.broadcast %9 : vector<1x32xf32> to vector<16x32xf32>
    %30 = arith.mulf %28, %29 : vector<16x32xf32>
    %31 = vector.broadcast %10 : vector<1x32xf32> to vector<16x32xf32>
    %32 = arith.addf %30, %31 : vector<16x32xf32>
    %c0_16 = arith.constant 0 : index
    %c0_17 = arith.constant 0 : index
    %33 = vector.load %arg7[%c0_16, %c0_17] : memref<32x96xbf16, #tpu.memory_space<vmem>>, vector<32x96xbf16>
    %c0_18 = arith.constant 0 : index
    %c0_19 = arith.constant 0 : index
    %34 = vector.load %arg8[%c0_18, %c0_19] : memref<1x96xf32, #tpu.memory_space<vmem>>, vector<1x96xf32>
    %c0_20 = arith.constant 0 : index
    %c0_21 = arith.constant 0 : index
    %35 = vector.load %arg9[%c0_20, %c0_21] : memref<32x32xbf16, #tpu.memory_space<vmem>>, vector<32x32xbf16>
    %c0_22 = arith.constant 0 : index
    %c0_23 = arith.constant 0 : index
    %36 = vector.load %arg10[%c0_22, %c0_23] : memref<1x32xf32, #tpu.memory_space<vmem>>, vector<1x32xf32>
    %c0_24 = arith.constant 0 : index
    %c0_25 = arith.constant 0 : index
    %37 = vector.load %arg11[%c0_24, %c0_25] : memref<1x32xf32, #tpu.memory_space<vmem>>, vector<1x32xf32>
    %c0_26 = arith.constant 0 : index
    %c0_27 = arith.constant 0 : index
    %38 = vector.load %arg12[%c0_26, %c0_27] : memref<1x32xf32, #tpu.memory_space<vmem>>, vector<1x32xf32>
    %c0_28 = arith.constant 0 : index
    %c0_29 = arith.constant 0 : index
    %39 = vector.load %arg13[%c0_28, %c0_29] : memref<32x64xbf16, #tpu.memory_space<vmem>>, vector<32x64xbf16>
    %c0_30 = arith.constant 0 : index
    %c0_31 = arith.constant 0 : index
    %40 = vector.load %arg14[%c0_30, %c0_31] : memref<1x64xf32, #tpu.memory_space<vmem>>, vector<1x64xf32>
    %c0_32 = arith.constant 0 : index
    %c0_33 = arith.constant 0 : index
    %41 = vector.load %arg15[%c0_32, %c0_33] : memref<64x32xbf16, #tpu.memory_space<vmem>>, vector<64x32xbf16>
    %c0_34 = arith.constant 0 : index
    %c0_35 = arith.constant 0 : index
    %42 = vector.load %arg16[%c0_34, %c0_35] : memref<1x32xf32, #tpu.memory_space<vmem>>, vector<1x32xf32>
    %c0_36 = arith.constant 0 : index
    %c0_37 = arith.constant 0 : index
    %43 = vector.load %arg17[%c0_36, %c0_37] : memref<1x32xf32, #tpu.memory_space<vmem>>, vector<1x32xf32>
    %c0_38 = arith.constant 0 : index
    %c0_39 = arith.constant 0 : index
    %44 = vector.load %arg18[%c0_38, %c0_39] : memref<1x32xf32, #tpu.memory_space<vmem>>, vector<1x32xf32>
    %c0_40 = arith.constant 0 : index
    %c0_41 = arith.constant 0 : index
    %45 = vector.load %arg6[%c0_40, %c0_41] : memref<2x8xf32, #tpu.memory_space<vmem>>, vector<2x8xf32>
    %46 = arith.truncf %32 : vector<16x32xf32> to vector<16x32xbf16>
    %cst_42 = arith.constant dense<0.000000e+00> : vector<16x96xf32>
    %47 = tpu.matmul %46, %33, %cst_42 {dimension_numbers = #tpu.dot_dimension_numbers<[1], [0], [0], [1], [0, 0, 1, 1], [], []>} : vector<16x32xbf16>, vector<32x96xbf16>, vector<16x96xf32> -> vector<16x96xf32>
    %48 = vector.broadcast %34 : vector<1x96xf32> to vector<16x96xf32>
    %49 = arith.addf %47, %48 : vector<16x96xf32>
    %50 = vector.extract_strided_slice %49 {offsets = [0, 0], sizes = [8, 32], strides = [1, 1]} : vector<16x96xf32> to vector<8x32xf32>
    %51 = vector.extract_strided_slice %49 {offsets = [0, 32], sizes = [8, 32], strides = [1, 1]} : vector<16x96xf32> to vector<8x32xf32>
    %52 = vector.extract_strided_slice %49 {offsets = [0, 64], sizes = [8, 32], strides = [1, 1]} : vector<16x96xf32> to vector<8x32xf32>
    %53 = vector.extract_strided_slice %45 {offsets = [0, 0], sizes = [1, 8], strides = [1, 1]} : vector<2x8xf32> to vector<1x8xf32>
    %54 = vector.extract_strided_slice %50 {offsets = [0, 0], sizes = [8, 8], strides = [1, 1]} : vector<8x32xf32> to vector<8x8xf32>
    %55 = arith.truncf %54 : vector<8x8xf32> to vector<8x8xbf16>
    %56 = vector.extract_strided_slice %51 {offsets = [0, 0], sizes = [8, 8], strides = [1, 1]} : vector<8x32xf32> to vector<8x8xf32>
    %57 = arith.truncf %56 : vector<8x8xf32> to vector<8x8xbf16>
    %58 = vector.extract_strided_slice %52 {offsets = [0, 0], sizes = [8, 8], strides = [1, 1]} : vector<8x32xf32> to vector<8x8xf32>
    %59 = arith.truncf %58 : vector<8x8xf32> to vector<8x8xbf16>
    %cst_43 = arith.constant dense<0.000000e+00> : vector<8x8xf32>
    %60 = tpu.matmul %55, %57, %cst_43 {dimension_numbers = #tpu.dot_dimension_numbers<[1], [1], [0], [0], [0, 0, 1, 0], [], []>} : vector<8x8xbf16>, vector<8x8xbf16>, vector<8x8xf32> -> vector<8x8xf32>
    %cst_44 = arith.constant 0.353553385 : f32
    %61 = vector.broadcast %cst_44 : f32 to vector<8x8xf32>
    %62 = arith.mulf %60, %61 : vector<8x8xf32>
    %63 = vector.broadcast %53 : vector<1x8xf32> to vector<8x8xf32>
    %64 = arith.addf %62, %63 : vector<8x8xf32>
    %cst_45 = arith.constant dense<0xFF800000> : vector<8xf32>
    %65 = vector.multi_reduction <maximumf>, %64, %cst_45 [1] : vector<8x8xf32> to vector<8xf32>
    %66 = vector.shape_cast %65 : vector<8xf32> to vector<8x1xf32>
    %67 = vector.broadcast %66 : vector<8x1xf32> to vector<8x8xf32>
    %68 = arith.subf %64, %67 : vector<8x8xf32>
    %69 = math.exp %68 : vector<8x8xf32>
    %cst_46 = arith.constant dense<0.000000e+00> : vector<8xf32>
    %70 = vector.multi_reduction <add>, %69, %cst_46 [1] : vector<8x8xf32> to vector<8xf32>
    %71 = vector.shape_cast %70 : vector<8xf32> to vector<8x1xf32>
    %72 = tpu.reciprocal %71 {approx = true} : vector<8x1xf32> -> vector<8x1xf32>
    %73 = vector.broadcast %72 : vector<8x1xf32> to vector<8x8xf32>
    %74 = arith.mulf %69, %73 : vector<8x8xf32>
    %75 = arith.truncf %74 : vector<8x8xf32> to vector<8x8xbf16>
    %cst_47 = arith.constant dense<0.000000e+00> : vector<8x8xf32>
    %76 = tpu.matmul %75, %59, %cst_47 {dimension_numbers = #tpu.dot_dimension_numbers<[1], [0], [0], [1], [0, 0, 1, 1], [], []>} : vector<8x8xbf16>, vector<8x8xbf16>, vector<8x8xf32> -> vector<8x8xf32>
    %c0_48 = arith.constant 0 : index
    %c0_49 = arith.constant 0 : index
    %77 = vector.load %arg20[%c0_48, %c0_49] : memref<16x32xf32, #tpu.memory_space<vmem>>, vector<8x8xf32>
    tpu.vector_store %arg20[%c0_48, %c0_49], %76 {strides = array<i32>} : memref<16x32xf32, #tpu.memory_space<vmem>>, vector<8x8xf32>,
    %78 = vector.extract_strided_slice %50 {offsets = [0, 8], sizes = [8, 8], strides = [1, 1]} : vector<8x32xf32> to vector<8x8xf32>
    %79 = arith.truncf %78 : vector<8x8xf32> to vector<8x8xbf16>
    %80 = vector.extract_strided_slice %51 {offsets = [0, 8], sizes = [8, 8], strides = [1, 1]} : vector<8x32xf32> to vector<8x8xf32>
    %81 = arith.truncf %80 : vector<8x8xf32> to vector<8x8xbf16>
    %82 = vector.extract_strided_slice %52 {offsets = [0, 8], sizes = [8, 8], strides = [1, 1]} : vector<8x32xf32> to vector<8x8xf32>
    %83 = arith.truncf %82 : vector<8x8xf32> to vector<8x8xbf16>
    %cst_50 = arith.constant dense<0.000000e+00> : vector<8x8xf32>
    %84 = tpu.matmul %79, %81, %cst_50 {dimension_numbers = #tpu.dot_dimension_numbers<[1], [1], [0], [0], [0, 0, 1, 0], [], []>} : vector<8x8xbf16>, vector<8x8xbf16>, vector<8x8xf32> -> vector<8x8xf32>
    %cst_51 = arith.constant 0.353553385 : f32
    %85 = vector.broadcast %cst_51 : f32 to vector<8x8xf32>
    %86 = arith.mulf %84, %85 : vector<8x8xf32>
    %87 = vector.broadcast %53 : vector<1x8xf32> to vector<8x8xf32>
    %88 = arith.addf %86, %87 : vector<8x8xf32>
    %cst_52 = arith.constant dense<0xFF800000> : vector<8xf32>
    %89 = vector.multi_reduction <maximumf>, %88, %cst_52 [1] : vector<8x8xf32> to vector<8xf32>
    %90 = vector.shape_cast %89 : vector<8xf32> to vector<8x1xf32>
    %91 = vector.broadcast %90 : vector<8x1xf32> to vector<8x8xf32>
    %92 = arith.subf %88, %91 : vector<8x8xf32>
    %93 = math.exp %92 : vector<8x8xf32>
    %cst_53 = arith.constant dense<0.000000e+00> : vector<8xf32>
    %94 = vector.multi_reduction <add>, %93, %cst_53 [1] : vector<8x8xf32> to vector<8xf32>
    %95 = vector.shape_cast %94 : vector<8xf32> to vector<8x1xf32>
    %96 = tpu.reciprocal %95 {approx = true} : vector<8x1xf32> -> vector<8x1xf32>
    %97 = vector.broadcast %96 : vector<8x1xf32> to vector<8x8xf32>
    %98 = arith.mulf %93, %97 : vector<8x8xf32>
    %99 = arith.truncf %98 : vector<8x8xf32> to vector<8x8xbf16>
    %cst_54 = arith.constant dense<0.000000e+00> : vector<8x8xf32>
    %100 = tpu.matmul %99, %83, %cst_54 {dimension_numbers = #tpu.dot_dimension_numbers<[1], [0], [0], [1], [0, 0, 1, 1], [], []>} : vector<8x8xbf16>, vector<8x8xbf16>, vector<8x8xf32> -> vector<8x8xf32>
    %c0_55 = arith.constant 0 : index
    %c8 = arith.constant 8 : index
    %101 = vector.load %arg20[%c0_55, %c8] : memref<16x32xf32, #tpu.memory_space<vmem>>, vector<8x8xf32>
    tpu.vector_store %arg20[%c0_55, %c8], %100 {strides = array<i32>} : memref<16x32xf32, #tpu.memory_space<vmem>>, vector<8x8xf32>,
    %102 = vector.extract_strided_slice %50 {offsets = [0, 16], sizes = [8, 8], strides = [1, 1]} : vector<8x32xf32> to vector<8x8xf32>
    %103 = arith.truncf %102 : vector<8x8xf32> to vector<8x8xbf16>
    %104 = vector.extract_strided_slice %51 {offsets = [0, 16], sizes = [8, 8], strides = [1, 1]} : vector<8x32xf32> to vector<8x8xf32>
    %105 = arith.truncf %104 : vector<8x8xf32> to vector<8x8xbf16>
    %106 = vector.extract_strided_slice %52 {offsets = [0, 16], sizes = [8, 8], strides = [1, 1]} : vector<8x32xf32> to vector<8x8xf32>
    %107 = arith.truncf %106 : vector<8x8xf32> to vector<8x8xbf16>
    %cst_56 = arith.constant dense<0.000000e+00> : vector<8x8xf32>
    %108 = tpu.matmul %103, %105, %cst_56 {dimension_numbers = #tpu.dot_dimension_numbers<[1], [1], [0], [0], [0, 0, 1, 0], [], []>} : vector<8x8xbf16>, vector<8x8xbf16>, vector<8x8xf32> -> vector<8x8xf32>
    %cst_57 = arith.constant 0.353553385 : f32
    %109 = vector.broadcast %cst_57 : f32 to vector<8x8xf32>
    %110 = arith.mulf %108, %109 : vector<8x8xf32>
    %111 = vector.broadcast %53 : vector<1x8xf32> to vector<8x8xf32>
    %112 = arith.addf %110, %111 : vector<8x8xf32>
    %cst_58 = arith.constant dense<0xFF800000> : vector<8xf32>
    %113 = vector.multi_reduction <maximumf>, %112, %cst_58 [1] : vector<8x8xf32> to vector<8xf32>
    %114 = vector.shape_cast %113 : vector<8xf32> to vector<8x1xf32>
    %115 = vector.broadcast %114 : vector<8x1xf32> to vector<8x8xf32>
    %116 = arith.subf %112, %115 : vector<8x8xf32>
    %117 = math.exp %116 : vector<8x8xf32>
    %cst_59 = arith.constant dense<0.000000e+00> : vector<8xf32>
    %118 = vector.multi_reduction <add>, %117, %cst_59 [1] : vector<8x8xf32> to vector<8xf32>
    %119 = vector.shape_cast %118 : vector<8xf32> to vector<8x1xf32>
    %120 = tpu.reciprocal %119 {approx = true} : vector<8x1xf32> -> vector<8x1xf32>
    %121 = vector.broadcast %120 : vector<8x1xf32> to vector<8x8xf32>
    %122 = arith.mulf %117, %121 : vector<8x8xf32>
    %123 = arith.truncf %122 : vector<8x8xf32> to vector<8x8xbf16>
    %cst_60 = arith.constant dense<0.000000e+00> : vector<8x8xf32>
    %124 = tpu.matmul %123, %107, %cst_60 {dimension_numbers = #tpu.dot_dimension_numbers<[1], [0], [0], [1], [0, 0, 1, 1], [], []>} : vector<8x8xbf16>, vector<8x8xbf16>, vector<8x8xf32> -> vector<8x8xf32>
    %c0_61 = arith.constant 0 : index
    %c16 = arith.constant 16 : index
    %125 = vector.load %arg20[%c0_61, %c16] : memref<16x32xf32, #tpu.memory_space<vmem>>, vector<8x8xf32>
    tpu.vector_store %arg20[%c0_61, %c16], %124 {strides = array<i32>} : memref<16x32xf32, #tpu.memory_space<vmem>>, vector<8x8xf32>,
    %126 = vector.extract_strided_slice %50 {offsets = [0, 24], sizes = [8, 8], strides = [1, 1]} : vector<8x32xf32> to vector<8x8xf32>
    %127 = arith.truncf %126 : vector<8x8xf32> to vector<8x8xbf16>
    %128 = vector.extract_strided_slice %51 {offsets = [0, 24], sizes = [8, 8], strides = [1, 1]} : vector<8x32xf32> to vector<8x8xf32>
    %129 = arith.truncf %128 : vector<8x8xf32> to vector<8x8xbf16>
    %130 = vector.extract_strided_slice %52 {offsets = [0, 24], sizes = [8, 8], strides = [1, 1]} : vector<8x32xf32> to vector<8x8xf32>
    %131 = arith.truncf %130 : vector<8x8xf32> to vector<8x8xbf16>
    %cst_62 = arith.constant dense<0.000000e+00> : vector<8x8xf32>
    %132 = tpu.matmul %127, %129, %cst_62 {dimension_numbers = #tpu.dot_dimension_numbers<[1], [1], [0], [0], [0, 0, 1, 0], [], []>} : vector<8x8xbf16>, vector<8x8xbf16>, vector<8x8xf32> -> vector<8x8xf32>
    %cst_63 = arith.constant 0.353553385 : f32
    %133 = vector.broadcast %cst_63 : f32 to vector<8x8xf32>
    %134 = arith.mulf %132, %133 : vector<8x8xf32>
    %135 = vector.broadcast %53 : vector<1x8xf32> to vector<8x8xf32>
    %136 = arith.addf %134, %135 : vector<8x8xf32>
    %cst_64 = arith.constant dense<0xFF800000> : vector<8xf32>
    %137 = vector.multi_reduction <maximumf>, %136, %cst_64 [1] : vector<8x8xf32> to vector<8xf32>
    %138 = vector.shape_cast %137 : vector<8xf32> to vector<8x1xf32>
    %139 = vector.broadcast %138 : vector<8x1xf32> to vector<8x8xf32>
    %140 = arith.subf %136, %139 : vector<8x8xf32>
    %141 = math.exp %140 : vector<8x8xf32>
    %cst_65 = arith.constant dense<0.000000e+00> : vector<8xf32>
    %142 = vector.multi_reduction <add>, %141, %cst_65 [1] : vector<8x8xf32> to vector<8xf32>
    %143 = vector.shape_cast %142 : vector<8xf32> to vector<8x1xf32>
    %144 = tpu.reciprocal %143 {approx = true} : vector<8x1xf32> -> vector<8x1xf32>
    %145 = vector.broadcast %144 : vector<8x1xf32> to vector<8x8xf32>
    %146 = arith.mulf %141, %145 : vector<8x8xf32>
    %147 = arith.truncf %146 : vector<8x8xf32> to vector<8x8xbf16>
    %cst_66 = arith.constant dense<0.000000e+00> : vector<8x8xf32>
    %148 = tpu.matmul %147, %131, %cst_66 {dimension_numbers = #tpu.dot_dimension_numbers<[1], [0], [0], [1], [0, 0, 1, 1], [], []>} : vector<8x8xbf16>, vector<8x8xbf16>, vector<8x8xf32> -> vector<8x8xf32>
    %c0_67 = arith.constant 0 : index
    %c24 = arith.constant 24 : index
    %149 = vector.load %arg20[%c0_67, %c24] : memref<16x32xf32, #tpu.memory_space<vmem>>, vector<8x8xf32>
    tpu.vector_store %arg20[%c0_67, %c24], %148 {strides = array<i32>} : memref<16x32xf32, #tpu.memory_space<vmem>>, vector<8x8xf32>,
    %150 = vector.extract_strided_slice %49 {offsets = [8, 0], sizes = [8, 32], strides = [1, 1]} : vector<16x96xf32> to vector<8x32xf32>
    %151 = vector.extract_strided_slice %49 {offsets = [8, 32], sizes = [8, 32], strides = [1, 1]} : vector<16x96xf32> to vector<8x32xf32>
    %152 = vector.extract_strided_slice %49 {offsets = [8, 64], sizes = [8, 32], strides = [1, 1]} : vector<16x96xf32> to vector<8x32xf32>
    %153 = vector.extract_strided_slice %45 {offsets = [1, 0], sizes = [1, 8], strides = [1, 1]} : vector<2x8xf32> to vector<1x8xf32>
    %154 = vector.extract_strided_slice %150 {offsets = [0, 0], sizes = [8, 8], strides = [1, 1]} : vector<8x32xf32> to vector<8x8xf32>
    %155 = arith.truncf %154 : vector<8x8xf32> to vector<8x8xbf16>
    %156 = vector.extract_strided_slice %151 {offsets = [0, 0], sizes = [8, 8], strides = [1, 1]} : vector<8x32xf32> to vector<8x8xf32>
    %157 = arith.truncf %156 : vector<8x8xf32> to vector<8x8xbf16>
    %158 = vector.extract_strided_slice %152 {offsets = [0, 0], sizes = [8, 8], strides = [1, 1]} : vector<8x32xf32> to vector<8x8xf32>
    %159 = arith.truncf %158 : vector<8x8xf32> to vector<8x8xbf16>
    %cst_68 = arith.constant dense<0.000000e+00> : vector<8x8xf32>
    %160 = tpu.matmul %155, %157, %cst_68 {dimension_numbers = #tpu.dot_dimension_numbers<[1], [1], [0], [0], [0, 0, 1, 0], [], []>} : vector<8x8xbf16>, vector<8x8xbf16>, vector<8x8xf32> -> vector<8x8xf32>
    %cst_69 = arith.constant 0.353553385 : f32
    %161 = vector.broadcast %cst_69 : f32 to vector<8x8xf32>
    %162 = arith.mulf %160, %161 : vector<8x8xf32>
    %163 = vector.broadcast %153 : vector<1x8xf32> to vector<8x8xf32>
    %164 = arith.addf %162, %163 : vector<8x8xf32>
    %cst_70 = arith.constant dense<0xFF800000> : vector<8xf32>
    %165 = vector.multi_reduction <maximumf>, %164, %cst_70 [1] : vector<8x8xf32> to vector<8xf32>
    %166 = vector.shape_cast %165 : vector<8xf32> to vector<8x1xf32>
    %167 = vector.broadcast %166 : vector<8x1xf32> to vector<8x8xf32>
    %168 = arith.subf %164, %167 : vector<8x8xf32>
    %169 = math.exp %168 : vector<8x8xf32>
    %cst_71 = arith.constant dense<0.000000e+00> : vector<8xf32>
    %170 = vector.multi_reduction <add>, %169, %cst_71 [1] : vector<8x8xf32> to vector<8xf32>
    %171 = vector.shape_cast %170 : vector<8xf32> to vector<8x1xf32>
    %172 = tpu.reciprocal %171 {approx = true} : vector<8x1xf32> -> vector<8x1xf32>
    %173 = vector.broadcast %172 : vector<8x1xf32> to vector<8x8xf32>
    %174 = arith.mulf %169, %173 : vector<8x8xf32>
    %175 = arith.truncf %174 : vector<8x8xf32> to vector<8x8xbf16>
    %cst_72 = arith.constant dense<0.000000e+00> : vector<8x8xf32>
    %176 = tpu.matmul %175, %159, %cst_72 {dimension_numbers = #tpu.dot_dimension_numbers<[1], [0], [0], [1], [0, 0, 1, 1], [], []>} : vector<8x8xbf16>, vector<8x8xbf16>, vector<8x8xf32> -> vector<8x8xf32>
    %c8_73 = arith.constant 8 : index
    %c0_74 = arith.constant 0 : index
    %177 = vector.load %arg20[%c8_73, %c0_74] : memref<16x32xf32, #tpu.memory_space<vmem>>, vector<8x8xf32>
    tpu.vector_store %arg20[%c8_73, %c0_74], %176 {strides = array<i32>} : memref<16x32xf32, #tpu.memory_space<vmem>>, vector<8x8xf32>,
    %178 = vector.extract_strided_slice %150 {offsets = [0, 8], sizes = [8, 8], strides = [1, 1]} : vector<8x32xf32> to vector<8x8xf32>
    %179 = arith.truncf %178 : vector<8x8xf32> to vector<8x8xbf16>
    %180 = vector.extract_strided_slice %151 {offsets = [0, 8], sizes = [8, 8], strides = [1, 1]} : vector<8x32xf32> to vector<8x8xf32>
    %181 = arith.truncf %180 : vector<8x8xf32> to vector<8x8xbf16>
    %182 = vector.extract_strided_slice %152 {offsets = [0, 8], sizes = [8, 8], strides = [1, 1]} : vector<8x32xf32> to vector<8x8xf32>
    %183 = arith.truncf %182 : vector<8x8xf32> to vector<8x8xbf16>
    %cst_75 = arith.constant dense<0.000000e+00> : vector<8x8xf32>
    %184 = tpu.matmul %179, %181, %cst_75 {dimension_numbers = #tpu.dot_dimension_numbers<[1], [1], [0], [0], [0, 0, 1, 0], [], []>} : vector<8x8xbf16>, vector<8x8xbf16>, vector<8x8xf32> -> vector<8x8xf32>
    %cst_76 = arith.constant 0.353553385 : f32
    %185 = vector.broadcast %cst_76 : f32 to vector<8x8xf32>
    %186 = arith.mulf %184, %185 : vector<8x8xf32>
    %187 = vector.broadcast %153 : vector<1x8xf32> to vector<8x8xf32>
    %188 = arith.addf %186, %187 : vector<8x8xf32>
    %cst_77 = arith.constant dense<0xFF800000> : vector<8xf32>
    %189 = vector.multi_reduction <maximumf>, %188, %cst_77 [1] : vector<8x8xf32> to vector<8xf32>
    %190 = vector.shape_cast %189 : vector<8xf32> to vector<8x1xf32>
    %191 = vector.broadcast %190 : vector<8x1xf32> to vector<8x8xf32>
    %192 = arith.subf %188, %191 : vector<8x8xf32>
    %193 = math.exp %192 : vector<8x8xf32>
    %cst_78 = arith.constant dense<0.000000e+00> : vector<8xf32>
    %194 = vector.multi_reduction <add>, %193, %cst_78 [1] : vector<8x8xf32> to vector<8xf32>
    %195 = vector.shape_cast %194 : vector<8xf32> to vector<8x1xf32>
    %196 = tpu.reciprocal %195 {approx = true} : vector<8x1xf32> -> vector<8x1xf32>
    %197 = vector.broadcast %196 : vector<8x1xf32> to vector<8x8xf32>
    %198 = arith.mulf %193, %197 : vector<8x8xf32>
    %199 = arith.truncf %198 : vector<8x8xf32> to vector<8x8xbf16>
    %cst_79 = arith.constant dense<0.000000e+00> : vector<8x8xf32>
    %200 = tpu.matmul %199, %183, %cst_79 {dimension_numbers = #tpu.dot_dimension_numbers<[1], [0], [0], [1], [0, 0, 1, 1], [], []>} : vector<8x8xbf16>, vector<8x8xbf16>, vector<8x8xf32> -> vector<8x8xf32>
    %c8_80 = arith.constant 8 : index
    %c8_81 = arith.constant 8 : index
    %201 = vector.load %arg20[%c8_80, %c8_81] : memref<16x32xf32, #tpu.memory_space<vmem>>, vector<8x8xf32>
    tpu.vector_store %arg20[%c8_80, %c8_81], %200 {strides = array<i32>} : memref<16x32xf32, #tpu.memory_space<vmem>>, vector<8x8xf32>,
    %202 = vector.extract_strided_slice %150 {offsets = [0, 16], sizes = [8, 8], strides = [1, 1]} : vector<8x32xf32> to vector<8x8xf32>
    %203 = arith.truncf %202 : vector<8x8xf32> to vector<8x8xbf16>
    %204 = vector.extract_strided_slice %151 {offsets = [0, 16], sizes = [8, 8], strides = [1, 1]} : vector<8x32xf32> to vector<8x8xf32>
    %205 = arith.truncf %204 : vector<8x8xf32> to vector<8x8xbf16>
    %206 = vector.extract_strided_slice %152 {offsets = [0, 16], sizes = [8, 8], strides = [1, 1]} : vector<8x32xf32> to vector<8x8xf32>
    %207 = arith.truncf %206 : vector<8x8xf32> to vector<8x8xbf16>
    %cst_82 = arith.constant dense<0.000000e+00> : vector<8x8xf32>
    %208 = tpu.matmul %203, %205, %cst_82 {dimension_numbers = #tpu.dot_dimension_numbers<[1], [1], [0], [0], [0, 0, 1, 0], [], []>} : vector<8x8xbf16>, vector<8x8xbf16>, vector<8x8xf32> -> vector<8x8xf32>
    %cst_83 = arith.constant 0.353553385 : f32
    %209 = vector.broadcast %cst_83 : f32 to vector<8x8xf32>
    %210 = arith.mulf %208, %209 : vector<8x8xf32>
    %211 = vector.broadcast %153 : vector<1x8xf32> to vector<8x8xf32>
    %212 = arith.addf %210, %211 : vector<8x8xf32>
    %cst_84 = arith.constant dense<0xFF800000> : vector<8xf32>
    %213 = vector.multi_reduction <maximumf>, %212, %cst_84 [1] : vector<8x8xf32> to vector<8xf32>
    %214 = vector.shape_cast %213 : vector<8xf32> to vector<8x1xf32>
    %215 = vector.broadcast %214 : vector<8x1xf32> to vector<8x8xf32>
    %216 = arith.subf %212, %215 : vector<8x8xf32>
    %217 = math.exp %216 : vector<8x8xf32>
    %cst_85 = arith.constant dense<0.000000e+00> : vector<8xf32>
    %218 = vector.multi_reduction <add>, %217, %cst_85 [1] : vector<8x8xf32> to vector<8xf32>
    %219 = vector.shape_cast %218 : vector<8xf32> to vector<8x1xf32>
    %220 = tpu.reciprocal %219 {approx = true} : vector<8x1xf32> -> vector<8x1xf32>
    %221 = vector.broadcast %220 : vector<8x1xf32> to vector<8x8xf32>
    %222 = arith.mulf %217, %221 : vector<8x8xf32>
    %223 = arith.truncf %222 : vector<8x8xf32> to vector<8x8xbf16>
    %cst_86 = arith.constant dense<0.000000e+00> : vector<8x8xf32>
    %224 = tpu.matmul %223, %207, %cst_86 {dimension_numbers = #tpu.dot_dimension_numbers<[1], [0], [0], [1], [0, 0, 1, 1], [], []>} : vector<8x8xbf16>, vector<8x8xbf16>, vector<8x8xf32> -> vector<8x8xf32>
    %c8_87 = arith.constant 8 : index
    %c16_88 = arith.constant 16 : index
    %225 = vector.load %arg20[%c8_87, %c16_88] : memref<16x32xf32, #tpu.memory_space<vmem>>, vector<8x8xf32>
    tpu.vector_store %arg20[%c8_87, %c16_88], %224 {strides = array<i32>} : memref<16x32xf32, #tpu.memory_space<vmem>>, vector<8x8xf32>,
    %226 = vector.extract_strided_slice %150 {offsets = [0, 24], sizes = [8, 8], strides = [1, 1]} : vector<8x32xf32> to vector<8x8xf32>
    %227 = arith.truncf %226 : vector<8x8xf32> to vector<8x8xbf16>
    %228 = vector.extract_strided_slice %151 {offsets = [0, 24], sizes = [8, 8], strides = [1, 1]} : vector<8x32xf32> to vector<8x8xf32>
    %229 = arith.truncf %228 : vector<8x8xf32> to vector<8x8xbf16>
    %230 = vector.extract_strided_slice %152 {offsets = [0, 24], sizes = [8, 8], strides = [1, 1]} : vector<8x32xf32> to vector<8x8xf32>
    %231 = arith.truncf %230 : vector<8x8xf32> to vector<8x8xbf16>
    %cst_89 = arith.constant dense<0.000000e+00> : vector<8x8xf32>
    %232 = tpu.matmul %227, %229, %cst_89 {dimension_numbers = #tpu.dot_dimension_numbers<[1], [1], [0], [0], [0, 0, 1, 0], [], []>} : vector<8x8xbf16>, vector<8x8xbf16>, vector<8x8xf32> -> vector<8x8xf32>
    %cst_90 = arith.constant 0.353553385 : f32
    %233 = vector.broadcast %cst_90 : f32 to vector<8x8xf32>
    %234 = arith.mulf %232, %233 : vector<8x8xf32>
    %235 = vector.broadcast %153 : vector<1x8xf32> to vector<8x8xf32>
    %236 = arith.addf %234, %235 : vector<8x8xf32>
    %cst_91 = arith.constant dense<0xFF800000> : vector<8xf32>
    %237 = vector.multi_reduction <maximumf>, %236, %cst_91 [1] : vector<8x8xf32> to vector<8xf32>
    %238 = vector.shape_cast %237 : vector<8xf32> to vector<8x1xf32>
    %239 = vector.broadcast %238 : vector<8x1xf32> to vector<8x8xf32>
    %240 = arith.subf %236, %239 : vector<8x8xf32>
    %241 = math.exp %240 : vector<8x8xf32>
    %cst_92 = arith.constant dense<0.000000e+00> : vector<8xf32>
    %242 = vector.multi_reduction <add>, %241, %cst_92 [1] : vector<8x8xf32> to vector<8xf32>
    %243 = vector.shape_cast %242 : vector<8xf32> to vector<8x1xf32>
    %244 = tpu.reciprocal %243 {approx = true} : vector<8x1xf32> -> vector<8x1xf32>
    %245 = vector.broadcast %244 : vector<8x1xf32> to vector<8x8xf32>
    %246 = arith.mulf %241, %245 : vector<8x8xf32>
    %247 = arith.truncf %246 : vector<8x8xf32> to vector<8x8xbf16>
    %cst_93 = arith.constant dense<0.000000e+00> : vector<8x8xf32>
    %248 = tpu.matmul %247, %231, %cst_93 {dimension_numbers = #tpu.dot_dimension_numbers<[1], [0], [0], [1], [0, 0, 1, 1], [], []>} : vector<8x8xbf16>, vector<8x8xbf16>, vector<8x8xf32> -> vector<8x8xf32>
    %c8_94 = arith.constant 8 : index
    %c24_95 = arith.constant 24 : index
    %249 = vector.load %arg20[%c8_94, %c24_95] : memref<16x32xf32, #tpu.memory_space<vmem>>, vector<8x8xf32>
    tpu.vector_store %arg20[%c8_94, %c24_95], %248 {strides = array<i32>} : memref<16x32xf32, #tpu.memory_space<vmem>>, vector<8x8xf32>,
    %c0_96 = arith.constant 0 : index
    %c0_97 = arith.constant 0 : index
    %250 = vector.load %arg20[%c0_96, %c0_97] : memref<16x32xf32, #tpu.memory_space<vmem>>, vector<16x32xf32>
    %251 = arith.truncf %250 : vector<16x32xf32> to vector<16x32xbf16>
    %cst_98 = arith.constant dense<0.000000e+00> : vector<16x32xf32>
    %252 = tpu.matmul %251, %35, %cst_98 {dimension_numbers = #tpu.dot_dimension_numbers<[1], [0], [0], [1], [0, 0, 1, 1], [], []>} : vector<16x32xbf16>, vector<32x32xbf16>, vector<16x32xf32> -> vector<16x32xf32>
    %253 = vector.broadcast %36 : vector<1x32xf32> to vector<16x32xf32>
    %254 = arith.addf %252, %253 : vector<16x32xf32>
    %255 = arith.addf %32, %254 : vector<16x32xf32>
    %cst_99 = arith.constant dense<0.000000e+00> : vector<16xf32>
    %256 = vector.multi_reduction <add>, %255, %cst_99 [1] : vector<16x32xf32> to vector<16xf32>
    %257 = vector.shape_cast %256 : vector<16xf32> to vector<16x1xf32>
    %cst_100 = arith.constant 3.200000e+01 : f32
    %258 = vector.broadcast %cst_100 : f32 to vector<16x1xf32>
    %259 = arith.divf %257, %258 : vector<16x1xf32>
    %260 = vector.broadcast %259 : vector<16x1xf32> to vector<16x32xf32>
    %261 = arith.subf %255, %260 : vector<16x32xf32>
    %262 = arith.mulf %261, %261 : vector<16x32xf32>
    %cst_101 = arith.constant dense<0.000000e+00> : vector<16xf32>
    %263 = vector.multi_reduction <add>, %262, %cst_101 [1] : vector<16x32xf32> to vector<16xf32>
    %264 = vector.shape_cast %263 : vector<16xf32> to vector<16x1xf32>
    %cst_102 = arith.constant 3.200000e+01 : f32
    %265 = vector.broadcast %cst_102 : f32 to vector<16x1xf32>
    %266 = arith.divf %264, %265 : vector<16x1xf32>
    %267 = vector.broadcast %259 : vector<16x1xf32> to vector<16x32xf32>
    %268 = arith.subf %255, %267 : vector<16x32xf32>
    %cst_103 = arith.constant 9.99999996E-13 : f32
    %269 = vector.broadcast %cst_103 : f32 to vector<16x1xf32>
    %270 = arith.addf %266, %269 : vector<16x1xf32>
    %271 = math.rsqrt %270 : vector<16x1xf32>
    %272 = vector.broadcast %271 : vector<16x1xf32> to vector<16x32xf32>
    %273 = arith.mulf %268, %272 : vector<16x32xf32>
    %274 = vector.broadcast %37 : vector<1x32xf32> to vector<16x32xf32>
    %275 = arith.mulf %273, %274 : vector<16x32xf32>
    %276 = vector.broadcast %38 : vector<1x32xf32> to vector<16x32xf32>
    %277 = arith.addf %275, %276 : vector<16x32xf32>
    %278 = arith.truncf %277 : vector<16x32xf32> to vector<16x32xbf16>
    %cst_104 = arith.constant dense<0.000000e+00> : vector<16x64xf32>
    %279 = tpu.matmul %278, %39, %cst_104 {dimension_numbers = #tpu.dot_dimension_numbers<[1], [0], [0], [1], [0, 0, 1, 1], [], []>} : vector<16x32xbf16>, vector<32x64xbf16>, vector<16x64xf32> -> vector<16x64xf32>
    %280 = vector.broadcast %40 : vector<1x64xf32> to vector<16x64xf32>
    %281 = arith.addf %279, %280 : vector<16x64xf32>
    %282 = arith.mulf %281, %281 : vector<16x64xf32>
    %283 = arith.mulf %281, %282 : vector<16x64xf32>
    %cst_105 = arith.constant 4.471500e-02 : f32
    %284 = vector.broadcast %cst_105 : f32 to vector<16x64xf32>
    %285 = arith.mulf %284, %283 : vector<16x64xf32>
    %286 = arith.addf %281, %285 : vector<16x64xf32>
    %cst_106 = arith.constant 0.797884583 : f32
    %287 = vector.broadcast %cst_106 : f32 to vector<16x64xf32>
    %288 = arith.mulf %287, %286 : vector<16x64xf32>
    %289 = math.tanh %288 : vector<16x64xf32>
    %cst_107 = arith.constant 1.000000e+00 : f32
    %290 = vector.broadcast %cst_107 : f32 to vector<16x64xf32>
    %291 = arith.addf %290, %289 : vector<16x64xf32>
    %cst_108 = arith.constant 5.000000e-01 : f32
    %292 = vector.broadcast %cst_108 : f32 to vector<16x64xf32>
    %293 = arith.mulf %292, %291 : vector<16x64xf32>
    %294 = arith.mulf %281, %293 : vector<16x64xf32>
    %295 = arith.truncf %294 : vector<16x64xf32> to vector<16x64xbf16>
    %cst_109 = arith.constant dense<0.000000e+00> : vector<16x32xf32>
    %296 = tpu.matmul %295, %41, %cst_109 {dimension_numbers = #tpu.dot_dimension_numbers<[1], [0], [0], [1], [0, 0, 1, 1], [], []>} : vector<16x64xbf16>, vector<64x32xbf16>, vector<16x32xf32> -> vector<16x32xf32>
    %297 = vector.broadcast %42 : vector<1x32xf32> to vector<16x32xf32>
    %298 = arith.addf %296, %297 : vector<16x32xf32>
    %299 = arith.addf %277, %298 : vector<16x32xf32>
    %cst_110 = arith.constant dense<0.000000e+00> : vector<16xf32>
    %300 = vector.multi_reduction <add>, %299, %cst_110 [1] : vector<16x32xf32> to vector<16xf32>
    %301 = vector.shape_cast %300 : vector<16xf32> to vector<16x1xf32>
    %cst_111 = arith.constant 3.200000e+01 : f32
    %302 = vector.broadcast %cst_111 : f32 to vector<16x1xf32>
    %303 = arith.divf %301, %302 : vector<16x1xf32>
    %304 = vector.broadcast %303 : vector<16x1xf32> to vector<16x32xf32>
    %305 = arith.subf %299, %304 : vector<16x32xf32>
    %306 = arith.mulf %305, %305 : vector<16x32xf32>
    %cst_112 = arith.constant dense<0.000000e+00> : vector<16xf32>
    %307 = vector.multi_reduction <add>, %306, %cst_112 [1] : vector<16x32xf32> to vector<16xf32>
    %308 = vector.shape_cast %307 : vector<16xf32> to vector<16x1xf32>
    %cst_113 = arith.constant 3.200000e+01 : f32
    %309 = vector.broadcast %cst_113 : f32 to vector<16x1xf32>
    %310 = arith.divf %308, %309 : vector<16x1xf32>
    %311 = vector.broadcast %303 : vector<16x1xf32> to vector<16x32xf32>
    %312 = arith.subf %299, %311 : vector<16x32xf32>
    %cst_114 = arith.constant 9.99999996E-13 : f32
    %313 = vector.broadcast %cst_114 : f32 to vector<16x1xf32>
    %314 = arith.addf %310, %313 : vector<16x1xf32>
    %315 = math.rsqrt %314 : vector<16x1xf32>
    %316 = vector.broadcast %315 : vector<16x1xf32> to vector<16x32xf32>
    %317 = arith.mulf %312, %316 : vector<16x32xf32>
    %318 = vector.broadcast %43 : vector<1x32xf32> to vector<16x32xf32>
    %319 = arith.mulf %317, %318 : vector<16x32xf32>
    %320 = vector.broadcast %44 : vector<1x32xf32> to vector<16x32xf32>
    %321 = arith.addf %319, %320 : vector<16x32xf32>
    %c0_115 = arith.constant 0 : index
    %c0_116 = arith.constant 0 : index
    %322 = vector.load %arg19[%c0_115, %c0_116] : memref<16x32xf32, #tpu.memory_space<vmem>>, vector<16x32xf32>
    tpu.vector_store %arg19[%c0_115, %c0_116], %321 {strides = array<i32>} : memref<16x32xf32, #tpu.memory_space<vmem>>, vector<16x32xf32>,
    return
  }
}

module attributes {stable_mosaic.version = 11 : i64} {
  func.func @_head_kernel(%arg0: memref<48x64xf32, #tpu.memory_space<vmem>>, %arg1: memref<2x24x1xf32, #tpu.memory_space<vmem>>, %arg2: memref<16x32xf32, #tpu.memory_space<vmem>>, %arg3: memref<2x8x1xf32, #tpu.memory_space<vmem>>, %arg4: memref<64x32xbf16, #tpu.memory_space<vmem>>, %arg5: memref<1x32xf32, #tpu.memory_space<vmem>>, %arg6: memref<64x32xbf16, #tpu.memory_space<vmem>>, %arg7: memref<1x32xf32, #tpu.memory_space<vmem>>, %arg8: memref<32x32xbf16, #tpu.memory_space<vmem>>, %arg9: memref<1x32xf32, #tpu.memory_space<vmem>>, %arg10: memref<1x32xf32, #tpu.memory_space<vmem>>, %arg11: memref<64x32xbf16, #tpu.memory_space<vmem>>, %arg12: memref<1x32xf32, #tpu.memory_space<vmem>>, %arg13: memref<32x4xbf16, #tpu.memory_space<vmem>>, %arg14: memref<1x4xf32, #tpu.memory_space<vmem>>, %arg15: memref<2x4xf32, #tpu.memory_space<vmem>>) attributes {dimension_semantics = [], scalar_prefetch = 0 : i64, scratch_operands = 0 : i64, tpu.core_type = #tpu.core_type<tc>} {
    %c0 = arith.constant 0 : index
    %c0_0 = arith.constant 0 : index
    %0 = vector.load %arg4[%c0, %c0_0] : memref<64x32xbf16, #tpu.memory_space<vmem>>, vector<64x32xbf16>
    %c0_1 = arith.constant 0 : index
    %c0_2 = arith.constant 0 : index
    %1 = vector.load %arg5[%c0_1, %c0_2] : memref<1x32xf32, #tpu.memory_space<vmem>>, vector<1x32xf32>
    %c0_3 = arith.constant 0 : index
    %c0_4 = arith.constant 0 : index
    %2 = vector.load %arg6[%c0_3, %c0_4] : memref<64x32xbf16, #tpu.memory_space<vmem>>, vector<64x32xbf16>
    %c0_5 = arith.constant 0 : index
    %c0_6 = arith.constant 0 : index
    %3 = vector.load %arg7[%c0_5, %c0_6] : memref<1x32xf32, #tpu.memory_space<vmem>>, vector<1x32xf32>
    %c0_7 = arith.constant 0 : index
    %c0_8 = arith.constant 0 : index
    %4 = vector.load %arg8[%c0_7, %c0_8] : memref<32x32xbf16, #tpu.memory_space<vmem>>, vector<32x32xbf16>
    %c0_9 = arith.constant 0 : index
    %c0_10 = arith.constant 0 : index
    %5 = vector.load %arg9[%c0_9, %c0_10] : memref<1x32xf32, #tpu.memory_space<vmem>>, vector<1x32xf32>
    %c0_11 = arith.constant 0 : index
    %c0_12 = arith.constant 0 : index
    %6 = vector.load %arg10[%c0_11, %c0_12] : memref<1x32xf32, #tpu.memory_space<vmem>>, vector<1x32xf32>
    %c0_13 = arith.constant 0 : index
    %c0_14 = arith.constant 0 : index
    %7 = vector.load %arg11[%c0_13, %c0_14] : memref<64x32xbf16, #tpu.memory_space<vmem>>, vector<64x32xbf16>
    %c0_15 = arith.constant 0 : index
    %c0_16 = arith.constant 0 : index
    %8 = vector.load %arg12[%c0_15, %c0_16] : memref<1x32xf32, #tpu.memory_space<vmem>>, vector<1x32xf32>
    %c0_17 = arith.constant 0 : index
    %c0_18 = arith.constant 0 : index
    %9 = vector.load %arg13[%c0_17, %c0_18] : memref<32x4xbf16, #tpu.memory_space<vmem>>, vector<32x4xbf16>
    %c0_19 = arith.constant 0 : index
    %c0_20 = arith.constant 0 : index
    %10 = vector.load %arg14[%c0_19, %c0_20] : memref<1x4xf32, #tpu.memory_space<vmem>>, vector<1x4xf32>
    %11 = vector.extract_strided_slice %7 {offsets = [0, 0], sizes = [32, 32], strides = [1, 1]} : vector<64x32xbf16> to vector<32x32xbf16>
    %12 = vector.extract_strided_slice %7 {offsets = [32, 0], sizes = [32, 32], strides = [1, 1]} : vector<64x32xbf16> to vector<32x32xbf16>
    %c0_21 = arith.constant 0 : index
    %c0_22 = arith.constant 0 : index
    %13 = vector.load %arg0[%c0_21, %c0_22] : memref<48x64xf32, #tpu.memory_space<vmem>>, vector<24x64xf32>
    %c0_23 = arith.constant 0 : index
    %c0_24 = arith.constant 0 : index
    %c0_25 = arith.constant 0 : index
    %14 = vector.load %arg1[%c0_23, %c0_24, %c0_25] : memref<2x24x1xf32, #tpu.memory_space<vmem>>, vector<1x24x1xf32>
    %15 = vector.shape_cast %14 : vector<1x24x1xf32> to vector<24x1xf32>
    %16 = arith.truncf %13 : vector<24x64xf32> to vector<24x64xbf16>
    %cst = arith.constant dense<0.000000e+00> : vector<24x32xf32>
    %17 = tpu.matmul %16, %0, %cst {dimension_numbers = #tpu.dot_dimension_numbers<[1], [0], [0], [1], [0, 0, 1, 1], [], []>} : vector<24x64xbf16>, vector<64x32xbf16>, vector<24x32xf32> -> vector<24x32xf32>
    %18 = vector.broadcast %1 : vector<1x32xf32> to vector<24x32xf32>
    %19 = arith.addf %17, %18 : vector<24x32xf32>
    %20 = math.tanh %19 : vector<24x32xf32>
    %21 = vector.broadcast %6 : vector<1x32xf32> to vector<24x32xf32>
    %22 = arith.mulf %20, %21 : vector<24x32xf32>
    %cst_26 = arith.constant dense<0.000000e+00> : vector<24xf32>
    %23 = vector.multi_reduction <add>, %22, %cst_26 [1] : vector<24x32xf32> to vector<24xf32>
    %24 = vector.shape_cast %23 : vector<24xf32> to vector<24x1xf32>
    %cst_27 = arith.constant 5.000000e-01 : f32
    %25 = vector.broadcast %cst_27 : f32 to vector<24x1xf32>
    %26 = arith.cmpf ogt, %15, %25 : vector<24x1xf32>
    %cst_28 = arith.constant -1.000000e+09 : f32
    %27 = vector.broadcast %cst_28 : f32 to vector<24x1xf32>
    %28 = arith.select %26, %24, %27 : vector<24x1xi1>, vector<24x1xf32>
    %cst_29 = arith.constant dense<0xFF800000> : vector<1xf32>
    %29 = vector.multi_reduction <maximumf>, %28, %cst_29 [0] : vector<24x1xf32> to vector<1xf32>
    %30 = vector.shape_cast %29 : vector<1xf32> to vector<1x1xf32>
    %31 = vector.broadcast %30 : vector<1x1xf32> to vector<24x1xf32>
    %32 = arith.subf %28, %31 : vector<24x1xf32>
    %33 = math.exp %32 : vector<24x1xf32>
    %cst_30 = arith.constant dense<0.000000e+00> : vector<1xf32>
    %34 = vector.multi_reduction <add>, %33, %cst_30 [0] : vector<24x1xf32> to vector<1xf32>
    %35 = vector.shape_cast %34 : vector<1xf32> to vector<1x1xf32>
    %36 = tpu.reciprocal %35 {approx = true} : vector<1x1xf32> -> vector<1x1xf32>
    %37 = vector.broadcast %36 : vector<1x1xf32> to vector<24x1xf32>
    %38 = arith.mulf %33, %37 : vector<24x1xf32>
    %39 = vector.broadcast %15 : vector<24x1xf32> to vector<24x64xf32>
    %40 = arith.mulf %39, %13 : vector<24x64xf32>
    %41 = vector.broadcast %38 : vector<24x1xf32> to vector<24x64xf32>
    %42 = arith.mulf %41, %40 : vector<24x64xf32>
    %cst_31 = arith.constant dense<0.000000e+00> : vector<64xf32>
    %43 = vector.multi_reduction <add>, %42, %cst_31 [0] : vector<24x64xf32> to vector<64xf32>
    %44 = vector.shape_cast %43 : vector<64xf32> to vector<1x64xf32>
    %45 = arith.truncf %44 : vector<1x64xf32> to vector<1x64xbf16>
    %cst_32 = arith.constant dense<0.000000e+00> : vector<1x32xf32>
    %46 = tpu.matmul %45, %2, %cst_32 {dimension_numbers = #tpu.dot_dimension_numbers<[1], [0], [0], [1], [0, 0, 1, 1], [], []>} : vector<1x64xbf16>, vector<64x32xbf16>, vector<1x32xf32> -> vector<1x32xf32>
    %47 = arith.addf %46, %3 : vector<1x32xf32>
    %c0_33 = arith.constant 0 : index
    %c0_34 = arith.constant 0 : index
    %48 = vector.load %arg2[%c0_33, %c0_34] : memref<16x32xf32, #tpu.memory_space<vmem>>, vector<8x32xf32>
    %c0_35 = arith.constant 0 : index
    %c0_36 = arith.constant 0 : index
    %c0_37 = arith.constant 0 : index
    %49 = vector.load %arg3[%c0_35, %c0_36, %c0_37] : memref<2x8x1xf32, #tpu.memory_space<vmem>>, vector<1x8x1xf32>
    %50 = vector.shape_cast %49 : vector<1x8x1xf32> to vector<8x1xf32>
    %51 = arith.truncf %48 : vector<8x32xf32> to vector<8x32xbf16>
    %cst_38 = arith.constant dense<0.000000e+00> : vector<8x32xf32>
    %52 = tpu.matmul %51, %4, %cst_38 {dimension_numbers = #tpu.dot_dimension_numbers<[1], [0], [0], [1], [0, 0, 1, 1], [], []>} : vector<8x32xbf16>, vector<32x32xbf16>, vector<8x32xf32> -> vector<8x32xf32>
    %53 = vector.broadcast %5 : vector<1x32xf32> to vector<8x32xf32>
    %54 = arith.addf %52, %53 : vector<8x32xf32>
    %55 = math.tanh %54 : vector<8x32xf32>
    %56 = vector.broadcast %6 : vector<1x32xf32> to vector<8x32xf32>
    %57 = arith.mulf %55, %56 : vector<8x32xf32>
    %cst_39 = arith.constant dense<0.000000e+00> : vector<8xf32>
    %58 = vector.multi_reduction <add>, %57, %cst_39 [1] : vector<8x32xf32> to vector<8xf32>
    %59 = vector.shape_cast %58 : vector<8xf32> to vector<8x1xf32>
    %cst_40 = arith.constant 5.000000e-01 : f32
    %60 = vector.broadcast %cst_40 : f32 to vector<8x1xf32>
    %61 = arith.cmpf ogt, %50, %60 : vector<8x1xf32>
    %cst_41 = arith.constant -1.000000e+09 : f32
    %62 = vector.broadcast %cst_41 : f32 to vector<8x1xf32>
    %63 = arith.select %61, %59, %62 : vector<8x1xi1>, vector<8x1xf32>
    %cst_42 = arith.constant dense<0xFF800000> : vector<1xf32>
    %64 = vector.multi_reduction <maximumf>, %63, %cst_42 [0] : vector<8x1xf32> to vector<1xf32>
    %65 = vector.shape_cast %64 : vector<1xf32> to vector<1x1xf32>
    %66 = vector.broadcast %65 : vector<1x1xf32> to vector<8x1xf32>
    %67 = arith.subf %63, %66 : vector<8x1xf32>
    %68 = math.exp %67 : vector<8x1xf32>
    %cst_43 = arith.constant dense<0.000000e+00> : vector<1xf32>
    %69 = vector.multi_reduction <add>, %68, %cst_43 [0] : vector<8x1xf32> to vector<1xf32>
    %70 = vector.shape_cast %69 : vector<1xf32> to vector<1x1xf32>
    %71 = tpu.reciprocal %70 {approx = true} : vector<1x1xf32> -> vector<1x1xf32>
    %72 = vector.broadcast %71 : vector<1x1xf32> to vector<8x1xf32>
    %73 = arith.mulf %68, %72 : vector<8x1xf32>
    %74 = vector.broadcast %50 : vector<8x1xf32> to vector<8x32xf32>
    %75 = arith.mulf %74, %48 : vector<8x32xf32>
    %76 = vector.broadcast %73 : vector<8x1xf32> to vector<8x32xf32>
    %77 = arith.mulf %76, %75 : vector<8x32xf32>
    %cst_44 = arith.constant dense<0.000000e+00> : vector<32xf32>
    %78 = vector.multi_reduction <add>, %77, %cst_44 [0] : vector<8x32xf32> to vector<32xf32>
    %79 = vector.shape_cast %78 : vector<32xf32> to vector<1x32xf32>
    %80 = arith.truncf %47 : vector<1x32xf32> to vector<1x32xbf16>
    %cst_45 = arith.constant dense<0.000000e+00> : vector<1x32xf32>
    %81 = tpu.matmul %80, %11, %cst_45 {dimension_numbers = #tpu.dot_dimension_numbers<[1], [0], [0], [1], [0, 0, 1, 1], [], []>} : vector<1x32xbf16>, vector<32x32xbf16>, vector<1x32xf32> -> vector<1x32xf32>
    %82 = arith.truncf %79 : vector<1x32xf32> to vector<1x32xbf16>
    %cst_46 = arith.constant dense<0.000000e+00> : vector<1x32xf32>
    %83 = tpu.matmul %82, %12, %cst_46 {dimension_numbers = #tpu.dot_dimension_numbers<[1], [0], [0], [1], [0, 0, 1, 1], [], []>} : vector<1x32xbf16>, vector<32x32xbf16>, vector<1x32xf32> -> vector<1x32xf32>
    %84 = arith.addf %81, %83 : vector<1x32xf32>
    %85 = arith.addf %84, %8 : vector<1x32xf32>
    %86 = arith.truncf %85 : vector<1x32xf32> to vector<1x32xbf16>
    %cst_47 = arith.constant dense<0.000000e+00> : vector<1x4xf32>
    %87 = tpu.matmul %86, %9, %cst_47 {dimension_numbers = #tpu.dot_dimension_numbers<[1], [0], [0], [1], [0, 0, 1, 1], [], []>} : vector<1x32xbf16>, vector<32x4xbf16>, vector<1x4xf32> -> vector<1x4xf32>
    %88 = arith.addf %87, %10 : vector<1x4xf32>
    %c0_48 = arith.constant 0 : index
    %c0_49 = arith.constant 0 : index
    %89 = vector.load %arg15[%c0_48, %c0_49] : memref<2x4xf32, #tpu.memory_space<vmem>>, vector<1x4xf32>
    tpu.vector_store %arg15[%c0_48, %c0_49], %88 {strides = array<i32>} : memref<2x4xf32, #tpu.memory_space<vmem>>, vector<1x4xf32>,
    %c24 = arith.constant 24 : index
    %c0_50 = arith.constant 0 : index
    %90 = vector.load %arg0[%c24, %c0_50] : memref<48x64xf32, #tpu.memory_space<vmem>>, vector<24x64xf32>
    %c1 = arith.constant 1 : index
    %c0_51 = arith.constant 0 : index
    %c0_52 = arith.constant 0 : index
    %91 = vector.load %arg1[%c1, %c0_51, %c0_52] : memref<2x24x1xf32, #tpu.memory_space<vmem>>, vector<1x24x1xf32>
    %92 = vector.shape_cast %91 : vector<1x24x1xf32> to vector<24x1xf32>
    %93 = arith.truncf %90 : vector<24x64xf32> to vector<24x64xbf16>
    %cst_53 = arith.constant dense<0.000000e+00> : vector<24x32xf32>
    %94 = tpu.matmul %93, %0, %cst_53 {dimension_numbers = #tpu.dot_dimension_numbers<[1], [0], [0], [1], [0, 0, 1, 1], [], []>} : vector<24x64xbf16>, vector<64x32xbf16>, vector<24x32xf32> -> vector<24x32xf32>
    %95 = vector.broadcast %1 : vector<1x32xf32> to vector<24x32xf32>
    %96 = arith.addf %94, %95 : vector<24x32xf32>
    %97 = math.tanh %96 : vector<24x32xf32>
    %98 = vector.broadcast %6 : vector<1x32xf32> to vector<24x32xf32>
    %99 = arith.mulf %97, %98 : vector<24x32xf32>
    %cst_54 = arith.constant dense<0.000000e+00> : vector<24xf32>
    %100 = vector.multi_reduction <add>, %99, %cst_54 [1] : vector<24x32xf32> to vector<24xf32>
    %101 = vector.shape_cast %100 : vector<24xf32> to vector<24x1xf32>
    %cst_55 = arith.constant 5.000000e-01 : f32
    %102 = vector.broadcast %cst_55 : f32 to vector<24x1xf32>
    %103 = arith.cmpf ogt, %92, %102 : vector<24x1xf32>
    %cst_56 = arith.constant -1.000000e+09 : f32
    %104 = vector.broadcast %cst_56 : f32 to vector<24x1xf32>
    %105 = arith.select %103, %101, %104 : vector<24x1xi1>, vector<24x1xf32>
    %cst_57 = arith.constant dense<0xFF800000> : vector<1xf32>
    %106 = vector.multi_reduction <maximumf>, %105, %cst_57 [0] : vector<24x1xf32> to vector<1xf32>
    %107 = vector.shape_cast %106 : vector<1xf32> to vector<1x1xf32>
    %108 = vector.broadcast %107 : vector<1x1xf32> to vector<24x1xf32>
    %109 = arith.subf %105, %108 : vector<24x1xf32>
    %110 = math.exp %109 : vector<24x1xf32>
    %cst_58 = arith.constant dense<0.000000e+00> : vector<1xf32>
    %111 = vector.multi_reduction <add>, %110, %cst_58 [0] : vector<24x1xf32> to vector<1xf32>
    %112 = vector.shape_cast %111 : vector<1xf32> to vector<1x1xf32>
    %113 = tpu.reciprocal %112 {approx = true} : vector<1x1xf32> -> vector<1x1xf32>
    %114 = vector.broadcast %113 : vector<1x1xf32> to vector<24x1xf32>
    %115 = arith.mulf %110, %114 : vector<24x1xf32>
    %116 = vector.broadcast %92 : vector<24x1xf32> to vector<24x64xf32>
    %117 = arith.mulf %116, %90 : vector<24x64xf32>
    %118 = vector.broadcast %115 : vector<24x1xf32> to vector<24x64xf32>
    %119 = arith.mulf %118, %117 : vector<24x64xf32>
    %cst_59 = arith.constant dense<0.000000e+00> : vector<64xf32>
    %120 = vector.multi_reduction <add>, %119, %cst_59 [0] : vector<24x64xf32> to vector<64xf32>
    %121 = vector.shape_cast %120 : vector<64xf32> to vector<1x64xf32>
    %122 = arith.truncf %121 : vector<1x64xf32> to vector<1x64xbf16>
    %cst_60 = arith.constant dense<0.000000e+00> : vector<1x32xf32>
    %123 = tpu.matmul %122, %2, %cst_60 {dimension_numbers = #tpu.dot_dimension_numbers<[1], [0], [0], [1], [0, 0, 1, 1], [], []>} : vector<1x64xbf16>, vector<64x32xbf16>, vector<1x32xf32> -> vector<1x32xf32>
    %124 = arith.addf %123, %3 : vector<1x32xf32>
    %c8 = arith.constant 8 : index
    %c0_61 = arith.constant 0 : index
    %125 = vector.load %arg2[%c8, %c0_61] : memref<16x32xf32, #tpu.memory_space<vmem>>, vector<8x32xf32>
    %c1_62 = arith.constant 1 : index
    %c0_63 = arith.constant 0 : index
    %c0_64 = arith.constant 0 : index
    %126 = vector.load %arg3[%c1_62, %c0_63, %c0_64] : memref<2x8x1xf32, #tpu.memory_space<vmem>>, vector<1x8x1xf32>
    %127 = vector.shape_cast %126 : vector<1x8x1xf32> to vector<8x1xf32>
    %128 = arith.truncf %125 : vector<8x32xf32> to vector<8x32xbf16>
    %cst_65 = arith.constant dense<0.000000e+00> : vector<8x32xf32>
    %129 = tpu.matmul %128, %4, %cst_65 {dimension_numbers = #tpu.dot_dimension_numbers<[1], [0], [0], [1], [0, 0, 1, 1], [], []>} : vector<8x32xbf16>, vector<32x32xbf16>, vector<8x32xf32> -> vector<8x32xf32>
    %130 = vector.broadcast %5 : vector<1x32xf32> to vector<8x32xf32>
    %131 = arith.addf %129, %130 : vector<8x32xf32>
    %132 = math.tanh %131 : vector<8x32xf32>
    %133 = vector.broadcast %6 : vector<1x32xf32> to vector<8x32xf32>
    %134 = arith.mulf %132, %133 : vector<8x32xf32>
    %cst_66 = arith.constant dense<0.000000e+00> : vector<8xf32>
    %135 = vector.multi_reduction <add>, %134, %cst_66 [1] : vector<8x32xf32> to vector<8xf32>
    %136 = vector.shape_cast %135 : vector<8xf32> to vector<8x1xf32>
    %cst_67 = arith.constant 5.000000e-01 : f32
    %137 = vector.broadcast %cst_67 : f32 to vector<8x1xf32>
    %138 = arith.cmpf ogt, %127, %137 : vector<8x1xf32>
    %cst_68 = arith.constant -1.000000e+09 : f32
    %139 = vector.broadcast %cst_68 : f32 to vector<8x1xf32>
    %140 = arith.select %138, %136, %139 : vector<8x1xi1>, vector<8x1xf32>
    %cst_69 = arith.constant dense<0xFF800000> : vector<1xf32>
    %141 = vector.multi_reduction <maximumf>, %140, %cst_69 [0] : vector<8x1xf32> to vector<1xf32>
    %142 = vector.shape_cast %141 : vector<1xf32> to vector<1x1xf32>
    %143 = vector.broadcast %142 : vector<1x1xf32> to vector<8x1xf32>
    %144 = arith.subf %140, %143 : vector<8x1xf32>
    %145 = math.exp %144 : vector<8x1xf32>
    %cst_70 = arith.constant dense<0.000000e+00> : vector<1xf32>
    %146 = vector.multi_reduction <add>, %145, %cst_70 [0] : vector<8x1xf32> to vector<1xf32>
    %147 = vector.shape_cast %146 : vector<1xf32> to vector<1x1xf32>
    %148 = tpu.reciprocal %147 {approx = true} : vector<1x1xf32> -> vector<1x1xf32>
    %149 = vector.broadcast %148 : vector<1x1xf32> to vector<8x1xf32>
    %150 = arith.mulf %145, %149 : vector<8x1xf32>
    %151 = vector.broadcast %127 : vector<8x1xf32> to vector<8x32xf32>
    %152 = arith.mulf %151, %125 : vector<8x32xf32>
    %153 = vector.broadcast %150 : vector<8x1xf32> to vector<8x32xf32>
    %154 = arith.mulf %153, %152 : vector<8x32xf32>
    %cst_71 = arith.constant dense<0.000000e+00> : vector<32xf32>
    %155 = vector.multi_reduction <add>, %154, %cst_71 [0] : vector<8x32xf32> to vector<32xf32>
    %156 = vector.shape_cast %155 : vector<32xf32> to vector<1x32xf32>
    %157 = arith.truncf %124 : vector<1x32xf32> to vector<1x32xbf16>
    %cst_72 = arith.constant dense<0.000000e+00> : vector<1x32xf32>
    %158 = tpu.matmul %157, %11, %cst_72 {dimension_numbers = #tpu.dot_dimension_numbers<[1], [0], [0], [1], [0, 0, 1, 1], [], []>} : vector<1x32xbf16>, vector<32x32xbf16>, vector<1x32xf32> -> vector<1x32xf32>
    %159 = arith.truncf %156 : vector<1x32xf32> to vector<1x32xbf16>
    %cst_73 = arith.constant dense<0.000000e+00> : vector<1x32xf32>
    %160 = tpu.matmul %159, %12, %cst_73 {dimension_numbers = #tpu.dot_dimension_numbers<[1], [0], [0], [1], [0, 0, 1, 1], [], []>} : vector<1x32xbf16>, vector<32x32xbf16>, vector<1x32xf32> -> vector<1x32xf32>
    %161 = arith.addf %158, %160 : vector<1x32xf32>
    %162 = arith.addf %161, %8 : vector<1x32xf32>
    %163 = arith.truncf %162 : vector<1x32xf32> to vector<1x32xbf16>
    %cst_74 = arith.constant dense<0.000000e+00> : vector<1x4xf32>
    %164 = tpu.matmul %163, %9, %cst_74 {dimension_numbers = #tpu.dot_dimension_numbers<[1], [0], [0], [1], [0, 0, 1, 1], [], []>} : vector<1x32xbf16>, vector<32x4xbf16>, vector<1x4xf32> -> vector<1x4xf32>
    %165 = arith.addf %164, %10 : vector<1x4xf32>
    %c1_75 = arith.constant 1 : index
    %c0_76 = arith.constant 0 : index
    %166 = vector.load %arg15[%c1_75, %c0_76] : memref<2x4xf32, #tpu.memory_space<vmem>>, vector<1x4xf32>
    tpu.vector_store %arg15[%c1_75, %c0_76], %165 {strides = array<i32>} : memref<2x4xf32, #tpu.memory_space<vmem>>, vector<1x4xf32>,
    return
  }
}

</mosaic_0001>

<llo_original>
// kernel: _lambda_.5
$region0: #{_lambda_.5}
  #allocation0 [shape = 'u32[]', space=smem, size = 0x4, offset = 0x4, fixed_abs, tag = 'smem constant byte address 0x4 - core index']
  #allocation1 [shape = 'u32[144,128]{1,0:T(1,128)}', space=vmem, size = 0x12000, scoped, tag = 'internal scratch']
  %s0 = inlined_call_operand.vmem [shape: f32[48,64], index: 0, kind: input, shape index: {}]
  %s1 = inlined_call_operand.vmem [shape: f32[2,24,1], index: 1, kind: input, shape index: {}]
  %s2 = inlined_call_operand.vmem [shape: f32[16,32], index: 2, kind: input, shape index: {}]
  %s3 = inlined_call_operand.vmem [shape: f32[2,8,1], index: 3, kind: input, shape index: {}]
  %s4 = inlined_call_operand.vmem [shape: bf16[64,32], index: 4, kind: input, shape index: {}]
  %s5 = inlined_call_operand.vmem [shape: f32[1,32], index: 5, kind: input, shape index: {}]
  %s6 = inlined_call_operand.vmem [shape: bf16[64,32], index: 6, kind: input, shape index: {}]
  %s7 = inlined_call_operand.vmem [shape: f32[1,32], index: 7, kind: input, shape index: {}]
  %s8 = inlined_call_operand.vmem [shape: bf16[32,32], index: 8, kind: input, shape index: {}]
  %s9 = inlined_call_operand.vmem [shape: f32[1,32], index: 9, kind: input, shape index: {}]
  %s10 = inlined_call_operand.vmem [shape: f32[1,32], index: 10, kind: input, shape index: {}]
  %s11 = inlined_call_operand.vmem [shape: bf16[64,32], index: 11, kind: input, shape index: {}]
  %s12 = inlined_call_operand.vmem [shape: f32[1,32], index: 12, kind: input, shape index: {}]
  %s13 = inlined_call_operand.vmem [shape: bf16[32,4], index: 13, kind: input, shape index: {}]
  %s14 = inlined_call_operand.vmem [shape: f32[1,4], index: 14, kind: input, shape index: {}]
  %s15 = inlined_call_operand.hbm [shape: f32[2,4], index: 15, kind: output, shape index: {}]
  %s16 = sld [smem:[#allocation0]]
  $region70: #{_lambda_.5} parent=0
    _
  %s18 = ssub.s32 1, %s16
  %s19 = scalar_select 0, %s18, %s16
  $region1: #{_lambda_.5} parent=0
    #allocation2 [shape = 'u8[1024]{0}', space=vmem, size = 0x400, scoped, tag = 'output window, operand 0, single buffered']
    #allocation3 [shape = 's32[1]{0}', space=sflag, size = 0x4, scoped, tag = 'scoped memory for _lambda_.5']
    %20 = vsyncpa [#allocation3], 0
    // Predicated region
    $region2: #{_lambda_.5} parent=1 // pred_check
      _
    $region3: #{_lambda_.5} parent=1 // pred_check_branch
      %22 = sbr.rel (0) target = $region5
    $region4: #{_lambda_.5} parent=1 // pred_region
      _
    $region5: #{_lambda_.5} parent=1 // pred_fallthru
      _
    // Predicated region
    $region6: #{_lambda_.5} parent=1 // pred_check
      _
    $region7: #{_lambda_.5} parent=1 // pred_check_branch
      %24 = sbr.rel (0) target = $region9
    $region8: #{_lambda_.5} parent=1 // pred_region
      _
    $region9: #{_lambda_.5} parent=1 // pred_fallthru
      _
    // Predicated region
    $region10: #{_lambda_.5} parent=1 // pred_check
      _
    $region11: #{_lambda_.5} parent=1 // pred_check_branch
      %26 = sbr.rel (0) target = $region13
    $region12: #{_lambda_.5} parent=1 // pred_region
      _
    $region13: #{_lambda_.5} parent=1 // pred_fallthru
      _
    // Predicated region
    $region14: #{_lambda_.5} parent=1 // pred_check
      _
    $region15: #{_lambda_.5} parent=1 // pred_check_branch
      %28 = sbr.rel (0) target = $region17
    $region16: #{_lambda_.5} parent=1 // pred_region
      _
    $region17: #{_lambda_.5} parent=1 // pred_fallthru
      _
    // Predicated region
    $region18: #{_lambda_.5} parent=1 // pred_check
      _
    $region19: #{_lambda_.5} parent=1 // pred_check_branch
      %30 = sbr.rel (0) target = $region21
    $region20: #{_lambda_.5} parent=1 // pred_region
      _
    $region21: #{_lambda_.5} parent=1 // pred_fallthru
      _
    // Predicated region
    $region22: #{_lambda_.5} parent=1 // pred_check
      _
    $region23: #{_lambda_.5} parent=1 // pred_check_branch
      %32 = sbr.rel (0) target = $region25
    $region24: #{_lambda_.5} parent=1 // pred_region
      _
    $region25: #{_lambda_.5} parent=1 // pred_fallthru
      _
    // Predicated region
    $region26: #{_lambda_.5} parent=1 // pred_check
      _
    $region27: #{_lambda_.5} parent=1 // pred_check_branch
      %34 = sbr.rel (0) target = $region29
    $region28: #{_lambda_.5} parent=1 // pred_region
      _
    $region29: #{_lambda_.5} parent=1 // pred_fallthru
      _
    // Predicated region
    $region30: #{_lambda_.5} parent=1 // pred_check
      _
    $region31: #{_lambda_.5} parent=1 // pred_check_branch
      %36 = sbr.rel (0) target = $region33
    $region32: #{_lambda_.5} parent=1 // pred_region
      _
    $region33: #{_lambda_.5} parent=1 // pred_fallthru
      _
    // Predicated region
    $region34: #{_lambda_.5} parent=1 // pred_check
      _
    $region35: #{_lambda_.5} parent=1 // pred_check_branch
      %38 = sbr.rel (0) target = $region37
    $region36: #{_lambda_.5} parent=1 // pred_region
      _
    $region37: #{_lambda_.5} parent=1 // pred_fallthru
      _
    // Predicated region
    $region38: #{_lambda_.5} parent=1 // pred_check
      _
    $region39: #{_lambda_.5} parent=1 // pred_check_branch
      %40 = sbr.rel (0) target = $region41
    $region40: #{_lambda_.5} parent=1 // pred_region
      _
    $region41: #{_lambda_.5} parent=1 // pred_fallthru
      _
    // Predicated region
    $region42: #{_lambda_.5} parent=1 // pred_check
      _
    $region43: #{_lambda_.5} parent=1 // pred_check_branch
      %42 = sbr.rel (0) target = $region45
    $region44: #{_lambda_.5} parent=1 // pred_region
      _
    $region45: #{_lambda_.5} parent=1 // pred_fallthru
      _
    // Predicated region
    $region46: #{_lambda_.5} parent=1 // pred_check
      _
    $region47: #{_lambda_.5} parent=1 // pred_check_branch
      %44 = sbr.rel (0) target = $region49
    $region48: #{_lambda_.5} parent=1 // pred_region
      _
    $region49: #{_lambda_.5} parent=1 // pred_fallthru
      _
    // Predicated region
    $region50: #{_lambda_.5} parent=1 // pred_check
      _
    $region51: #{_lambda_.5} parent=1 // pred_check_branch
      %46 = sbr.rel (0) target = $region53
    $region52: #{_lambda_.5} parent=1 // pred_region
      _
    $region53: #{_lambda_.5} parent=1 // pred_fallthru
      _
    // Predicated region
    $region54: #{_lambda_.5} parent=1 // pred_check
      _
    $region55: #{_lambda_.5} parent=1 // pred_check_branch
      %48 = sbr.rel (0) target = $region57
    $region56: #{_lambda_.5} parent=1 // pred_region
      _
    $region57: #{_lambda_.5} parent=1 // pred_fallthru
      _
    // Predicated region
    $region58: #{_lambda_.5} parent=1 // pred_check
      _
    $region59: #{_lambda_.5} parent=1 // pred_check_branch
      %50 = sbr.rel (0) target = $region61
    $region60: #{_lambda_.5} parent=1 // pred_region
      _
    $region61: #{_lambda_.5} parent=1 // pred_fallthru
      _
    %v52 = vld [vmem:[%s4] sm:$0xf]
    %v53 = vld [vmem:[%s4 + $0x4] sm:$0xf]
    %v54 = vld [vmem:[%s4 + $0x8] sm:$0xf]
    %v55 = vld [vmem:[%s4 + $0xc] sm:$0xf]
    %v56 = vld [vmem:[%s4 + $0x10] sm:$0xf]
    %v57 = vld [vmem:[%s4 + $0x14] sm:$0xf]
    %v58 = vld [vmem:[%s4 + $0x18] sm:$0xf]
    %v59 = vld [vmem:[%s4 + $0x1c] sm:$0xf]
    %v60 = vld [vmem:[%s5] sm:$0x1]
    %v61 = vld [vmem:[%s6] sm:$0xf]
    %v62 = vld [vmem:[%s6 + $0x4] sm:$0xf]
    %v63 = vld [vmem:[%s6 + $0x8] sm:$0xf]
    %v64 = vld [vmem:[%s6 + $0xc] sm:$0xf]
    %v65 = vld [vmem:[%s6 + $0x10] sm:$0xf]
    %v66 = vld [vmem:[%s6 + $0x14] sm:$0xf]
    %v67 = vld [vmem:[%s6 + $0x18] sm:$0xf]
    %v68 = vld [vmem:[%s6 + $0x1c] sm:$0xf]
    %v69 = vld [vmem:[%s7] sm:$0x1]
    %v70 = vld [vmem:[%s8] sm:$0xf]
    %v71 = vld [vmem:[%s8 + $0x4] sm:$0xf]
    %v72 = vld [vmem:[%s8 + $0x8] sm:$0xf]
    %v73 = vld [vmem:[%s8 + $0xc] sm:$0xf]
    %v74 = vld [vmem:[%s9] sm:$0x1]
    %v75 = vld [vmem:[%s10] sm:$0x1]
    %v76 = vld [vmem:[%s11] sm:$0xf]
    %v77 = vld [vmem:[%s11 + $0x4] sm:$0xf]
    %v78 = vld [vmem:[%s11 + $0x8] sm:$0xf]
    %v79 = vld [vmem:[%s11 + $0xc] sm:$0xf]
    %v80 = vld [vmem:[%s11 + $0x10] sm:$0xf]
    %v81 = vld [vmem:[%s11 + $0x14] sm:$0xf]
    %v82 = vld [vmem:[%s11 + $0x18] sm:$0xf]
    %v83 = vld [vmem:[%s11 + $0x1c] sm:$0xf]
    %v84 = vld [vmem:[%s12] sm:$0x1]
    %v85 = vld [vmem:[%s13] sm:$0xf]
    %v86 = vld [vmem:[%s13 + $0x4] sm:$0xf]
    %v87 = vld [vmem:[%s13 + $0x8] sm:$0xf]
    %v88 = vld [vmem:[%s13 + $0xc] sm:$0xf]
    %v89 = vld [vmem:[%s14] sm:$0x1]
    %v90 = vld [vmem:[%s0] sm:$0xff]
    %v91 = vld [vmem:[%s0 + $0x8] sm:$0xff]
    %v92 = vld [vmem:[%s0 + $0x10] sm:$0xff]
    %v93 = vld [vmem:[%s1] sm:$0xff]
    %v94 = vld [vmem:[%s1 + $0x8] sm:$0xff]
    %v95 = vld [vmem:[%s1 + $0x10] sm:$0xff]
    %v96 = vpack.c.bf16 %v91, %v90
    %v97 = vpack.c.bf16 %v92, %v92
    %v99 = vlaneseq
    %v100 = vshrl.u32 %v99, 7
    %v101 = vsub.s32 0, %v100
    %v102 = vrot.slane %v60, %v101
    %v112 = vunpack.c.l.b16 %v52
    %v113 = vunpack.c.l.b16 %v53
    %v114 = vunpack.c.l.b16 %v54
    %v115 = vunpack.c.l.b16 %v55
    %v116 = vunpack.c.l.b16 %v56
    %v117 = vunpack.c.l.b16 %v57
    %v118 = vunpack.c.l.b16 %v58
    %v119 = vunpack.c.l.b16 %v59
    %v120 = vpack.c.b16 %v113, %v112
    %v121 = vpack.c.b16 %v115, %v114
    %v122 = vpack.c.b16 %v117, %v116
    %v123 = vpack.c.b16 %v119, %v118
    %vm128 = vcmask 523264
    %v130 = vsel %vm128, %v96, 0
    %v133 = vsel %vm128, %v97, 0
    %135 = vmatprep.subr.bf16.mxu0 0
    %136 = vmatpush1.bf16.msra.mxu0 0
    %137 = vmatprep.subr.bf16.mxu0 0
    %138 = vmatpush1.bf16.msra.mxu0 0
    %139 = vmatprep.subr.bf16.mxu0 0
    %140 = vmatpush1.bf16.msra.mxu0 0
    %141 = vmatprep.subr.bf16.mxu0 0
    %142 = vmatpush1.bf16.msra.mxu0 0
    %143 = vmatprep.subr.bf16.mxu0 0
    %144 = vmatpush1.bf16.msra.mxu0 %v123
    %145 = vmatprep.subr.bf16.mxu0 0
    %146 = vmatpush1.bf16.msra.mxu0 %v122
    %147 = vmatprep.subr.bf16.mxu0 0
    %148 = vmatpush1.bf16.msra.mxu0 %v121
    %149 = vmatprep.subr.bf16.mxu0 0
    %150 = vmatpush1.bf16.msra.mxu0 %v120
    %151 = vmatprep.subr.bf16.mxu0 0
    %152 = vmatpush2.bf16.msra.mxu0 0
    %153 = vmatprep.subr.bf16.mxu0 0
    %154 = vmatpush2.bf16.msra.mxu0 0
    %155 = vmatprep.subr.bf16.mxu0 0
    %156 = vmatpush2.bf16.msra.mxu0 0
    %157 = vmatprep.subr.bf16.mxu0 0
    %158 = vmatpush2.bf16.msra.mxu0 0
    %159 = vmatprep.subr.bf16.mxu0 0
    %160 = vmatpush2.bf16.msra.mxu0 0
    %161 = vmatprep.subr.bf16.mxu0 0
    %162 = vmatpush2.bf16.msra.mxu0 0
    %163 = vmatprep.subr.bf16.mxu0 0
    %164 = vmatpush2.bf16.msra.mxu0 0
    %165 = vmatprep.subr.bf16.mxu0 0
    %166 = vmatpush2.bf16.msra.mxu0 0
    %167 = vmatprep.mubr.bf16.mxu0 0
    %168 = vmatmul.mubr.bf16.gmra.mxu0 %v130
    %v169 = vpop.f32.mrf.mxu0
    %v170 = vadd.f32 %v102, %v169
    %v171 = vpop.f32.mrf.mxu0
    %v172 = vpop.f32.mrf.mxu0
    %v173 = vadd.f32 %v102, %v172
    %v174 = vpop.f32.mrf.mxu0
    %175 = vmatprep.mubr.bf16.mxu0 0
    %176 = vmatmul.mubr.bf16.gmra.mxu0 %v133
    %v177 = vpop.f32.mrf.mxu0
    %v178 = vadd.f32 %v102, %v177
    %v179 = vpop.f32.mrf.mxu0
    %v180 = vpop.f32.mrf.mxu0
    %v181 = vpop.f32.mrf.mxu0
    %182 = vdwg.mxu0
    %v183 = vtanh.pop %v170
    %v184 = vtanh.pop %v173
    %v185 = vtanh.pop %v178
    %v187 = vlaneseq
    %v188 = vshrl.u32 %v187, 7
    %v189 = vsub.s32 0, %v188
    %v190 = vrot.slane %v75, %v189
    %v192 = vmul.f32 %v183, %v190
    %v193 = vmul.f32 %v184, %v190
    %v194 = vmul.f32 %v185, %v190
    %vm195 = vcmask 261120
    %v196 = vsel %vm195, %v192, 0.0
    %197 = vadd.xlane.f32.xlu0 %v196
    %v198 = vpop.xlane.xlu0 %197
    %v199 = vsel %vm195, %v193, 0.0
    %200 = vadd.xlane.f32.xlu0 %v199
    %v201 = vpop.xlane.xlu0 %200
    %v202 = vsel %vm195, %v194, 0.0
    %203 = vadd.xlane.f32.xlu0 %v202
    %v204 = vpop.xlane.xlu0 %203
    %vm205 = vcmp.gt.f32.partialorder %v93, 0.5
    %vm206 = vcmp.gt.f32.partialorder %v94, 0.5
    %vm207 = vcmp.gt.f32.partialorder %v95, 0.5
    %v208 = vsel %vm205, %v198, -1e+09
    %v209 = vsel %vm206, %v201, -1e+09
    %v210 = vsel %vm207, %v204, -1e+09
    %vm211 = vcmask 7168
    %v212 = vsel %vm211, %v208, -inf
    %v213 = vsel %vm211, %v209, -inf
    %v214 = vsel %vm211, %v210, -inf
    %v215 = vmax.f32 %v212, %v213
    %v216 = vmax.f32 %v215, %v214
    %v217 = vrot.slane %v216, 4
    %v218 = vmax.f32 %v216, %v217
    %v219 = vrot.slane %v218, 2
    %v220 = vmax.f32 %v218, %v219
    %v221 = vrot.slane %v220, 1
    %v222 = vmax.f32 %v220, %v221
    %v223 = vsub.f32 %v208, %v222
    %v224 = vsub.f32 %v209, %v222
    %v225 = vsub.f32 %v210, %v222
    %v226 = vmul.f32 %v223, 1.442695
    %v227 = vpow.pop %v226
    %v228 = vmul.f32 %v224, 1.442695
    %v229 = vpow.pop %v228
    %v230 = vmul.f32 %v225, 1.442695
    %v231 = vpow.pop %v230
    %v232 = vsel %vm211, %v227, 0.0
    %v233 = vsel %vm211, %v229, 0.0
    %v234 = vadd.f32 %v232, %v233
    %v235 = vsel %vm211, %v231, 0.0
    %v236 = vadd.f32 %v234, %v235
    %v237 = vrot.slane %v236, 4
    %v238 = vadd.f32 %v236, %v237
    %v239 = vrot.slane %v238, 2
    %v240 = vadd.f32 %v238, %v239
    %v241 = vrot.slane %v240, 1
    %v242 = vadd.f32 %v240, %v241
    %v243 = vrcp.pop %v242
    %v244 = vmul.f32 %v227, %v243
    %v245 = vmul.f32 %v229, %v243
    %v246 = vmul.f32 %v231, %v243
    %248 = vset.pattern.permute.xlu0 0
    %249 = vperm.xlu0 %248, %v93
    %v250 = vpop.permute.xlu0 %249
    %253 = vset.pattern.permute.xlu0 0
    %254 = vperm.xlu0 %253, %v94
    %v255 = vpop.permute.xlu0 %254
    %258 = vset.pattern.permute.xlu0 0
    %259 = vperm.xlu0 %258, %v95
    %v260 = vpop.permute.xlu0 %259
    %v262 = vmul.f32 %v250, %v90
    %v263 = vmul.f32 %v255, %v91
    %v264 = vmul.f32 %v260, %v92
    %266 = vset.pattern.permute.xlu0 0
    %267 = vperm.xlu0 %266, %v244
    %v268 = vpop.permute.xlu0 %267
    %271 = vset.pattern.permute.xlu0 0
    %272 = vperm.xlu0 %271, %v245
    %v273 = vpop.permute.xlu0 %272
    %276 = vset.pattern.permute.xlu0 0
    %277 = vperm.xlu0 %276, %v246
    %v278 = vpop.permute.xlu0 %277
    %v280 = vmul.f32 %v268, %v262
    %v281 = vmul.f32 %v273, %v263
    %v282 = vmul.f32 %v278, %v264
    %v283 = vsel %vm128, %v280, 0.0
    %v284 = vsel %vm128, %v281, 0.0
    %v285 = vadd.f32 %v283, %v284
    %v286 = vsel %vm128, %v282, 0.0
    %v287 = vadd.f32 %v285, %v286
    %v288 = vrot.slane %v287, 4
    %v289 = vadd.f32 %v287, %v288
    %v290 = vrot.slane %v289, 2
    %v291 = vadd.f32 %v289, %v290
    %v292 = vrot.slane %v291, 1
    %v293 = vadd.f32 %v291, %v292
    %v294 = vpack.c.bf16 %v293, %v293
    %v303 = vunpack.c.l.b16 %v61
    %v304 = vunpack.c.l.b16 %v62
    %v305 = vunpack.c.l.b16 %v63
    %v306 = vunpack.c.l.b16 %v64
    %v307 = vunpack.c.l.b16 %v65
    %v308 = vunpack.c.l.b16 %v66
    %v309 = vunpack.c.l.b16 %v67
    %v310 = vunpack.c.l.b16 %v68
    %v311 = vpack.c.b16 %v304, %v303
    %v312 = vpack.c.b16 %v306, %v305
    %v313 = vpack.c.b16 %v308, %v307
    %v314 = vpack.c.b16 %v310, %v309
    %v320 = vsel %vm128, %v294, 0
    %322 = vmatprep.subr.bf16.mxu0 0
    %323 = vmatpush1.bf16.msra.mxu0 0
    %324 = vmatprep.subr.bf16.mxu0 0
    %325 = vmatpush1.bf16.msra.mxu0 0
    %326 = vmatprep.subr.bf16.mxu0 0
    %327 = vmatpush1.bf16.msra.mxu0 0
    %328 = vmatprep.subr.bf16.mxu0 0
    %329 = vmatpush1.bf16.msra.mxu0 0
    %330 = vmatprep.subr.bf16.mxu0 0
    %331 = vmatpush1.bf16.msra.mxu0 %v314
    %332 = vmatprep.subr.bf16.mxu0 0
    %333 = vmatpush1.bf16.msra.mxu0 %v313
    %334 = vmatprep.subr.bf16.mxu0 0
    %335 = vmatpush1.bf16.msra.mxu0 %v312
    %336 = vmatprep.subr.bf16.mxu0 0
    %337 = vmatpush1.bf16.msra.mxu0 %v311
    %338 = vmatprep.subr.bf16.mxu0 0
    %339 = vmatpush2.bf16.msra.mxu0 0
    %340 = vmatprep.subr.bf16.mxu0 0
    %341 = vmatpush2.bf16.msra.mxu0 0
    %342 = vmatprep.subr.bf16.mxu0 0
    %343 = vmatpush2.bf16.msra.mxu0 0
    %344 = vmatprep.subr.bf16.mxu0 0
    %345 = vmatpush2.bf16.msra.mxu0 0
    %346 = vmatprep.subr.bf16.mxu0 0
    %347 = vmatpush2.bf16.msra.mxu0 0
    %348 = vmatprep.subr.bf16.mxu0 0
    %349 = vmatpush2.bf16.msra.mxu0 0
    %350 = vmatprep.subr.bf16.mxu0 0
    %351 = vmatpush2.bf16.msra.mxu0 0
    %352 = vmatprep.subr.bf16.mxu0 0
    %353 = vmatpush2.bf16.msra.mxu0 0
    %354 = vmatprep.mubr.bf16.mxu0 0
    %355 = vmatmul.mubr.bf16.gmra.mxu0 %v320
    %v356 = vpop.f32.mrf.mxu0
    %v357 = vadd.f32 %v69, %v356
    %v358 = vpop.f32.mrf.mxu0
    %v359 = vpop.f32.mrf.mxu0
    %v360 = vpop.f32.mrf.mxu0
    %361 = vdwg.mxu0
    %v362 = vld [vmem:[%s2] sm:$0xff]
    %v363 = vld [vmem:[%s3] sm:$0xff]
    %v364 = vpack.c.bf16 %v362, %v362
    %v366 = vlaneseq
    %v367 = vshrl.u32 %v366, 7
    %v368 = vsub.s32 0, %v367
    %v369 = vrot.slane %v74, %v368
    %v375 = vunpack.c.l.b16 %v70
    %v376 = vunpack.c.l.b16 %v71
    %v377 = vunpack.c.l.b16 %v72
    %v378 = vunpack.c.l.b16 %v73
    %v379 = vpack.c.b16 %v376, %v375
    %v380 = vpack.c.b16 %v378, %v377
    %v384 = vsel %vm195, %v364, 0
    %386 = vmatprep.subr.bf16.mxu0 0
    %387 = vmatpush1.bf16.msra.mxu0 0
    %388 = vmatprep.subr.bf16.mxu0 0
    %389 = vmatpush1.bf16.msra.mxu0 0
    %390 = vmatprep.subr.bf16.mxu0 0
    %391 = vmatpush1.bf16.msra.mxu0 0
    %392 = vmatprep.subr.bf16.mxu0 0
    %393 = vmatpush1.bf16.msra.mxu0 0
    %394 = vmatprep.subr.bf16.mxu0 0
    %395 = vmatpush1.bf16.msra.mxu0 0
    %396 = vmatprep.subr.bf16.mxu0 0
    %397 = vmatpush1.bf16.msra.mxu0 0
    %398 = vmatprep.subr.bf16.mxu0 0
    %399 = vmatpush1.bf16.msra.mxu0 %v380
    %400 = vmatprep.subr.bf16.mxu0 0
    %401 = vmatpush1.bf16.msra.mxu0 %v379
    %402 = vmatprep.subr.bf16.mxu0 0
    %403 = vmatpush2.bf16.msra.mxu0 0
    %404 = vmatprep.subr.bf16.mxu0 0
    %405 = vmatpush2.bf16.msra.mxu0 0
    %406 = vmatprep.subr.bf16.mxu0 0
    %407 = vmatpush2.bf16.msra.mxu0 0
    %408 = vmatprep.subr.bf16.mxu0 0
    %409 = vmatpush2.bf16.msra.mxu0 0
    %410 = vmatprep.subr.bf16.mxu0 0
    %411 = vmatpush2.bf16.msra.mxu0 0
    %412 = vmatprep.subr.bf16.mxu0 0
    %413 = vmatpush2.bf16.msra.mxu0 0
    %414 = vmatprep.subr.bf16.mxu0 0
    %415 = vmatpush2.bf16.msra.mxu0 0
    %416 = vmatprep.subr.bf16.mxu0 0
    %417 = vmatpush2.bf16.msra.mxu0 0
    %418 = vmatprep.mubr.bf16.mxu0 0
    %419 = vmatmul.mubr.bf16.gmra.mxu0 %v384
    %v420 = vpop.f32.mrf.mxu0
    %v421 = vadd.f32 %v369, %v420
    %v422 = vpop.f32.mrf.mxu0
    %v423 = vpop.f32.mrf.mxu0
    %v424 = vpop.f32.mrf.mxu0
    %425 = vdwg.mxu0
    %v426 = vtanh.pop %v421
    %v427 = vmul.f32 %v426, %v190
    %v428 = vsel %vm195, %v427, 0.0
    %429 = vadd.xlane.f32.xlu0 %v428
    %v430 = vpop.xlane.xlu0 %429
    %vm431 = vcmp.gt.f32.partialorder %v363, 0.5
    %v432 = vsel %vm431, %v430, -1e+09
    %v433 = vsel %vm211, %v432, -inf
    %v434 = vrot.slane %v433, 4
    %v435 = vmax.f32 %v433, %v434
    %v436 = vrot.slane %v435, 2
    %v437 = vmax.f32 %v435, %v436
    %v438 = vrot.slane %v437, 1
    %v439 = vmax.f32 %v437, %v438
    %v440 = vsub.f32 %v432, %v439
    %v441 = vmul.f32 %v440, 1.442695
    %v442 = vpow.pop %v441
    %v443 = vsel %vm211, %v442, 0.0
    %v444 = vrot.slane %v443, 4
    %v445 = vadd.f32 %v443, %v444
    %v446 = vrot.slane %v445, 2
    %v447 = vadd.f32 %v445, %v446
    %v448 = vrot.slane %v447, 1
    %v449 = vadd.f32 %v447, %v448
    %v450 = vrcp.pop %v449
    %v451 = vmul.f32 %v442, %v450
    %453 = vset.pattern.permute.xlu0 0
    %454 = vperm.xlu0 %453, %v363
    %v455 = vpop.permute.xlu0 %454
    %v457 = vmul.f32 %v455, %v362
    %459 = vset.pattern.permute.xlu0 0
    %460 = vperm.xlu0 %459, %v451
    %v461 = vpop.permute.xlu0 %460
    %v463 = vmul.f32 %v461, %v457
    %v464 = vsel %vm195, %v463, 0.0
    %v465 = vrot.slane %v464, 4
    %v466 = vadd.f32 %v464, %v465
    %v467 = vrot.slane %v466, 2
    %v468 = vadd.f32 %v466, %v467
    %v469 = vrot.slane %v468, 1
    %v470 = vadd.f32 %v468, %v469
    %v471 = vpack.c.bf16 %v357, %v357
    %v472 = vpack.c.bf16 %v470, %v470
    %v477 = vunpack.c.l.b16 %v80
    %v478 = vunpack.c.l.b16 %v81
    %v479 = vunpack.c.l.b16 %v82
    %v480 = vunpack.c.l.b16 %v83
    %v481 = vpack.c.b16 %v478, %v477
    %v482 = vpack.c.b16 %v480, %v479
    %v486 = vsel %vm195, %v472, 0
    %488 = vmatprep.subr.bf16.mxu0 0
    %489 = vmatpush1.bf16.msra.mxu0 0
    %490 = vmatprep.subr.bf16.mxu0 0
    %491 = vmatpush1.bf16.msra.mxu0 0
    %492 = vmatprep.subr.bf16.mxu0 0
    %493 = vmatpush1.bf16.msra.mxu0 0
    %494 = vmatprep.subr.bf16.mxu0 0
    %495 = vmatpush1.bf16.msra.mxu0 0
    %496 = vmatprep.subr.bf16.mxu0 0
    %497 = vmatpush1.bf16.msra.mxu0 0
    %498 = vmatprep.subr.bf16.mxu0 0
    %499 = vmatpush1.bf16.msra.mxu0 0
    %500 = vmatprep.subr.bf16.mxu0 0
    %501 = vmatpush1.bf16.msra.mxu0 %v482
    %502 = vmatprep.subr.bf16.mxu0 0
    %503 = vmatpush1.bf16.msra.mxu0 %v481
    %504 = vmatprep.subr.bf16.mxu0 0
    %505 = vmatpush2.bf16.msra.mxu0 0
    %506 = vmatprep.subr.bf16.mxu0 0
    %507 = vmatpush2.bf16.msra.mxu0 0
    %508 = vmatprep.subr.bf16.mxu0 0
    %509 = vmatpush2.bf16.msra.mxu0 0
    %510 = vmatprep.subr.bf16.mxu0 0
    %511 = vmatpush2.bf16.msra.mxu0 0
    %512 = vmatprep.subr.bf16.mxu0 0
    %513 = vmatpush2.bf16.msra.mxu0 0
    %514 = vmatprep.subr.bf16.mxu0 0
    %515 = vmatpush2.bf16.msra.mxu0 0
    %516 = vmatprep.subr.bf16.mxu0 0
    %517 = vmatpush2.bf16.msra.mxu0 0
    %518 = vmatprep.subr.bf16.mxu0 0
    %519 = vmatpush2.bf16.msra.mxu0 0
    %520 = vmatprep.mubr.bf16.mxu0 0
    %521 = vmatmul.mubr.bf16.gmra.mxu0 %v486
    %v522 = vpop.f32.mrf.mxu0
    %v523 = vadd.f32 0.0, %v522
    %v524 = vpop.f32.mrf.mxu0
    %v525 = vpop.f32.mrf.mxu0
    %v526 = vpop.f32.mrf.mxu0
    %527 = vdwg.mxu0
    %v532 = vunpack.c.l.b16 %v76
    %v533 = vunpack.c.l.b16 %v77
    %v534 = vunpack.c.l.b16 %v78
    %v535 = vunpack.c.l.b16 %v79
    %v536 = vpack.c.b16 %v533, %v532
    %v537 = vpack.c.b16 %v535, %v534
    %v541 = vsel %vm195, %v471, 0
    %543 = vmatprep.subr.bf16.mxu0 0
    %544 = vmatpush1.bf16.msra.mxu0 0
    %545 = vmatprep.subr.bf16.mxu0 0
    %546 = vmatpush1.bf16.msra.mxu0 0
    %547 = vmatprep.subr.bf16.mxu0 0
    %548 = vmatpush1.bf16.msra.mxu0 0
    %549 = vmatprep.subr.bf16.mxu0 0
    %550 = vmatpush1.bf16.msra.mxu0 0
    %551 = vmatprep.subr.bf16.mxu0 0
    %552 = vmatpush1.bf16.msra.mxu0 0
    %553 = vmatprep.subr.bf16.mxu0 0
    %554 = vmatpush1.bf16.msra.mxu0 0
    %555 = vmatprep.subr.bf16.mxu0 0
    %556 = vmatpush1.bf16.msra.mxu0 %v537
    %557 = vmatprep.subr.bf16.mxu0 0
    %558 = vmatpush1.bf16.msra.mxu0 %v536
    %559 = vmatprep.subr.bf16.mxu0 0
    %560 = vmatpush2.bf16.msra.mxu0 0
    %561 = vmatprep.subr.bf16.mxu0 0
    %562 = vmatpush2.bf16.msra.mxu0 0
    %563 = vmatprep.subr.bf16.mxu0 0
    %564 = vmatpush2.bf16.msra.mxu0 0
    %565 = vmatprep.subr.bf16.mxu0 0
    %566 = vmatpush2.bf16.msra.mxu0 0
    %567 = vmatprep.subr.bf16.mxu0 0
    %568 = vmatpush2.bf16.msra.mxu0 0
    %569 = vmatprep.subr.bf16.mxu0 0
    %570 = vmatpush2.bf16.msra.mxu0 0
    %571 = vmatprep.subr.bf16.mxu0 0
    %572 = vmatpush2.bf16.msra.mxu0 0
    %573 = vmatprep.subr.bf16.mxu0 0
    %574 = vmatpush2.bf16.msra.mxu0 0
    %575 = vmatprep.mubr.bf16.mxu0 0
    %576 = vmatmul.mubr.bf16.gmra.mxu0 %v541
    %v577 = vpop.f32.mrf.mxu0
    %v578 = vadd.f32 %v523, %v577
    %v579 = vpop.f32.mrf.mxu0
    %v580 = vpop.f32.mrf.mxu0
    %v581 = vpop.f32.mrf.mxu0
    %582 = vdwg.mxu0
    %v583 = vadd.f32 %v578, %v84
    %v584 = vpack.c.bf16 %v583, %v583
    %v589 = vunpack.c.l.b16 %v85
    %v590 = vunpack.c.l.b16 %v86
    %v591 = vunpack.c.l.b16 %v87
    %v592 = vunpack.c.l.b16 %v88
    %v593 = vpack.c.b16 %v590, %v589
    %v594 = vpack.c.b16 %v592, %v591
    %v598 = vsel %vm195, %v584, 0
    %600 = vmatprep.subr.bf16.mxu0 0
    %601 = vmatpush1.bf16.msra.mxu0 0
    %602 = vmatprep.subr.bf16.mxu0 0
    %603 = vmatpush1.bf16.msra.mxu0 0
    %604 = vmatprep.subr.bf16.mxu0 0
    %605 = vmatpush1.bf16.msra.mxu0 0
    %606 = vmatprep.subr.bf16.mxu0 0
    %607 = vmatpush1.bf16.msra.mxu0 0
    %608 = vmatprep.subr.bf16.mxu0 0
    %609 = vmatpush1.bf16.msra.mxu0 0
    %610 = vmatprep.subr.bf16.mxu0 0
    %611 = vmatpush1.bf16.msra.mxu0 0
    %612 = vmatprep.subr.bf16.mxu0 0
    %613 = vmatpush1.bf16.msra.mxu0 %v594
    %614 = vmatprep.subr.bf16.mxu0 0
    %615 = vmatpush1.bf16.msra.mxu0 %v593
    %616 = vmatprep.subr.bf16.mxu0 0
    %617 = vmatpush2.bf16.msra.mxu0 0
    %618 = vmatprep.subr.bf16.mxu0 0
    %619 = vmatpush2.bf16.msra.mxu0 0
    %620 = vmatprep.subr.bf16.mxu0 0
    %621 = vmatpush2.bf16.msra.mxu0 0
    %622 = vmatprep.subr.bf16.mxu0 0
    %623 = vmatpush2.bf16.msra.mxu0 0
    %624 = vmatprep.subr.bf16.mxu0 0
    %625 = vmatpush2.bf16.msra.mxu0 0
    %626 = vmatprep.subr.bf16.mxu0 0
    %627 = vmatpush2.bf16.msra.mxu0 0
    %628 = vmatprep.subr.bf16.mxu0 0
    %629 = vmatpush2.bf16.msra.mxu0 0
    %630 = vmatprep.subr.bf16.mxu0 0
    %631 = vmatpush2.bf16.msra.mxu0 0
    %632 = vmatprep.mubr.bf16.mxu0 0
    %633 = vmatmul.mubr.bf16.gmra.mxu0 %v598
    %v634 = vpop.f32.mrf.mxu0
    %v635 = vadd.f32 %v89, %v634
    %v636 = vpop.f32.mrf.mxu0
    %v637 = vpop.f32.mrf.mxu0
    %v638 = vpop.f32.mrf.mxu0
    %639 = vdwg.mxu0
    %vm640 = vcmask 24576
    %641 = vst.msk [vmem:[#allocation2] sm:$0x1] %vm640, %v635
    %v642 = vld [vmem:[%s0 + $0x18] sm:$0xff]
    %v643 = vld [vmem:[%s0 + $0x20] sm:$0xff]
    %v644 = vld [vmem:[%s0 + $0x28] sm:$0xff]
    %s645 = scalar_lea.vmem %s1, 24
    %v646 = vld [vmem:[%s645] sm:$0xff]
    %v647 = vld [vmem:[%s645 + $0x8] sm:$0xff]
    %v648 = vld [vmem:[%s645 + $0x10] sm:$0xff]
    %v649 = vpack.c.bf16 %v643, %v642
    %v650 = vpack.c.bf16 %v644, %v644
    %v652 = vsel %vm128, %v649, 0
    %v655 = vsel %vm128, %v650, 0
    %657 = vmatprep.subr.bf16.mxu0 0
    %658 = vmatpush1.bf16.msra.mxu0 0
    %659 = vmatprep.subr.bf16.mxu0 0
    %660 = vmatpush1.bf16.msra.mxu0 0
    %661 = vmatprep.subr.bf16.mxu0 0
    %662 = vmatpush1.bf16.msra.mxu0 0
    %663 = vmatprep.subr.bf16.mxu0 0
    %664 = vmatpush1.bf16.msra.mxu0 0
    %665 = vmatprep.subr.bf16.mxu0 0
    %666 = vmatpush1.bf16.msra.mxu0 %v123
    %667 = vmatprep.subr.bf16.mxu0 0
    %668 = vmatpush1.bf16.msra.mxu0 %v122
    %669 = vmatprep.subr.bf16.mxu0 0
    %670 = vmatpush1.bf16.msra.mxu0 %v121
    %671 = vmatprep.subr.bf16.mxu0 0
    %672 = vmatpush1.bf16.msra.mxu0 %v120
    %673 = vmatprep.subr.bf16.mxu0 0
    %674 = vmatpush2.bf16.msra.mxu0 0
    %675 = vmatprep.subr.bf16.mxu0 0
    %676 = vmatpush2.bf16.msra.mxu0 0
    %677 = vmatprep.subr.bf16.mxu0 0
    %678 = vmatpush2.bf16.msra.mxu0 0
    %679 = vmatprep.subr.bf16.mxu0 0
    %680 = vmatpush2.bf16.msra.mxu0 0
    %681 = vmatprep.subr.bf16.mxu0 0
    %682 = vmatpush2.bf16.msra.mxu0 0
    %683 = vmatprep.subr.bf16.mxu0 0
    %684 = vmatpush2.bf16.msra.mxu0 0
    %685 = vmatprep.subr.bf16.mxu0 0
    %686 = vmatpush2.bf16.msra.mxu0 0
    %687 = vmatprep.subr.bf16.mxu0 0
    %688 = vmatpush2.bf16.msra.mxu0 0
    %689 = vmatprep.mubr.bf16.mxu0 0
    %690 = vmatmul.mubr.bf16.gmra.mxu0 %v652
    %v691 = vpop.f32.mrf.mxu0
    %v692 = vadd.f32 %v102, %v691
    %v693 = vpop.f32.mrf.mxu0
    %v694 = vpop.f32.mrf.mxu0
    %v695 = vadd.f32 %v102, %v694
    %v696 = vpop.f32.mrf.mxu0
    %697 = vmatprep.mubr.bf16.mxu0 0
    %698 = vmatmul.mubr.bf16.gmra.mxu0 %v655
    %v699 = vpop.f32.mrf.mxu0
    %v700 = vadd.f32 %v102, %v699
    %v701 = vpop.f32.mrf.mxu0
    %v702 = vpop.f32.mrf.mxu0
    %v703 = vpop.f32.mrf.mxu0
    %704 = vdwg.mxu0
    %v705 = vtanh.pop %v692
    %v706 = vtanh.pop %v695
    %v707 = vtanh.pop %v700
    %v708 = vmul.f32 %v705, %v190
    %v709 = vmul.f32 %v706, %v190
    %v710 = vmul.f32 %v707, %v190
    %v711 = vsel %vm195, %v708, 0.0
    %712 = vadd.xlane.f32.xlu0 %v711
    %v713 = vpop.xlane.xlu0 %712
    %v714 = vsel %vm195, %v709, 0.0
    %715 = vadd.xlane.f32.xlu0 %v714
    %v716 = vpop.xlane.xlu0 %715
    %v717 = vsel %vm195, %v710, 0.0
    %718 = vadd.xlane.f32.xlu0 %v717
    %v719 = vpop.xlane.xlu0 %718
    %vm720 = vcmp.gt.f32.partialorder %v646, 0.5
    %vm721 = vcmp.gt.f32.partialorder %v647, 0.5
    %vm722 = vcmp.gt.f32.partialorder %v648, 0.5
    %v723 = vsel %vm720, %v713, -1e+09
    %v724 = vsel %vm721, %v716, -1e+09
    %v725 = vsel %vm722, %v719, -1e+09
    %v726 = vsel %vm211, %v723, -inf
    %v727 = vsel %vm211, %v724, -inf
    %v728 = vsel %vm211, %v725, -inf
    %v729 = vmax.f32 %v726, %v727
    %v730 = vmax.f32 %v729, %v728
    %v731 = vrot.slane %v730, 4
    %v732 = vmax.f32 %v730, %v731
    %v733 = vrot.slane %v732, 2
    %v734 = vmax.f32 %v732, %v733
    %v735 = vrot.slane %v734, 1
    %v736 = vmax.f32 %v734, %v735
    %v737 = vsub.f32 %v723, %v736
    %v738 = vsub.f32 %v724, %v736
    %v739 = vsub.f32 %v725, %v736
    %v740 = vmul.f32 %v737, 1.442695
    %v741 = vpow.pop %v740
    %v742 = vmul.f32 %v738, 1.442695
    %v743 = vpow.pop %v742
    %v744 = vmul.f32 %v739, 1.442695
    %v745 = vpow.pop %v744
    %v746 = vsel %vm211, %v741, 0.0
    %v747 = vsel %vm211, %v743, 0.0
    %v748 = vadd.f32 %v746, %v747
    %v749 = vsel %vm211, %v745, 0.0
    %v750 = vadd.f32 %v748, %v749
    %v751 = vrot.slane %v750, 4
    %v752 = vadd.f32 %v750, %v751
    %v753 = vrot.slane %v752, 2
    %v754 = vadd.f32 %v752, %v753
    %v755 = vrot.slane %v754, 1
    %v756 = vadd.f32 %v754, %v755
    %v757 = vrcp.pop %v756
    %v758 = vmul.f32 %v741, %v757
    %v759 = vmul.f32 %v743, %v757
    %v760 = vmul.f32 %v745, %v757
    %762 = vset.pattern.permute.xlu0 0
    %763 = vperm.xlu0 %762, %v646
    %v764 = vpop.permute.xlu0 %763
    %767 = vset.pattern.permute.xlu0 0
    %768 = vperm.xlu0 %767, %v647
    %v769 = vpop.permute.xlu0 %768
    %772 = vset.pattern.permute.xlu0 0
    %773 = vperm.xlu0 %772, %v648
    %v774 = vpop.permute.xlu0 %773
    %v776 = vmul.f32 %v764, %v642
    %v777 = vmul.f32 %v769, %v643
    %v778 = vmul.f32 %v774, %v644
    %780 = vset.pattern.permute.xlu0 0
    %781 = vperm.xlu0 %780, %v758
    %v782 = vpop.permute.xlu0 %781
    %785 = vset.pattern.permute.xlu0 0
    %786 = vperm.xlu0 %785, %v759
    %v787 = vpop.permute.xlu0 %786
    %790 = vset.pattern.permute.xlu0 0
    %791 = vperm.xlu0 %790, %v760
    %v792 = vpop.permute.xlu0 %791
    %v794 = vmul.f32 %v782, %v776
    %v795 = vmul.f32 %v787, %v777
    %v796 = vmul.f32 %v792, %v778
    %v797 = vsel %vm128, %v794, 0.0
    %v798 = vsel %vm128, %v795, 0.0
    %v799 = vadd.f32 %v797, %v798
    %v800 = vsel %vm128, %v796, 0.0
    %v801 = vadd.f32 %v799, %v800
    %v802 = vrot.slane %v801, 4
    %v803 = vadd.f32 %v801, %v802
    %v804 = vrot.slane %v803, 2
    %v805 = vadd.f32 %v803, %v804
    %v806 = vrot.slane %v805, 1
    %v807 = vadd.f32 %v805, %v806
    %v808 = vpack.c.bf16 %v807, %v807
    %v810 = vsel %vm128, %v808, 0
    %812 = vmatprep.subr.bf16.mxu0 0
    %813 = vmatpush1.bf16.msra.mxu0 0
    %814 = vmatprep.subr.bf16.mxu0 0
    %815 = vmatpush1.bf16.msra.mxu0 0
    %816 = vmatprep.subr.bf16.mxu0 0
    %817 = vmatpush1.bf16.msra.mxu0 0
    %818 = vmatprep.subr.bf16.mxu0 0
    %819 = vmatpush1.bf16.msra.mxu0 0
    %820 = vmatprep.subr.bf16.mxu0 0
    %821 = vmatpush1.bf16.msra.mxu0 %v314
    %822 = vmatprep.subr.bf16.mxu0 0
    %823 = vmatpush1.bf16.msra.mxu0 %v313
    %824 = vmatprep.subr.bf16.mxu0 0
    %825 = vmatpush1.bf16.msra.mxu0 %v312
    %826 = vmatprep.subr.bf16.mxu0 0
    %827 = vmatpush1.bf16.msra.mxu0 %v311
    %828 = vmatprep.subr.bf16.mxu0 0
    %829 = vmatpush2.bf16.msra.mxu0 0
    %830 = vmatprep.subr.bf16.mxu0 0
    %831 = vmatpush2.bf16.msra.mxu0 0
    %832 = vmatprep.subr.bf16.mxu0 0
    %833 = vmatpush2.bf16.msra.mxu0 0
    %834 = vmatprep.subr.bf16.mxu0 0
    %835 = vmatpush2.bf16.msra.mxu0 0
    %836 = vmatprep.subr.bf16.mxu0 0
    %837 = vmatpush2.bf16.msra.mxu0 0
    %838 = vmatprep.subr.bf16.mxu0 0
    %839 = vmatpush2.bf16.msra.mxu0 0
    %840 = vmatprep.subr.bf16.mxu0 0
    %841 = vmatpush2.bf16.msra.mxu0 0
    %842 = vmatprep.subr.bf16.mxu0 0
    %843 = vmatpush2.bf16.msra.mxu0 0
    %844 = vmatprep.mubr.bf16.mxu0 0
    %845 = vmatmul.mubr.bf16.gmra.mxu0 %v810
    %v846 = vpop.f32.mrf.mxu0
    %v847 = vadd.f32 %v69, %v846
    %v848 = vpop.f32.mrf.mxu0
    %v849 = vpop.f32.mrf.mxu0
    %v850 = vpop.f32.mrf.mxu0
    %851 = vdwg.mxu0
    %v852 = vld [vmem:[%s2 + $0x8] sm:$0xff]
    %s853 = scalar_lea.vmem %s3, 8
    %v854 = vld [vmem:[%s853] sm:$0xff]
    %v855 = vpack.c.bf16 %v852, %v852
    %v857 = vsel %vm195, %v855, 0
    %859 = vmatprep.subr.bf16.mxu0 0
    %860 = vmatpush1.bf16.msra.mxu0 0
    %861 = vmatprep.subr.bf16.mxu0 0
    %862 = vmatpush1.bf16.msra.mxu0 0
    %863 = vmatprep.subr.bf16.mxu0 0
    %864 = vmatpush1.bf16.msra.mxu0 0
    %865 = vmatprep.subr.bf16.mxu0 0
    %866 = vmatpush1.bf16.msra.mxu0 0
    %867 = vmatprep.subr.bf16.mxu0 0
    %868 = vmatpush1.bf16.msra.mxu0 0
    %869 = vmatprep.subr.bf16.mxu0 0
    %870 = vmatpush1.bf16.msra.mxu0 0
    %871 = vmatprep.subr.bf16.mxu0 0
    %872 = vmatpush1.bf16.msra.mxu0 %v380
    %873 = vmatprep.subr.bf16.mxu0 0
    %874 = vmatpush1.bf16.msra.mxu0 %v379
    %875 = vmatprep.subr.bf16.mxu0 0
    %876 = vmatpush2.bf16.msra.mxu0 0
    %877 = vmatprep.subr.bf16.mxu0 0
    %878 = vmatpush2.bf16.msra.mxu0 0
    %879 = vmatprep.subr.bf16.mxu0 0
    %880 = vmatpush2.bf16.msra.mxu0 0
    %881 = vmatprep.subr.bf16.mxu0 0
    %882 = vmatpush2.bf16.msra.mxu0 0
    %883 = vmatprep.subr.bf16.mxu0 0
    %884 = vmatpush2.bf16.msra.mxu0 0
    %885 = vmatprep.subr.bf16.mxu0 0
    %886 = vmatpush2.bf16.msra.mxu0 0
    %887 = vmatprep.subr.bf16.mxu0 0
    %888 = vmatpush2.bf16.msra.mxu0 0
    %889 = vmatprep.subr.bf16.mxu0 0
    %890 = vmatpush2.bf16.msra.mxu0 0
    %891 = vmatprep.mubr.bf16.mxu0 0
    %892 = vmatmul.mubr.bf16.gmra.mxu0 %v857
    %v893 = vpop.f32.mrf.mxu0
    %v894 = vadd.f32 %v369, %v893
    %v895 = vpop.f32.mrf.mxu0
    %v896 = vpop.f32.mrf.mxu0
    %v897 = vpop.f32.mrf.mxu0
    %898 = vdwg.mxu0
    %v899 = vtanh.pop %v894
    %v900 = vmul.f32 %v899, %v190
    %v901 = vsel %vm195, %v900, 0.0
    %902 = vadd.xlane.f32.xlu0 %v901
    %v903 = vpop.xlane.xlu0 %902
    %vm904 = vcmp.gt.f32.partialorder %v854, 0.5
    %v905 = vsel %vm904, %v903, -1e+09
    %v906 = vsel %vm211, %v905, -inf
    %v907 = vrot.slane %v906, 4
    %v908 = vmax.f32 %v906, %v907
    %v909 = vrot.slane %v908, 2
    %v910 = vmax.f32 %v908, %v909
    %v911 = vrot.slane %v910, 1
    %v912 = vmax.f32 %v910, %v911
    %v913 = vsub.f32 %v905, %v912
    %v914 = vmul.f32 %v913, 1.442695
    %v915 = vpow.pop %v914
    %v916 = vsel %vm211, %v915, 0.0
    %v917 = vrot.slane %v916, 4
    %v918 = vadd.f32 %v916, %v917
    %v919 = vrot.slane %v918, 2
    %v920 = vadd.f32 %v918, %v919
    %v921 = vrot.slane %v920, 1
    %v922 = vadd.f32 %v920, %v921
    %v923 = vrcp.pop %v922
    %v924 = vmul.f32 %v915, %v923
    %926 = vset.pattern.permute.xlu0 0
    %927 = vperm.xlu0 %926, %v854
    %v928 = vpop.permute.xlu0 %927
    %v930 = vmul.f32 %v928, %v852
    %932 = vset.pattern.permute.xlu0 0
    %933 = vperm.xlu0 %932, %v924
    %v934 = vpop.permute.xlu0 %933
    %v936 = vmul.f32 %v934, %v930
    %v937 = vsel %vm195, %v936, 0.0
    %v938 = vrot.slane %v937, 4
    %v939 = vadd.f32 %v937, %v938
    %v940 = vrot.slane %v939, 2
    %v941 = vadd.f32 %v939, %v940
    %v942 = vrot.slane %v941, 1
    %v943 = vadd.f32 %v941, %v942
    %v944 = vpack.c.bf16 %v847, %v847
    %v945 = vpack.c.bf16 %v943, %v943
    %v947 = vsel %vm195, %v945, 0
    %949 = vmatprep.subr.bf16.mxu0 0
    %950 = vmatpush1.bf16.msra.mxu0 0
    %951 = vmatprep.subr.bf16.mxu0 0
    %952 = vmatpush1.bf16.msra.mxu0 0
    %953 = vmatprep.subr.bf16.mxu0 0
    %954 = vmatpush1.bf16.msra.mxu0 0
    %955 = vmatprep.subr.bf16.mxu0 0
    %956 = vmatpush1.bf16.msra.mxu0 0
    %957 = vmatprep.subr.bf16.mxu0 0
    %958 = vmatpush1.bf16.msra.mxu0 0
    %959 = vmatprep.subr.bf16.mxu0 0
    %960 = vmatpush1.bf16.msra.mxu0 0
    %961 = vmatprep.subr.bf16.mxu0 0
    %962 = vmatpush1.bf16.msra.mxu0 %v482
    %963 = vmatprep.subr.bf16.mxu0 0
    %964 = vmatpush1.bf16.msra.mxu0 %v481
    %965 = vmatprep.subr.bf16.mxu0 0
    %966 = vmatpush2.bf16.msra.mxu0 0
    %967 = vmatprep.subr.bf16.mxu0 0
    %968 = vmatpush2.bf16.msra.mxu0 0
    %969 = vmatprep.subr.bf16.mxu0 0
    %970 = vmatpush2.bf16.msra.mxu0 0
    %971 = vmatprep.subr.bf16.mxu0 0
    %972 = vmatpush2.bf16.msra.mxu0 0
    %973 = vmatprep.subr.bf16.mxu0 0
    %974 = vmatpush2.bf16.msra.mxu0 0
    %975 = vmatprep.subr.bf16.mxu0 0
    %976 = vmatpush2.bf16.msra.mxu0 0
    %977 = vmatprep.subr.bf16.mxu0 0
    %978 = vmatpush2.bf16.msra.mxu0 0
    %979 = vmatprep.subr.bf16.mxu0 0
    %980 = vmatpush2.bf16.msra.mxu0 0
    %981 = vmatprep.mubr.bf16.mxu0 0
    %982 = vmatmul.mubr.bf16.gmra.mxu0 %v947
    %v983 = vpop.f32.mrf.mxu0
    %v984 = vadd.f32 0.0, %v983
    %v985 = vpop.f32.mrf.mxu0
    %v986 = vpop.f32.mrf.mxu0
    %v987 = vpop.f32.mrf.mxu0
    %988 = vdwg.mxu0
    %v990 = vsel %vm195, %v944, 0
    %992 = vmatprep.subr.bf16.mxu0 0
    %993 = vmatpush1.bf16.msra.mxu0 0
    %994 = vmatprep.subr.bf16.mxu0 0
    %995 = vmatpush1.bf16.msra.mxu0 0
    %996 = vmatprep.subr.bf16.mxu0 0
    %997 = vmatpush1.bf16.msra.mxu0 0
    %998 = vmatprep.subr.bf16.mxu0 0
    %999 = vmatpush1.bf16.msra.mxu0 0
    %1000 = vmatprep.subr.bf16.mxu0 0
    %1001 = vmatpush1.bf16.msra.mxu0 0
    %1002 = vmatprep.subr.bf16.mxu0 0
    %1003 = vmatpush1.bf16.msra.mxu0 0
    %1004 = vmatprep.subr.bf16.mxu0 0
    %1005 = vmatpush1.bf16.msra.mxu0 %v537
    %1006 = vmatprep.subr.bf16.mxu0 0
    %1007 = vmatpush1.bf16.msra.mxu0 %v536
    %1008 = vmatprep.subr.bf16.mxu0 0
    %1009 = vmatpush2.bf16.msra.mxu0 0
    %1010 = vmatprep.subr.bf16.mxu0 0
    %1011 = vmatpush2.bf16.msra.mxu0 0
    %1012 = vmatprep.subr.bf16.mxu0 0
    %1013 = vmatpush2.bf16.msra.mxu0 0
    %1014 = vmatprep.subr.bf16.mxu0 0
    %1015 = vmatpush2.bf16.msra.mxu0 0
    %1016 = vmatprep.subr.bf16.mxu0 0
    %1017 = vmatpush2.bf16.msra.mxu0 0
    %1018 = vmatprep.subr.bf16.mxu0 0
    %1019 = vmatpush2.bf16.msra.mxu0 0
    %1020 = vmatprep.subr.bf16.mxu0 0
    %1021 = vmatpush2.bf16.msra.mxu0 0
    %1022 = vmatprep.subr.bf16.mxu0 0
    %1023 = vmatpush2.bf16.msra.mxu0 0
    %1024 = vmatprep.mubr.bf16.mxu0 0
    %1025 = vmatmul.mubr.bf16.gmra.mxu0 %v990
    %v1026 = vpop.f32.mrf.mxu0
    %v1027 = vadd.f32 %v984, %v1026
    %v1028 = vpop.f32.mrf.mxu0
    %v1029 = vpop.f32.mrf.mxu0
    %v1030 = vpop.f32.mrf.mxu0
    %1031 = vdwg.mxu0
    %v1032 = vadd.f32 %v1027, %v84
    %v1033 = vpack.c.bf16 %v1032, %v1032
    %v1035 = vsel %vm195, %v1033, 0
    %1037 = vmatprep.subr.bf16.mxu0 0
    %1038 = vmatpush1.bf16.msra.mxu0 0
    %1039 = vmatprep.subr.bf16.mxu0 0
    %1040 = vmatpush1.bf16.msra.mxu0 0
    %1041 = vmatprep.subr.bf16.mxu0 0
    %1042 = vmatpush1.bf16.msra.mxu0 0
    %1043 = vmatprep.subr.bf16.mxu0 0
    %1044 = vmatpush1.bf16.msra.mxu0 0
    %1045 = vmatprep.subr.bf16.mxu0 0
    %1046 = vmatpush1.bf16.msra.mxu0 0
    %1047 = vmatprep.subr.bf16.mxu0 0
    %1048 = vmatpush1.bf16.msra.mxu0 0
    %1049 = vmatprep.subr.bf16.mxu0 0
    %1050 = vmatpush1.bf16.msra.mxu0 %v594
    %1051 = vmatprep.subr.bf16.mxu0 0
    %1052 = vmatpush1.bf16.msra.mxu0 %v593
    %1053 = vmatprep.subr.bf16.mxu0 0
    %1054 = vmatpush2.bf16.msra.mxu0 0
    %1055 = vmatprep.subr.bf16.mxu0 0
    %1056 = vmatpush2.bf16.msra.mxu0 0
    %1057 = vmatprep.subr.bf16.mxu0 0
    %1058 = vmatpush2.bf16.msra.mxu0 0
    %1059 = vmatprep.subr.bf16.mxu0 0
    %1060 = vmatpush2.bf16.msra.mxu0 0
    %1061 = vmatprep.subr.bf16.mxu0 0
    %1062 = vmatpush2.bf16.msra.mxu0 0
    %1063 = vmatprep.subr.bf16.mxu0 0
    %1064 = vmatpush2.bf16.msra.mxu0 0
    %1065 = vmatprep.subr.bf16.mxu0 0
    %1066 = vmatpush2.bf16.msra.mxu0 0
    %1067 = vmatprep.subr.bf16.mxu0 0
    %1068 = vmatpush2.bf16.msra.mxu0 0
    %1069 = vmatprep.mubr.bf16.mxu0 0
    %1070 = vmatmul.mubr.bf16.gmra.mxu0 %v1035
    %v1071 = vpop.f32.mrf.mxu0
    %v1072 = vadd.f32 %v89, %v1071
    %v1073 = vpop.f32.mrf.mxu0
    %v1074 = vpop.f32.mrf.mxu0
    %v1075 = vpop.f32.mrf.mxu0
    %1076 = vdwg.mxu0
    %1077 = vst.msk [vmem:[#allocation2 + $0x1] sm:$0x1] %vm640, %v1072
    // Predicated region
    $region62: #{_lambda_.5} parent=1 // pred_check
      _
    $region63: #{_lambda_.5} parent=1 // pred_check_branch
      %1079 = sbr.rel (0) target = $region65
    $region64: #{_lambda_.5} parent=1 // pred_region
      %s1081 = ssub.s32 32, 32
      %1082 = vsyncadd [#allocation3], %s1081
      %s1084 = sshll.u32 [#allocation2], 4
      %s1085 = int_to_ptr.vmem [resolvable:$true] %s1084
      %1087 = dma.vmem_to_hbm [thread:$0]  %s1085, 32, %s15, [#allocation3]
    $region65: #{_lambda_.5} parent=1 // pred_fallthru
      _
    // Predicated region
    $region66: #{_lambda_.5} parent=1 // pred_check
      _
    $region67: #{_lambda_.5} parent=1 // pred_check_branch
      %1089 = sbr.rel (0) target = $region69
    $region68: #{_lambda_.5} parent=1 // pred_region
      %1090 = dma.done [#allocation3], 32
    $region69: #{_lambda_.5} parent=1 // pred_fallthru
      _
    %1091 = vsyncpa [#allocation3], 1

// kernel: _lambda_.4
$region0: #{_lambda_.4}
  #allocation0 [shape = 'u32[]', space=smem, size = 0x4, offset = 0x4, fixed_abs, tag = 'smem constant byte address 0x4 - core index']
  #allocation1 [shape = 'u32[144,128]{1,0:T(1,128)}', space=vmem, size = 0x12000, scoped, tag = 'internal scratch']
  #allocation2 [shape = 'f32[16,32]{1,0:T(8,128)}', space=vmem, size = 0x2000, scoped, tag = 'scratch operand']
  %s0 = inlined_call_operand.vmem [shape: f32[16,24], index: 0, kind: input, shape index: {}]
  %s1 = inlined_call_operand.vmem [shape: bf16[24,32], index: 1, kind: input, shape index: {}]
  %s2 = inlined_call_operand.vmem [shape: f32[1,32], index: 2, kind: input, shape index: {}]
  %s3 = inlined_call_operand.vmem [shape: f32[16,32], index: 3, kind: input, shape index: {}]
  %s4 = inlined_call_operand.vmem [shape: f32[1,32], index: 4, kind: input, shape index: {}, may-alias: {4,11,17}]
  %s5 = inlined_call_operand.vmem [shape: f32[1,32], index: 5, kind: input, shape index: {}, may-alias: {5,12,18}]
  %s6 = inlined_call_operand.vmem [shape: f32[2,8], index: 6, kind: input, shape index: {}]
  %s7 = inlined_call_operand.vmem [shape: bf16[32,96], index: 7, kind: input, shape index: {}]
  %s8 = inlined_call_operand.vmem [shape: f32[1,96], index: 8, kind: input, shape index: {}]
  %s9 = inlined_call_operand.vmem [shape: bf16[32,32], index: 9, kind: input, shape index: {}]
  %s10 = inlined_call_operand.vmem [shape: f32[1,32], index: 10, kind: input, shape index: {}]
  %s11 = inlined_call_operand.vmem [shape: f32[1,32], index: 11, kind: input, shape index: {}, may-alias: {4,11,17}]
  %s12 = inlined_call_operand.vmem [shape: f32[1,32], index: 12, kind: input, shape index: {}, may-alias: {5,12,18}]
  %s13 = inlined_call_operand.vmem [shape: bf16[32,64], index: 13, kind: input, shape index: {}]
  %s14 = inlined_call_operand.vmem [shape: f32[1,64], index: 14, kind: input, shape index: {}]
  %s15 = inlined_call_operand.vmem [shape: bf16[64,32], index: 15, kind: input, shape index: {}]
  %s16 = inlined_call_operand.vmem [shape: f32[1,32], index: 16, kind: input, shape index: {}]
  %s17 = inlined_call_operand.vmem [shape: f32[1,32], index: 17, kind: input, shape index: {}, may-alias: {4,11,17}]
  %s18 = inlined_call_operand.vmem [shape: f32[1,32], index: 18, kind: input, shape index: {}, may-alias: {5,12,18}]
  %s19 = inlined_call_operand.vmem [shape: f32[16,32], index: 19, kind: output, shape index: {}]
  %s20 = sld [smem:[#allocation0]]
  $region86: #{_lambda_.4} parent=0
    _
  %s22 = ssub.s32 1, %s20
  %s23 = scalar_select 0, %s22, %s20
  // Predicated region
  $region2: #{_lambda_.4} parent=0 // pred_check
    _
  $region3: #{_lambda_.4} parent=0 // pred_check_branch
    %25 = sbr.rel (0) target = $region5
  $region4: #{_lambda_.4} parent=0 // pred_region
    _
  $region5: #{_lambda_.4} parent=0 // pred_fallthru
    _
  // Predicated region
  $region6: #{_lambda_.4} parent=0 // pred_check
    _
  $region7: #{_lambda_.4} parent=0 // pred_check_branch
    %27 = sbr.rel (0) target = $region9
  $region8: #{_lambda_.4} parent=0 // pred_region
    _
  $region9: #{_lambda_.4} parent=0 // pred_fallthru
    _
  // Predicated region
  $region10: #{_lambda_.4} parent=0 // pred_check
    _
  $region11: #{_lambda_.4} parent=0 // pred_check_branch
    %29 = sbr.rel (0) target = $region13
  $region12: #{_lambda_.4} parent=0 // pred_region
    _
  $region13: #{_lambda_.4} parent=0 // pred_fallthru
    _
  // Predicated region
  $region14: #{_lambda_.4} parent=0 // pred_check
    _
  $region15: #{_lambda_.4} parent=0 // pred_check_branch
    %31 = sbr.rel (0) target = $region17
  $region16: #{_lambda_.4} parent=0 // pred_region
    _
  $region17: #{_lambda_.4} parent=0 // pred_fallthru
    _
  // Predicated region
  $region18: #{_lambda_.4} parent=0 // pred_check
    _
  $region19: #{_lambda_.4} parent=0 // pred_check_branch
    %33 = sbr.rel (0) target = $region21
  $region20: #{_lambda_.4} parent=0 // pred_region
    _
  $region21: #{_lambda_.4} parent=0 // pred_fallthru
    _
  // Predicated region
  $region22: #{_lambda_.4} parent=0 // pred_check
    _
  $region23: #{_lambda_.4} parent=0 // pred_check_branch
    %35 = sbr.rel (0) target = $region25
  $region24: #{_lambda_.4} parent=0 // pred_region
    _
  $region25: #{_lambda_.4} parent=0 // pred_fallthru
    _
  // Predicated region
  $region26: #{_lambda_.4} parent=0 // pred_check
    _
  $region27: #{_lambda_.4} parent=0 // pred_check_branch
    %37 = sbr.rel (0) target = $region29
  $region28: #{_lambda_.4} parent=0 // pred_region
    _
  $region29: #{_lambda_.4} parent=0 // pred_fallthru
    _
  // Predicated region
  $region30: #{_lambda_.4} parent=0 // pred_check
    _
  $region31: #{_lambda_.4} parent=0 // pred_check_branch
    %39 = sbr.rel (0) target = $region33
  $region32: #{_lambda_.4} parent=0 // pred_region
    _
  $region33: #{_lambda_.4} parent=0 // pred_fallthru
    _
  // Predicated region
  $region34: #{_lambda_.4} parent=0 // pred_check
    _
  $region35: #{_lambda_.4} parent=0 // pred_check_branch
    %41 = sbr.rel (0) target = $region37
  $region36: #{_lambda_.4} parent=0 // pred_region
    _
  $region37: #{_lambda_.4} parent=0 // pred_fallthru
    _
  // Predicated region
  $region38: #{_lambda_.4} parent=0 // pred_check
    _
  $region39: #{_lambda_.4} parent=0 // pred_check_branch
    %43 = sbr.rel (0) target = $region41
  $region40: #{_lambda_.4} parent=0 // pred_region
    _
  $region41: #{_lambda_.4} parent=0 // pred_fallthru
    _
  // Predicated region
  $region42: #{_lambda_.4} parent=0 // pred_check
    _
  $region43: #{_lambda_.4} parent=0 // pred_check_branch
    %45 = sbr.rel (0) target = $region45
  $region44: #{_lambda_.4} parent=0 // pred_region
    _
  $region45: #{_lambda_.4} parent=0 // pred_fallthru
    _
  // Predicated region
  $region46: #{_lambda_.4} parent=0 // pred_check
    _
  $region47: #{_lambda_.4} parent=0 // pred_check_branch
    %47 = sbr.rel (0) target = $region49
  $region48: #{_lambda_.4} parent=0 // pred_region
    _
  $region49: #{_lambda_.4} parent=0 // pred_fallthru
    _
  // Predicated region
  $region50: #{_lambda_.4} parent=0 // pred_check
    _
  $region51: #{_lambda_.4} parent=0 // pred_check_branch
    %49 = sbr.rel (0) target = $region53
  $region52: #{_lambda_.4} parent=0 // pred_region
    _
  $region53: #{_lambda_.4} parent=0 // pred_fallthru
    _
  // Predicated region
  $region54: #{_lambda_.4} parent=0 // pred_check
    _
  $region55: #{_lambda_.4} parent=0 // pred_check_branch
    %51 = sbr.rel (0) target = $region57
  $region56: #{_lambda_.4} parent=0 // pred_region
    _
  $region57: #{_lambda_.4} parent=0 // pred_fallthru
    _
  // Predicated region
  $region58: #{_lambda_.4} parent=0 // pred_check
    _
  $region59: #{_lambda_.4} parent=0 // pred_check_branch
    %53 = sbr.rel (0) target = $region61
  $region60: #{_lambda_.4} parent=0 // pred_region
    _
  $region61: #{_lambda_.4} parent=0 // pred_fallthru
    _
  // Predicated region
  $region62: #{_lambda_.4} parent=0 // pred_check
    _
  $region63: #{_lambda_.4} parent=0 // pred_check_branch
    %55 = sbr.rel (0) target = $region65
  $region64: #{_lambda_.4} parent=0 // pred_region
    _
  $region65: #{_lambda_.4} parent=0 // pred_fallthru
    _
  // Predicated region
  $region66: #{_lambda_.4} parent=0 // pred_check
    _
  $region67: #{_lambda_.4} parent=0 // pred_check_branch
    %57 = sbr.rel (0) target = $region69
  $region68: #{_lambda_.4} parent=0 // pred_region
    _
  $region69: #{_lambda_.4} parent=0 // pred_fallthru
    _
  // Predicated region
  $region70: #{_lambda_.4} parent=0 // pred_check
    _
  $region71: #{_lambda_.4} parent=0 // pred_check_branch
    %59 = sbr.rel (0) target = $region73
  $region72: #{_lambda_.4} parent=0 // pred_region
    _
  $region73: #{_lambda_.4} parent=0 // pred_fallthru
    _
  // Predicated region
  $region74: #{_lambda_.4} parent=0 // pred_check
    _
  $region75: #{_lambda_.4} parent=0 // pred_check_branch
    %61 = sbr.rel (0) target = $region77
  $region76: #{_lambda_.4} parent=0 // pred_region
    _
  $region77: #{_lambda_.4} parent=0 // pred_fallthru
    _
  %v63 = vld [vmem:[%s0] sm:$0xff]
  %v64 = vld [vmem:[%s0 + $0x8] sm:$0xff]
  %v65 = vpack.c.bf16 %v64, %v63
  %v66 = vld [vmem:[%s1] sm:$0xf]
  %v67 = vld [vmem:[%s1 + $0x4] sm:$0xf]
  %v68 = vld [vmem:[%s1 + $0x8] sm:$0xf]
  %v69 = vld [vmem:[%s2] sm:$0x1]
  %v71 = vlaneseq
  %v72 = vshrl.u32 %v71, 7
  %v73 = vsub.s32 0, %v72
  %v74 = vrot.slane %v69, %v73
  %v79 = vunpack.c.l.b16 %v66
  %v80 = vunpack.c.l.b16 %v67
  %v81 = vunpack.c.l.b16 %v68
  %v82 = vpack.c.b16 %v80, %v79
  %v83 = vpack.c.b16 %v81, %v81
  %vm85 = vcmask 195584
  %v87 = vsel %vm85, %v65, 0
  %vm89 = vcmask 1043456
  %v91 = vsel %vm89, %v83, 0
  %93 = vmatprep.subr.bf16.mxu0 0
  %94 = vmatpush1.bf16.msra.mxu0 0
  %95 = vmatprep.subr.bf16.mxu0 0
  %96 = vmatpush1.bf16.msra.mxu0 0
  %97 = vmatprep.subr.bf16.mxu0 0
  %98 = vmatpush1.bf16.msra.mxu0 0
  %99 = vmatprep.subr.bf16.mxu0 0
  %100 = vmatpush1.bf16.msra.mxu0 0
  %101 = vmatprep.subr.bf16.mxu0 0
  %102 = vmatpush1.bf16.msra.mxu0 0
  %103 = vmatprep.subr.bf16.mxu0 0
  %104 = vmatpush1.bf16.msra.mxu0 0
  %105 = vmatprep.subr.bf16.mxu0 0
  %106 = vmatpush1.bf16.msra.mxu0 %v91
  %107 = vmatprep.subr.bf16.mxu0 0
  %108 = vmatpush1.bf16.msra.mxu0 %v82
  %109 = vmatprep.subr.bf16.mxu0 0
  %110 = vmatpush2.bf16.msra.mxu0 0
  %111 = vmatprep.subr.bf16.mxu0 0
  %112 = vmatpush2.bf16.msra.mxu0 0
  %113 = vmatprep.subr.bf16.mxu0 0
  %114 = vmatpush2.bf16.msra.mxu0 0
  %115 = vmatprep.subr.bf16.mxu0 0
  %116 = vmatpush2.bf16.msra.mxu0 0
  %117 = vmatprep.subr.bf16.mxu0 0
  %118 = vmatpush2.bf16.msra.mxu0 0
  %119 = vmatprep.subr.bf16.mxu0 0
  %120 = vmatpush2.bf16.msra.mxu0 0
  %121 = vmatprep.subr.bf16.mxu0 0
  %122 = vmatpush2.bf16.msra.mxu0 0
  %123 = vmatprep.subr.bf16.mxu0 0
  %124 = vmatpush2.bf16.msra.mxu0 0
  %125 = vmatprep.mubr.bf16.mxu0 0
  %126 = vmatmul.mubr.bf16.gmra.mxu0 %v87
  %v127 = vpop.f32.mrf.mxu0
  %v128 = vadd.f32 %v74, %v127
  %v129 = vpop.f32.mrf.mxu0
  %v130 = vpop.f32.mrf.mxu0
  %v131 = vadd.f32 %v74, %v130
  %v132 = vpop.f32.mrf.mxu0
  %133 = vdwg.mxu0
  %v134 = vld [vmem:[%s3] sm:$0xff]
  %v135 = vld [vmem:[%s3 + $0x8] sm:$0xff]
  %v136 = vadd.f32 %v128, %v134
  %v137 = vadd.f32 %v131, %v135
  %v138 = vld [vmem:[%s4] sm:$0x1]
  %v139 = vld [vmem:[%s5] sm:$0x1]
  %vm140 = vcmask 261120
  %v141 = vsel %vm140, %v136, 0.0
  %142 = vadd.xlane.f32.xlu0 %v141
  %v143 = vpop.xlane.xlu0 %142
  %v144 = vsel %vm140, %v137, 0.0
  %145 = vadd.xlane.f32.xlu0 %v144
  %v146 = vpop.xlane.xlu0 %145
  %v147 = vrcp.pop 32.0
  %v148 = vmul.f32 %v143, %v147
  %v149 = vmul.f32 %v146, %v147
  %v150 = vsub.f32 %v136, %v148
  %v151 = vsub.f32 %v137, %v149
  %v152 = vmul.f32 %v150, %v150
  %v153 = vmul.f32 %v151, %v151
  %v154 = vsel %vm140, %v152, 0.0
  %155 = vadd.xlane.f32.xlu0 %v154
  %v156 = vpop.xlane.xlu0 %155
  %v157 = vsel %vm140, %v153, 0.0
  %158 = vadd.xlane.f32.xlu0 %v157
  %v159 = vpop.xlane.xlu0 %158
  %v160 = vmul.f32 %v156, %v147
  %v161 = vmul.f32 %v159, %v147
  %v162 = vadd.f32 %v160, 1e-12
  %v163 = vadd.f32 %v161, 1e-12
  %v164 = vrsqrt.pop %v162
  %v165 = vrsqrt.pop %v163
  %v166 = vmul.f32 %v150, %v164
  %v167 = vmul.f32 %v151, %v165
  %v169 = vlaneseq
  %v170 = vshrl.u32 %v169, 7
  %v171 = vsub.s32 0, %v170
  %v172 = vrot.slane %v138, %v171
  %v174 = vmul.f32 %v166, %v172
  %v175 = vmul.f32 %v167, %v172
  %v177 = vlaneseq
  %v178 = vshrl.u32 %v177, 7
  %v179 = vsub.s32 0, %v178
  %v180 = vrot.slane %v139, %v179
  %v182 = vadd.f32 %v174, %v180
  %v183 = vadd.f32 %v175, %v180
  %v184 = vld [vmem:[%s7] sm:$0xf]
  %v185 = vld [vmem:[%s7 + $0x4] sm:$0xf]
  %v186 = vld [vmem:[%s7 + $0x8] sm:$0xf]
  %v187 = vld [vmem:[%s7 + $0xc] sm:$0xf]
  %v188 = vld [vmem:[%s8] sm:$0x1]
  %v189 = vld [vmem:[%s9] sm:$0xf]
  %v190 = vld [vmem:[%s9 + $0x4] sm:$0xf]
  %v191 = vld [vmem:[%s9 + $0x8] sm:$0xf]
  %v192 = vld [vmem:[%s9 + $0xc] sm:$0xf]
  %v193 = vld [vmem:[%s10] sm:$0x1]
  %v194 = vld [vmem:[%s11] sm:$0x1]
  %v195 = vld [vmem:[%s12] sm:$0x1]
  %v196 = vld [vmem:[%s13] sm:$0xf]
  %v197 = vld [vmem:[%s13 + $0x4] sm:$0xf]
  %v198 = vld [vmem:[%s13 + $0x8] sm:$0xf]
  %v199 = vld [vmem:[%s13 + $0xc] sm:$0xf]
  %v200 = vld [vmem:[%s14] sm:$0x1]
  %v201 = vld [vmem:[%s15] sm:$0xf]
  %v202 = vld [vmem:[%s15 + $0x4] sm:$0xf]
  %v203 = vld [vmem:[%s15 + $0x8] sm:$0xf]
  %v204 = vld [vmem:[%s15 + $0xc] sm:$0xf]
  %v205 = vld [vmem:[%s15 + $0x10] sm:$0xf]
  %v206 = vld [vmem:[%s15 + $0x14] sm:$0xf]
  %v207 = vld [vmem:[%s15 + $0x18] sm:$0xf]
  %v208 = vld [vmem:[%s15 + $0x1c] sm:$0xf]
  %v209 = vld [vmem:[%s16] sm:$0x1]
  %v210 = vld [vmem:[%s17] sm:$0x1]
  %v211 = vld [vmem:[%s18] sm:$0x1]
  %v212 = vld [vmem:[%s6] sm:$0x3]
  %v213 = vpack.c.bf16 %v183, %v182
  %v215 = vlaneseq
  %v216 = vshrl.u32 %v215, 7
  %v217 = vsub.s32 0, %v216
  %v218 = vrot.slane %v188, %v217
  %v224 = vunpack.c.l.b16 %v184
  %v225 = vunpack.c.l.b16 %v185
  %v226 = vunpack.c.l.b16 %v186
  %v227 = vunpack.c.l.b16 %v187
  %v228 = vpack.c.b16 %v225, %v224
  %v229 = vpack.c.b16 %v227, %v226
  %v233 = vsel %vm140, %v213, 0
  %235 = vmatprep.subr.bf16.mxu0 0
  %236 = vmatpush1.bf16.msra.mxu0 0
  %237 = vmatprep.subr.bf16.mxu0 0
  %238 = vmatpush1.bf16.msra.mxu0 0
  %239 = vmatprep.subr.bf16.mxu0 0
  %240 = vmatpush1.bf16.msra.mxu0 0
  %241 = vmatprep.subr.bf16.mxu0 0
  %242 = vmatpush1.bf16.msra.mxu0 0
  %243 = vmatprep.subr.bf16.mxu0 0
  %244 = vmatpush1.bf16.msra.mxu0 0
  %245 = vmatprep.subr.bf16.mxu0 0
  %246 = vmatpush1.bf16.msra.mxu0 0
  %247 = vmatprep.subr.bf16.mxu0 0
  %248 = vmatpush1.bf16.msra.mxu0 %v229
  %249 = vmatprep.subr.bf16.mxu0 0
  %250 = vmatpush1.bf16.msra.mxu0 %v228
  %251 = vmatprep.subr.bf16.mxu0 0
  %252 = vmatpush2.bf16.msra.mxu0 0
  %253 = vmatprep.subr.bf16.mxu0 0
  %254 = vmatpush2.bf16.msra.mxu0 0
  %255 = vmatprep.subr.bf16.mxu0 0
  %256 = vmatpush2.bf16.msra.mxu0 0
  %257 = vmatprep.subr.bf16.mxu0 0
  %258 = vmatpush2.bf16.msra.mxu0 0
  %259 = vmatprep.subr.bf16.mxu0 0
  %260 = vmatpush2.bf16.msra.mxu0 0
  %261 = vmatprep.subr.bf16.mxu0 0
  %262 = vmatpush2.bf16.msra.mxu0 0
  %263 = vmatprep.subr.bf16.mxu0 0
  %264 = vmatpush2.bf16.msra.mxu0 0
  %265 = vmatprep.subr.bf16.mxu0 0
  %266 = vmatpush2.bf16.msra.mxu0 0
  %267 = vmatprep.mubr.bf16.mxu0 0
  %268 = vmatmul.mubr.bf16.gmra.mxu0 %v233
  %v269 = vpop.f32.mrf.mxu0
  %v270 = vadd.f32 %v218, %v269
  %v271 = vpop.f32.mrf.mxu0
  %v272 = vpop.f32.mrf.mxu0
  %v273 = vadd.f32 %v218, %v272
  %v274 = vpop.f32.mrf.mxu0
  %275 = vdwg.mxu0
  %v276 = vpack.c.bf16 %v270, %v270
  %278 = vrot.lane.b32.xlu0 %v276, 96
  %v279 = vpop.permute.xlu0 %278
  %vm280 = vcmask 64512
  %v282 = vsel %vm280, %v276, 0
  %v285 = vsel %vm280, %v279, 0
  %287 = vmatprep.subr.bf16.mxu0 0
  %288 = vmatpush1.bf16.xpose.msra.mxu0 0
  %289 = vmatprep.subr.bf16.mxu0 0
  %290 = vmatpush1.bf16.xpose.msra.mxu0 0
  %291 = vmatprep.subr.bf16.mxu0 0
  %292 = vmatpush1.bf16.xpose.msra.mxu0 0
  %293 = vmatprep.subr.bf16.mxu0 0
  %294 = vmatpush1.bf16.xpose.msra.mxu0 0
  %295 = vmatprep.subr.bf16.mxu0 0
  %296 = vmatpush1.bf16.xpose.msra.mxu0 0
  %297 = vmatprep.subr.bf16.mxu0 0
  %298 = vmatpush1.bf16.xpose.msra.mxu0 0
  %299 = vmatprep.subr.bf16.mxu0 0
  %300 = vmatpush1.bf16.xpose.msra.mxu0 0
  %301 = vmatprep.subr.bf16.mxu0 0
  %302 = vmatpush1.bf16.xpose.msra.mxu0 %v285
  %303 = vmatprep.subr.bf16.mxu0 0
  %304 = vmatpush2.bf16.xpose.msra.mxu0 0
  %305 = vmatprep.subr.bf16.mxu0 0
  %306 = vmatpush2.bf16.xpose.msra.mxu0 0
  %307 = vmatprep.subr.bf16.mxu0 0
  %308 = vmatpush2.bf16.xpose.msra.mxu0 0
  %309 = vmatprep.subr.bf16.mxu0 0
  %310 = vmatpush2.bf16.xpose.msra.mxu0 0
  %311 = vmatprep.subr.bf16.mxu0 0
  %312 = vmatpush2.bf16.xpose.msra.mxu0 0
  %313 = vmatprep.subr.bf16.mxu0 0
  %314 = vmatpush2.bf16.xpose.msra.mxu0 0
  %315 = vmatprep.subr.bf16.mxu0 0
  %316 = vmatpush2.bf16.xpose.msra.mxu0 0
  %317 = vmatprep.subr.bf16.mxu0 0
  %318 = vmatpush2.bf16.xpose.msra.mxu0 0
  %319 = vmatprep.mubr.bf16.mxu0 0
  %320 = vmatmul.mubr.bf16.gmra.mxu0 %v282
  %v321 = vpop.f32.mrf.mxu0
  %v322 = vadd.f32 0.0, %v321
  %v323 = vpop.f32.mrf.mxu0
  %v324 = vpop.f32.mrf.mxu0
  %v325 = vpop.f32.mrf.mxu0
  %326 = vdwg.mxu0
  %v327 = vmul.f32 %v322, 0.35355338
  %v328 = vlaneseq
  %v329 = vshrl.u32 %v328, 7
  %v330 = vsub.s32 0, %v329
  %v331 = vrot.slane %v212, %v330
  %v332 = vadd.f32 %v327, %v331
  %v333 = vsel %vm280, %v332, -inf
  %334 = vmax.xlane.f32.xlu0 %v333
  %v335 = vpop.xlane.xlu0 %334
  %v336 = vsub.f32 %v332, %v335
  %v337 = vmul.f32 %v336, 1.442695
  %v338 = vpow.pop %v337
  %v339 = vsel %vm280, %v338, 0.0
  %340 = vadd.xlane.f32.xlu0 %v339
  %v341 = vpop.xlane.xlu0 %340
  %v342 = vrcp.pop %v341
  %v343 = vmul.f32 %v338, %v342
  %v344 = vpack.c.bf16 %v343, %v343
  %345 = vrot.lane.b32.xlu0 %v276, 64
  %v346 = vpop.permute.xlu0 %345
  %v348 = vsel %vm280, %v344, 0
  %v351 = vsel %vm89, %v346, 0
  %353 = vmatprep.subr.bf16.mxu0 0
  %354 = vmatpush1.bf16.msra.mxu0 0
  %355 = vmatprep.subr.bf16.mxu0 0
  %356 = vmatpush1.bf16.msra.mxu0 0
  %357 = vmatprep.subr.bf16.mxu0 0
  %358 = vmatpush1.bf16.msra.mxu0 0
  %359 = vmatprep.subr.bf16.mxu0 0
  %360 = vmatpush1.bf16.msra.mxu0 0
  %361 = vmatprep.subr.bf16.mxu0 0
  %362 = vmatpush1.bf16.msra.mxu0 0
  %363 = vmatprep.subr.bf16.mxu0 0
  %364 = vmatpush1.bf16.msra.mxu0 0
  %365 = vmatprep.subr.bf16.mxu0 0
  %366 = vmatpush1.bf16.msra.mxu0 0
  %367 = vmatprep.subr.bf16.mxu0 0
  %368 = vmatpush1.bf16.msra.mxu0 %v351
  %369 = vmatprep.subr.bf16.mxu0 0
  %370 = vmatpush2.bf16.msra.mxu0 0
  %371 = vmatprep.subr.bf16.mxu0 0
  %372 = vmatpush2.bf16.msra.mxu0 0
  %373 = vmatprep.subr.bf16.mxu0 0
  %374 = vmatpush2.bf16.msra.mxu0 0
  %375 = vmatprep.subr.bf16.mxu0 0
  %376 = vmatpush2.bf16.msra.mxu0 0
  %377 = vmatprep.subr.bf16.mxu0 0
  %378 = vmatpush2.bf16.msra.mxu0 0
  %379 = vmatprep.subr.bf16.mxu0 0
  %380 = vmatpush2.bf16.msra.mxu0 0
  %381 = vmatprep.subr.bf16.mxu0 0
  %382 = vmatpush2.bf16.msra.mxu0 0
  %383 = vmatprep.subr.bf16.mxu0 0
  %384 = vmatpush2.bf16.msra.mxu0 0
  %385 = vmatprep.mubr.bf16.mxu0 0
  %386 = vmatmul.mubr.bf16.gmra.mxu0 %v348
  %v387 = vpop.f32.mrf.mxu0
  %v388 = vadd.f32 0.0, %v387
  %v389 = vpop.f32.mrf.mxu0
  %v390 = vpop.f32.mrf.mxu0
  %v391 = vpop.f32.mrf.mxu0
  %392 = vdwg.mxu0
  %393 = vst.msk [vmem:[#allocation2] sm:$0xff] %vm280, %v388
  %394 = vrot.lane.b32.xlu0 %v276, 120
  %v395 = vpop.permute.xlu0 %394
  %396 = vrot.lane.b32.xlu0 %v276, 88
  %v397 = vpop.permute.xlu0 %396
  %v399 = vsel %vm280, %v395, 0
  %v402 = vsel %vm280, %v397, 0
  %404 = vmatprep.subr.bf16.mxu0 0
  %405 = vmatpush1.bf16.xpose.msra.mxu0 0
  %406 = vmatprep.subr.bf16.mxu0 0
  %407 = vmatpush1.bf16.xpose.msra.mxu0 0
  %408 = vmatprep.subr.bf16.mxu0 0
  %409 = vmatpush1.bf16.xpose.msra.mxu0 0
  %410 = vmatprep.subr.bf16.mxu0 0
  %411 = vmatpush1.bf16.xpose.msra.mxu0 0
  %412 = vmatprep.subr.bf16.mxu0 0
  %413 = vmatpush1.bf16.xpose.msra.mxu0 0
  %414 = vmatprep.subr.bf16.mxu0 0
  %415 = vmatpush1.bf16.xpose.msra.mxu0 0
  %416 = vmatprep.subr.bf16.mxu0 0
  %417 = vmatpush1.bf16.xpose.msra.mxu0 0
  %418 = vmatprep.subr.bf16.mxu0 0
  %419 = vmatpush1.bf16.xpose.msra.mxu0 %v402
  %420 = vmatprep.subr.bf16.mxu0 0
  %421 = vmatpush2.bf16.xpose.msra.mxu0 0
  %422 = vmatprep.subr.bf16.mxu0 0
  %423 = vmatpush2.bf16.xpose.msra.mxu0 0
  %424 = vmatprep.subr.bf16.mxu0 0
  %425 = vmatpush2.bf16.xpose.msra.mxu0 0
  %426 = vmatprep.subr.bf16.mxu0 0
  %427 = vmatpush2.bf16.xpose.msra.mxu0 0
  %428 = vmatprep.subr.bf16.mxu0 0
  %429 = vmatpush2.bf16.xpose.msra.mxu0 0
  %430 = vmatprep.subr.bf16.mxu0 0
  %431 = vmatpush2.bf16.xpose.msra.mxu0 0
  %432 = vmatprep.subr.bf16.mxu0 0
  %433 = vmatpush2.bf16.xpose.msra.mxu0 0
  %434 = vmatprep.subr.bf16.mxu0 0
  %435 = vmatpush2.bf16.xpose.msra.mxu0 0
  %436 = vmatprep.mubr.bf16.mxu0 0
  %437 = vmatmul.mubr.bf16.gmra.mxu0 %v399
  %v438 = vpop.f32.mrf.mxu0
  %v439 = vadd.f32 0.0, %v438
  %v440 = vpop.f32.mrf.mxu0
  %v441 = vpop.f32.mrf.mxu0
  %v442 = vpop.f32.mrf.mxu0
  %443 = vdwg.mxu0
  %v444 = vmul.f32 %v439, 0.35355338
  %v445 = vadd.f32 %v444, %v331
  %v446 = vsel %vm280, %v445, -inf
  %447 = vmax.xlane.f32.xlu0 %v446
  %v448 = vpop.xlane.xlu0 %447
  %v449 = vsub.f32 %v445, %v448
  %v450 = vmul.f32 %v449, 1.442695
  %v451 = vpow.pop %v450
  %v452 = vsel %vm280, %v451, 0.0
  %453 = vadd.xlane.f32.xlu0 %v452
  %v454 = vpop.xlane.xlu0 %453
  %v455 = vrcp.pop %v454
  %v456 = vmul.f32 %v451, %v455
  %v457 = vpack.c.bf16 %v456, %v456
  %458 = vrot.lane.b32.xlu0 %v276, 56
  %v459 = vpop.permute.xlu0 %458
  %v461 = vsel %vm280, %v457, 0
  %v464 = vsel %vm89, %v459, 0
  %466 = vmatprep.subr.bf16.mxu0 0
  %467 = vmatpush1.bf16.msra.mxu0 0
  %468 = vmatprep.subr.bf16.mxu0 0
  %469 = vmatpush1.bf16.msra.mxu0 0
  %470 = vmatprep.subr.bf16.mxu0 0
  %471 = vmatpush1.bf16.msra.mxu0 0
  %472 = vmatprep.subr.bf16.mxu0 0
  %473 = vmatpush1.bf16.msra.mxu0 0
  %474 = vmatprep.subr.bf16.mxu0 0
  %475 = vmatpush1.bf16.msra.mxu0 0
  %476 = vmatprep.subr.bf16.mxu0 0
  %477 = vmatpush1.bf16.msra.mxu0 0
  %478 = vmatprep.subr.bf16.mxu0 0
  %479 = vmatpush1.bf16.msra.mxu0 0
  %480 = vmatprep.subr.bf16.mxu0 0
  %481 = vmatpush1.bf16.msra.mxu0 %v464
  %482 = vmatprep.subr.bf16.mxu0 0
  %483 = vmatpush2.bf16.msra.mxu0 0
  %484 = vmatprep.subr.bf16.mxu0 0
  %485 = vmatpush2.bf16.msra.mxu0 0
  %486 = vmatprep.subr.bf16.mxu0 0
  %487 = vmatpush2.bf16.msra.mxu0 0
  %488 = vmatprep.subr.bf16.mxu0 0
  %489 = vmatpush2.bf16.msra.mxu0 0
  %490 = vmatprep.subr.bf16.mxu0 0
  %491 = vmatpush2.bf16.msra.mxu0 0
  %492 = vmatprep.subr.bf16.mxu0 0
  %493 = vmatpush2.bf16.msra.mxu0 0
  %494 = vmatprep.subr.bf16.mxu0 0
  %495 = vmatpush2.bf16.msra.mxu0 0
  %496 = vmatprep.subr.bf16.mxu0 0
  %497 = vmatpush2.bf16.msra.mxu0 0
  %498 = vmatprep.mubr.bf16.mxu0 0
  %499 = vmatmul.mubr.bf16.gmra.mxu0 %v461
  %v500 = vpop.f32.mrf.mxu0
  %v501 = vadd.f32 0.0, %v500
  %v502 = vpop.f32.mrf.mxu0
  %v503 = vpop.f32.mrf.mxu0
  %v504 = vpop.f32.mrf.mxu0
  %505 = vdwg.mxu0
  %507 = vrot.lane.b32.xlu0 %v501, 8
  %v508 = vpop.permute.xlu0 %507
  %vm510 = vcmask 130112
  %511 = vst.msk [vmem:[#allocation2] sm:$0xff] %vm510, %v508
  %512 = vrot.lane.b32.xlu0 %v276, 112
  %v513 = vpop.permute.xlu0 %512
  %514 = vrot.lane.b32.xlu0 %v276, 80
  %v515 = vpop.permute.xlu0 %514
  %v517 = vsel %vm280, %v513, 0
  %v520 = vsel %vm280, %v515, 0
  %522 = vmatprep.subr.bf16.mxu0 0
  %523 = vmatpush1.bf16.xpose.msra.mxu0 0
  %524 = vmatprep.subr.bf16.mxu0 0
  %525 = vmatpush1.bf16.xpose.msra.mxu0 0
  %526 = vmatprep.subr.bf16.mxu0 0
  %527 = vmatpush1.bf16.xpose.msra.mxu0 0
  %528 = vmatprep.subr.bf16.mxu0 0
  %529 = vmatpush1.bf16.xpose.msra.mxu0 0
  %530 = vmatprep.subr.bf16.mxu0 0
  %531 = vmatpush1.bf16.xpose.msra.mxu0 0
  %532 = vmatprep.subr.bf16.mxu0 0
  %533 = vmatpush1.bf16.xpose.msra.mxu0 0
  %534 = vmatprep.subr.bf16.mxu0 0
  %535 = vmatpush1.bf16.xpose.msra.mxu0 0
  %536 = vmatprep.subr.bf16.mxu0 0
  %537 = vmatpush1.bf16.xpose.msra.mxu0 %v520
  %538 = vmatprep.subr.bf16.mxu0 0
  %539 = vmatpush2.bf16.xpose.msra.mxu0 0
  %540 = vmatprep.subr.bf16.mxu0 0
  %541 = vmatpush2.bf16.xpose.msra.mxu0 0
  %542 = vmatprep.subr.bf16.mxu0 0
  %543 = vmatpush2.bf16.xpose.msra.mxu0 0
  %544 = vmatprep.subr.bf16.mxu0 0
  %545 = vmatpush2.bf16.xpose.msra.mxu0 0
  %546 = vmatprep.subr.bf16.mxu0 0
  %547 = vmatpush2.bf16.xpose.msra.mxu0 0
  %548 = vmatprep.subr.bf16.mxu0 0
  %549 = vmatpush2.bf16.xpose.msra.mxu0 0
  %550 = vmatprep.subr.bf16.mxu0 0
  %551 = vmatpush2.bf16.xpose.msra.mxu0 0
  %552 = vmatprep.subr.bf16.mxu0 0
  %553 = vmatpush2.bf16.xpose.msra.mxu0 0
  %554 = vmatprep.mubr.bf16.mxu0 0
  %555 = vmatmul.mubr.bf16.gmra.mxu0 %v517
  %v556 = vpop.f32.mrf.mxu0
  %v557 = vadd.f32 0.0, %v556
  %v558 = vpop.f32.mrf.mxu0
  %v559 = vpop.f32.mrf.mxu0
  %v560 = vpop.f32.mrf.mxu0
  %561 = vdwg.mxu0
  %v562 = vmul.f32 %v557, 0.35355338
  %v563 = vadd.f32 %v562, %v331
  %v564 = vsel %vm280, %v563, -inf
  %565 = vmax.xlane.f32.xlu0 %v564
  %v566 = vpop.xlane.xlu0 %565
  %v567 = vsub.f32 %v563, %v566
  %v568 = vmul.f32 %v567, 1.442695
  %v569 = vpow.pop %v568
  %v570 = vsel %vm280, %v569, 0.0
  %571 = vadd.xlane.f32.xlu0 %v570
  %v572 = vpop.xlane.xlu0 %571
  %v573 = vrcp.pop %v572
  %v574 = vmul.f32 %v569, %v573
  %v575 = vpack.c.bf16 %v574, %v574
  %576 = vrot.lane.b32.xlu0 %v276, 48
  %v577 = vpop.permute.xlu0 %576
  %v579 = vsel %vm280, %v575, 0
  %v582 = vsel %vm89, %v577, 0
  %584 = vmatprep.subr.bf16.mxu0 0
  %585 = vmatpush1.bf16.msra.mxu0 0
  %586 = vmatprep.subr.bf16.mxu0 0
  %587 = vmatpush1.bf16.msra.mxu0 0
  %588 = vmatprep.subr.bf16.mxu0 0
  %589 = vmatpush1.bf16.msra.mxu0 0
  %590 = vmatprep.subr.bf16.mxu0 0
  %591 = vmatpush1.bf16.msra.mxu0 0
  %592 = vmatprep.subr.bf16.mxu0 0
  %593 = vmatpush1.bf16.msra.mxu0 0
  %594 = vmatprep.subr.bf16.mxu0 0
  %595 = vmatpush1.bf16.msra.mxu0 0
  %596 = vmatprep.subr.bf16.mxu0 0
  %597 = vmatpush1.bf16.msra.mxu0 0
  %598 = vmatprep.subr.bf16.mxu0 0
  %599 = vmatpush1.bf16.msra.mxu0 %v582
  %600 = vmatprep.subr.bf16.mxu0 0
  %601 = vmatpush2.bf16.msra.mxu0 0
  %602 = vmatprep.subr.bf16.mxu0 0
  %603 = vmatpush2.bf16.msra.mxu0 0
  %604 = vmatprep.subr.bf16.mxu0 0
  %605 = vmatpush2.bf16.msra.mxu0 0
  %606 = vmatprep.subr.bf16.mxu0 0
  %607 = vmatpush2.bf16.msra.mxu0 0
  %608 = vmatprep.subr.bf16.mxu0 0
  %609 = vmatpush2.bf16.msra.mxu0 0
  %610 = vmatprep.subr.bf16.mxu0 0
  %611 = vmatpush2.bf16.msra.mxu0 0
  %612 = vmatprep.subr.bf16.mxu0 0
  %613 = vmatpush2.bf16.msra.mxu0 0
  %614 = vmatprep.subr.bf16.mxu0 0
  %615 = vmatpush2.bf16.msra.mxu0 0
  %616 = vmatprep.mubr.bf16.mxu0 0
  %617 = vmatmul.mubr.bf16.gmra.mxu0 %v579
  %v618 = vpop.f32.mrf.mxu0
  %v619 = vadd.f32 0.0, %v618
  %v620 = vpop.f32.mrf.mxu0
  %v621 = vpop.f32.mrf.mxu0
  %v622 = vpop.f32.mrf.mxu0
  %623 = vdwg.mxu0
  %625 = vrot.lane.b32.xlu0 %v619, 16
  %v626 = vpop.permute.xlu0 %625
  %vm628 = vcmask 195712
  %629 = vst.msk [vmem:[#allocation2] sm:$0xff] %vm628, %v626
  %630 = vrot.lane.b32.xlu0 %v276, 104
  %v631 = vpop.permute.xlu0 %630
  %632 = vrot.lane.b32.xlu0 %v276, 72
  %v633 = vpop.permute.xlu0 %632
  %v635 = vsel %vm280, %v631, 0
  %v638 = vsel %vm280, %v633, 0
  %640 = vmatprep.subr.bf16.mxu0 0
  %641 = vmatpush1.bf16.xpose.msra.mxu0 0
  %642 = vmatprep.subr.bf16.mxu0 0
  %643 = vmatpush1.bf16.xpose.msra.mxu0 0
  %644 = vmatprep.subr.bf16.mxu0 0
  %645 = vmatpush1.bf16.xpose.msra.mxu0 0
  %646 = vmatprep.subr.bf16.mxu0 0
  %647 = vmatpush1.bf16.xpose.msra.mxu0 0
  %648 = vmatprep.subr.bf16.mxu0 0
  %649 = vmatpush1.bf16.xpose.msra.mxu0 0
  %650 = vmatprep.subr.bf16.mxu0 0
  %651 = vmatpush1.bf16.xpose.msra.mxu0 0
  %652 = vmatprep.subr.bf16.mxu0 0
  %653 = vmatpush1.bf16.xpose.msra.mxu0 0
  %654 = vmatprep.subr.bf16.mxu0 0
  %655 = vmatpush1.bf16.xpose.msra.mxu0 %v638
  %656 = vmatprep.subr.bf16.mxu0 0
  %657 = vmatpush2.bf16.xpose.msra.mxu0 0
  %658 = vmatprep.subr.bf16.mxu0 0
  %659 = vmatpush2.bf16.xpose.msra.mxu0 0
  %660 = vmatprep.subr.bf16.mxu0 0
  %661 = vmatpush2.bf16.xpose.msra.mxu0 0
  %662 = vmatprep.subr.bf16.mxu0 0
  %663 = vmatpush2.bf16.xpose.msra.mxu0 0
  %664 = vmatprep.subr.bf16.mxu0 0
  %665 = vmatpush2.bf16.xpose.msra.mxu0 0
  %666 = vmatprep.subr.bf16.mxu0 0
  %667 = vmatpush2.bf16.xpose.msra.mxu0 0
  %668 = vmatprep.subr.bf16.mxu0 0
  %669 = vmatpush2.bf16.xpose.msra.mxu0 0
  %670 = vmatprep.subr.bf16.mxu0 0
  %671 = vmatpush2.bf16.xpose.msra.mxu0 0
  %672 = vmatprep.mubr.bf16.mxu0 0
  %673 = vmatmul.mubr.bf16.gmra.mxu0 %v635
  %v674 = vpop.f32.mrf.mxu0
  %v675 = vadd.f32 0.0, %v674
  %v676 = vpop.f32.mrf.mxu0
  %v677 = vpop.f32.mrf.mxu0
  %v678 = vpop.f32.mrf.mxu0
  %679 = vdwg.mxu0
  %v680 = vmul.f32 %v675, 0.35355338
  %v681 = vadd.f32 %v680, %v331
  %v682 = vsel %vm280, %v681, -inf
  %683 = vmax.xlane.f32.xlu0 %v682
  %v684 = vpop.xlane.xlu0 %683
  %v685 = vsub.f32 %v681, %v684
  %v686 = vmul.f32 %v685, 1.442695
  %v687 = vpow.pop %v686
  %v688 = vsel %vm280, %v687, 0.0
  %689 = vadd.xlane.f32.xlu0 %v688
  %v690 = vpop.xlane.xlu0 %689
  %v691 = vrcp.pop %v690
  %v692 = vmul.f32 %v687, %v691
  %v693 = vpack.c.bf16 %v692, %v692
  %694 = vrot.lane.b32.xlu0 %v276, 40
  %v695 = vpop.permute.xlu0 %694
  %v697 = vsel %vm280, %v693, 0
  %v700 = vsel %vm89, %v695, 0
  %702 = vmatprep.subr.bf16.mxu0 0
  %703 = vmatpush1.bf16.msra.mxu0 0
  %704 = vmatprep.subr.bf16.mxu0 0
  %705 = vmatpush1.bf16.msra.mxu0 0
  %706 = vmatprep.subr.bf16.mxu0 0
  %707 = vmatpush1.bf16.msra.mxu0 0
  %708 = vmatprep.subr.bf16.mxu0 0
  %709 = vmatpush1.bf16.msra.mxu0 0
  %710 = vmatprep.subr.bf16.mxu0 0
  %711 = vmatpush1.bf16.msra.mxu0 0
  %712 = vmatprep.subr.bf16.mxu0 0
  %713 = vmatpush1.bf16.msra.mxu0 0
  %714 = vmatprep.subr.bf16.mxu0 0
  %715 = vmatpush1.bf16.msra.mxu0 0
  %716 = vmatprep.subr.bf16.mxu0 0
  %717 = vmatpush1.bf16.msra.mxu0 %v700
  %718 = vmatprep.subr.bf16.mxu0 0
  %719 = vmatpush2.bf16.msra.mxu0 0
  %720 = vmatprep.subr.bf16.mxu0 0
  %721 = vmatpush2.bf16.msra.mxu0 0
  %722 = vmatprep.subr.bf16.mxu0 0
  %723 = vmatpush2.bf16.msra.mxu0 0
  %724 = vmatprep.subr.bf16.mxu0 0
  %725 = vmatpush2.bf16.msra.mxu0 0
  %726 = vmatprep.subr.bf16.mxu0 0
  %727 = vmatpush2.bf16.msra.mxu0 0
  %728 = vmatprep.subr.bf16.mxu0 0
  %729 = vmatpush2.bf16.msra.mxu0 0
  %730 = vmatprep.subr.bf16.mxu0 0
  %731 = vmatpush2.bf16.msra.mxu0 0
  %732 = vmatprep.subr.bf16.mxu0 0
  %733 = vmatpush2.bf16.msra.mxu0 0
  %734 = vmatprep.mubr.bf16.mxu0 0
  %735 = vmatmul.mubr.bf16.gmra.mxu0 %v697
  %v736 = vpop.f32.mrf.mxu0
  %v737 = vadd.f32 0.0, %v736
  %v738 = vpop.f32.mrf.mxu0
  %v739 = vpop.f32.mrf.mxu0
  %v740 = vpop.f32.mrf.mxu0
  %741 = vdwg.mxu0
  %743 = vrot.lane.b32.xlu0 %v737, 24
  %v744 = vpop.permute.xlu0 %743
  %vm746 = vcmask 261312
  %747 = vst.msk [vmem:[#allocation2] sm:$0xff] %vm746, %v744
  %v748 = vpack.c.bf16 %v273, %v273
  %750 = vrot.lane.b32.xlu0 %v748, 96
  %v751 = vpop.permute.xlu0 %750
  %v753 = vsel %vm280, %v748, 0
  %v756 = vsel %vm280, %v751, 0
  %758 = vmatprep.subr.bf16.mxu0 0
  %759 = vmatpush1.bf16.xpose.msra.mxu0 0
  %760 = vmatprep.subr.bf16.mxu0 0
  %761 = vmatpush1.bf16.xpose.msra.mxu0 0
  %762 = vmatprep.subr.bf16.mxu0 0
  %763 = vmatpush1.bf16.xpose.msra.mxu0 0
  %764 = vmatprep.subr.bf16.mxu0 0
  %765 = vmatpush1.bf16.xpose.msra.mxu0 0
  %766 = vmatprep.subr.bf16.mxu0 0
  %767 = vmatpush1.bf16.xpose.msra.mxu0 0
  %768 = vmatprep.subr.bf16.mxu0 0
  %769 = vmatpush1.bf16.xpose.msra.mxu0 0
  %770 = vmatprep.subr.bf16.mxu0 0
  %771 = vmatpush1.bf16.xpose.msra.mxu0 0
  %772 = vmatprep.subr.bf16.mxu0 0
  %773 = vmatpush1.bf16.xpose.msra.mxu0 %v756
  %774 = vmatprep.subr.bf16.mxu0 0
  %775 = vmatpush2.bf16.xpose.msra.mxu0 0
  %776 = vmatprep.subr.bf16.mxu0 0
  %777 = vmatpush2.bf16.xpose.msra.mxu0 0
  %778 = vmatprep.subr.bf16.mxu0 0
  %779 = vmatpush2.bf16.xpose.msra.mxu0 0
  %780 = vmatprep.subr.bf16.mxu0 0
  %781 = vmatpush2.bf16.xpose.msra.mxu0 0
  %782 = vmatprep.subr.bf16.mxu0 0
  %783 = vmatpush2.bf16.xpose.msra.mxu0 0
  %784 = vmatprep.subr.bf16.mxu0 0
  %785 = vmatpush2.bf16.xpose.msra.mxu0 0
  %786 = vmatprep.subr.bf16.mxu0 0
  %787 = vmatpush2.bf16.xpose.msra.mxu0 0
  %788 = vmatprep.subr.bf16.mxu0 0
  %789 = vmatpush2.bf16.xpose.msra.mxu0 0
  %790 = vmatprep.mubr.bf16.mxu0 0
  %791 = vmatmul.mubr.bf16.gmra.mxu0 %v753
  %v792 = vpop.f32.mrf.mxu0
  %v793 = vadd.f32 0.0, %v792
  %v794 = vpop.f32.mrf.mxu0
  %v795 = vpop.f32.mrf.mxu0
  %v796 = vpop.f32.mrf.mxu0
  %797 = vdwg.mxu0
  %v798 = vmul.f32 %v793, 0.35355338
  %v799 = vlaneseq
  %v800 = vshrl.u32 %v799, 7
  %v801 = vsub.s32 1, %v800
  %v802 = vrot.slane %v212, %v801
  %v803 = vadd.f32 %v798, %v802
  %v804 = vsel %vm280, %v803, -inf
  %805 = vmax.xlane.f32.xlu0 %v804
  %v806 = vpop.xlane.xlu0 %805
  %v807 = vsub.f32 %v803, %v806
  %v808 = vmul.f32 %v807, 1.442695
  %v809 = vpow.pop %v808
  %v810 = vsel %vm280, %v809, 0.0
  %811 = vadd.xlane.f32.xlu0 %v810
  %v812 = vpop.xlane.xlu0 %811
  %v813 = vrcp.pop %v812
  %v814 = vmul.f32 %v809, %v813
  %v815 = vpack.c.bf16 %v814, %v814
  %816 = vrot.lane.b32.xlu0 %v748, 64
  %v817 = vpop.permute.xlu0 %816
  %v819 = vsel %vm280, %v815, 0
  %v822 = vsel %vm89, %v817, 0
  %824 = vmatprep.subr.bf16.mxu0 0
  %825 = vmatpush1.bf16.msra.mxu0 0
  %826 = vmatprep.subr.bf16.mxu0 0
  %827 = vmatpush1.bf16.msra.mxu0 0
  %828 = vmatprep.subr.bf16.mxu0 0
  %829 = vmatpush1.bf16.msra.mxu0 0
  %830 = vmatprep.subr.bf16.mxu0 0
  %831 = vmatpush1.bf16.msra.mxu0 0
  %832 = vmatprep.subr.bf16.mxu0 0
  %833 = vmatpush1.bf16.msra.mxu0 0
  %834 = vmatprep.subr.bf16.mxu0 0
  %835 = vmatpush1.bf16.msra.mxu0 0
  %836 = vmatprep.subr.bf16.mxu0 0
  %837 = vmatpush1.bf16.msra.mxu0 0
  %838 = vmatprep.subr.bf16.mxu0 0
  %839 = vmatpush1.bf16.msra.mxu0 %v822
  %840 = vmatprep.subr.bf16.mxu0 0
  %841 = vmatpush2.bf16.msra.mxu0 0
  %842 = vmatprep.subr.bf16.mxu0 0
  %843 = vmatpush2.bf16.msra.mxu0 0
  %844 = vmatprep.subr.bf16.mxu0 0
  %845 = vmatpush2.bf16.msra.mxu0 0
  %846 = vmatprep.subr.bf16.mxu0 0
  %847 = vmatpush2.bf16.msra.mxu0 0
  %848 = vmatprep.subr.bf16.mxu0 0
  %849 = vmatpush2.bf16.msra.mxu0 0
  %850 = vmatprep.subr.bf16.mxu0 0
  %851 = vmatpush2.bf16.msra.mxu0 0
  %852 = vmatprep.subr.bf16.mxu0 0
  %853 = vmatpush2.bf16.msra.mxu0 0
  %854 = vmatprep.subr.bf16.mxu0 0
  %855 = vmatpush2.bf16.msra.mxu0 0
  %856 = vmatprep.mubr.bf16.mxu0 0
  %857 = vmatmul.mubr.bf16.gmra.mxu0 %v819
  %v858 = vpop.f32.mrf.mxu0
  %v859 = vadd.f32 0.0, %v858
  %v860 = vpop.f32.mrf.mxu0
  %v861 = vpop.f32.mrf.mxu0
  %v862 = vpop.f32.mrf.mxu0
  %863 = vdwg.mxu0
  %864 = vst.msk [vmem:[#allocation2 + $0x8] sm:$0xff] %vm280, %v859
  %865 = vrot.lane.b32.xlu0 %v748, 120
  %v866 = vpop.permute.xlu0 %865
  %867 = vrot.lane.b32.xlu0 %v748, 88
  %v868 = vpop.permute.xlu0 %867
  %v870 = vsel %vm280, %v866, 0
  %v873 = vsel %vm280, %v868, 0
  %875 = vmatprep.subr.bf16.mxu0 0
  %876 = vmatpush1.bf16.xpose.msra.mxu0 0
  %877 = vmatprep.subr.bf16.mxu0 0
  %878 = vmatpush1.bf16.xpose.msra.mxu0 0
  %879 = vmatprep.subr.bf16.mxu0 0
  %880 = vmatpush1.bf16.xpose.msra.mxu0 0
  %881 = vmatprep.subr.bf16.mxu0 0
  %882 = vmatpush1.bf16.xpose.msra.mxu0 0
  %883 = vmatprep.subr.bf16.mxu0 0
  %884 = vmatpush1.bf16.xpose.msra.mxu0 0
  %885 = vmatprep.subr.bf16.mxu0 0
  %886 = vmatpush1.bf16.xpose.msra.mxu0 0
  %887 = vmatprep.subr.bf16.mxu0 0
  %888 = vmatpush1.bf16.xpose.msra.mxu0 0
  %889 = vmatprep.subr.bf16.mxu0 0
  %890 = vmatpush1.bf16.xpose.msra.mxu0 %v873
  %891 = vmatprep.subr.bf16.mxu0 0
  %892 = vmatpush2.bf16.xpose.msra.mxu0 0
  %893 = vmatprep.subr.bf16.mxu0 0
  %894 = vmatpush2.bf16.xpose.msra.mxu0 0
  %895 = vmatprep.subr.bf16.mxu0 0
  %896 = vmatpush2.bf16.xpose.msra.mxu0 0
  %897 = vmatprep.subr.bf16.mxu0 0
  %898 = vmatpush2.bf16.xpose.msra.mxu0 0
  %899 = vmatprep.subr.bf16.mxu0 0
  %900 = vmatpush2.bf16.xpose.msra.mxu0 0
  %901 = vmatprep.subr.bf16.mxu0 0
  %902 = vmatpush2.bf16.xpose.msra.mxu0 0
  %903 = vmatprep.subr.bf16.mxu0 0
  %904 = vmatpush2.bf16.xpose.msra.mxu0 0
  %905 = vmatprep.subr.bf16.mxu0 0
  %906 = vmatpush2.bf16.xpose.msra.mxu0 0
  %907 = vmatprep.mubr.bf16.mxu0 0
  %908 = vmatmul.mubr.bf16.gmra.mxu0 %v870
  %v909 = vpop.f32.mrf.mxu0
  %v910 = vadd.f32 0.0, %v909
  %v911 = vpop.f32.mrf.mxu0
  %v912 = vpop.f32.mrf.mxu0
  %v913 = vpop.f32.mrf.mxu0
  %914 = vdwg.mxu0
  %v915 = vmul.f32 %v910, 0.35355338
  %v916 = vadd.f32 %v915, %v802
  %v917 = vsel %vm280, %v916, -inf
  %918 = vmax.xlane.f32.xlu0 %v917
  %v919 = vpop.xlane.xlu0 %918
  %v920 = vsub.f32 %v916, %v919
  %v921 = vmul.f32 %v920, 1.442695
  %v922 = vpow.pop %v921
  %v923 = vsel %vm280, %v922, 0.0
  %924 = vadd.xlane.f32.xlu0 %v923
  %v925 = vpop.xlane.xlu0 %924
  %v926 = vrcp.pop %v925
  %v927 = vmul.f32 %v922, %v926
  %v928 = vpack.c.bf16 %v927, %v927
  %929 = vrot.lane.b32.xlu0 %v748, 56
  %v930 = vpop.permute.xlu0 %929
  %v932 = vsel %vm280, %v928, 0
  %v935 = vsel %vm89, %v930, 0
  %937 = vmatprep.subr.bf16.mxu0 0
  %938 = vmatpush1.bf16.msra.mxu0 0
  %939 = vmatprep.subr.bf16.mxu0 0
  %940 = vmatpush1.bf16.msra.mxu0 0
  %941 = vmatprep.subr.bf16.mxu0 0
  %942 = vmatpush1.bf16.msra.mxu0 0
  %943 = vmatprep.subr.bf16.mxu0 0
  %944 = vmatpush1.bf16.msra.mxu0 0
  %945 = vmatprep.subr.bf16.mxu0 0
  %946 = vmatpush1.bf16.msra.mxu0 0
  %947 = vmatprep.subr.bf16.mxu0 0
  %948 = vmatpush1.bf16.msra.mxu0 0
  %949 = vmatprep.subr.bf16.mxu0 0
  %950 = vmatpush1.bf16.msra.mxu0 0
  %951 = vmatprep.subr.bf16.mxu0 0
  %952 = vmatpush1.bf16.msra.mxu0 %v935
  %953 = vmatprep.subr.bf16.mxu0 0
  %954 = vmatpush2.bf16.msra.mxu0 0
  %955 = vmatprep.subr.bf16.mxu0 0
  %956 = vmatpush2.bf16.msra.mxu0 0
  %957 = vmatprep.subr.bf16.mxu0 0
  %958 = vmatpush2.bf16.msra.mxu0 0
  %959 = vmatprep.subr.bf16.mxu0 0
  %960 = vmatpush2.bf16.msra.mxu0 0
  %961 = vmatprep.subr.bf16.mxu0 0
  %962 = vmatpush2.bf16.msra.mxu0 0
  %963 = vmatprep.subr.bf16.mxu0 0
  %964 = vmatpush2.bf16.msra.mxu0 0
  %965 = vmatprep.subr.bf16.mxu0 0
  %966 = vmatpush2.bf16.msra.mxu0 0
  %967 = vmatprep.subr.bf16.mxu0 0
  %968 = vmatpush2.bf16.msra.mxu0 0
  %969 = vmatprep.mubr.bf16.mxu0 0
  %970 = vmatmul.mubr.bf16.gmra.mxu0 %v932
  %v971 = vpop.f32.mrf.mxu0
  %v972 = vadd.f32 0.0, %v971
  %v973 = vpop.f32.mrf.mxu0
  %v974 = vpop.f32.mrf.mxu0
  %v975 = vpop.f32.mrf.mxu0
  %976 = vdwg.mxu0
  %978 = vrot.lane.b32.xlu0 %v972, 8
  %v979 = vpop.permute.xlu0 %978
  %981 = vst.msk [vmem:[#allocation2 + $0x8] sm:$0xff] %vm510, %v979
  %982 = vrot.lane.b32.xlu0 %v748, 112
  %v983 = vpop.permute.xlu0 %982
  %984 = vrot.lane.b32.xlu0 %v748, 80
  %v985 = vpop.permute.xlu0 %984
  %v987 = vsel %vm280, %v983, 0
  %v990 = vsel %vm280, %v985, 0
  %992 = vmatprep.subr.bf16.mxu0 0
  %993 = vmatpush1.bf16.xpose.msra.mxu0 0
  %994 = vmatprep.subr.bf16.mxu0 0
  %995 = vmatpush1.bf16.xpose.msra.mxu0 0
  %996 = vmatprep.subr.bf16.mxu0 0
  %997 = vmatpush1.bf16.xpose.msra.mxu0 0
  %998 = vmatprep.subr.bf16.mxu0 0
  %999 = vmatpush1.bf16.xpose.msra.mxu0 0
  %1000 = vmatprep.subr.bf16.mxu0 0
  %1001 = vmatpush1.bf16.xpose.msra.mxu0 0
  %1002 = vmatprep.subr.bf16.mxu0 0
  %1003 = vmatpush1.bf16.xpose.msra.mxu0 0
  %1004 = vmatprep.subr.bf16.mxu0 0
  %1005 = vmatpush1.bf16.xpose.msra.mxu0 0
  %1006 = vmatprep.subr.bf16.mxu0 0
  %1007 = vmatpush1.bf16.xpose.msra.mxu0 %v990
  %1008 = vmatprep.subr.bf16.mxu0 0
  %1009 = vmatpush2.bf16.xpose.msra.mxu0 0
  %1010 = vmatprep.subr.bf16.mxu0 0
  %1011 = vmatpush2.bf16.xpose.msra.mxu0 0
  %1012 = vmatprep.subr.bf16.mxu0 0
  %1013 = vmatpush2.bf16.xpose.msra.mxu0 0
  %1014 = vmatprep.subr.bf16.mxu0 0
  %1015 = vmatpush2.bf16.xpose.msra.mxu0 0
  %1016 = vmatprep.subr.bf16.mxu0 0
  %1017 = vmatpush2.bf16.xpose.msra.mxu0 0
  %1018 = vmatprep.subr.bf16.mxu0 0
  %1019 = vmatpush2.bf16.xpose.msra.mxu0 0
  %1020 = vmatprep.subr.bf16.mxu0 0
  %1021 = vmatpush2.bf16.xpose.msra.mxu0 0
  %1022 = vmatprep.subr.bf16.mxu0 0
  %1023 = vmatpush2.bf16.xpose.msra.mxu0 0
  %1024 = vmatprep.mubr.bf16.mxu0 0
  %1025 = vmatmul.mubr.bf16.gmra.mxu0 %v987
  %v1026 = vpop.f32.mrf.mxu0
  %v1027 = vadd.f32 0.0, %v1026
  %v1028 = vpop.f32.mrf.mxu0
  %v1029 = vpop.f32.mrf.mxu0
  %v1030 = vpop.f32.mrf.mxu0
  %1031 = vdwg.mxu0
  %v1032 = vmul.f32 %v1027, 0.35355338
  %v1033 = vadd.f32 %v1032, %v802
  %v1034 = vsel %vm280, %v1033, -inf
  %1035 = vmax.xlane.f32.xlu0 %v1034
  %v1036 = vpop.xlane.xlu0 %1035
  %v1037 = vsub.f32 %v1033, %v1036
  %v1038 = vmul.f32 %v1037, 1.442695
  %v1039 = vpow.pop %v1038
  %v1040 = vsel %vm280, %v1039, 0.0
  %1041 = vadd.xlane.f32.xlu0 %v1040
  %v1042 = vpop.xlane.xlu0 %1041
  %v1043 = vrcp.pop %v1042
  %v1044 = vmul.f32 %v1039, %v1043
  %v1045 = vpack.c.bf16 %v1044, %v1044
  %1046 = vrot.lane.b32.xlu0 %v748, 48
  %v1047 = vpop.permute.xlu0 %1046
  %v1049 = vsel %vm280, %v1045, 0
  %v1052 = vsel %vm89, %v1047, 0
  %1054 = vmatprep.subr.bf16.mxu0 0
  %1055 = vmatpush1.bf16.msra.mxu0 0
  %1056 = vmatprep.subr.bf16.mxu0 0
  %1057 = vmatpush1.bf16.msra.mxu0 0
  %1058 = vmatprep.subr.bf16.mxu0 0
  %1059 = vmatpush1.bf16.msra.mxu0 0
  %1060 = vmatprep.subr.bf16.mxu0 0
  %1061 = vmatpush1.bf16.msra.mxu0 0
  %1062 = vmatprep.subr.bf16.mxu0 0
  %1063 = vmatpush1.bf16.msra.mxu0 0
  %1064 = vmatprep.subr.bf16.mxu0 0
  %1065 = vmatpush1.bf16.msra.mxu0 0
  %1066 = vmatprep.subr.bf16.mxu0 0
  %1067 = vmatpush1.bf16.msra.mxu0 0
  %1068 = vmatprep.subr.bf16.mxu0 0
  %1069 = vmatpush1.bf16.msra.mxu0 %v1052
  %1070 = vmatprep.subr.bf16.mxu0 0
  %1071 = vmatpush2.bf16.msra.mxu0 0
  %1072 = vmatprep.subr.bf16.mxu0 0
  %1073 = vmatpush2.bf16.msra.mxu0 0
  %1074 = vmatprep.subr.bf16.mxu0 0
  %1075 = vmatpush2.bf16.msra.mxu0 0
  %1076 = vmatprep.subr.bf16.mxu0 0
  %1077 = vmatpush2.bf16.msra.mxu0 0
  %1078 = vmatprep.subr.bf16.mxu0 0
  %1079 = vmatpush2.bf16.msra.mxu0 0
  %1080 = vmatprep.subr.bf16.mxu0 0
  %1081 = vmatpush2.bf16.msra.mxu0 0
  %1082 = vmatprep.subr.bf16.mxu0 0
  %1083 = vmatpush2.bf16.msra.mxu0 0
  %1084 = vmatprep.subr.bf16.mxu0 0
  %1085 = vmatpush2.bf16.msra.mxu0 0
  %1086 = vmatprep.mubr.bf16.mxu0 0
  %1087 = vmatmul.mubr.bf16.gmra.mxu0 %v1049
  %v1088 = vpop.f32.mrf.mxu0
  %v1089 = vadd.f32 0.0, %v1088
  %v1090 = vpop.f32.mrf.mxu0
  %v1091 = vpop.f32.mrf.mxu0
  %v1092 = vpop.f32.mrf.mxu0
  %1093 = vdwg.mxu0
  %1095 = vrot.lane.b32.xlu0 %v1089, 16
  %v1096 = vpop.permute.xlu0 %1095
  %1098 = vst.msk [vmem:[#allocation2 + $0x8] sm:$0xff] %vm628, %v1096
  %1099 = vrot.lane.b32.xlu0 %v748, 104
  %v1100 = vpop.permute.xlu0 %1099
  %1101 = vrot.lane.b32.xlu0 %v748, 72
  %v1102 = vpop.permute.xlu0 %1101
  %v1104 = vsel %vm280, %v1100, 0
  %v1107 = vsel %vm280, %v1102, 0
  %1109 = vmatprep.subr.bf16.mxu0 0
  %1110 = vmatpush1.bf16.xpose.msra.mxu0 0
  %1111 = vmatprep.subr.bf16.mxu0 0
  %1112 = vmatpush1.bf16.xpose.msra.mxu0 0
  %1113 = vmatprep.subr.bf16.mxu0 0
  %1114 = vmatpush1.bf16.xpose.msra.mxu0 0
  %1115 = vmatprep.subr.bf16.mxu0 0
  %1116 = vmatpush1.bf16.xpose.msra.mxu0 0
  %1117 = vmatprep.subr.bf16.mxu0 0
  %1118 = vmatpush1.bf16.xpose.msra.mxu0 0
  %1119 = vmatprep.subr.bf16.mxu0 0
  %1120 = vmatpush1.bf16.xpose.msra.mxu0 0
  %1121 = vmatprep.subr.bf16.mxu0 0
  %1122 = vmatpush1.bf16.xpose.msra.mxu0 0
  %1123 = vmatprep.subr.bf16.mxu0 0
  %1124 = vmatpush1.bf16.xpose.msra.mxu0 %v1107
  %1125 = vmatprep.subr.bf16.mxu0 0
  %1126 = vmatpush2.bf16.xpose.msra.mxu0 0
  %1127 = vmatprep.subr.bf16.mxu0 0
  %1128 = vmatpush2.bf16.xpose.msra.mxu0 0
  %1129 = vmatprep.subr.bf16.mxu0 0
  %1130 = vmatpush2.bf16.xpose.msra.mxu0 0
  %1131 = vmatprep.subr.bf16.mxu0 0
  %1132 = vmatpush2.bf16.xpose.msra.mxu0 0
  %1133 = vmatprep.subr.bf16.mxu0 0
  %1134 = vmatpush2.bf16.xpose.msra.mxu0 0
  %1135 = vmatprep.subr.bf16.mxu0 0
  %1136 = vmatpush2.bf16.xpose.msra.mxu0 0
  %1137 = vmatprep.subr.bf16.mxu0 0
  %1138 = vmatpush2.bf16.xpose.msra.mxu0 0
  %1139 = vmatprep.subr.bf16.mxu0 0
  %1140 = vmatpush2.bf16.xpose.msra.mxu0 0
  %1141 = vmatprep.mubr.bf16.mxu0 0
  %1142 = vmatmul.mubr.bf16.gmra.mxu0 %v1104
  %v1143 = vpop.f32.mrf.mxu0
  %v1144 = vadd.f32 0.0, %v1143
  %v1145 = vpop.f32.mrf.mxu0
  %v1146 = vpop.f32.mrf.mxu0
  %v1147 = vpop.f32.mrf.mxu0
  %1148 = vdwg.mxu0
  %v1149 = vmul.f32 %v1144, 0.35355338
  %v1150 = vadd.f32 %v1149, %v802
  %v1151 = vsel %vm280, %v1150, -inf
  %1152 = vmax.xlane.f32.xlu0 %v1151
  %v1153 = vpop.xlane.xlu0 %1152
  %v1154 = vsub.f32 %v1150, %v1153
  %v1155 = vmul.f32 %v1154, 1.442695
  %v1156 = vpow.pop %v1155
  %v1157 = vsel %vm280, %v1156, 0.0
  %1158 = vadd.xlane.f32.xlu0 %v1157
  %v1159 = vpop.xlane.xlu0 %1158
  %v1160 = vrcp.pop %v1159
  %v1161 = vmul.f32 %v1156, %v1160
  %v1162 = vpack.c.bf16 %v1161, %v1161
  %1163 = vrot.lane.b32.xlu0 %v748, 40
  %v1164 = vpop.permute.xlu0 %1163
  %v1166 = vsel %vm280, %v1162, 0
  %v1169 = vsel %vm89, %v1164, 0
  %1171 = vmatprep.subr.bf16.mxu0 0
  %1172 = vmatpush1.bf16.msra.mxu0 0
  %1173 = vmatprep.subr.bf16.mxu0 0
  %1174 = vmatpush1.bf16.msra.mxu0 0
  %1175 = vmatprep.subr.bf16.mxu0 0
  %1176 = vmatpush1.bf16.msra.mxu0 0
  %1177 = vmatprep.subr.bf16.mxu0 0
  %1178 = vmatpush1.bf16.msra.mxu0 0
  %1179 = vmatprep.subr.bf16.mxu0 0
  %1180 = vmatpush1.bf16.msra.mxu0 0
  %1181 = vmatprep.subr.bf16.mxu0 0
  %1182 = vmatpush1.bf16.msra.mxu0 0
  %1183 = vmatprep.subr.bf16.mxu0 0
  %1184 = vmatpush1.bf16.msra.mxu0 0
  %1185 = vmatprep.subr.bf16.mxu0 0
  %1186 = vmatpush1.bf16.msra.mxu0 %v1169
  %1187 = vmatprep.subr.bf16.mxu0 0
  %1188 = vmatpush2.bf16.msra.mxu0 0
  %1189 = vmatprep.subr.bf16.mxu0 0
  %1190 = vmatpush2.bf16.msra.mxu0 0
  %1191 = vmatprep.subr.bf16.mxu0 0
  %1192 = vmatpush2.bf16.msra.mxu0 0
  %1193 = vmatprep.subr.bf16.mxu0 0
  %1194 = vmatpush2.bf16.msra.mxu0 0
  %1195 = vmatprep.subr.bf16.mxu0 0
  %1196 = vmatpush2.bf16.msra.mxu0 0
  %1197 = vmatprep.subr.bf16.mxu0 0
  %1198 = vmatpush2.bf16.msra.mxu0 0
  %1199 = vmatprep.subr.bf16.mxu0 0
  %1200 = vmatpush2.bf16.msra.mxu0 0
  %1201 = vmatprep.subr.bf16.mxu0 0
  %1202 = vmatpush2.bf16.msra.mxu0 0
  %1203 = vmatprep.mubr.bf16.mxu0 0
  %1204 = vmatmul.mubr.bf16.gmra.mxu0 %v1166
  %v1205 = vpop.f32.mrf.mxu0
  %v1206 = vadd.f32 0.0, %v1205
  %v1207 = vpop.f32.mrf.mxu0
  %v1208 = vpop.f32.mrf.mxu0
  %v1209 = vpop.f32.mrf.mxu0
  %1210 = vdwg.mxu0
  %1212 = vrot.lane.b32.xlu0 %v1206, 24
  %v1213 = vpop.permute.xlu0 %1212
  %1215 = vst.msk [vmem:[#allocation2 + $0x8] sm:$0xff] %vm746, %v1213
  %v1216 = vld [vmem:[#allocation2] sm:$0xff]
  %v1217 = vld [vmem:[#allocation2 + $0x8] sm:$0xff]
  %v1218 = vpack.c.bf16 %v1217, %v1216
  %v1220 = vlaneseq
  %v1221 = vshrl.u32 %v1220, 7
  %v1222 = vsub.s32 0, %v1221
  %v1223 = vrot.slane %v193, %v1222
  %v1229 = vunpack.c.l.b16 %v189
  %v1230 = vunpack.c.l.b16 %v190
  %v1231 = vunpack.c.l.b16 %v191
  %v1232 = vunpack.c.l.b16 %v192
  %v1233 = vpack.c.b16 %v1230, %v1229
  %v1234 = vpack.c.b16 %v1232, %v1231
  %v1238 = vsel %vm140, %v1218, 0
  %1240 = vmatprep.subr.bf16.mxu0 0
  %1241 = vmatpush1.bf16.msra.mxu0 0
  %1242 = vmatprep.subr.bf16.mxu0 0
  %1243 = vmatpush1.bf16.msra.mxu0 0
  %1244 = vmatprep.subr.bf16.mxu0 0
  %1245 = vmatpush1.bf16.msra.mxu0 0
  %1246 = vmatprep.subr.bf16.mxu0 0
  %1247 = vmatpush1.bf16.msra.mxu0 0
  %1248 = vmatprep.subr.bf16.mxu0 0
  %1249 = vmatpush1.bf16.msra.mxu0 0
  %1250 = vmatprep.subr.bf16.mxu0 0
  %1251 = vmatpush1.bf16.msra.mxu0 0
  %1252 = vmatprep.subr.bf16.mxu0 0
  %1253 = vmatpush1.bf16.msra.mxu0 %v1234
  %1254 = vmatprep.subr.bf16.mxu0 0
  %1255 = vmatpush1.bf16.msra.mxu0 %v1233
  %1256 = vmatprep.subr.bf16.mxu0 0
  %1257 = vmatpush2.bf16.msra.mxu0 0
  %1258 = vmatprep.subr.bf16.mxu0 0
  %1259 = vmatpush2.bf16.msra.mxu0 0
  %1260 = vmatprep.subr.bf16.mxu0 0
  %1261 = vmatpush2.bf16.msra.mxu0 0
  %1262 = vmatprep.subr.bf16.mxu0 0
  %1263 = vmatpush2.bf16.msra.mxu0 0
  %1264 = vmatprep.subr.bf16.mxu0 0
  %1265 = vmatpush2.bf16.msra.mxu0 0
  %1266 = vmatprep.subr.bf16.mxu0 0
  %1267 = vmatpush2.bf16.msra.mxu0 0
  %1268 = vmatprep.subr.bf16.mxu0 0
  %1269 = vmatpush2.bf16.msra.mxu0 0
  %1270 = vmatprep.subr.bf16.mxu0 0
  %1271 = vmatpush2.bf16.msra.mxu0 0
  %1272 = vmatprep.mubr.bf16.mxu0 0
  %1273 = vmatmul.mubr.bf16.gmra.mxu0 %v1238
  %v1274 = vpop.f32.mrf.mxu0
  %v1275 = vadd.f32 %v1223, %v1274
  %v1276 = vpop.f32.mrf.mxu0
  %v1277 = vpop.f32.mrf.mxu0
  %v1278 = vadd.f32 %v1223, %v1277
  %v1279 = vpop.f32.mrf.mxu0
  %1280 = vdwg.mxu0
  %v1281 = vadd.f32 %v182, %v1275
  %v1282 = vadd.f32 %v183, %v1278
  %v1283 = vsel %vm140, %v1281, 0.0
  %1284 = vadd.xlane.f32.xlu0 %v1283
  %v1285 = vpop.xlane.xlu0 %1284
  %v1286 = vsel %vm140, %v1282, 0.0
  %1287 = vadd.xlane.f32.xlu0 %v1286
  %v1288 = vpop.xlane.xlu0 %1287
  %v1289 = vmul.f32 %v1285, %v147
  %v1290 = vmul.f32 %v1288, %v147
  %v1291 = vsub.f32 %v1281, %v1289
  %v1292 = vsub.f32 %v1282, %v1290
  %v1293 = vmul.f32 %v1291, %v1291
  %v1294 = vmul.f32 %v1292, %v1292
  %v1295 = vsel %vm140, %v1293, 0.0
  %1296 = vadd.xlane.f32.xlu0 %v1295
  %v1297 = vpop.xlane.xlu0 %1296
  %v1298 = vsel %vm140, %v1294, 0.0
  %1299 = vadd.xlane.f32.xlu0 %v1298
  %v1300 = vpop.xlane.xlu0 %1299
  %v1301 = vmul.f32 %v1297, %v147
  %v1302 = vmul.f32 %v1300, %v147
  %v1303 = vadd.f32 %v1301, 1e-12
  %v1304 = vadd.f32 %v1302, 1e-12
  %v1305 = vrsqrt.pop %v1303
  %v1306 = vrsqrt.pop %v1304
  %v1307 = vmul.f32 %v1291, %v1305
  %v1308 = vmul.f32 %v1292, %v1306
  %v1310 = vlaneseq
  %v1311 = vshrl.u32 %v1310, 7
  %v1312 = vsub.s32 0, %v1311
  %v1313 = vrot.slane %v194, %v1312
  %v1315 = vmul.f32 %v1307, %v1313
  %v1316 = vmul.f32 %v1308, %v1313
  %v1318 = vlaneseq
  %v1319 = vshrl.u32 %v1318, 7
  %v1320 = vsub.s32 0, %v1319
  %v1321 = vrot.slane %v195, %v1320
  %v1323 = vadd.f32 %v1315, %v1321
  %v1324 = vadd.f32 %v1316, %v1321
  %v1325 = vpack.c.bf16 %v1324, %v1323
  %v1327 = vlaneseq
  %v1328 = vshrl.u32 %v1327, 7
  %v1329 = vsub.s32 0, %v1328
  %v1330 = vrot.slane %v200, %v1329
  %v1336 = vunpack.c.l.b16 %v196
  %v1337 = vunpack.c.l.b16 %v197
  %v1338 = vunpack.c.l.b16 %v198
  %v1339 = vunpack.c.l.b16 %v199
  %v1340 = vpack.c.b16 %v1337, %v1336
  %v1341 = vpack.c.b16 %v1339, %v1338
  %v1345 = vsel %vm140, %v1325, 0
  %1347 = vmatprep.subr.bf16.mxu0 0
  %1348 = vmatpush1.bf16.msra.mxu0 0
  %1349 = vmatprep.subr.bf16.mxu0 0
  %1350 = vmatpush1.bf16.msra.mxu0 0
  %1351 = vmatprep.subr.bf16.mxu0 0
  %1352 = vmatpush1.bf16.msra.mxu0 0
  %1353 = vmatprep.subr.bf16.mxu0 0
  %1354 = vmatpush1.bf16.msra.mxu0 0
  %1355 = vmatprep.subr.bf16.mxu0 0
  %1356 = vmatpush1.bf16.msra.mxu0 0
  %1357 = vmatprep.subr.bf16.mxu0 0
  %1358 = vmatpush1.bf16.msra.mxu0 0
  %1359 = vmatprep.subr.bf16.mxu0 0
  %1360 = vmatpush1.bf16.msra.mxu0 %v1341
  %1361 = vmatprep.subr.bf16.mxu0 0
  %1362 = vmatpush1.bf16.msra.mxu0 %v1340
  %1363 = vmatprep.subr.bf16.mxu0 0
  %1364 = vmatpush2.bf16.msra.mxu0 0
  %1365 = vmatprep.subr.bf16.mxu0 0
  %1366 = vmatpush2.bf16.msra.mxu0 0
  %1367 = vmatprep.subr.bf16.mxu0 0
  %1368 = vmatpush2.bf16.msra.mxu0 0
  %1369 = vmatprep.subr.bf16.mxu0 0
  %1370 = vmatpush2.bf16.msra.mxu0 0
  %1371 = vmatprep.subr.bf16.mxu0 0
  %1372 = vmatpush2.bf16.msra.mxu0 0
  %1373 = vmatprep.subr.bf16.mxu0 0
  %1374 = vmatpush2.bf16.msra.mxu0 0
  %1375 = vmatprep.subr.bf16.mxu0 0
  %1376 = vmatpush2.bf16.msra.mxu0 0
  %1377 = vmatprep.subr.bf16.mxu0 0
  %1378 = vmatpush2.bf16.msra.mxu0 0
  %1379 = vmatprep.mubr.bf16.mxu0 0
  %1380 = vmatmul.mubr.bf16.gmra.mxu0 %v1345
  %v1381 = vpop.f32.mrf.mxu0
  %v1382 = vadd.f32 %v1330, %v1381
  %v1383 = vpop.f32.mrf.mxu0
  %v1384 = vpop.f32.mrf.mxu0
  %v1385 = vadd.f32 %v1330, %v1384
  %v1386 = vpop.f32.mrf.mxu0
  %1387 = vdwg.mxu0
  %v1388 = vmul.f32 %v1382, %v1382
  %v1389 = vmul.f32 %v1385, %v1385
  %v1390 = vmul.f32 %v1382, %v1388
  %v1391 = vmul.f32 %v1385, %v1389
  %v1392 = vmul.f32 %v1390, 0.044715
  %v1393 = vmul.f32 %v1391, 0.044715
  %v1394 = vadd.f32 %v1382, %v1392
  %v1395 = vadd.f32 %v1385, %v1393
  %v1396 = vmul.f32 %v1394, 0.7978846
  %v1397 = vmul.f32 %v1395, 0.7978846
  %v1398 = vtanh.pop %v1396
  %v1399 = vtanh.pop %v1397
  %v1400 = vadd.f32 %v1398, 1.0
  %v1401 = vadd.f32 %v1399, 1.0
  %v1402 = vmul.f32 %v1400, 0.5
  %v1403 = vmul.f32 %v1401, 0.5
  %v1404 = vmul.f32 %v1382, %v1402
  %v1405 = vmul.f32 %v1385, %v1403
  %v1406 = vpack.c.bf16 %v1405, %v1404
  %v1408 = vlaneseq
  %v1409 = vshrl.u32 %v1408, 7
  %v1410 = vsub.s32 0, %v1409
  %v1411 = vrot.slane %v209, %v1410
  %v1421 = vunpack.c.l.b16 %v201
  %v1422 = vunpack.c.l.b16 %v202
  %v1423 = vunpack.c.l.b16 %v203
  %v1424 = vunpack.c.l.b16 %v204
  %v1425 = vunpack.c.l.b16 %v205
  %v1426 = vunpack.c.l.b16 %v206
  %v1427 = vunpack.c.l.b16 %v207
  %v1428 = vunpack.c.l.b16 %v208
  %v1429 = vpack.c.b16 %v1422, %v1421
  %v1430 = vpack.c.b16 %v1424, %v1423
  %v1431 = vpack.c.b16 %v1426, %v1425
  %v1432 = vpack.c.b16 %v1428, %v1427
  %vm1437 = vcmask 523264
  %v1439 = vsel %vm1437, %v1406, 0
  %1441 = vmatprep.subr.bf16.mxu0 0
  %1442 = vmatpush1.bf16.msra.mxu0 0
  %1443 = vmatprep.subr.bf16.mxu0 0
  %1444 = vmatpush1.bf16.msra.mxu0 0
  %1445 = vmatprep.subr.bf16.mxu0 0
  %1446 = vmatpush1.bf16.msra.mxu0 0
  %1447 = vmatprep.subr.bf16.mxu0 0
  %1448 = vmatpush1.bf16.msra.mxu0 0
  %1449 = vmatprep.subr.bf16.mxu0 0
  %1450 = vmatpush1.bf16.msra.mxu0 %v1432
  %1451 = vmatprep.subr.bf16.mxu0 0
  %1452 = vmatpush1.bf16.msra.mxu0 %v1431
  %1453 = vmatprep.subr.bf16.mxu0 0
  %1454 = vmatpush1.bf16.msra.mxu0 %v1430
  %1455 = vmatprep.subr.bf16.mxu0 0
  %1456 = vmatpush1.bf16.msra.mxu0 %v1429
  %1457 = vmatprep.subr.bf16.mxu0 0
  %1458 = vmatpush2.bf16.msra.mxu0 0
  %1459 = vmatprep.subr.bf16.mxu0 0
  %1460 = vmatpush2.bf16.msra.mxu0 0
  %1461 = vmatprep.subr.bf16.mxu0 0
  %1462 = vmatpush2.bf16.msra.mxu0 0
  %1463 = vmatprep.subr.bf16.mxu0 0
  %1464 = vmatpush2.bf16.msra.mxu0 0
  %1465 = vmatprep.subr.bf16.mxu0 0
  %1466 = vmatpush2.bf16.msra.mxu0 0
  %1467 = vmatprep.subr.bf16.mxu0 0
  %1468 = vmatpush2.bf16.msra.mxu0 0
  %1469 = vmatprep.subr.bf16.mxu0 0
  %1470 = vmatpush2.bf16.msra.mxu0 0
  %1471 = vmatprep.subr.bf16.mxu0 0
  %1472 = vmatpush2.bf16.msra.mxu0 0
  %1473 = vmatprep.mubr.bf16.mxu0 0
  %1474 = vmatmul.mubr.bf16.gmra.mxu0 %v1439
  %v1475 = vpop.f32.mrf.mxu0
  %v1476 = vadd.f32 %v1411, %v1475
  %v1477 = vpop.f32.mrf.mxu0
  %v1478 = vpop.f32.mrf.mxu0
  %v1479 = vadd.f32 %v1411, %v1478
  %v1480 = vpop.f32.mrf.mxu0
  %1481 = vdwg.mxu0
  %v1482 = vadd.f32 %v1323, %v1476
  %v1483 = vadd.f32 %v1324, %v1479
  %v1484 = vsel %vm140, %v1482, 0.0
  %1485 = vadd.xlane.f32.xlu0 %v1484
  %v1486 = vpop.xlane.xlu0 %1485
  %v1487 = vsel %vm140, %v1483, 0.0
  %1488 = vadd.xlane.f32.xlu0 %v1487
  %v1489 = vpop.xlane.xlu0 %1488
  %v1490 = vmul.f32 %v1486, %v147
  %v1491 = vmul.f32 %v1489, %v147
  %v1492 = vsub.f32 %v1482, %v1490
  %v1493 = vsub.f32 %v1483, %v1491
  %v1494 = vmul.f32 %v1492, %v1492
  %v1495 = vmul.f32 %v1493, %v1493
  %v1496 = vsel %vm140, %v1494, 0.0
  %1497 = vadd.xlane.f32.xlu0 %v1496
  %v1498 = vpop.xlane.xlu0 %1497
  %v1499 = vsel %vm140, %v1495, 0.0
  %1500 = vadd.xlane.f32.xlu0 %v1499
  %v1501 = vpop.xlane.xlu0 %1500
  %v1502 = vmul.f32 %v1498, %v147
  %v1503 = vmul.f32 %v1501, %v147
  %v1504 = vadd.f32 %v1502, 1e-12
  %v1505 = vadd.f32 %v1503, 1e-12
  %v1506 = vrsqrt.pop %v1504
  %v1507 = vrsqrt.pop %v1505
  %v1508 = vmul.f32 %v1492, %v1506
  %v1509 = vmul.f32 %v1493, %v1507
  %v1511 = vlaneseq
  %v1512 = vshrl.u32 %v1511, 7
  %v1513 = vsub.s32 0, %v1512
  %v1514 = vrot.slane %v210, %v1513
  %v1516 = vmul.f32 %v1508, %v1514
  %v1517 = vmul.f32 %v1509, %v1514
  %v1519 = vlaneseq
  %v1520 = vshrl.u32 %v1519, 7
  %v1521 = vsub.s32 0, %v1520
  %v1522 = vrot.slane %v211, %v1521
  %v1524 = vadd.f32 %v1516, %v1522
  %v1525 = vadd.f32 %v1517, %v1522
  %1526 = vst.msk [vmem:[%s19] sm:$0xff] %vm140, %v1524
  %1527 = vst.msk [vmem:[%s19 + $0x8] sm:$0xff] %vm140, %v1525
  // Predicated region
  $region78: #{_lambda_.4} parent=0 // pred_check
    _
  $region79: #{_lambda_.4} parent=0 // pred_check_branch
    %1529 = sbr.rel (0) target = $region81
  $region80: #{_lambda_.4} parent=0 // pred_region
    _
  $region81: #{_lambda_.4} parent=0 // pred_fallthru
    _
  // Predicated region
  $region82: #{_lambda_.4} parent=0 // pred_check
    _
  $region83: #{_lambda_.4} parent=0 // pred_check_branch
    %1531 = sbr.rel (0) target = $region85
  $region84: #{_lambda_.4} parent=0 // pred_region
    _
  $region85: #{_lambda_.4} parent=0 // pred_fallthru
    _

// kernel: _lambda_.3
$region0: #{_lambda_.3}
  #allocation0 [shape = 'u32[]', space=smem, size = 0x4, offset = 0x4, fixed_abs, tag = 'smem constant byte address 0x4 - core index']
  #allocation1 [shape = 'u32[144,128]{1,0:T(1,128)}', space=vmem, size = 0x12000, scoped, tag = 'internal scratch']
  #allocation2 [shape = 'f32[48,64]{1,0:T(8,128)}', space=vmem, size = 0x6000, scoped, tag = 'scratch operand']
  %s0 = inlined_call_operand.vmem [shape: f32[48,64], index: 0, kind: input, shape index: {}]
  %s1 = inlined_call_operand.vmem [shape: f32[48,64], index: 1, kind: input, shape index: {}]
  %s2 = inlined_call_operand.vmem [shape: f32[1,64], index: 2, kind: input, shape index: {}, may-alias: {2,9,15}]
  %s3 = inlined_call_operand.vmem [shape: f32[1,64], index: 3, kind: input, shape index: {}, may-alias: {3,10,16}]
  %s4 = inlined_call_operand.vmem [shape: f32[2,24], index: 4, kind: input, shape index: {}]
  %s5 = inlined_call_operand.vmem [shape: bf16[64,192], index: 5, kind: input, shape index: {}]
  %s6 = inlined_call_operand.vmem [shape: f32[1,192], index: 6, kind: input, shape index: {}]
  %s7 = inlined_call_operand.vmem [shape: bf16[64,64], index: 7, kind: input, shape index: {}]
  %s8 = inlined_call_operand.vmem [shape: f32[1,64], index: 8, kind: input, shape index: {}]
  %s9 = inlined_call_operand.vmem [shape: f32[1,64], index: 9, kind: input, shape index: {}, may-alias: {2,9,15}]
  %s10 = inlined_call_operand.vmem [shape: f32[1,64], index: 10, kind: input, shape index: {}, may-alias: {3,10,16}]
  %s11 = inlined_call_operand.vmem [shape: bf16[64,128], index: 11, kind: input, shape index: {}]
  %s12 = inlined_call_operand.vmem [shape: f32[1,128], index: 12, kind: input, shape index: {}]
  %s13 = inlined_call_operand.vmem [shape: bf16[128,64], index: 13, kind: input, shape index: {}]
  %s14 = inlined_call_operand.vmem [shape: f32[1,64], index: 14, kind: input, shape index: {}]
  %s15 = inlined_call_operand.vmem [shape: f32[1,64], index: 15, kind: input, shape index: {}, may-alias: {2,9,15}]
  %s16 = inlined_call_operand.vmem [shape: f32[1,64], index: 16, kind: input, shape index: {}, may-alias: {3,10,16}]
  %s17 = inlined_call_operand.vmem [shape: f32[48,64], index: 17, kind: output, shape index: {}]
  %s18 = sld [smem:[#allocation0]]
  $region78: #{_lambda_.3} parent=0
    _
  %s20 = ssub.s32 1, %s18
  %s21 = scalar_select 0, %s20, %s18
  // Predicated region
  $region2: #{_lambda_.3} parent=0 // pred_check
    _
  $region3: #{_lambda_.3} parent=0 // pred_check_branch
    %23 = sbr.rel (0) target = $region5
  $region4: #{_lambda_.3} parent=0 // pred_region
    _
  $region5: #{_lambda_.3} parent=0 // pred_fallthru
    _
  // Predicated region
  $region6: #{_lambda_.3} parent=0 // pred_check
    _
  $region7: #{_lambda_.3} parent=0 // pred_check_branch
    %25 = sbr.rel (0) target = $region9
  $region8: #{_lambda_.3} parent=0 // pred_region
    _
  $region9: #{_lambda_.3} parent=0 // pred_fallthru
    _
  // Predicated region
  $region10: #{_lambda_.3} parent=0 // pred_check
    _
  $region11: #{_lambda_.3} parent=0 // pred_check_branch
    %27 = sbr.rel (0) target = $region13
  $region12: #{_lambda_.3} parent=0 // pred_region
    _
  $region13: #{_lambda_.3} parent=0 // pred_fallthru
    _
  // Predicated region
  $region14: #{_lambda_.3} parent=0 // pred_check
    _
  $region15: #{_lambda_.3} parent=0 // pred_check_branch
    %29 = sbr.rel (0) target = $region17
  $region16: #{_lambda_.3} parent=0 // pred_region
    _
  $region17: #{_lambda_.3} parent=0 // pred_fallthru
    _
  // Predicated region
  $region18: #{_lambda_.3} parent=0 // pred_check
    _
  $region19: #{_lambda_.3} parent=0 // pred_check_branch
    %31 = sbr.rel (0) target = $region21
  $region20: #{_lambda_.3} parent=0 // pred_region
    _
  $region21: #{_lambda_.3} parent=0 // pred_fallthru
    _
  // Predicated region
  $region22: #{_lambda_.3} parent=0 // pred_check
    _
  $region23: #{_lambda_.3} parent=0 // pred_check_branch
    %33 = sbr.rel (0) target = $region25
  $region24: #{_lambda_.3} parent=0 // pred_region
    _
  $region25: #{_lambda_.3} parent=0 // pred_fallthru
    _
  // Predicated region
  $region26: #{_lambda_.3} parent=0 // pred_check
    _
  $region27: #{_lambda_.3} parent=0 // pred_check_branch
    %35 = sbr.rel (0) target = $region29
  $region28: #{_lambda_.3} parent=0 // pred_region
    _
  $region29: #{_lambda_.3} parent=0 // pred_fallthru
    _
  // Predicated region
  $region30: #{_lambda_.3} parent=0 // pred_check
    _
  $region31: #{_lambda_.3} parent=0 // pred_check_branch
    %37 = sbr.rel (0) target = $region33
  $region32: #{_lambda_.3} parent=0 // pred_region
    _
  $region33: #{_lambda_.3} parent=0 // pred_fallthru
    _
  // Predicated region
  $region34: #{_lambda_.3} parent=0 // pred_check
    _
  $region35: #{_lambda_.3} parent=0 // pred_check_branch
    %39 = sbr.rel (0) target = $region37
  $region36: #{_lambda_.3} parent=0 // pred_region
    _
  $region37: #{_lambda_.3} parent=0 // pred_fallthru
    _
  // Predicated region
  $region38: #{_lambda_.3} parent=0 // pred_check
    _
  $region39: #{_lambda_.3} parent=0 // pred_check_branch
    %41 = sbr.rel (0) target = $region41
  $region40: #{_lambda_.3} parent=0 // pred_region
    _
  $region41: #{_lambda_.3} parent=0 // pred_fallthru
    _
  // Predicated region
  $region42: #{_lambda_.3} parent=0 // pred_check
    _
  $region43: #{_lambda_.3} parent=0 // pred_check_branch
    %43 = sbr.rel (0) target = $region45
  $region44: #{_lambda_.3} parent=0 // pred_region
    _
  $region45: #{_lambda_.3} parent=0 // pred_fallthru
    _
  // Predicated region
  $region46: #{_lambda_.3} parent=0 // pred_check
    _
  $region47: #{_lambda_.3} parent=0 // pred_check_branch
    %45 = sbr.rel (0) target = $region49
  $region48: #{_lambda_.3} parent=0 // pred_region
    _
  $region49: #{_lambda_.3} parent=0 // pred_fallthru
    _
  // Predicated region
  $region50: #{_lambda_.3} parent=0 // pred_check
    _
  $region51: #{_lambda_.3} parent=0 // pred_check_branch
    %47 = sbr.rel (0) target = $region53
  $region52: #{_lambda_.3} parent=0 // pred_region
    _
  $region53: #{_lambda_.3} parent=0 // pred_fallthru
    _
  // Predicated region
  $region54: #{_lambda_.3} parent=0 // pred_check
    _
  $region55: #{_lambda_.3} parent=0 // pred_check_branch
    %49 = sbr.rel (0) target = $region57
  $region56: #{_lambda_.3} parent=0 // pred_region
    _
  $region57: #{_lambda_.3} parent=0 // pred_fallthru
    _
  // Predicated region
  $region58: #{_lambda_.3} parent=0 // pred_check
    _
  $region59: #{_lambda_.3} parent=0 // pred_check_branch
    %51 = sbr.rel (0) target = $region61
  $region60: #{_lambda_.3} parent=0 // pred_region
    _
  $region61: #{_lambda_.3} parent=0 // pred_fallthru
    _
  // Predicated region
  $region62: #{_lambda_.3} parent=0 // pred_check
    _
  $region63: #{_lambda_.3} parent=0 // pred_check_branch
    %53 = sbr.rel (0) target = $region65
  $region64: #{_lambda_.3} parent=0 // pred_region
    _
  $region65: #{_lambda_.3} parent=0 // pred_fallthru
    _
  // Predicated region
  $region66: #{_lambda_.3} parent=0 // pred_check
    _
  $region67: #{_lambda_.3} parent=0 // pred_check_branch
    %55 = sbr.rel (0) target = $region69
  $region68: #{_lambda_.3} parent=0 // pred_region
    _
  $region69: #{_lambda_.3} parent=0 // pred_fallthru
    _
  %v57 = vld [vmem:[%s0] sm:$0xff]
  %v58 = vld [vmem:[%s0 + $0x8] sm:$0xff]
  %v59 = vld [vmem:[%s0 + $0x10] sm:$0xff]
  %v60 = vld [vmem:[%s0 + $0x18] sm:$0xff]
  %v61 = vld [vmem:[%s0 + $0x20] sm:$0xff]
  %v62 = vld [vmem:[%s0 + $0x28] sm:$0xff]
  %v63 = vld [vmem:[%s1] sm:$0xff]
  %v64 = vld [vmem:[%s1 + $0x8] sm:$0xff]
  %v65 = vld [vmem:[%s1 + $0x10] sm:$0xff]
  %v66 = vld [vmem:[%s1 + $0x18] sm:$0xff]
  %v67 = vld [vmem:[%s1 + $0x20] sm:$0xff]
  %v68 = vld [vmem:[%s1 + $0x28] sm:$0xff]
  %v69 = vadd.f32 %v57, %v63
  %v70 = vadd.f32 %v58, %v64
  %v71 = vadd.f32 %v59, %v65
  %v72 = vadd.f32 %v60, %v66
  %v73 = vadd.f32 %v61, %v67
  %v74 = vadd.f32 %v62, %v68
  %v75 = vld [vmem:[%s2] sm:$0x1]
  %v76 = vld [vmem:[%s3] sm:$0x1]
  %vm77 = vcmask 523264
  %v78 = vsel %vm77, %v69, 0.0
  %79 = vadd.xlane.f32.xlu0 %v78
  %v80 = vpop.xlane.xlu0 %79
  %v81 = vsel %vm77, %v70, 0.0
  %82 = vadd.xlane.f32.xlu0 %v81
  %v83 = vpop.xlane.xlu0 %82
  %v84 = vsel %vm77, %v71, 0.0
  %85 = vadd.xlane.f32.xlu0 %v84
  %v86 = vpop.xlane.xlu0 %85
  %v87 = vsel %vm77, %v72, 0.0
  %88 = vadd.xlane.f32.xlu0 %v87
  %v89 = vpop.xlane.xlu0 %88
  %v90 = vsel %vm77, %v73, 0.0
  %91 = vadd.xlane.f32.xlu0 %v90
  %v92 = vpop.xlane.xlu0 %91
  %v93 = vsel %vm77, %v74, 0.0
  %94 = vadd.xlane.f32.xlu0 %v93
  %v95 = vpop.xlane.xlu0 %94
  %v96 = vrcp.pop 64.0
  %v97 = vmul.f32 %v80, %v96
  %v98 = vmul.f32 %v83, %v96
  %v99 = vmul.f32 %v86, %v96
  %v100 = vmul.f32 %v89, %v96
  %v101 = vmul.f32 %v92, %v96
  %v102 = vmul.f32 %v95, %v96
  %v103 = vsub.f32 %v69, %v97
  %v104 = vsub.f32 %v70, %v98
  %v105 = vsub.f32 %v71, %v99
  %v106 = vsub.f32 %v72, %v100
  %v107 = vsub.f32 %v73, %v101
  %v108 = vsub.f32 %v74, %v102
  %v109 = vmul.f32 %v103, %v103
  %v110 = vmul.f32 %v104, %v104
  %v111 = vmul.f32 %v105, %v105
  %v112 = vmul.f32 %v106, %v106
  %v113 = vmul.f32 %v107, %v107
  %v114 = vmul.f32 %v108, %v108
  %v115 = vsel %vm77, %v109, 0.0
  %116 = vadd.xlane.f32.xlu0 %v115
  %v117 = vpop.xlane.xlu0 %116
  %v118 = vsel %vm77, %v110, 0.0
  %119 = vadd.xlane.f32.xlu0 %v118
  %v120 = vpop.xlane.xlu0 %119
  %v121 = vsel %vm77, %v111, 0.0
  %122 = vadd.xlane.f32.xlu0 %v121
  %v123 = vpop.xlane.xlu0 %122
  %v124 = vsel %vm77, %v112, 0.0
  %125 = vadd.xlane.f32.xlu0 %v124
  %v126 = vpop.xlane.xlu0 %125
  %v127 = vsel %vm77, %v113, 0.0
  %128 = vadd.xlane.f32.xlu0 %v127
  %v129 = vpop.xlane.xlu0 %128
  %v130 = vsel %vm77, %v114, 0.0
  %131 = vadd.xlane.f32.xlu0 %v130
  %v132 = vpop.xlane.xlu0 %131
  %v133 = vmul.f32 %v117, %v96
  %v134 = vmul.f32 %v120, %v96
  %v135 = vmul.f32 %v123, %v96
  %v136 = vmul.f32 %v126, %v96
  %v137 = vmul.f32 %v129, %v96
  %v138 = vmul.f32 %v132, %v96
  %v139 = vadd.f32 %v133, 1e-12
  %v140 = vadd.f32 %v134, 1e-12
  %v141 = vadd.f32 %v135, 1e-12
  %v142 = vadd.f32 %v136, 1e-12
  %v143 = vadd.f32 %v137, 1e-12
  %v144 = vadd.f32 %v138, 1e-12
  %v145 = vrsqrt.pop %v139
  %v146 = vrsqrt.pop %v140
  %v147 = vrsqrt.pop %v141
  %v148 = vrsqrt.pop %v142
  %v149 = vrsqrt.pop %v143
  %v150 = vrsqrt.pop %v144
  %v151 = vmul.f32 %v103, %v145
  %v152 = vmul.f32 %v104, %v146
  %v153 = vmul.f32 %v105, %v147
  %v154 = vmul.f32 %v106, %v148
  %v155 = vmul.f32 %v107, %v149
  %v156 = vmul.f32 %v108, %v150
  %v158 = vlaneseq
  %v159 = vshrl.u32 %v158, 7
  %v160 = vsub.s32 0, %v159
  %v161 = vrot.slane %v75, %v160
  %v163 = vmul.f32 %v151, %v161
  %v164 = vmul.f32 %v152, %v161
  %v165 = vmul.f32 %v153, %v161
  %v166 = vmul.f32 %v154, %v161
  %v167 = vmul.f32 %v155, %v161
  %v168 = vmul.f32 %v156, %v161
  %v170 = vlaneseq
  %v171 = vshrl.u32 %v170, 7
  %v172 = vsub.s32 0, %v171
  %v173 = vrot.slane %v76, %v172
  %v175 = vadd.f32 %v163, %v173
  %v176 = vadd.f32 %v164, %v173
  %v177 = vadd.f32 %v165, %v173
  %v178 = vadd.f32 %v166, %v173
  %v179 = vadd.f32 %v167, %v173
  %v180 = vadd.f32 %v168, %v173
  %v181 = vld [vmem:[%s5] sm:$0xff]
  %v182 = vld [vmem:[%s5 + $0x8] sm:$0xff]
  %v183 = vld [vmem:[%s5 + $0x10] sm:$0xff]
  %v184 = vld [vmem:[%s5 + $0x18] sm:$0xff]
  %v185 = vld [vmem:[%s5 + $0x20] sm:$0xff]
  %v186 = vld [vmem:[%s5 + $0x28] sm:$0xff]
  %v187 = vld [vmem:[%s5 + $0x30] sm:$0xff]
  %v188 = vld [vmem:[%s5 + $0x38] sm:$0xff]
  %v189 = vld [vmem:[%s6] sm:$0x3]
  %v190 = vld [vmem:[%s7] sm:$0xf]
  %v191 = vld [vmem:[%s7 + $0x4] sm:$0xf]
  %v192 = vld [vmem:[%s7 + $0x8] sm:$0xf]
  %v193 = vld [vmem:[%s7 + $0xc] sm:$0xf]
  %v194 = vld [vmem:[%s7 + $0x10] sm:$0xf]
  %v195 = vld [vmem:[%s7 + $0x14] sm:$0xf]
  %v196 = vld [vmem:[%s7 + $0x18] sm:$0xf]
  %v197 = vld [vmem:[%s7 + $0x1c] sm:$0xf]
  %v198 = vld [vmem:[%s8] sm:$0x1]
  %v199 = vld [vmem:[%s9] sm:$0x1]
  %v200 = vld [vmem:[%s10] sm:$0x1]
  %v201 = vld [vmem:[%s11] sm:$0xf]
  %v202 = vld [vmem:[%s11 + $0x4] sm:$0xf]
  %v203 = vld [vmem:[%s11 + $0x8] sm:$0xf]
  %v204 = vld [vmem:[%s11 + $0xc] sm:$0xf]
  %v205 = vld [vmem:[%s11 + $0x10] sm:$0xf]
  %v206 = vld [vmem:[%s11 + $0x14] sm:$0xf]
  %v207 = vld [vmem:[%s11 + $0x18] sm:$0xf]
  %v208 = vld [vmem:[%s11 + $0x1c] sm:$0xf]
  %v209 = vld [vmem:[%s12] sm:$0x1]
  %v210 = vld [vmem:[%s13] sm:$0xf]
  %v211 = vld [vmem:[%s13 + $0x4] sm:$0xf]
  %v212 = vld [vmem:[%s13 + $0x8] sm:$0xf]
  %v213 = vld [vmem:[%s13 + $0xc] sm:$0xf]
  %v214 = vld [vmem:[%s13 + $0x10] sm:$0xf]
  %v215 = vld [vmem:[%s13 + $0x14] sm:$0xf]
  %v216 = vld [vmem:[%s13 + $0x18] sm:$0xf]
  %v217 = vld [vmem:[%s13 + $0x1c] sm:$0xf]
  %v218 = vld [vmem:[%s13 + $0x20] sm:$0xf]
  %v219 = vld [vmem:[%s13 + $0x24] sm:$0xf]
  %v220 = vld [vmem:[%s13 + $0x28] sm:$0xf]
  %v221 = vld [vmem:[%s13 + $0x2c] sm:$0xf]
  %v222 = vld [vmem:[%s13 + $0x30] sm:$0xf]
  %v223 = vld [vmem:[%s13 + $0x34] sm:$0xf]
  %v224 = vld [vmem:[%s13 + $0x38] sm:$0xf]
  %v225 = vld [vmem:[%s13 + $0x3c] sm:$0xf]
  %v226 = vld [vmem:[%s14] sm:$0x1]
  %v227 = vld [vmem:[%s15] sm:$0x1]
  %v228 = vld [vmem:[%s16] sm:$0x1]
  %v229 = vld [vmem:[%s4] sm:$0x3]
  %v230 = vpack.c.bf16 %v176, %v175
  %v231 = vpack.c.bf16 %v178, %v177
  %v232 = vpack.c.bf16 %v180, %v179
  %v234 = vlaneseq
  %v235 = vshrl.u32 %v234, 7
  %v236 = vsub.s32 0, %v235
  %v237 = vrot.slane %v189, %v236
  %v238 = vlaneseq
  %v239 = vshrl.u32 %v238, 7
  %v240 = vsub.s32 1, %v239
  %v241 = vrot.slane %v189, %v240
  %v252 = vunpack.c.l.b16 %v181
  %v253 = vunpack.c.h.b16 %v181
  %v254 = vunpack.c.l.b16 %v182
  %v255 = vunpack.c.h.b16 %v182
  %v256 = vunpack.c.l.b16 %v183
  %v257 = vunpack.c.h.b16 %v183
  %v258 = vunpack.c.l.b16 %v184
  %v259 = vunpack.c.h.b16 %v184
  %v260 = vunpack.c.l.b16 %v185
  %v261 = vunpack.c.h.b16 %v185
  %v262 = vunpack.c.l.b16 %v186
  %v263 = vunpack.c.h.b16 %v186
  %v264 = vunpack.c.l.b16 %v187
  %v265 = vunpack.c.h.b16 %v187
  %v266 = vunpack.c.l.b16 %v188
  %v267 = vunpack.c.h.b16 %v188
  %v268 = vpack.c.b16 %v254, %v252
  %v269 = vpack.c.b16 %v255, %v253
  %v270 = vpack.c.b16 %v258, %v256
  %v271 = vpack.c.b16 %v259, %v257
  %v272 = vpack.c.b16 %v262, %v260
  %v273 = vpack.c.b16 %v263, %v261
  %v274 = vpack.c.b16 %v266, %v264
  %v275 = vpack.c.b16 %v267, %v265
  %v285 = vsel %vm77, %v230, 0
  %v288 = vsel %vm77, %v231, 0
  %v291 = vsel %vm77, %v232, 0
  %293 = vmatprep.subr.bf16.mxu0 0
  %294 = vmatpush1.bf16.msra.mxu0 0
  %295 = vmatprep.subr.bf16.mxu0 0
  %296 = vmatpush1.bf16.msra.mxu0 0
  %297 = vmatprep.subr.bf16.mxu0 0
  %298 = vmatpush1.bf16.msra.mxu0 0
  %299 = vmatprep.subr.bf16.mxu0 0
  %300 = vmatpush1.bf16.msra.mxu0 0
  %301 = vmatprep.subr.bf16.mxu0 %v275
  %302 = vmatpush1.bf16.msra.mxu0 %v274
  %303 = vmatprep.subr.bf16.mxu0 %v273
  %304 = vmatpush1.bf16.msra.mxu0 %v272
  %305 = vmatprep.subr.bf16.mxu0 %v271
  %306 = vmatpush1.bf16.msra.mxu0 %v270
  %307 = vmatprep.subr.bf16.mxu0 %v269
  %308 = vmatpush1.bf16.msra.mxu0 %v268
  %309 = vmatprep.subr.bf16.mxu0 0
  %310 = vmatpush2.bf16.msra.mxu0 0
  %311 = vmatprep.subr.bf16.mxu0 0
  %312 = vmatpush2.bf16.msra.mxu0 0
  %313 = vmatprep.subr.bf16.mxu0 0
  %314 = vmatpush2.bf16.msra.mxu0 0
  %315 = vmatprep.subr.bf16.mxu0 0
  %316 = vmatpush2.bf16.msra.mxu0 0
  %317 = vmatprep.subr.bf16.mxu0 0
  %318 = vmatpush2.bf16.msra.mxu0 0
  %319 = vmatprep.subr.bf16.mxu0 0
  %320 = vmatpush2.bf16.msra.mxu0 0
  %321 = vmatprep.subr.bf16.mxu0 0
  %322 = vmatpush2.bf16.msra.mxu0 0
  %323 = vmatprep.subr.bf16.mxu0 0
  %324 = vmatpush2.bf16.msra.mxu0 0
  %325 = vmatprep.mubr.bf16.mxu0 0
  %326 = vmatmul.mubr.bf16.gmra.mxu0 %v285
  %v327 = vpop.f32.mrf.mxu0
  %v328 = vadd.f32 %v237, %v327
  %v329 = vpop.f32.mrf.mxu0
  %v330 = vadd.f32 %v241, %v329
  %v331 = vpop.f32.mrf.mxu0
  %v332 = vadd.f32 %v237, %v331
  %v333 = vpop.f32.mrf.mxu0
  %v334 = vadd.f32 %v241, %v333
  %335 = vmatprep.mubr.bf16.mxu0 0
  %336 = vmatmul.mubr.bf16.gmra.mxu0 %v288
  %v337 = vpop.f32.mrf.mxu0
  %v338 = vadd.f32 %v237, %v337
  %v339 = vpop.f32.mrf.mxu0
  %v340 = vadd.f32 %v241, %v339
  %v341 = vpop.f32.mrf.mxu0
  %v342 = vadd.f32 %v237, %v341
  %v343 = vpop.f32.mrf.mxu0
  %v344 = vadd.f32 %v241, %v343
  %345 = vmatprep.mubr.bf16.mxu0 0
  %346 = vmatmul.mubr.bf16.gmra.mxu0 %v291
  %v347 = vpop.f32.mrf.mxu0
  %v348 = vadd.f32 %v237, %v347
  %v349 = vpop.f32.mrf.mxu0
  %v350 = vadd.f32 %v241, %v349
  %v351 = vpop.f32.mrf.mxu0
  %v352 = vadd.f32 %v237, %v351
  %v353 = vpop.f32.mrf.mxu0
  %v354 = vadd.f32 %v241, %v353
  %355 = vdwg.mxu0
  %v356 = vpack.c.bf16 %v332, %v328
  %v357 = vpack.c.bf16 %v338, %v338
  %v358 = vpack.c.bf16 %v334, %v330
  %v359 = vpack.c.bf16 %v340, %v340
  %362 = vrot.lane.b32.xlu0 %v356, 64
  %v363 = vpop.permute.xlu0 %362
  %364 = vrot.lane.b32.xlu0 %v357, 64
  %v365 = vpop.permute.xlu0 %364
  %vm366 = vcmask 130048
  %v368 = vsel %vm366, %v356, 0
  %v371 = vsel %vm366, %v357, 0
  %v374 = vsel %vm366, %v363, 0
  %v377 = vsel %vm366, %v365, 0
  %379 = vmatprep.subr.bf16.mxu0 0
  %380 = vmatpush1.bf16.xpose.msra.mxu0 0
  %381 = vmatprep.subr.bf16.mxu0 0
  %382 = vmatpush1.bf16.xpose.msra.mxu0 0
  %383 = vmatprep.subr.bf16.mxu0 0
  %384 = vmatpush1.bf16.xpose.msra.mxu0 0
  %385 = vmatprep.subr.bf16.mxu0 0
  %386 = vmatpush1.bf16.xpose.msra.mxu0 0
  %387 = vmatprep.subr.bf16.mxu0 0
  %388 = vmatpush1.bf16.xpose.msra.mxu0 0
  %389 = vmatprep.subr.bf16.mxu0 0
  %390 = vmatpush1.bf16.xpose.msra.mxu0 0
  %391 = vmatprep.subr.bf16.mxu0 0
  %392 = vmatpush1.bf16.xpose.msra.mxu0 %v377
  %393 = vmatprep.subr.bf16.mxu0 0
  %394 = vmatpush1.bf16.xpose.msra.mxu0 %v374
  %395 = vmatprep.subr.bf16.mxu0 0
  %396 = vmatpush2.bf16.xpose.msra.mxu0 0
  %397 = vmatprep.subr.bf16.mxu0 0
  %398 = vmatpush2.bf16.xpose.msra.mxu0 0
  %399 = vmatprep.subr.bf16.mxu0 0
  %400 = vmatpush2.bf16.xpose.msra.mxu0 0
  %401 = vmatprep.subr.bf16.mxu0 0
  %402 = vmatpush2.bf16.xpose.msra.mxu0 0
  %403 = vmatprep.subr.bf16.mxu0 0
  %404 = vmatpush2.bf16.xpose.msra.mxu0 0
  %405 = vmatprep.subr.bf16.mxu0 0
  %406 = vmatpush2.bf16.xpose.msra.mxu0 0
  %407 = vmatprep.subr.bf16.mxu0 0
  %408 = vmatpush2.bf16.xpose.msra.mxu0 0
  %409 = vmatprep.subr.bf16.mxu0 0
  %410 = vmatpush2.bf16.xpose.msra.mxu0 0
  %411 = vmatprep.mubr.bf16.mxu0 0
  %412 = vmatmul.mubr.bf16.gmra.mxu0 %v368
  %v413 = vpop.f32.mrf.mxu0
  %v414 = vadd.f32 0.0, %v413
  %v415 = vpop.f32.mrf.mxu0
  %v416 = vpop.f32.mrf.mxu0
  %v417 = vadd.f32 0.0, %v416
  %v418 = vpop.f32.mrf.mxu0
  %419 = vmatprep.mubr.bf16.mxu0 0
  %420 = vmatmul.mubr.bf16.gmra.mxu0 %v371
  %v421 = vpop.f32.mrf.mxu0
  %v422 = vadd.f32 0.0, %v421
  %v423 = vpop.f32.mrf.mxu0
  %v424 = vpop.f32.mrf.mxu0
  %v425 = vpop.f32.mrf.mxu0
  %426 = vdwg.mxu0
  %v427 = vmul.f32 %v414, 0.25
  %v428 = vmul.f32 %v417, 0.25
  %v429 = vmul.f32 %v422, 0.25
  %v430 = vlaneseq
  %v431 = vshrl.u32 %v430, 7
  %v432 = vsub.s32 0, %v431
  %v433 = vrot.slane %v229, %v432
  %v434 = vadd.f32 %v427, %v433
  %v435 = vadd.f32 %v428, %v433
  %v436 = vadd.f32 %v429, %v433
  %vm437 = vcmask 195584
  %v438 = vsel %vm437, %v434, -inf
  %439 = vmax.xlane.f32.xlu0 %v438
  %v440 = vpop.xlane.xlu0 %439
  %v441 = vsel %vm437, %v435, -inf
  %442 = vmax.xlane.f32.xlu0 %v441
  %v443 = vpop.xlane.xlu0 %442
  %v444 = vsel %vm437, %v436, -inf
  %445 = vmax.xlane.f32.xlu0 %v444
  %v446 = vpop.xlane.xlu0 %445
  %v447 = vsub.f32 %v434, %v440
  %v448 = vsub.f32 %v435, %v443
  %v449 = vsub.f32 %v436, %v446
  %v450 = vmul.f32 %v447, 1.442695
  %v451 = vpow.pop %v450
  %v452 = vmul.f32 %v448, 1.442695
  %v453 = vpow.pop %v452
  %v454 = vmul.f32 %v449, 1.442695
  %v455 = vpow.pop %v454
  %v456 = vsel %vm437, %v451, 0.0
  %457 = vadd.xlane.f32.xlu0 %v456
  %v458 = vpop.xlane.xlu0 %457
  %v459 = vsel %vm437, %v453, 0.0
  %460 = vadd.xlane.f32.xlu0 %v459
  %v461 = vpop.xlane.xlu0 %460
  %v462 = vsel %vm437, %v455, 0.0
  %463 = vadd.xlane.f32.xlu0 %v462
  %v464 = vpop.xlane.xlu0 %463
  %v465 = vrcp.pop %v458
  %v466 = vrcp.pop %v461
  %v467 = vrcp.pop %v464
  %v468 = vmul.f32 %v451, %v465
  %v469 = vmul.f32 %v453, %v466
  %v470 = vmul.f32 %v455, %v467
  %v471 = vpack.c.bf16 %v469, %v468
  %v472 = vpack.c.bf16 %v470, %v470
  %v474 = vsel %vm437, %v471, 0
  %v477 = vsel %vm437, %v472, 0
  %vm479 = vcmask 1043456
  %v481 = vsel %vm479, %v359, 0
  %483 = vmatprep.subr.bf16.mxu0 0
  %484 = vmatpush1.bf16.msra.mxu0 0
  %485 = vmatprep.subr.bf16.mxu0 0
  %486 = vmatpush1.bf16.msra.mxu0 0
  %487 = vmatprep.subr.bf16.mxu0 0
  %488 = vmatpush1.bf16.msra.mxu0 0
  %489 = vmatprep.subr.bf16.mxu0 0
  %490 = vmatpush1.bf16.msra.mxu0 0
  %491 = vmatprep.subr.bf16.mxu0 0
  %492 = vmatpush1.bf16.msra.mxu0 0
  %493 = vmatprep.subr.bf16.mxu0 0
  %494 = vmatpush1.bf16.msra.mxu0 0
  %495 = vmatprep.subr.bf16.mxu0 0
  %496 = vmatpush1.bf16.msra.mxu0 %v481
  %497 = vmatprep.subr.bf16.mxu0 0
  %498 = vmatpush1.bf16.msra.mxu0 %v358
  %499 = vmatprep.subr.bf16.mxu0 0
  %500 = vmatpush2.bf16.msra.mxu0 0
  %501 = vmatprep.subr.bf16.mxu0 0
  %502 = vmatpush2.bf16.msra.mxu0 0
  %503 = vmatprep.subr.bf16.mxu0 0
  %504 = vmatpush2.bf16.msra.mxu0 0
  %505 = vmatprep.subr.bf16.mxu0 0
  %506 = vmatpush2.bf16.msra.mxu0 0
  %507 = vmatprep.subr.bf16.mxu0 0
  %508 = vmatpush2.bf16.msra.mxu0 0
  %509 = vmatprep.subr.bf16.mxu0 0
  %510 = vmatpush2.bf16.msra.mxu0 0
  %511 = vmatprep.subr.bf16.mxu0 0
  %512 = vmatpush2.bf16.msra.mxu0 0
  %513 = vmatprep.subr.bf16.mxu0 0
  %514 = vmatpush2.bf16.msra.mxu0 0
  %515 = vmatprep.mubr.bf16.mxu0 0
  %516 = vmatmul.mubr.bf16.gmra.mxu0 %v474
  %v517 = vpop.f32.mrf.mxu0
  %v518 = vadd.f32 0.0, %v517
  %v519 = vpop.f32.mrf.mxu0
  %v520 = vpop.f32.mrf.mxu0
  %v521 = vadd.f32 0.0, %v520
  %v522 = vpop.f32.mrf.mxu0
  %523 = vmatprep.mubr.bf16.mxu0 0
  %524 = vmatmul.mubr.bf16.gmra.mxu0 %v477
  %v525 = vpop.f32.mrf.mxu0
  %v526 = vadd.f32 0.0, %v525
  %v527 = vpop.f32.mrf.mxu0
  %v528 = vpop.f32.mrf.mxu0
  %v529 = vpop.f32.mrf.mxu0
  %530 = vdwg.mxu0
  %531 = vst.msk [vmem:[#allocation2] sm:$0xff] %vm366, %v518
  %532 = vst.msk [vmem:[#allocation2 + $0x8] sm:$0xff] %vm366, %v521
  %533 = vst.msk [vmem:[#allocation2 + $0x10] sm:$0xff] %vm366, %v526
  %534 = vrot.lane.b32.xlu0 %v356, 112
  %v535 = vpop.permute.xlu0 %534
  %536 = vrot.lane.b32.xlu0 %v357, 112
  %v537 = vpop.permute.xlu0 %536
  %538 = vrot.lane.b32.xlu0 %v356, 48
  %v539 = vpop.permute.xlu0 %538
  %540 = vrot.lane.b32.xlu0 %v357, 48
  %v541 = vpop.permute.xlu0 %540
  %v543 = vsel %vm366, %v535, 0
  %v546 = vsel %vm366, %v537, 0
  %v549 = vsel %vm366, %v539, 0
  %v552 = vsel %vm366, %v541, 0
  %554 = vmatprep.subr.bf16.mxu0 0
  %555 = vmatpush1.bf16.xpose.msra.mxu0 0
  %556 = vmatprep.subr.bf16.mxu0 0
  %557 = vmatpush1.bf16.xpose.msra.mxu0 0
  %558 = vmatprep.subr.bf16.mxu0 0
  %559 = vmatpush1.bf16.xpose.msra.mxu0 0
  %560 = vmatprep.subr.bf16.mxu0 0
  %561 = vmatpush1.bf16.xpose.msra.mxu0 0
  %562 = vmatprep.subr.bf16.mxu0 0
  %563 = vmatpush1.bf16.xpose.msra.mxu0 0
  %564 = vmatprep.subr.bf16.mxu0 0
  %565 = vmatpush1.bf16.xpose.msra.mxu0 0
  %566 = vmatprep.subr.bf16.mxu0 0
  %567 = vmatpush1.bf16.xpose.msra.mxu0 %v552
  %568 = vmatprep.subr.bf16.mxu0 0
  %569 = vmatpush1.bf16.xpose.msra.mxu0 %v549
  %570 = vmatprep.subr.bf16.mxu0 0
  %571 = vmatpush2.bf16.xpose.msra.mxu0 0
  %572 = vmatprep.subr.bf16.mxu0 0
  %573 = vmatpush2.bf16.xpose.msra.mxu0 0
  %574 = vmatprep.subr.bf16.mxu0 0
  %575 = vmatpush2.bf16.xpose.msra.mxu0 0
  %576 = vmatprep.subr.bf16.mxu0 0
  %577 = vmatpush2.bf16.xpose.msra.mxu0 0
  %578 = vmatprep.subr.bf16.mxu0 0
  %579 = vmatpush2.bf16.xpose.msra.mxu0 0
  %580 = vmatprep.subr.bf16.mxu0 0
  %581 = vmatpush2.bf16.xpose.msra.mxu0 0
  %582 = vmatprep.subr.bf16.mxu0 0
  %583 = vmatpush2.bf16.xpose.msra.mxu0 0
  %584 = vmatprep.subr.bf16.mxu0 0
  %585 = vmatpush2.bf16.xpose.msra.mxu0 0
  %586 = vmatprep.mubr.bf16.mxu0 0
  %587 = vmatmul.mubr.bf16.gmra.mxu0 %v543
  %v588 = vpop.f32.mrf.mxu0
  %v589 = vadd.f32 0.0, %v588
  %v590 = vpop.f32.mrf.mxu0
  %v591 = vpop.f32.mrf.mxu0
  %v592 = vadd.f32 0.0, %v591
  %v593 = vpop.f32.mrf.mxu0
  %594 = vmatprep.mubr.bf16.mxu0 0
  %595 = vmatmul.mubr.bf16.gmra.mxu0 %v546
  %v596 = vpop.f32.mrf.mxu0
  %v597 = vadd.f32 0.0, %v596
  %v598 = vpop.f32.mrf.mxu0
  %v599 = vpop.f32.mrf.mxu0
  %v600 = vpop.f32.mrf.mxu0
  %601 = vdwg.mxu0
  %v602 = vmul.f32 %v589, 0.25
  %v603 = vmul.f32 %v592, 0.25
  %v604 = vmul.f32 %v597, 0.25
  %v605 = vadd.f32 %v602, %v433
  %v606 = vadd.f32 %v603, %v433
  %v607 = vadd.f32 %v604, %v433
  %v608 = vsel %vm437, %v605, -inf
  %609 = vmax.xlane.f32.xlu0 %v608
  %v610 = vpop.xlane.xlu0 %609
  %v611 = vsel %vm437, %v606, -inf
  %612 = vmax.xlane.f32.xlu0 %v611
  %v613 = vpop.xlane.xlu0 %612
  %v614 = vsel %vm437, %v607, -inf
  %615 = vmax.xlane.f32.xlu0 %v614
  %v616 = vpop.xlane.xlu0 %615
  %v617 = vsub.f32 %v605, %v610
  %v618 = vsub.f32 %v606, %v613
  %v619 = vsub.f32 %v607, %v616
  %v620 = vmul.f32 %v617, 1.442695
  %v621 = vpow.pop %v620
  %v622 = vmul.f32 %v618, 1.442695
  %v623 = vpow.pop %v622
  %v624 = vmul.f32 %v619, 1.442695
  %v625 = vpow.pop %v624
  %v626 = vsel %vm437, %v621, 0.0
  %627 = vadd.xlane.f32.xlu0 %v626
  %v628 = vpop.xlane.xlu0 %627
  %v629 = vsel %vm437, %v623, 0.0
  %630 = vadd.xlane.f32.xlu0 %v629
  %v631 = vpop.xlane.xlu0 %630
  %v632 = vsel %vm437, %v625, 0.0
  %633 = vadd.xlane.f32.xlu0 %v632
  %v634 = vpop.xlane.xlu0 %633
  %v635 = vrcp.pop %v628
  %v636 = vrcp.pop %v631
  %v637 = vrcp.pop %v634
  %v638 = vmul.f32 %v621, %v635
  %v639 = vmul.f32 %v623, %v636
  %v640 = vmul.f32 %v625, %v637
  %v641 = vpack.c.bf16 %v639, %v638
  %v642 = vpack.c.bf16 %v640, %v640
  %645 = vrot.lane.b32.xlu0 %v358, 112
  %v646 = vpop.permute.xlu0 %645
  %647 = vrot.lane.b32.xlu0 %v359, 112
  %v648 = vpop.permute.xlu0 %647
  %v651 = vsel %vm437, %v641, 0
  %v654 = vsel %vm437, %v642, 0
  %v657 = vsel %vm479, %v648, 0
  %659 = vmatprep.subr.bf16.mxu0 0
  %660 = vmatpush1.bf16.msra.mxu0 0
  %661 = vmatprep.subr.bf16.mxu0 0
  %662 = vmatpush1.bf16.msra.mxu0 0
  %663 = vmatprep.subr.bf16.mxu0 0
  %664 = vmatpush1.bf16.msra.mxu0 0
  %665 = vmatprep.subr.bf16.mxu0 0
  %666 = vmatpush1.bf16.msra.mxu0 0
  %667 = vmatprep.subr.bf16.mxu0 0
  %668 = vmatpush1.bf16.msra.mxu0 0
  %669 = vmatprep.subr.bf16.mxu0 0
  %670 = vmatpush1.bf16.msra.mxu0 0
  %671 = vmatprep.subr.bf16.mxu0 0
  %672 = vmatpush1.bf16.msra.mxu0 %v657
  %673 = vmatprep.subr.bf16.mxu0 0
  %674 = vmatpush1.bf16.msra.mxu0 %v646
  %675 = vmatprep.subr.bf16.mxu0 0
  %676 = vmatpush2.bf16.msra.mxu0 0
  %677 = vmatprep.subr.bf16.mxu0 0
  %678 = vmatpush2.bf16.msra.mxu0 0
  %679 = vmatprep.subr.bf16.mxu0 0
  %680 = vmatpush2.bf16.msra.mxu0 0
  %681 = vmatprep.subr.bf16.mxu0 0
  %682 = vmatpush2.bf16.msra.mxu0 0
  %683 = vmatprep.subr.bf16.mxu0 0
  %684 = vmatpush2.bf16.msra.mxu0 0
  %685 = vmatprep.subr.bf16.mxu0 0
  %686 = vmatpush2.bf16.msra.mxu0 0
  %687 = vmatprep.subr.bf16.mxu0 0
  %688 = vmatpush2.bf16.msra.mxu0 0
  %689 = vmatprep.subr.bf16.mxu0 0
  %690 = vmatpush2.bf16.msra.mxu0 0
  %691 = vmatprep.mubr.bf16.mxu0 0
  %692 = vmatmul.mubr.bf16.gmra.mxu0 %v651
  %v693 = vpop.f32.mrf.mxu0
  %v694 = vadd.f32 0.0, %v693
  %v695 = vpop.f32.mrf.mxu0
  %v696 = vpop.f32.mrf.mxu0
  %v697 = vadd.f32 0.0, %v696
  %v698 = vpop.f32.mrf.mxu0
  %699 = vmatprep.mubr.bf16.mxu0 0
  %700 = vmatmul.mubr.bf16.gmra.mxu0 %v654
  %v701 = vpop.f32.mrf.mxu0
  %v702 = vadd.f32 0.0, %v701
  %v703 = vpop.f32.mrf.mxu0
  %v704 = vpop.f32.mrf.mxu0
  %v705 = vpop.f32.mrf.mxu0
  %706 = vdwg.mxu0
  %710 = vrot.lane.b32.xlu0 %v694, 16
  %v711 = vpop.permute.xlu0 %710
  %712 = vrot.lane.b32.xlu0 %v697, 16
  %v713 = vpop.permute.xlu0 %712
  %714 = vrot.lane.b32.xlu0 %v702, 16
  %v715 = vpop.permute.xlu0 %714
  %vm719 = vcmask 261248
  %720 = vst.msk [vmem:[#allocation2] sm:$0xff] %vm719, %v711
  %721 = vst.msk [vmem:[#allocation2 + $0x8] sm:$0xff] %vm719, %v713
  %722 = vst.msk [vmem:[#allocation2 + $0x10] sm:$0xff] %vm719, %v715
  %723 = vrot.lane.b32.xlu0 %v356, 96
  %v724 = vpop.permute.xlu0 %723
  %725 = vrot.lane.b32.xlu0 %v357, 96
  %v726 = vpop.permute.xlu0 %725
  %727 = vrot.lane.b32.xlu0 %v356, 32
  %v728 = vpop.permute.xlu0 %727
  %729 = vrot.lane.b32.xlu0 %v357, 32
  %v730 = vpop.permute.xlu0 %729
  %v732 = vsel %vm366, %v724, 0
  %v735 = vsel %vm366, %v726, 0
  %v738 = vsel %vm366, %v728, 0
  %v741 = vsel %vm366, %v730, 0
  %743 = vmatprep.subr.bf16.mxu0 0
  %744 = vmatpush1.bf16.xpose.msra.mxu0 0
  %745 = vmatprep.subr.bf16.mxu0 0
  %746 = vmatpush1.bf16.xpose.msra.mxu0 0
  %747 = vmatprep.subr.bf16.mxu0 0
  %748 = vmatpush1.bf16.xpose.msra.mxu0 0
  %749 = vmatprep.subr.bf16.mxu0 0
  %750 = vmatpush1.bf16.xpose.msra.mxu0 0
  %751 = vmatprep.subr.bf16.mxu0 0
  %752 = vmatpush1.bf16.xpose.msra.mxu0 0
  %753 = vmatprep.subr.bf16.mxu0 0
  %754 = vmatpush1.bf16.xpose.msra.mxu0 0
  %755 = vmatprep.subr.bf16.mxu0 0
  %756 = vmatpush1.bf16.xpose.msra.mxu0 %v741
  %757 = vmatprep.subr.bf16.mxu0 0
  %758 = vmatpush1.bf16.xpose.msra.mxu0 %v738
  %759 = vmatprep.subr.bf16.mxu0 0
  %760 = vmatpush2.bf16.xpose.msra.mxu0 0
  %761 = vmatprep.subr.bf16.mxu0 0
  %762 = vmatpush2.bf16.xpose.msra.mxu0 0
  %763 = vmatprep.subr.bf16.mxu0 0
  %764 = vmatpush2.bf16.xpose.msra.mxu0 0
  %765 = vmatprep.subr.bf16.mxu0 0
  %766 = vmatpush2.bf16.xpose.msra.mxu0 0
  %767 = vmatprep.subr.bf16.mxu0 0
  %768 = vmatpush2.bf16.xpose.msra.mxu0 0
  %769 = vmatprep.subr.bf16.mxu0 0
  %770 = vmatpush2.bf16.xpose.msra.mxu0 0
  %771 = vmatprep.subr.bf16.mxu0 0
  %772 = vmatpush2.bf16.xpose.msra.mxu0 0
  %773 = vmatprep.subr.bf16.mxu0 0
  %774 = vmatpush2.bf16.xpose.msra.mxu0 0
  %775 = vmatprep.mubr.bf16.mxu0 0
  %776 = vmatmul.mubr.bf16.gmra.mxu0 %v732
  %v777 = vpop.f32.mrf.mxu0
  %v778 = vadd.f32 0.0, %v777
  %v779 = vpop.f32.mrf.mxu0
  %v780 = vpop.f32.mrf.mxu0
  %v781 = vadd.f32 0.0, %v780
  %v782 = vpop.f32.mrf.mxu0
  %783 = vmatprep.mubr.bf16.mxu0 0
  %784 = vmatmul.mubr.bf16.gmra.mxu0 %v735
  %v785 = vpop.f32.mrf.mxu0
  %v786 = vadd.f32 0.0, %v785
  %v787 = vpop.f32.mrf.mxu0
  %v788 = vpop.f32.mrf.mxu0
  %v789 = vpop.f32.mrf.mxu0
  %790 = vdwg.mxu0
  %v791 = vmul.f32 %v778, 0.25
  %v792 = vmul.f32 %v781, 0.25
  %v793 = vmul.f32 %v786, 0.25
  %v794 = vadd.f32 %v791, %v433
  %v795 = vadd.f32 %v792, %v433
  %v796 = vadd.f32 %v793, %v433
  %v797 = vsel %vm437, %v794, -inf
  %798 = vmax.xlane.f32.xlu0 %v797
  %v799 = vpop.xlane.xlu0 %798
  %v800 = vsel %vm437, %v795, -inf
  %801 = vmax.xlane.f32.xlu0 %v800
  %v802 = vpop.xlane.xlu0 %801
  %v803 = vsel %vm437, %v796, -inf
  %804 = vmax.xlane.f32.xlu0 %v803
  %v805 = vpop.xlane.xlu0 %804
  %v806 = vsub.f32 %v794, %v799
  %v807 = vsub.f32 %v795, %v802
  %v808 = vsub.f32 %v796, %v805
  %v809 = vmul.f32 %v806, 1.442695
  %v810 = vpow.pop %v809
  %v811 = vmul.f32 %v807, 1.442695
  %v812 = vpow.pop %v811
  %v813 = vmul.f32 %v808, 1.442695
  %v814 = vpow.pop %v813
  %v815 = vsel %vm437, %v810, 0.0
  %816 = vadd.xlane.f32.xlu0 %v815
  %v817 = vpop.xlane.xlu0 %816
  %v818 = vsel %vm437, %v812, 0.0
  %819 = vadd.xlane.f32.xlu0 %v818
  %v820 = vpop.xlane.xlu0 %819
  %v821 = vsel %vm437, %v814, 0.0
  %822 = vadd.xlane.f32.xlu0 %v821
  %v823 = vpop.xlane.xlu0 %822
  %v824 = vrcp.pop %v817
  %v825 = vrcp.pop %v820
  %v826 = vrcp.pop %v823
  %v827 = vmul.f32 %v810, %v824
  %v828 = vmul.f32 %v812, %v825
  %v829 = vmul.f32 %v814, %v826
  %v830 = vpack.c.bf16 %v828, %v827
  %v831 = vpack.c.bf16 %v829, %v829
  %832 = vrot.lane.b32.xlu0 %v358, 96
  %v833 = vpop.permute.xlu0 %832
  %834 = vrot.lane.b32.xlu0 %v359, 96
  %v835 = vpop.permute.xlu0 %834
  %v838 = vsel %vm437, %v830, 0
  %v841 = vsel %vm437, %v831, 0
  %v844 = vsel %vm479, %v835, 0
  %846 = vmatprep.subr.bf16.mxu0 0
  %847 = vmatpush1.bf16.msra.mxu0 0
  %848 = vmatprep.subr.bf16.mxu0 0
  %849 = vmatpush1.bf16.msra.mxu0 0
  %850 = vmatprep.subr.bf16.mxu0 0
  %851 = vmatpush1.bf16.msra.mxu0 0
  %852 = vmatprep.subr.bf16.mxu0 0
  %853 = vmatpush1.bf16.msra.mxu0 0
  %854 = vmatprep.subr.bf16.mxu0 0
  %855 = vmatpush1.bf16.msra.mxu0 0
  %856 = vmatprep.subr.bf16.mxu0 0
  %857 = vmatpush1.bf16.msra.mxu0 0
  %858 = vmatprep.subr.bf16.mxu0 0
  %859 = vmatpush1.bf16.msra.mxu0 %v844
  %860 = vmatprep.subr.bf16.mxu0 0
  %861 = vmatpush1.bf16.msra.mxu0 %v833
  %862 = vmatprep.subr.bf16.mxu0 0
  %863 = vmatpush2.bf16.msra.mxu0 0
  %864 = vmatprep.subr.bf16.mxu0 0
  %865 = vmatpush2.bf16.msra.mxu0 0
  %866 = vmatprep.subr.bf16.mxu0 0
  %867 = vmatpush2.bf16.msra.mxu0 0
  %868 = vmatprep.subr.bf16.mxu0 0
  %869 = vmatpush2.bf16.msra.mxu0 0
  %870 = vmatprep.subr.bf16.mxu0 0
  %871 = vmatpush2.bf16.msra.mxu0 0
  %872 = vmatprep.subr.bf16.mxu0 0
  %873 = vmatpush2.bf16.msra.mxu0 0
  %874 = vmatprep.subr.bf16.mxu0 0
  %875 = vmatpush2.bf16.msra.mxu0 0
  %876 = vmatprep.subr.bf16.mxu0 0
  %877 = vmatpush2.bf16.msra.mxu0 0
  %878 = vmatprep.mubr.bf16.mxu0 0
  %879 = vmatmul.mubr.bf16.gmra.mxu0 %v838
  %v880 = vpop.f32.mrf.mxu0
  %v881 = vadd.f32 0.0, %v880
  %v882 = vpop.f32.mrf.mxu0
  %v883 = vpop.f32.mrf.mxu0
  %v884 = vadd.f32 0.0, %v883
  %v885 = vpop.f32.mrf.mxu0
  %886 = vmatprep.mubr.bf16.mxu0 0
  %887 = vmatmul.mubr.bf16.gmra.mxu0 %v841
  %v888 = vpop.f32.mrf.mxu0
  %v889 = vadd.f32 0.0, %v888
  %v890 = vpop.f32.mrf.mxu0
  %v891 = vpop.f32.mrf.mxu0
  %v892 = vpop.f32.mrf.mxu0
  %893 = vdwg.mxu0
  %897 = vrot.lane.b32.xlu0 %v881, 32
  %v898 = vpop.permute.xlu0 %897
  %899 = vrot.lane.b32.xlu0 %v884, 32
  %v900 = vpop.permute.xlu0 %899
  %901 = vrot.lane.b32.xlu0 %v889, 32
  %v902 = vpop.permute.xlu0 %901
  %vm906 = vcmask 392448
  %907 = vst.msk [vmem:[#allocation2] sm:$0xff] %vm906, %v898
  %908 = vst.msk [vmem:[#allocation2 + $0x8] sm:$0xff] %vm906, %v900
  %909 = vst.msk [vmem:[#allocation2 + $0x10] sm:$0xff] %vm906, %v902
  %910 = vrot.lane.b32.xlu0 %v356, 80
  %v911 = vpop.permute.xlu0 %910
  %912 = vrot.lane.b32.xlu0 %v357, 80
  %v913 = vpop.permute.xlu0 %912
  %914 = vrot.lane.b32.xlu0 %v356, 16
  %v915 = vpop.permute.xlu0 %914
  %916 = vrot.lane.b32.xlu0 %v357, 16
  %v917 = vpop.permute.xlu0 %916
  %v919 = vsel %vm366, %v911, 0
  %v922 = vsel %vm366, %v913, 0
  %v925 = vsel %vm366, %v915, 0
  %v928 = vsel %vm366, %v917, 0
  %930 = vmatprep.subr.bf16.mxu0 0
  %931 = vmatpush1.bf16.xpose.msra.mxu0 0
  %932 = vmatprep.subr.bf16.mxu0 0
  %933 = vmatpush1.bf16.xpose.msra.mxu0 0
  %934 = vmatprep.subr.bf16.mxu0 0
  %935 = vmatpush1.bf16.xpose.msra.mxu0 0
  %936 = vmatprep.subr.bf16.mxu0 0
  %937 = vmatpush1.bf16.xpose.msra.mxu0 0
  %938 = vmatprep.subr.bf16.mxu0 0
  %939 = vmatpush1.bf16.xpose.msra.mxu0 0
  %940 = vmatprep.subr.bf16.mxu0 0
  %941 = vmatpush1.bf16.xpose.msra.mxu0 0
  %942 = vmatprep.subr.bf16.mxu0 0
  %943 = vmatpush1.bf16.xpose.msra.mxu0 %v928
  %944 = vmatprep.subr.bf16.mxu0 0
  %945 = vmatpush1.bf16.xpose.msra.mxu0 %v925
  %946 = vmatprep.subr.bf16.mxu0 0
  %947 = vmatpush2.bf16.xpose.msra.mxu0 0
  %948 = vmatprep.subr.bf16.mxu0 0
  %949 = vmatpush2.bf16.xpose.msra.mxu0 0
  %950 = vmatprep.subr.bf16.mxu0 0
  %951 = vmatpush2.bf16.xpose.msra.mxu0 0
  %952 = vmatprep.subr.bf16.mxu0 0
  %953 = vmatpush2.bf16.xpose.msra.mxu0 0
  %954 = vmatprep.subr.bf16.mxu0 0
  %955 = vmatpush2.bf16.xpose.msra.mxu0 0
  %956 = vmatprep.subr.bf16.mxu0 0
  %957 = vmatpush2.bf16.xpose.msra.mxu0 0
  %958 = vmatprep.subr.bf16.mxu0 0
  %959 = vmatpush2.bf16.xpose.msra.mxu0 0
  %960 = vmatprep.subr.bf16.mxu0 0
  %961 = vmatpush2.bf16.xpose.msra.mxu0 0
  %962 = vmatprep.mubr.bf16.mxu0 0
  %963 = vmatmul.mubr.bf16.gmra.mxu0 %v919
  %v964 = vpop.f32.mrf.mxu0
  %v965 = vadd.f32 0.0, %v964
  %v966 = vpop.f32.mrf.mxu0
  %v967 = vpop.f32.mrf.mxu0
  %v968 = vadd.f32 0.0, %v967
  %v969 = vpop.f32.mrf.mxu0
  %970 = vmatprep.mubr.bf16.mxu0 0
  %971 = vmatmul.mubr.bf16.gmra.mxu0 %v922
  %v972 = vpop.f32.mrf.mxu0
  %v973 = vadd.f32 0.0, %v972
  %v974 = vpop.f32.mrf.mxu0
  %v975 = vpop.f32.mrf.mxu0
  %v976 = vpop.f32.mrf.mxu0
  %977 = vdwg.mxu0
  %v978 = vmul.f32 %v965, 0.25
  %v979 = vmul.f32 %v968, 0.25
  %v980 = vmul.f32 %v973, 0.25
  %v981 = vadd.f32 %v978, %v433
  %v982 = vadd.f32 %v979, %v433
  %v983 = vadd.f32 %v980, %v433
  %v984 = vsel %vm437, %v981, -inf
  %985 = vmax.xlane.f32.xlu0 %v984
  %v986 = vpop.xlane.xlu0 %985
  %v987 = vsel %vm437, %v982, -inf
  %988 = vmax.xlane.f32.xlu0 %v987
  %v989 = vpop.xlane.xlu0 %988
  %v990 = vsel %vm437, %v983, -inf
  %991 = vmax.xlane.f32.xlu0 %v990
  %v992 = vpop.xlane.xlu0 %991
  %v993 = vsub.f32 %v981, %v986
  %v994 = vsub.f32 %v982, %v989
  %v995 = vsub.f32 %v983, %v992
  %v996 = vmul.f32 %v993, 1.442695
  %v997 = vpow.pop %v996
  %v998 = vmul.f32 %v994, 1.442695
  %v999 = vpow.pop %v998
  %v1000 = vmul.f32 %v995, 1.442695
  %v1001 = vpow.pop %v1000
  %v1002 = vsel %vm437, %v997, 0.0
  %1003 = vadd.xlane.f32.xlu0 %v1002
  %v1004 = vpop.xlane.xlu0 %1003
  %v1005 = vsel %vm437, %v999, 0.0
  %1006 = vadd.xlane.f32.xlu0 %v1005
  %v1007 = vpop.xlane.xlu0 %1006
  %v1008 = vsel %vm437, %v1001, 0.0
  %1009 = vadd.xlane.f32.xlu0 %v1008
  %v1010 = vpop.xlane.xlu0 %1009
  %v1011 = vrcp.pop %v1004
  %v1012 = vrcp.pop %v1007
  %v1013 = vrcp.pop %v1010
  %v1014 = vmul.f32 %v997, %v1011
  %v1015 = vmul.f32 %v999, %v1012
  %v1016 = vmul.f32 %v1001, %v1013
  %v1017 = vpack.c.bf16 %v1015, %v1014
  %v1018 = vpack.c.bf16 %v1016, %v1016
  %1019 = vrot.lane.b32.xlu0 %v358, 80
  %v1020 = vpop.permute.xlu0 %1019
  %1021 = vrot.lane.b32.xlu0 %v359, 80
  %v1022 = vpop.permute.xlu0 %1021
  %v1025 = vsel %vm437, %v1017, 0
  %v1028 = vsel %vm437, %v1018, 0
  %v1031 = vsel %vm479, %v1022, 0
  %1033 = vmatprep.subr.bf16.mxu0 0
  %1034 = vmatpush1.bf16.msra.mxu0 0
  %1035 = vmatprep.subr.bf16.mxu0 0
  %1036 = vmatpush1.bf16.msra.mxu0 0
  %1037 = vmatprep.subr.bf16.mxu0 0
  %1038 = vmatpush1.bf16.msra.mxu0 0
  %1039 = vmatprep.subr.bf16.mxu0 0
  %1040 = vmatpush1.bf16.msra.mxu0 0
  %1041 = vmatprep.subr.bf16.mxu0 0
  %1042 = vmatpush1.bf16.msra.mxu0 0
  %1043 = vmatprep.subr.bf16.mxu0 0
  %1044 = vmatpush1.bf16.msra.mxu0 0
  %1045 = vmatprep.subr.bf16.mxu0 0
  %1046 = vmatpush1.bf16.msra.mxu0 %v1031
  %1047 = vmatprep.subr.bf16.mxu0 0
  %1048 = vmatpush1.bf16.msra.mxu0 %v1020
  %1049 = vmatprep.subr.bf16.mxu0 0
  %1050 = vmatpush2.bf16.msra.mxu0 0
  %1051 = vmatprep.subr.bf16.mxu0 0
  %1052 = vmatpush2.bf16.msra.mxu0 0
  %1053 = vmatprep.subr.bf16.mxu0 0
  %1054 = vmatpush2.bf16.msra.mxu0 0
  %1055 = vmatprep.subr.bf16.mxu0 0
  %1056 = vmatpush2.bf16.msra.mxu0 0
  %1057 = vmatprep.subr.bf16.mxu0 0
  %1058 = vmatpush2.bf16.msra.mxu0 0
  %1059 = vmatprep.subr.bf16.mxu0 0
  %1060 = vmatpush2.bf16.msra.mxu0 0
  %1061 = vmatprep.subr.bf16.mxu0 0
  %1062 = vmatpush2.bf16.msra.mxu0 0
  %1063 = vmatprep.subr.bf16.mxu0 0
  %1064 = vmatpush2.bf16.msra.mxu0 0
  %1065 = vmatprep.mubr.bf16.mxu0 0
  %1066 = vmatmul.mubr.bf16.gmra.mxu0 %v1025
  %v1067 = vpop.f32.mrf.mxu0
  %v1068 = vadd.f32 0.0, %v1067
  %v1069 = vpop.f32.mrf.mxu0
  %v1070 = vpop.f32.mrf.mxu0
  %v1071 = vadd.f32 0.0, %v1070
  %v1072 = vpop.f32.mrf.mxu0
  %1073 = vmatprep.mubr.bf16.mxu0 0
  %1074 = vmatmul.mubr.bf16.gmra.mxu0 %v1028
  %v1075 = vpop.f32.mrf.mxu0
  %v1076 = vadd.f32 0.0, %v1075
  %v1077 = vpop.f32.mrf.mxu0
  %v1078 = vpop.f32.mrf.mxu0
  %v1079 = vpop.f32.mrf.mxu0
  %1080 = vdwg.mxu0
  %1084 = vrot.lane.b32.xlu0 %v1068, 48
  %v1085 = vpop.permute.xlu0 %1084
  %1086 = vrot.lane.b32.xlu0 %v1071, 48
  %v1087 = vpop.permute.xlu0 %1086
  %1088 = vrot.lane.b32.xlu0 %v1076, 48
  %v1089 = vpop.permute.xlu0 %1088
  %vm1093 = vcmask 523648
  %1094 = vst.msk [vmem:[#allocation2] sm:$0xff] %vm1093, %v1085
  %1095 = vst.msk [vmem:[#allocation2 + $0x8] sm:$0xff] %vm1093, %v1087
  %1096 = vst.msk [vmem:[#allocation2 + $0x10] sm:$0xff] %vm1093, %v1089
  %v1097 = vpack.c.bf16 %v348, %v342
  %v1098 = vpack.c.bf16 %v352, %v352
  %v1099 = vpack.c.bf16 %v350, %v344
  %v1100 = vpack.c.bf16 %v354, %v354
  %1103 = vrot.lane.b32.xlu0 %v1097, 64
  %v1104 = vpop.permute.xlu0 %1103
  %1105 = vrot.lane.b32.xlu0 %v1098, 64
  %v1106 = vpop.permute.xlu0 %1105
  %v1108 = vsel %vm366, %v1097, 0
  %v1111 = vsel %vm366, %v1098, 0
  %v1114 = vsel %vm366, %v1104, 0
  %v1117 = vsel %vm366, %v1106, 0
  %1119 = vmatprep.subr.bf16.mxu0 0
  %1120 = vmatpush1.bf16.xpose.msra.mxu0 0
  %1121 = vmatprep.subr.bf16.mxu0 0
  %1122 = vmatpush1.bf16.xpose.msra.mxu0 0
  %1123 = vmatprep.subr.bf16.mxu0 0
  %1124 = vmatpush1.bf16.xpose.msra.mxu0 0
  %1125 = vmatprep.subr.bf16.mxu0 0
  %1126 = vmatpush1.bf16.xpose.msra.mxu0 0
  %1127 = vmatprep.subr.bf16.mxu0 0
  %1128 = vmatpush1.bf16.xpose.msra.mxu0 0
  %1129 = vmatprep.subr.bf16.mxu0 0
  %1130 = vmatpush1.bf16.xpose.msra.mxu0 0
  %1131 = vmatprep.subr.bf16.mxu0 0
  %1132 = vmatpush1.bf16.xpose.msra.mxu0 %v1117
  %1133 = vmatprep.subr.bf16.mxu0 0
  %1134 = vmatpush1.bf16.xpose.msra.mxu0 %v1114
  %1135 = vmatprep.subr.bf16.mxu0 0
  %1136 = vmatpush2.bf16.xpose.msra.mxu0 0
  %1137 = vmatprep.subr.bf16.mxu0 0
  %1138 = vmatpush2.bf16.xpose.msra.mxu0 0
  %1139 = vmatprep.subr.bf16.mxu0 0
  %1140 = vmatpush2.bf16.xpose.msra.mxu0 0
  %1141 = vmatprep.subr.bf16.mxu0 0
  %1142 = vmatpush2.bf16.xpose.msra.mxu0 0
  %1143 = vmatprep.subr.bf16.mxu0 0
  %1144 = vmatpush2.bf16.xpose.msra.mxu0 0
  %1145 = vmatprep.subr.bf16.mxu0 0
  %1146 = vmatpush2.bf16.xpose.msra.mxu0 0
  %1147 = vmatprep.subr.bf16.mxu0 0
  %1148 = vmatpush2.bf16.xpose.msra.mxu0 0
  %1149 = vmatprep.subr.bf16.mxu0 0
  %1150 = vmatpush2.bf16.xpose.msra.mxu0 0
  %1151 = vmatprep.mubr.bf16.mxu0 0
  %1152 = vmatmul.mubr.bf16.gmra.mxu0 %v1108
  %v1153 = vpop.f32.mrf.mxu0
  %v1154 = vadd.f32 0.0, %v1153
  %v1155 = vpop.f32.mrf.mxu0
  %v1156 = vpop.f32.mrf.mxu0
  %v1157 = vadd.f32 0.0, %v1156
  %v1158 = vpop.f32.mrf.mxu0
  %1159 = vmatprep.mubr.bf16.mxu0 0
  %1160 = vmatmul.mubr.bf16.gmra.mxu0 %v1111
  %v1161 = vpop.f32.mrf.mxu0
  %v1162 = vadd.f32 0.0, %v1161
  %v1163 = vpop.f32.mrf.mxu0
  %v1164 = vpop.f32.mrf.mxu0
  %v1165 = vpop.f32.mrf.mxu0
  %1166 = vdwg.mxu0
  %v1167 = vmul.f32 %v1154, 0.25
  %v1168 = vmul.f32 %v1157, 0.25
  %v1169 = vmul.f32 %v1162, 0.25
  %v1170 = vlaneseq
  %v1171 = vshrl.u32 %v1170, 7
  %v1172 = vsub.s32 1, %v1171
  %v1173 = vrot.slane %v229, %v1172
  %v1174 = vadd.f32 %v1167, %v1173
  %v1175 = vadd.f32 %v1168, %v1173
  %v1176 = vadd.f32 %v1169, %v1173
  %v1177 = vsel %vm437, %v1174, -inf
  %1178 = vmax.xlane.f32.xlu0 %v1177
  %v1179 = vpop.xlane.xlu0 %1178
  %v1180 = vsel %vm437, %v1175, -inf
  %1181 = vmax.xlane.f32.xlu0 %v1180
  %v1182 = vpop.xlane.xlu0 %1181
  %v1183 = vsel %vm437, %v1176, -inf
  %1184 = vmax.xlane.f32.xlu0 %v1183
  %v1185 = vpop.xlane.xlu0 %1184
  %v1186 = vsub.f32 %v1174, %v1179
  %v1187 = vsub.f32 %v1175, %v1182
  %v1188 = vsub.f32 %v1176, %v1185
  %v1189 = vmul.f32 %v1186, 1.442695
  %v1190 = vpow.pop %v1189
  %v1191 = vmul.f32 %v1187, 1.442695
  %v1192 = vpow.pop %v1191
  %v1193 = vmul.f32 %v1188, 1.442695
  %v1194 = vpow.pop %v1193
  %v1195 = vsel %vm437, %v1190, 0.0
  %1196 = vadd.xlane.f32.xlu0 %v1195
  %v1197 = vpop.xlane.xlu0 %1196
  %v1198 = vsel %vm437, %v1192, 0.0
  %1199 = vadd.xlane.f32.xlu0 %v1198
  %v1200 = vpop.xlane.xlu0 %1199
  %v1201 = vsel %vm437, %v1194, 0.0
  %1202 = vadd.xlane.f32.xlu0 %v1201
  %v1203 = vpop.xlane.xlu0 %1202
  %v1204 = vrcp.pop %v1197
  %v1205 = vrcp.pop %v1200
  %v1206 = vrcp.pop %v1203
  %v1207 = vmul.f32 %v1190, %v1204
  %v1208 = vmul.f32 %v1192, %v1205
  %v1209 = vmul.f32 %v1194, %v1206
  %v1210 = vpack.c.bf16 %v1208, %v1207
  %v1211 = vpack.c.bf16 %v1209, %v1209
  %v1213 = vsel %vm437, %v1210, 0
  %v1216 = vsel %vm437, %v1211, 0
  %v1219 = vsel %vm479, %v1100, 0
  %1221 = vmatprep.subr.bf16.mxu0 0
  %1222 = vmatpush1.bf16.msra.mxu0 0
  %1223 = vmatprep.subr.bf16.mxu0 0
  %1224 = vmatpush1.bf16.msra.mxu0 0
  %1225 = vmatprep.subr.bf16.mxu0 0
  %1226 = vmatpush1.bf16.msra.mxu0 0
  %1227 = vmatprep.subr.bf16.mxu0 0
  %1228 = vmatpush1.bf16.msra.mxu0 0
  %1229 = vmatprep.subr.bf16.mxu0 0
  %1230 = vmatpush1.bf16.msra.mxu0 0
  %1231 = vmatprep.subr.bf16.mxu0 0
  %1232 = vmatpush1.bf16.msra.mxu0 0
  %1233 = vmatprep.subr.bf16.mxu0 0
  %1234 = vmatpush1.bf16.msra.mxu0 %v1219
  %1235 = vmatprep.subr.bf16.mxu0 0
  %1236 = vmatpush1.bf16.msra.mxu0 %v1099
  %1237 = vmatprep.subr.bf16.mxu0 0
  %1238 = vmatpush2.bf16.msra.mxu0 0
  %1239 = vmatprep.subr.bf16.mxu0 0
  %1240 = vmatpush2.bf16.msra.mxu0 0
  %1241 = vmatprep.subr.bf16.mxu0 0
  %1242 = vmatpush2.bf16.msra.mxu0 0
  %1243 = vmatprep.subr.bf16.mxu0 0
  %1244 = vmatpush2.bf16.msra.mxu0 0
  %1245 = vmatprep.subr.bf16.mxu0 0
  %1246 = vmatpush2.bf16.msra.mxu0 0
  %1247 = vmatprep.subr.bf16.mxu0 0
  %1248 = vmatpush2.bf16.msra.mxu0 0
  %1249 = vmatprep.subr.bf16.mxu0 0
  %1250 = vmatpush2.bf16.msra.mxu0 0
  %1251 = vmatprep.subr.bf16.mxu0 0
  %1252 = vmatpush2.bf16.msra.mxu0 0
  %1253 = vmatprep.mubr.bf16.mxu0 0
  %1254 = vmatmul.mubr.bf16.gmra.mxu0 %v1213
  %v1255 = vpop.f32.mrf.mxu0
  %v1256 = vadd.f32 0.0, %v1255
  %v1257 = vpop.f32.mrf.mxu0
  %v1258 = vpop.f32.mrf.mxu0
  %v1259 = vadd.f32 0.0, %v1258
  %v1260 = vpop.f32.mrf.mxu0
  %1261 = vmatprep.mubr.bf16.mxu0 0
  %1262 = vmatmul.mubr.bf16.gmra.mxu0 %v1216
  %v1263 = vpop.f32.mrf.mxu0
  %v1264 = vadd.f32 0.0, %v1263
  %v1265 = vpop.f32.mrf.mxu0
  %v1266 = vpop.f32.mrf.mxu0
  %v1267 = vpop.f32.mrf.mxu0
  %1268 = vdwg.mxu0
  %1269 = vst.msk [vmem:[#allocation2 + $0x18] sm:$0xff] %vm366, %v1256
  %1270 = vst.msk [vmem:[#allocation2 + $0x20] sm:$0xff] %vm366, %v1259
  %1271 = vst.msk [vmem:[#allocation2 + $0x28] sm:$0xff] %vm366, %v1264
  %1272 = vrot.lane.b32.xlu0 %v1097, 112
  %v1273 = vpop.permute.xlu0 %1272
  %1274 = vrot.lane.b32.xlu0 %v1098, 112
  %v1275 = vpop.permute.xlu0 %1274
  %1276 = vrot.lane.b32.xlu0 %v1097, 48
  %v1277 = vpop.permute.xlu0 %1276
  %1278 = vrot.lane.b32.xlu0 %v1098, 48
  %v1279 = vpop.permute.xlu0 %1278
  %v1281 = vsel %vm366, %v1273, 0
  %v1284 = vsel %vm366, %v1275, 0
  %v1287 = vsel %vm366, %v1277, 0
  %v1290 = vsel %vm366, %v1279, 0
  %1292 = vmatprep.subr.bf16.mxu0 0
  %1293 = vmatpush1.bf16.xpose.msra.mxu0 0
  %1294 = vmatprep.subr.bf16.mxu0 0
  %1295 = vmatpush1.bf16.xpose.msra.mxu0 0
  %1296 = vmatprep.subr.bf16.mxu0 0
  %1297 = vmatpush1.bf16.xpose.msra.mxu0 0
  %1298 = vmatprep.subr.bf16.mxu0 0
  %1299 = vmatpush1.bf16.xpose.msra.mxu0 0
  %1300 = vmatprep.subr.bf16.mxu0 0
  %1301 = vmatpush1.bf16.xpose.msra.mxu0 0
  %1302 = vmatprep.subr.bf16.mxu0 0
  %1303 = vmatpush1.bf16.xpose.msra.mxu0 0
  %1304 = vmatprep.subr.bf16.mxu0 0
  %1305 = vmatpush1.bf16.xpose.msra.mxu0 %v1290
  %1306 = vmatprep.subr.bf16.mxu0 0
  %1307 = vmatpush1.bf16.xpose.msra.mxu0 %v1287
  %1308 = vmatprep.subr.bf16.mxu0 0
  %1309 = vmatpush2.bf16.xpose.msra.mxu0 0
  %1310 = vmatprep.subr.bf16.mxu0 0
  %1311 = vmatpush2.bf16.xpose.msra.mxu0 0
  %1312 = vmatprep.subr.bf16.mxu0 0
  %1313 = vmatpush2.bf16.xpose.msra.mxu0 0
  %1314 = vmatprep.subr.bf16.mxu0 0
  %1315 = vmatpush2.bf16.xpose.msra.mxu0 0
  %1316 = vmatprep.subr.bf16.mxu0 0
  %1317 = vmatpush2.bf16.xpose.msra.mxu0 0
  %1318 = vmatprep.subr.bf16.mxu0 0
  %1319 = vmatpush2.bf16.xpose.msra.mxu0 0
  %1320 = vmatprep.subr.bf16.mxu0 0
  %1321 = vmatpush2.bf16.xpose.msra.mxu0 0
  %1322 = vmatprep.subr.bf16.mxu0 0
  %1323 = vmatpush2.bf16.xpose.msra.mxu0 0
  %1324 = vmatprep.mubr.bf16.mxu0 0
  %1325 = vmatmul.mubr.bf16.gmra.mxu0 %v1281
  %v1326 = vpop.f32.mrf.mxu0
  %v1327 = vadd.f32 0.0, %v1326
  %v1328 = vpop.f32.mrf.mxu0
  %v1329 = vpop.f32.mrf.mxu0
  %v1330 = vadd.f32 0.0, %v1329
  %v1331 = vpop.f32.mrf.mxu0
  %1332 = vmatprep.mubr.bf16.mxu0 0
  %1333 = vmatmul.mubr.bf16.gmra.mxu0 %v1284
  %v1334 = vpop.f32.mrf.mxu0
  %v1335 = vadd.f32 0.0, %v1334
  %v1336 = vpop.f32.mrf.mxu0
  %v1337 = vpop.f32.mrf.mxu0
  %v1338 = vpop.f32.mrf.mxu0
  %1339 = vdwg.mxu0
  %v1340 = vmul.f32 %v1327, 0.25
  %v1341 = vmul.f32 %v1330, 0.25
  %v1342 = vmul.f32 %v1335, 0.25
  %v1343 = vadd.f32 %v1340, %v1173
  %v1344 = vadd.f32 %v1341, %v1173
  %v1345 = vadd.f32 %v1342, %v1173
  %v1346 = vsel %vm437, %v1343, -inf
  %1347 = vmax.xlane.f32.xlu0 %v1346
  %v1348 = vpop.xlane.xlu0 %1347
  %v1349 = vsel %vm437, %v1344, -inf
  %1350 = vmax.xlane.f32.xlu0 %v1349
  %v1351 = vpop.xlane.xlu0 %1350
  %v1352 = vsel %vm437, %v1345, -inf
  %1353 = vmax.xlane.f32.xlu0 %v1352
  %v1354 = vpop.xlane.xlu0 %1353
  %v1355 = vsub.f32 %v1343, %v1348
  %v1356 = vsub.f32 %v1344, %v1351
  %v1357 = vsub.f32 %v1345, %v1354
  %v1358 = vmul.f32 %v1355, 1.442695
  %v1359 = vpow.pop %v1358
  %v1360 = vmul.f32 %v1356, 1.442695
  %v1361 = vpow.pop %v1360
  %v1362 = vmul.f32 %v1357, 1.442695
  %v1363 = vpow.pop %v1362
  %v1364 = vsel %vm437, %v1359, 0.0
  %1365 = vadd.xlane.f32.xlu0 %v1364
  %v1366 = vpop.xlane.xlu0 %1365
  %v1367 = vsel %vm437, %v1361, 0.0
  %1368 = vadd.xlane.f32.xlu0 %v1367
  %v1369 = vpop.xlane.xlu0 %1368
  %v1370 = vsel %vm437, %v1363, 0.0
  %1371 = vadd.xlane.f32.xlu0 %v1370
  %v1372 = vpop.xlane.xlu0 %1371
  %v1373 = vrcp.pop %v1366
  %v1374 = vrcp.pop %v1369
  %v1375 = vrcp.pop %v1372
  %v1376 = vmul.f32 %v1359, %v1373
  %v1377 = vmul.f32 %v1361, %v1374
  %v1378 = vmul.f32 %v1363, %v1375
  %v1379 = vpack.c.bf16 %v1377, %v1376
  %v1380 = vpack.c.bf16 %v1378, %v1378
  %1383 = vrot.lane.b32.xlu0 %v1099, 112
  %v1384 = vpop.permute.xlu0 %1383
  %1385 = vrot.lane.b32.xlu0 %v1100, 112
  %v1386 = vpop.permute.xlu0 %1385
  %v1389 = vsel %vm437, %v1379, 0
  %v1392 = vsel %vm437, %v1380, 0
  %v1395 = vsel %vm479, %v1386, 0
  %1397 = vmatprep.subr.bf16.mxu0 0
  %1398 = vmatpush1.bf16.msra.mxu0 0
  %1399 = vmatprep.subr.bf16.mxu0 0
  %1400 = vmatpush1.bf16.msra.mxu0 0
  %1401 = vmatprep.subr.bf16.mxu0 0
  %1402 = vmatpush1.bf16.msra.mxu0 0
  %1403 = vmatprep.subr.bf16.mxu0 0
  %1404 = vmatpush1.bf16.msra.mxu0 0
  %1405 = vmatprep.subr.bf16.mxu0 0
  %1406 = vmatpush1.bf16.msra.mxu0 0
  %1407 = vmatprep.subr.bf16.mxu0 0
  %1408 = vmatpush1.bf16.msra.mxu0 0
  %1409 = vmatprep.subr.bf16.mxu0 0
  %1410 = vmatpush1.bf16.msra.mxu0 %v1395
  %1411 = vmatprep.subr.bf16.mxu0 0
  %1412 = vmatpush1.bf16.msra.mxu0 %v1384
  %1413 = vmatprep.subr.bf16.mxu0 0
  %1414 = vmatpush2.bf16.msra.mxu0 0
  %1415 = vmatprep.subr.bf16.mxu0 0
  %1416 = vmatpush2.bf16.msra.mxu0 0
  %1417 = vmatprep.subr.bf16.mxu0 0
  %1418 = vmatpush2.bf16.msra.mxu0 0
  %1419 = vmatprep.subr.bf16.mxu0 0
  %1420 = vmatpush2.bf16.msra.mxu0 0
  %1421 = vmatprep.subr.bf16.mxu0 0
  %1422 = vmatpush2.bf16.msra.mxu0 0
  %1423 = vmatprep.subr.bf16.mxu0 0
  %1424 = vmatpush2.bf16.msra.mxu0 0
  %1425 = vmatprep.subr.bf16.mxu0 0
  %1426 = vmatpush2.bf16.msra.mxu0 0
  %1427 = vmatprep.subr.bf16.mxu0 0
  %1428 = vmatpush2.bf16.msra.mxu0 0
  %1429 = vmatprep.mubr.bf16.mxu0 0
  %1430 = vmatmul.mubr.bf16.gmra.mxu0 %v1389
  %v1431 = vpop.f32.mrf.mxu0
  %v1432 = vadd.f32 0.0, %v1431
  %v1433 = vpop.f32.mrf.mxu0
  %v1434 = vpop.f32.mrf.mxu0
  %v1435 = vadd.f32 0.0, %v1434
  %v1436 = vpop.f32.mrf.mxu0
  %1437 = vmatprep.mubr.bf16.mxu0 0
  %1438 = vmatmul.mubr.bf16.gmra.mxu0 %v1392
  %v1439 = vpop.f32.mrf.mxu0
  %v1440 = vadd.f32 0.0, %v1439
  %v1441 = vpop.f32.mrf.mxu0
  %v1442 = vpop.f32.mrf.mxu0
  %v1443 = vpop.f32.mrf.mxu0
  %1444 = vdwg.mxu0
  %1448 = vrot.lane.b32.xlu0 %v1432, 16
  %v1449 = vpop.permute.xlu0 %1448
  %1450 = vrot.lane.b32.xlu0 %v1435, 16
  %v1451 = vpop.permute.xlu0 %1450
  %1452 = vrot.lane.b32.xlu0 %v1440, 16
  %v1453 = vpop.permute.xlu0 %1452
  %1457 = vst.msk [vmem:[#allocation2 + $0x18] sm:$0xff] %vm719, %v1449
  %1458 = vst.msk [vmem:[#allocation2 + $0x20] sm:$0xff] %vm719, %v1451
  %1459 = vst.msk [vmem:[#allocation2 + $0x28] sm:$0xff] %vm719, %v1453
  %1460 = vrot.lane.b32.xlu0 %v1097, 96
  %v1461 = vpop.permute.xlu0 %1460
  %1462 = vrot.lane.b32.xlu0 %v1098, 96
  %v1463 = vpop.permute.xlu0 %1462
  %1464 = vrot.lane.b32.xlu0 %v1097, 32
  %v1465 = vpop.permute.xlu0 %1464
  %1466 = vrot.lane.b32.xlu0 %v1098, 32
  %v1467 = vpop.permute.xlu0 %1466
  %v1469 = vsel %vm366, %v1461, 0
  %v1472 = vsel %vm366, %v1463, 0
  %v1475 = vsel %vm366, %v1465, 0
  %v1478 = vsel %vm366, %v1467, 0
  %1480 = vmatprep.subr.bf16.mxu0 0
  %1481 = vmatpush1.bf16.xpose.msra.mxu0 0
  %1482 = vmatprep.subr.bf16.mxu0 0
  %1483 = vmatpush1.bf16.xpose.msra.mxu0 0
  %1484 = vmatprep.subr.bf16.mxu0 0
  %1485 = vmatpush1.bf16.xpose.msra.mxu0 0
  %1486 = vmatprep.subr.bf16.mxu0 0
  %1487 = vmatpush1.bf16.xpose.msra.mxu0 0
  %1488 = vmatprep.subr.bf16.mxu0 0
  %1489 = vmatpush1.bf16.xpose.msra.mxu0 0
  %1490 = vmatprep.subr.bf16.mxu0 0
  %1491 = vmatpush1.bf16.xpose.msra.mxu0 0
  %1492 = vmatprep.subr.bf16.mxu0 0
  %1493 = vmatpush1.bf16.xpose.msra.mxu0 %v1478
  %1494 = vmatprep.subr.bf16.mxu0 0
  %1495 = vmatpush1.bf16.xpose.msra.mxu0 %v1475
  %1496 = vmatprep.subr.bf16.mxu0 0
  %1497 = vmatpush2.bf16.xpose.msra.mxu0 0
  %1498 = vmatprep.subr.bf16.mxu0 0
  %1499 = vmatpush2.bf16.xpose.msra.mxu0 0
  %1500 = vmatprep.subr.bf16.mxu0 0
  %1501 = vmatpush2.bf16.xpose.msra.mxu0 0
  %1502 = vmatprep.subr.bf16.mxu0 0
  %1503 = vmatpush2.bf16.xpose.msra.mxu0 0
  %1504 = vmatprep.subr.bf16.mxu0 0
  %1505 = vmatpush2.bf16.xpose.msra.mxu0 0
  %1506 = vmatprep.subr.bf16.mxu0 0
  %1507 = vmatpush2.bf16.xpose.msra.mxu0 0
  %1508 = vmatprep.subr.bf16.mxu0 0
  %1509 = vmatpush2.bf16.xpose.msra.mxu0 0
  %1510 = vmatprep.subr.bf16.mxu0 0
  %1511 = vmatpush2.bf16.xpose.msra.mxu0 0
  %1512 = vmatprep.mubr.bf16.mxu0 0
  %1513 = vmatmul.mubr.bf16.gmra.mxu0 %v1469
  %v1514 = vpop.f32.mrf.mxu0
  %v1515 = vadd.f32 0.0, %v1514
  %v1516 = vpop.f32.mrf.mxu0
  %v1517 = vpop.f32.mrf.mxu0
  %v1518 = vadd.f32 0.0, %v1517
  %v1519 = vpop.f32.mrf.mxu0
  %1520 = vmatprep.mubr.bf16.mxu0 0
  %1521 = vmatmul.mubr.bf16.gmra.mxu0 %v1472
  %v1522 = vpop.f32.mrf.mxu0
  %v1523 = vadd.f32 0.0, %v1522
  %v1524 = vpop.f32.mrf.mxu0
  %v1525 = vpop.f32.mrf.mxu0
  %v1526 = vpop.f32.mrf.mxu0
  %1527 = vdwg.mxu0
  %v1528 = vmul.f32 %v1515, 0.25
  %v1529 = vmul.f32 %v1518, 0.25
  %v1530 = vmul.f32 %v1523, 0.25
  %v1531 = vadd.f32 %v1528, %v1173
  %v1532 = vadd.f32 %v1529, %v1173
  %v1533 = vadd.f32 %v1530, %v1173
  %v1534 = vsel %vm437, %v1531, -inf
  %1535 = vmax.xlane.f32.xlu0 %v1534
  %v1536 = vpop.xlane.xlu0 %1535
  %v1537 = vsel %vm437, %v1532, -inf
  %1538 = vmax.xlane.f32.xlu0 %v1537
  %v1539 = vpop.xlane.xlu0 %1538
  %v1540 = vsel %vm437, %v1533, -inf
  %1541 = vmax.xlane.f32.xlu0 %v1540
  %v1542 = vpop.xlane.xlu0 %1541
  %v1543 = vsub.f32 %v1531, %v1536
  %v1544 = vsub.f32 %v1532, %v1539
  %v1545 = vsub.f32 %v1533, %v1542
  %v1546 = vmul.f32 %v1543, 1.442695
  %v1547 = vpow.pop %v1546
  %v1548 = vmul.f32 %v1544, 1.442695
  %v1549 = vpow.pop %v1548
  %v1550 = vmul.f32 %v1545, 1.442695
  %v1551 = vpow.pop %v1550
  %v1552 = vsel %vm437, %v1547, 0.0
  %1553 = vadd.xlane.f32.xlu0 %v1552
  %v1554 = vpop.xlane.xlu0 %1553
  %v1555 = vsel %vm437, %v1549, 0.0
  %1556 = vadd.xlane.f32.xlu0 %v1555
  %v1557 = vpop.xlane.xlu0 %1556
  %v1558 = vsel %vm437, %v1551, 0.0
  %1559 = vadd.xlane.f32.xlu0 %v1558
  %v1560 = vpop.xlane.xlu0 %1559
  %v1561 = vrcp.pop %v1554
  %v1562 = vrcp.pop %v1557
  %v1563 = vrcp.pop %v1560
  %v1564 = vmul.f32 %v1547, %v1561
  %v1565 = vmul.f32 %v1549, %v1562
  %v1566 = vmul.f32 %v1551, %v1563
  %v1567 = vpack.c.bf16 %v1565, %v1564
  %v1568 = vpack.c.bf16 %v1566, %v1566
  %1569 = vrot.lane.b32.xlu0 %v1099, 96
  %v1570 = vpop.permute.xlu0 %1569
  %1571 = vrot.lane.b32.xlu0 %v1100, 96
  %v1572 = vpop.permute.xlu0 %1571
  %v1575 = vsel %vm437, %v1567, 0
  %v1578 = vsel %vm437, %v1568, 0
  %v1581 = vsel %vm479, %v1572, 0
  %1583 = vmatprep.subr.bf16.mxu0 0
  %1584 = vmatpush1.bf16.msra.mxu0 0
  %1585 = vmatprep.subr.bf16.mxu0 0
  %1586 = vmatpush1.bf16.msra.mxu0 0
  %1587 = vmatprep.subr.bf16.mxu0 0
  %1588 = vmatpush1.bf16.msra.mxu0 0
  %1589 = vmatprep.subr.bf16.mxu0 0
  %1590 = vmatpush1.bf16.msra.mxu0 0
  %1591 = vmatprep.subr.bf16.mxu0 0
  %1592 = vmatpush1.bf16.msra.mxu0 0
  %1593 = vmatprep.subr.bf16.mxu0 0
  %1594 = vmatpush1.bf16.msra.mxu0 0
  %1595 = vmatprep.subr.bf16.mxu0 0
  %1596 = vmatpush1.bf16.msra.mxu0 %v1581
  %1597 = vmatprep.subr.bf16.mxu0 0
  %1598 = vmatpush1.bf16.msra.mxu0 %v1570
  %1599 = vmatprep.subr.bf16.mxu0 0
  %1600 = vmatpush2.bf16.msra.mxu0 0
  %1601 = vmatprep.subr.bf16.mxu0 0
  %1602 = vmatpush2.bf16.msra.mxu0 0
  %1603 = vmatprep.subr.bf16.mxu0 0
  %1604 = vmatpush2.bf16.msra.mxu0 0
  %1605 = vmatprep.subr.bf16.mxu0 0
  %1606 = vmatpush2.bf16.msra.mxu0 0
  %1607 = vmatprep.subr.bf16.mxu0 0
  %1608 = vmatpush2.bf16.msra.mxu0 0
  %1609 = vmatprep.subr.bf16.mxu0 0
  %1610 = vmatpush2.bf16.msra.mxu0 0
  %1611 = vmatprep.subr.bf16.mxu0 0
  %1612 = vmatpush2.bf16.msra.mxu0 0
  %1613 = vmatprep.subr.bf16.mxu0 0
  %1614 = vmatpush2.bf16.msra.mxu0 0
  %1615 = vmatprep.mubr.bf16.mxu0 0
  %1616 = vmatmul.mubr.bf16.gmra.mxu0 %v1575
  %v1617 = vpop.f32.mrf.mxu0
  %v1618 = vadd.f32 0.0, %v1617
  %v1619 = vpop.f32.mrf.mxu0
  %v1620 = vpop.f32.mrf.mxu0
  %v1621 = vadd.f32 0.0, %v1620
  %v1622 = vpop.f32.mrf.mxu0
  %1623 = vmatprep.mubr.bf16.mxu0 0
  %1624 = vmatmul.mubr.bf16.gmra.mxu0 %v1578
  %v1625 = vpop.f32.mrf.mxu0
  %v1626 = vadd.f32 0.0, %v1625
  %v1627 = vpop.f32.mrf.mxu0
  %v1628 = vpop.f32.mrf.mxu0
  %v1629 = vpop.f32.mrf.mxu0
  %1630 = vdwg.mxu0
  %1634 = vrot.lane.b32.xlu0 %v1618, 32
  %v1635 = vpop.permute.xlu0 %1634
  %1636 = vrot.lane.b32.xlu0 %v1621, 32
  %v1637 = vpop.permute.xlu0 %1636
  %1638 = vrot.lane.b32.xlu0 %v1626, 32
  %v1639 = vpop.permute.xlu0 %1638
  %1643 = vst.msk [vmem:[#allocation2 + $0x18] sm:$0xff] %vm906, %v1635
  %1644 = vst.msk [vmem:[#allocation2 + $0x20] sm:$0xff] %vm906, %v1637
  %1645 = vst.msk [vmem:[#allocation2 + $0x28] sm:$0xff] %vm906, %v1639
  %1646 = vrot.lane.b32.xlu0 %v1097, 80
  %v1647 = vpop.permute.xlu0 %1646
  %1648 = vrot.lane.b32.xlu0 %v1098, 80
  %v1649 = vpop.permute.xlu0 %1648
  %1650 = vrot.lane.b32.xlu0 %v1097, 16
  %v1651 = vpop.permute.xlu0 %1650
  %1652 = vrot.lane.b32.xlu0 %v1098, 16
  %v1653 = vpop.permute.xlu0 %1652
  %v1655 = vsel %vm366, %v1647, 0
  %v1658 = vsel %vm366, %v1649, 0
  %v1661 = vsel %vm366, %v1651, 0
  %v1664 = vsel %vm366, %v1653, 0
  %1666 = vmatprep.subr.bf16.mxu0 0
  %1667 = vmatpush1.bf16.xpose.msra.mxu0 0
  %1668 = vmatprep.subr.bf16.mxu0 0
  %1669 = vmatpush1.bf16.xpose.msra.mxu0 0
  %1670 = vmatprep.subr.bf16.mxu0 0
  %1671 = vmatpush1.bf16.xpose.msra.mxu0 0
  %1672 = vmatprep.subr.bf16.mxu0 0
  %1673 = vmatpush1.bf16.xpose.msra.mxu0 0
  %1674 = vmatprep.subr.bf16.mxu0 0
  %1675 = vmatpush1.bf16.xpose.msra.mxu0 0
  %1676 = vmatprep.subr.bf16.mxu0 0
  %1677 = vmatpush1.bf16.xpose.msra.mxu0 0
  %1678 = vmatprep.subr.bf16.mxu0 0
  %1679 = vmatpush1.bf16.xpose.msra.mxu0 %v1664
  %1680 = vmatprep.subr.bf16.mxu0 0
  %1681 = vmatpush1.bf16.xpose.msra.mxu0 %v1661
  %1682 = vmatprep.subr.bf16.mxu0 0
  %1683 = vmatpush2.bf16.xpose.msra.mxu0 0
  %1684 = vmatprep.subr.bf16.mxu0 0
  %1685 = vmatpush2.bf16.xpose.msra.mxu0 0
  %1686 = vmatprep.subr.bf16.mxu0 0
  %1687 = vmatpush2.bf16.xpose.msra.mxu0 0
  %1688 = vmatprep.subr.bf16.mxu0 0
  %1689 = vmatpush2.bf16.xpose.msra.mxu0 0
  %1690 = vmatprep.subr.bf16.mxu0 0
  %1691 = vmatpush2.bf16.xpose.msra.mxu0 0
  %1692 = vmatprep.subr.bf16.mxu0 0
  %1693 = vmatpush2.bf16.xpose.msra.mxu0 0
  %1694 = vmatprep.subr.bf16.mxu0 0
  %1695 = vmatpush2.bf16.xpose.msra.mxu0 0
  %1696 = vmatprep.subr.bf16.mxu0 0
  %1697 = vmatpush2.bf16.xpose.msra.mxu0 0
  %1698 = vmatprep.mubr.bf16.mxu0 0
  %1699 = vmatmul.mubr.bf16.gmra.mxu0 %v1655
  %v1700 = vpop.f32.mrf.mxu0
  %v1701 = vadd.f32 0.0, %v1700
  %v1702 = vpop.f32.mrf.mxu0
  %v1703 = vpop.f32.mrf.mxu0
  %v1704 = vadd.f32 0.0, %v1703
  %v1705 = vpop.f32.mrf.mxu0
  %1706 = vmatprep.mubr.bf16.mxu0 0
  %1707 = vmatmul.mubr.bf16.gmra.mxu0 %v1658
  %v1708 = vpop.f32.mrf.mxu0
  %v1709 = vadd.f32 0.0, %v1708
  %v1710 = vpop.f32.mrf.mxu0
  %v1711 = vpop.f32.mrf.mxu0
  %v1712 = vpop.f32.mrf.mxu0
  %1713 = vdwg.mxu0
  %v1714 = vmul.f32 %v1701, 0.25
  %v1715 = vmul.f32 %v1704, 0.25
  %v1716 = vmul.f32 %v1709, 0.25
  %v1717 = vadd.f32 %v1714, %v1173
  %v1718 = vadd.f32 %v1715, %v1173
  %v1719 = vadd.f32 %v1716, %v1173
  %v1720 = vsel %vm437, %v1717, -inf
  %1721 = vmax.xlane.f32.xlu0 %v1720
  %v1722 = vpop.xlane.xlu0 %1721
  %v1723 = vsel %vm437, %v1718, -inf
  %1724 = vmax.xlane.f32.xlu0 %v1723
  %v1725 = vpop.xlane.xlu0 %1724
  %v1726 = vsel %vm437, %v1719, -inf
  %1727 = vmax.xlane.f32.xlu0 %v1726
  %v1728 = vpop.xlane.xlu0 %1727
  %v1729 = vsub.f32 %v1717, %v1722
  %v1730 = vsub.f32 %v1718, %v1725
  %v1731 = vsub.f32 %v1719, %v1728
  %v1732 = vmul.f32 %v1729, 1.442695
  %v1733 = vpow.pop %v1732
  %v1734 = vmul.f32 %v1730, 1.442695
  %v1735 = vpow.pop %v1734
  %v1736 = vmul.f32 %v1731, 1.442695
  %v1737 = vpow.pop %v1736
  %v1738 = vsel %vm437, %v1733, 0.0
  %1739 = vadd.xlane.f32.xlu0 %v1738
  %v1740 = vpop.xlane.xlu0 %1739
  %v1741 = vsel %vm437, %v1735, 0.0
  %1742 = vadd.xlane.f32.xlu0 %v1741
  %v1743 = vpop.xlane.xlu0 %1742
  %v1744 = vsel %vm437, %v1737, 0.0
  %1745 = vadd.xlane.f32.xlu0 %v1744
  %v1746 = vpop.xlane.xlu0 %1745
  %v1747 = vrcp.pop %v1740
  %v1748 = vrcp.pop %v1743
  %v1749 = vrcp.pop %v1746
  %v1750 = vmul.f32 %v1733, %v1747
  %v1751 = vmul.f32 %v1735, %v1748
  %v1752 = vmul.f32 %v1737, %v1749
  %v1753 = vpack.c.bf16 %v1751, %v1750
  %v1754 = vpack.c.bf16 %v1752, %v1752
  %1755 = vrot.lane.b32.xlu0 %v1099, 80
  %v1756 = vpop.permute.xlu0 %1755
  %1757 = vrot.lane.b32.xlu0 %v1100, 80
  %v1758 = vpop.permute.xlu0 %1757
  %v1761 = vsel %vm437, %v1753, 0
  %v1764 = vsel %vm437, %v1754, 0
  %v1767 = vsel %vm479, %v1758, 0
  %1769 = vmatprep.subr.bf16.mxu0 0
  %1770 = vmatpush1.bf16.msra.mxu0 0
  %1771 = vmatprep.subr.bf16.mxu0 0
  %1772 = vmatpush1.bf16.msra.mxu0 0
  %1773 = vmatprep.subr.bf16.mxu0 0
  %1774 = vmatpush1.bf16.msra.mxu0 0
  %1775 = vmatprep.subr.bf16.mxu0 0
  %1776 = vmatpush1.bf16.msra.mxu0 0
  %1777 = vmatprep.subr.bf16.mxu0 0
  %1778 = vmatpush1.bf16.msra.mxu0 0
  %1779 = vmatprep.subr.bf16.mxu0 0
  %1780 = vmatpush1.bf16.msra.mxu0 0
  %1781 = vmatprep.subr.bf16.mxu0 0
  %1782 = vmatpush1.bf16.msra.mxu0 %v1767
  %1783 = vmatprep.subr.bf16.mxu0 0
  %1784 = vmatpush1.bf16.msra.mxu0 %v1756
  %1785 = vmatprep.subr.bf16.mxu0 0
  %1786 = vmatpush2.bf16.msra.mxu0 0
  %1787 = vmatprep.subr.bf16.mxu0 0
  %1788 = vmatpush2.bf16.msra.mxu0 0
  %1789 = vmatprep.subr.bf16.mxu0 0
  %1790 = vmatpush2.bf16.msra.mxu0 0
  %1791 = vmatprep.subr.bf16.mxu0 0
  %1792 = vmatpush2.bf16.msra.mxu0 0
  %1793 = vmatprep.subr.bf16.mxu0 0
  %1794 = vmatpush2.bf16.msra.mxu0 0
  %1795 = vmatprep.subr.bf16.mxu0 0
  %1796 = vmatpush2.bf16.msra.mxu0 0
  %1797 = vmatprep.subr.bf16.mxu0 0
  %1798 = vmatpush2.bf16.msra.mxu0 0
  %1799 = vmatprep.subr.bf16.mxu0 0
  %1800 = vmatpush2.bf16.msra.mxu0 0
  %1801 = vmatprep.mubr.bf16.mxu0 0
  %1802 = vmatmul.mubr.bf16.gmra.mxu0 %v1761
  %v1803 = vpop.f32.mrf.mxu0
  %v1804 = vadd.f32 0.0, %v1803
  %v1805 = vpop.f32.mrf.mxu0
  %v1806 = vpop.f32.mrf.mxu0
  %v1807 = vadd.f32 0.0, %v1806
  %v1808 = vpop.f32.mrf.mxu0
  %1809 = vmatprep.mubr.bf16.mxu0 0
  %1810 = vmatmul.mubr.bf16.gmra.mxu0 %v1764
  %v1811 = vpop.f32.mrf.mxu0
  %v1812 = vadd.f32 0.0, %v1811
  %v1813 = vpop.f32.mrf.mxu0
  %v1814 = vpop.f32.mrf.mxu0
  %v1815 = vpop.f32.mrf.mxu0
  %1816 = vdwg.mxu0
  %1820 = vrot.lane.b32.xlu0 %v1804, 48
  %v1821 = vpop.permute.xlu0 %1820
  %1822 = vrot.lane.b32.xlu0 %v1807, 48
  %v1823 = vpop.permute.xlu0 %1822
  %1824 = vrot.lane.b32.xlu0 %v1812, 48
  %v1825 = vpop.permute.xlu0 %1824
  %1829 = vst.msk [vmem:[#allocation2 + $0x18] sm:$0xff] %vm1093, %v1821
  %1830 = vst.msk [vmem:[#allocation2 + $0x20] sm:$0xff] %vm1093, %v1823
  %1831 = vst.msk [vmem:[#allocation2 + $0x28] sm:$0xff] %vm1093, %v1825
  %v1832 = vld [vmem:[#allocation2] sm:$0xff]
  %v1833 = vld [vmem:[#allocation2 + $0x8] sm:$0xff]
  %v1834 = vld [vmem:[#allocation2 + $0x10] sm:$0xff]
  %v1835 = vld [vmem:[#allocation2 + $0x18] sm:$0xff]
  %v1836 = vld [vmem:[#allocation2 + $0x20] sm:$0xff]
  %v1837 = vld [vmem:[#allocation2 + $0x28] sm:$0xff]
  %v1838 = vpack.c.bf16 %v1833, %v1832
  %v1839 = vpack.c.bf16 %v1835, %v1834
  %v1840 = vpack.c.bf16 %v1837, %v1836
  %v1842 = vlaneseq
  %v1843 = vshrl.u32 %v1842, 7
  %v1844 = vsub.s32 0, %v1843
  %v1845 = vrot.slane %v198, %v1844
  %v1855 = vunpack.c.l.b16 %v190
  %v1856 = vunpack.c.l.b16 %v191
  %v1857 = vunpack.c.l.b16 %v192
  %v1858 = vunpack.c.l.b16 %v193
  %v1859 = vunpack.c.l.b16 %v194
  %v1860 = vunpack.c.l.b16 %v195
  %v1861 = vunpack.c.l.b16 %v196
  %v1862 = vunpack.c.l.b16 %v197
  %v1863 = vpack.c.b16 %v1856, %v1855
  %v1864 = vpack.c.b16 %v1858, %v1857
  %v1865 = vpack.c.b16 %v1860, %v1859
  %v1866 = vpack.c.b16 %v1862, %v1861
  %v1872 = vsel %vm77, %v1838, 0
  %v1875 = vsel %vm77, %v1839, 0
  %v1878 = vsel %vm77, %v1840, 0
  %1880 = vmatprep.subr.bf16.mxu0 0
  %1881 = vmatpush1.bf16.msra.mxu0 0
  %1882 = vmatprep.subr.bf16.mxu0 0
  %1883 = vmatpush1.bf16.msra.mxu0 0
  %1884 = vmatprep.subr.bf16.mxu0 0
  %1885 = vmatpush1.bf16.msra.mxu0 0
  %1886 = vmatprep.subr.bf16.mxu0 0
  %1887 = vmatpush1.bf16.msra.mxu0 0
  %1888 = vmatprep.subr.bf16.mxu0 0
  %1889 = vmatpush1.bf16.msra.mxu0 %v1866
  %1890 = vmatprep.subr.bf16.mxu0 0
  %1891 = vmatpush1.bf16.msra.mxu0 %v1865
  %1892 = vmatprep.subr.bf16.mxu0 0
  %1893 = vmatpush1.bf16.msra.mxu0 %v1864
  %1894 = vmatprep.subr.bf16.mxu0 0
  %1895 = vmatpush1.bf16.msra.mxu0 %v1863
  %1896 = vmatprep.subr.bf16.mxu0 0
  %1897 = vmatpush2.bf16.msra.mxu0 0
  %1898 = vmatprep.subr.bf16.mxu0 0
  %1899 = vmatpush2.bf16.msra.mxu0 0
  %1900 = vmatprep.subr.bf16.mxu0 0
  %1901 = vmatpush2.bf16.msra.mxu0 0
  %1902 = vmatprep.subr.bf16.mxu0 0
  %1903 = vmatpush2.bf16.msra.mxu0 0
  %1904 = vmatprep.subr.bf16.mxu0 0
  %1905 = vmatpush2.bf16.msra.mxu0 0
  %1906 = vmatprep.subr.bf16.mxu0 0
  %1907 = vmatpush2.bf16.msra.mxu0 0
  %1908 = vmatprep.subr.bf16.mxu0 0
  %1909 = vmatpush2.bf16.msra.mxu0 0
  %1910 = vmatprep.subr.bf16.mxu0 0
  %1911 = vmatpush2.bf16.msra.mxu0 0
  %1912 = vmatprep.mubr.bf16.mxu0 0
  %1913 = vmatmul.mubr.bf16.gmra.mxu0 %v1872
  %v1914 = vpop.f32.mrf.mxu0
  %v1915 = vadd.f32 %v1845, %v1914
  %v1916 = vpop.f32.mrf.mxu0
  %v1917 = vpop.f32.mrf.mxu0
  %v1918 = vadd.f32 %v1845, %v1917
  %v1919 = vpop.f32.mrf.mxu0
  %1920 = vmatprep.mubr.bf16.mxu0 0
  %1921 = vmatmul.mubr.bf16.gmra.mxu0 %v1875
  %v1922 = vpop.f32.mrf.mxu0
  %v1923 = vadd.f32 %v1845, %v1922
  %v1924 = vpop.f32.mrf.mxu0
  %v1925 = vpop.f32.mrf.mxu0
  %v1926 = vadd.f32 %v1845, %v1925
  %v1927 = vpop.f32.mrf.mxu0
  %1928 = vmatprep.mubr.bf16.mxu0 0
  %1929 = vmatmul.mubr.bf16.gmra.mxu0 %v1878
  %v1930 = vpop.f32.mrf.mxu0
  %v1931 = vadd.f32 %v1845, %v1930
  %v1932 = vpop.f32.mrf.mxu0
  %v1933 = vpop.f32.mrf.mxu0
  %v1934 = vadd.f32 %v1845, %v1933
  %v1935 = vpop.f32.mrf.mxu0
  %1936 = vdwg.mxu0
  %v1937 = vadd.f32 %v175, %v1915
  %v1938 = vadd.f32 %v176, %v1918
  %v1939 = vadd.f32 %v177, %v1923
  %v1940 = vadd.f32 %v178, %v1926
  %v1941 = vadd.f32 %v179, %v1931
  %v1942 = vadd.f32 %v180, %v1934
  %v1943 = vsel %vm77, %v1937, 0.0
  %1944 = vadd.xlane.f32.xlu0 %v1943
  %v1945 = vpop.xlane.xlu0 %1944
  %v1946 = vsel %vm77, %v1938, 0.0
  %1947 = vadd.xlane.f32.xlu0 %v1946
  %v1948 = vpop.xlane.xlu0 %1947
  %v1949 = vsel %vm77, %v1939, 0.0
  %1950 = vadd.xlane.f32.xlu0 %v1949
  %v1951 = vpop.xlane.xlu0 %1950
  %v1952 = vsel %vm77, %v1940, 0.0
  %1953 = vadd.xlane.f32.xlu0 %v1952
  %v1954 = vpop.xlane.xlu0 %1953
  %v1955 = vsel %vm77, %v1941, 0.0
  %1956 = vadd.xlane.f32.xlu0 %v1955
  %v1957 = vpop.xlane.xlu0 %1956
  %v1958 = vsel %vm77, %v1942, 0.0
  %1959 = vadd.xlane.f32.xlu0 %v1958
  %v1960 = vpop.xlane.xlu0 %1959
  %v1961 = vmul.f32 %v1945, %v96
  %v1962 = vmul.f32 %v1948, %v96
  %v1963 = vmul.f32 %v1951, %v96
  %v1964 = vmul.f32 %v1954, %v96
  %v1965 = vmul.f32 %v1957, %v96
  %v1966 = vmul.f32 %v1960, %v96
  %v1967 = vsub.f32 %v1937, %v1961
  %v1968 = vsub.f32 %v1938, %v1962
  %v1969 = vsub.f32 %v1939, %v1963
  %v1970 = vsub.f32 %v1940, %v1964
  %v1971 = vsub.f32 %v1941, %v1965
  %v1972 = vsub.f32 %v1942, %v1966
  %v1973 = vmul.f32 %v1967, %v1967
  %v1974 = vmul.f32 %v1968, %v1968
  %v1975 = vmul.f32 %v1969, %v1969
  %v1976 = vmul.f32 %v1970, %v1970
  %v1977 = vmul.f32 %v1971, %v1971
  %v1978 = vmul.f32 %v1972, %v1972
  %v1979 = vsel %vm77, %v1973, 0.0
  %1980 = vadd.xlane.f32.xlu0 %v1979
  %v1981 = vpop.xlane.xlu0 %1980
  %v1982 = vsel %vm77, %v1974, 0.0
  %1983 = vadd.xlane.f32.xlu0 %v1982
  %v1984 = vpop.xlane.xlu0 %1983
  %v1985 = vsel %vm77, %v1975, 0.0
  %1986 = vadd.xlane.f32.xlu0 %v1985
  %v1987 = vpop.xlane.xlu0 %1986
  %v1988 = vsel %vm77, %v1976, 0.0
  %1989 = vadd.xlane.f32.xlu0 %v1988
  %v1990 = vpop.xlane.xlu0 %1989
  %v1991 = vsel %vm77, %v1977, 0.0
  %1992 = vadd.xlane.f32.xlu0 %v1991
  %v1993 = vpop.xlane.xlu0 %1992
  %v1994 = vsel %vm77, %v1978, 0.0
  %1995 = vadd.xlane.f32.xlu0 %v1994
  %v1996 = vpop.xlane.xlu0 %1995
  %v1997 = vmul.f32 %v1981, %v96
  %v1998 = vmul.f32 %v1984, %v96
  %v1999 = vmul.f32 %v1987, %v96
  %v2000 = vmul.f32 %v1990, %v96
  %v2001 = vmul.f32 %v1993, %v96
  %v2002 = vmul.f32 %v1996, %v96
  %v2003 = vadd.f32 %v1997, 1e-12
  %v2004 = vadd.f32 %v1998, 1e-12
  %v2005 = vadd.f32 %v1999, 1e-12
  %v2006 = vadd.f32 %v2000, 1e-12
  %v2007 = vadd.f32 %v2001, 1e-12
  %v2008 = vadd.f32 %v2002, 1e-12
  %v2009 = vrsqrt.pop %v2003
  %v2010 = vrsqrt.pop %v2004
  %v2011 = vrsqrt.pop %v2005
  %v2012 = vrsqrt.pop %v2006
  %v2013 = vrsqrt.pop %v2007
  %v2014 = vrsqrt.pop %v2008
  %v2015 = vmul.f32 %v1967, %v2009
  %v2016 = vmul.f32 %v1968, %v2010
  %v2017 = vmul.f32 %v1969, %v2011
  %v2018 = vmul.f32 %v1970, %v2012
  %v2019 = vmul.f32 %v1971, %v2013
  %v2020 = vmul.f32 %v1972, %v2014
  %v2022 = vlaneseq
  %v2023 = vshrl.u32 %v2022, 7
  %v2024 = vsub.s32 0, %v2023
  %v2025 = vrot.slane %v199, %v2024
  %v2027 = vmul.f32 %v2015, %v2025
  %v2028 = vmul.f32 %v2016, %v2025
  %v2029 = vmul.f32 %v2017, %v2025
  %v2030 = vmul.f32 %v2018, %v2025
  %v2031 = vmul.f32 %v2019, %v2025
  %v2032 = vmul.f32 %v2020, %v2025
  %v2034 = vlaneseq
  %v2035 = vshrl.u32 %v2034, 7
  %v2036 = vsub.s32 0, %v2035
  %v2037 = vrot.slane %v200, %v2036
  %v2039 = vadd.f32 %v2027, %v2037
  %v2040 = vadd.f32 %v2028, %v2037
  %v2041 = vadd.f32 %v2029, %v2037
  %v2042 = vadd.f32 %v2030, %v2037
  %v2043 = vadd.f32 %v2031, %v2037
  %v2044 = vadd.f32 %v2032, %v2037
  %v2045 = vpack.c.bf16 %v2040, %v2039
  %v2046 = vpack.c.bf16 %v2042, %v2041
  %v2047 = vpack.c.bf16 %v2044, %v2043
  %v2049 = vlaneseq
  %v2050 = vshrl.u32 %v2049, 7
  %v2051 = vsub.s32 0, %v2050
  %v2052 = vrot.slane %v209, %v2051
  %v2062 = vunpack.c.l.b16 %v201
  %v2063 = vunpack.c.l.b16 %v202
  %v2064 = vunpack.c.l.b16 %v203
  %v2065 = vunpack.c.l.b16 %v204
  %v2066 = vunpack.c.l.b16 %v205
  %v2067 = vunpack.c.l.b16 %v206
  %v2068 = vunpack.c.l.b16 %v207
  %v2069 = vunpack.c.l.b16 %v208
  %v2070 = vpack.c.b16 %v2063, %v2062
  %v2071 = vpack.c.b16 %v2065, %v2064
  %v2072 = vpack.c.b16 %v2067, %v2066
  %v2073 = vpack.c.b16 %v2069, %v2068
  %v2079 = vsel %vm77, %v2045, 0
  %v2082 = vsel %vm77, %v2046, 0
  %v2085 = vsel %vm77, %v2047, 0
  %2087 = vmatprep.subr.bf16.mxu0 0
  %2088 = vmatpush1.bf16.msra.mxu0 0
  %2089 = vmatprep.subr.bf16.mxu0 0
  %2090 = vmatpush1.bf16.msra.mxu0 0
  %2091 = vmatprep.subr.bf16.mxu0 0
  %2092 = vmatpush1.bf16.msra.mxu0 0
  %2093 = vmatprep.subr.bf16.mxu0 0
  %2094 = vmatpush1.bf16.msra.mxu0 0
  %2095 = vmatprep.subr.bf16.mxu0 0
  %2096 = vmatpush1.bf16.msra.mxu0 %v2073
  %2097 = vmatprep.subr.bf16.mxu0 0
  %2098 = vmatpush1.bf16.msra.mxu0 %v2072
  %2099 = vmatprep.subr.bf16.mxu0 0
  %2100 = vmatpush1.bf16.msra.mxu0 %v2071
  %2101 = vmatprep.subr.bf16.mxu0 0
  %2102 = vmatpush1.bf16.msra.mxu0 %v2070
  %2103 = vmatprep.subr.bf16.mxu0 0
  %2104 = vmatpush2.bf16.msra.mxu0 0
  %2105 = vmatprep.subr.bf16.mxu0 0
  %2106 = vmatpush2.bf16.msra.mxu0 0
  %2107 = vmatprep.subr.bf16.mxu0 0
  %2108 = vmatpush2.bf16.msra.mxu0 0
  %2109 = vmatprep.subr.bf16.mxu0 0
  %2110 = vmatpush2.bf16.msra.mxu0 0
  %2111 = vmatprep.subr.bf16.mxu0 0
  %2112 = vmatpush2.bf16.msra.mxu0 0
  %2113 = vmatprep.subr.bf16.mxu0 0
  %2114 = vmatpush2.bf16.msra.mxu0 0
  %2115 = vmatprep.subr.bf16.mxu0 0
  %2116 = vmatpush2.bf16.msra.mxu0 0
  %2117 = vmatprep.subr.bf16.mxu0 0
  %2118 = vmatpush2.bf16.msra.mxu0 0
  %2119 = vmatprep.mubr.bf16.mxu0 0
  %2120 = vmatmul.mubr.bf16.gmra.mxu0 %v2079
  %v2121 = vpop.f32.mrf.mxu0
  %v2122 = vadd.f32 %v2052, %v2121
  %v2123 = vpop.f32.mrf.mxu0
  %v2124 = vpop.f32.mrf.mxu0
  %v2125 = vadd.f32 %v2052, %v2124
  %v2126 = vpop.f32.mrf.mxu0
  %2127 = vmatprep.mubr.bf16.mxu0 0
  %2128 = vmatmul.mubr.bf16.gmra.mxu0 %v2082
  %v2129 = vpop.f32.mrf.mxu0
  %v2130 = vadd.f32 %v2052, %v2129
  %v2131 = vpop.f32.mrf.mxu0
  %v2132 = vpop.f32.mrf.mxu0
  %v2133 = vadd.f32 %v2052, %v2132
  %v2134 = vpop.f32.mrf.mxu0
  %2135 = vmatprep.mubr.bf16.mxu0 0
  %2136 = vmatmul.mubr.bf16.gmra.mxu0 %v2085
  %v2137 = vpop.f32.mrf.mxu0
  %v2138 = vadd.f32 %v2052, %v2137
  %v2139 = vpop.f32.mrf.mxu0
  %v2140 = vpop.f32.mrf.mxu0
  %v2141 = vadd.f32 %v2052, %v2140
  %v2142 = vpop.f32.mrf.mxu0
  %2143 = vdwg.mxu0
  %v2144 = vmul.f32 %v2122, %v2122
  %v2145 = vmul.f32 %v2125, %v2125
  %v2146 = vmul.f32 %v2130, %v2130
  %v2147 = vmul.f32 %v2133, %v2133
  %v2148 = vmul.f32 %v2138, %v2138
  %v2149 = vmul.f32 %v2141, %v2141
  %v2150 = vmul.f32 %v2122, %v2144
  %v2151 = vmul.f32 %v2125, %v2145
  %v2152 = vmul.f32 %v2130, %v2146
  %v2153 = vmul.f32 %v2133, %v2147
  %v2154 = vmul.f32 %v2138, %v2148
  %v2155 = vmul.f32 %v2141, %v2149
  %v2156 = vmul.f32 %v2150, 0.044715
  %v2157 = vmul.f32 %v2151, 0.044715
  %v2158 = vmul.f32 %v2152, 0.044715
  %v2159 = vmul.f32 %v2153, 0.044715
  %v2160 = vmul.f32 %v2154, 0.044715
  %v2161 = vmul.f32 %v2155, 0.044715
  %v2162 = vadd.f32 %v2122, %v2156
  %v2163 = vadd.f32 %v2125, %v2157
  %v2164 = vadd.f32 %v2130, %v2158
  %v2165 = vadd.f32 %v2133, %v2159
  %v2166 = vadd.f32 %v2138, %v2160
  %v2167 = vadd.f32 %v2141, %v2161
  %v2168 = vmul.f32 %v2162, 0.7978846
  %v2169 = vmul.f32 %v2163, 0.7978846
  %v2170 = vmul.f32 %v2164, 0.7978846
  %v2171 = vmul.f32 %v2165, 0.7978846
  %v2172 = vmul.f32 %v2166, 0.7978846
  %v2173 = vmul.f32 %v2167, 0.7978846
  %v2174 = vtanh.pop %v2168
  %v2175 = vtanh.pop %v2169
  %v2176 = vtanh.pop %v2170
  %v2177 = vtanh.pop %v2171
  %v2178 = vtanh.pop %v2172
  %v2179 = vtanh.pop %v2173
  %v2180 = vadd.f32 %v2174, 1.0
  %v2181 = vadd.f32 %v2175, 1.0
  %v2182 = vadd.f32 %v2176, 1.0
  %v2183 = vadd.f32 %v2177, 1.0
  %v2184 = vadd.f32 %v2178, 1.0
  %v2185 = vadd.f32 %v2179, 1.0
  %v2186 = vmul.f32 %v2180, 0.5
  %v2187 = vmul.f32 %v2181, 0.5
  %v2188 = vmul.f32 %v2182, 0.5
  %v2189 = vmul.f32 %v2183, 0.5
  %v2190 = vmul.f32 %v2184, 0.5
  %v2191 = vmul.f32 %v2185, 0.5
  %v2192 = vmul.f32 %v2122, %v2186
  %v2193 = vmul.f32 %v2125, %v2187
  %v2194 = vmul.f32 %v2130, %v2188
  %v2195 = vmul.f32 %v2133, %v2189
  %v2196 = vmul.f32 %v2138, %v2190
  %v2197 = vmul.f32 %v2141, %v2191
  %v2198 = vpack.c.bf16 %v2193, %v2192
  %v2199 = vpack.c.bf16 %v2195, %v2194
  %v2200 = vpack.c.bf16 %v2197, %v2196
  %v2202 = vlaneseq
  %v2203 = vshrl.u32 %v2202, 7
  %v2204 = vsub.s32 0, %v2203
  %v2205 = vrot.slane %v226, %v2204
  %v2223 = vunpack.c.l.b16 %v210
  %v2224 = vunpack.c.l.b16 %v211
  %v2225 = vunpack.c.l.b16 %v212
  %v2226 = vunpack.c.l.b16 %v213
  %v2227 = vunpack.c.l.b16 %v214
  %v2228 = vunpack.c.l.b16 %v215
  %v2229 = vunpack.c.l.b16 %v216
  %v2230 = vunpack.c.l.b16 %v217
  %v2231 = vunpack.c.l.b16 %v218
  %v2232 = vunpack.c.l.b16 %v219
  %v2233 = vunpack.c.l.b16 %v220
  %v2234 = vunpack.c.l.b16 %v221
  %v2235 = vunpack.c.l.b16 %v222
  %v2236 = vunpack.c.l.b16 %v223
  %v2237 = vunpack.c.l.b16 %v224
  %v2238 = vunpack.c.l.b16 %v225
  %v2239 = vpack.c.b16 %v2224, %v2223
  %v2240 = vpack.c.b16 %v2226, %v2225
  %v2241 = vpack.c.b16 %v2228, %v2227
  %v2242 = vpack.c.b16 %v2230, %v2229
  %v2243 = vpack.c.b16 %v2232, %v2231
  %v2244 = vpack.c.b16 %v2234, %v2233
  %v2245 = vpack.c.b16 %v2236, %v2235
  %v2246 = vpack.c.b16 %v2238, %v2237
  %2255 = vmatprep.subr.bf16.mxu0 0
  %2256 = vmatpush1.bf16.msra.mxu0 %v2246
  %2257 = vmatprep.subr.bf16.mxu0 0
  %2258 = vmatpush1.bf16.msra.mxu0 %v2245
  %2259 = vmatprep.subr.bf16.mxu0 0
  %2260 = vmatpush1.bf16.msra.mxu0 %v2244
  %2261 = vmatprep.subr.bf16.mxu0 0
  %2262 = vmatpush1.bf16.msra.mxu0 %v2243
  %2263 = vmatprep.subr.bf16.mxu0 0
  %2264 = vmatpush1.bf16.msra.mxu0 %v2242
  %2265 = vmatprep.subr.bf16.mxu0 0
  %2266 = vmatpush1.bf16.msra.mxu0 %v2241
  %2267 = vmatprep.subr.bf16.mxu0 0
  %2268 = vmatpush1.bf16.msra.mxu0 %v2240
  %2269 = vmatprep.subr.bf16.mxu0 0
  %2270 = vmatpush1.bf16.msra.mxu0 %v2239
  %2271 = vmatprep.subr.bf16.mxu0 0
  %2272 = vmatpush2.bf16.msra.mxu0 0
  %2273 = vmatprep.subr.bf16.mxu0 0
  %2274 = vmatpush2.bf16.msra.mxu0 0
  %2275 = vmatprep.subr.bf16.mxu0 0
  %2276 = vmatpush2.bf16.msra.mxu0 0
  %2277 = vmatprep.subr.bf16.mxu0 0
  %2278 = vmatpush2.bf16.msra.mxu0 0
  %2279 = vmatprep.subr.bf16.mxu0 0
  %2280 = vmatpush2.bf16.msra.mxu0 0
  %2281 = vmatprep.subr.bf16.mxu0 0
  %2282 = vmatpush2.bf16.msra.mxu0 0
  %2283 = vmatprep.subr.bf16.mxu0 0
  %2284 = vmatpush2.bf16.msra.mxu0 0
  %2285 = vmatprep.subr.bf16.mxu0 0
  %2286 = vmatpush2.bf16.msra.mxu0 0
  %2287 = vmatprep.mubr.bf16.mxu0 0
  %2288 = vmatmul.mubr.bf16.gmra.mxu0 %v2198
  %v2289 = vpop.f32.mrf.mxu0
  %v2290 = vadd.f32 %v2205, %v2289
  %v2291 = vpop.f32.mrf.mxu0
  %v2292 = vpop.f32.mrf.mxu0
  %v2293 = vadd.f32 %v2205, %v2292
  %v2294 = vpop.f32.mrf.mxu0
  %2295 = vmatprep.mubr.bf16.mxu0 0
  %2296 = vmatmul.mubr.bf16.gmra.mxu0 %v2199
  %v2297 = vpop.f32.mrf.mxu0
  %v2298 = vadd.f32 %v2205, %v2297
  %v2299 = vpop.f32.mrf.mxu0
  %v2300 = vpop.f32.mrf.mxu0
  %v2301 = vadd.f32 %v2205, %v2300
  %v2302 = vpop.f32.mrf.mxu0
  %2303 = vmatprep.mubr.bf16.mxu0 0
  %2304 = vmatmul.mubr.bf16.gmra.mxu0 %v2200
  %v2305 = vpop.f32.mrf.mxu0
  %v2306 = vadd.f32 %v2205, %v2305
  %v2307 = vpop.f32.mrf.mxu0
  %v2308 = vpop.f32.mrf.mxu0
  %v2309 = vadd.f32 %v2205, %v2308
  %v2310 = vpop.f32.mrf.mxu0
  %2311 = vdwg.mxu0
  %v2312 = vadd.f32 %v2039, %v2290
  %v2313 = vadd.f32 %v2040, %v2293
  %v2314 = vadd.f32 %v2041, %v2298
  %v2315 = vadd.f32 %v2042, %v2301
  %v2316 = vadd.f32 %v2043, %v2306
  %v2317 = vadd.f32 %v2044, %v2309
  %v2318 = vsel %vm77, %v2312, 0.0
  %2319 = vadd.xlane.f32.xlu0 %v2318
  %v2320 = vpop.xlane.xlu0 %2319
  %v2321 = vsel %vm77, %v2313, 0.0
  %2322 = vadd.xlane.f32.xlu0 %v2321
  %v2323 = vpop.xlane.xlu0 %2322
  %v2324 = vsel %vm77, %v2314, 0.0
  %2325 = vadd.xlane.f32.xlu0 %v2324
  %v2326 = vpop.xlane.xlu0 %2325
  %v2327 = vsel %vm77, %v2315, 0.0
  %2328 = vadd.xlane.f32.xlu0 %v2327
  %v2329 = vpop.xlane.xlu0 %2328
  %v2330 = vsel %vm77, %v2316, 0.0
  %2331 = vadd.xlane.f32.xlu0 %v2330
  %v2332 = vpop.xlane.xlu0 %2331
  %v2333 = vsel %vm77, %v2317, 0.0
  %2334 = vadd.xlane.f32.xlu0 %v2333
  %v2335 = vpop.xlane.xlu0 %2334
  %v2336 = vmul.f32 %v2320, %v96
  %v2337 = vmul.f32 %v2323, %v96
  %v2338 = vmul.f32 %v2326, %v96
  %v2339 = vmul.f32 %v2329, %v96
  %v2340 = vmul.f32 %v2332, %v96
  %v2341 = vmul.f32 %v2335, %v96
  %v2342 = vsub.f32 %v2312, %v2336
  %v2343 = vsub.f32 %v2313, %v2337
  %v2344 = vsub.f32 %v2314, %v2338
  %v2345 = vsub.f32 %v2315, %v2339
  %v2346 = vsub.f32 %v2316, %v2340
  %v2347 = vsub.f32 %v2317, %v2341
  %v2348 = vmul.f32 %v2342, %v2342
  %v2349 = vmul.f32 %v2343, %v2343
  %v2350 = vmul.f32 %v2344, %v2344
  %v2351 = vmul.f32 %v2345, %v2345
  %v2352 = vmul.f32 %v2346, %v2346
  %v2353 = vmul.f32 %v2347, %v2347
  %v2354 = vsel %vm77, %v2348, 0.0
  %2355 = vadd.xlane.f32.xlu0 %v2354
  %v2356 = vpop.xlane.xlu0 %2355
  %v2357 = vsel %vm77, %v2349, 0.0
  %2358 = vadd.xlane.f32.xlu0 %v2357
  %v2359 = vpop.xlane.xlu0 %2358
  %v2360 = vsel %vm77, %v2350, 0.0
  %2361 = vadd.xlane.f32.xlu0 %v2360
  %v2362 = vpop.xlane.xlu0 %2361
  %v2363 = vsel %vm77, %v2351, 0.0
  %2364 = vadd.xlane.f32.xlu0 %v2363
  %v2365 = vpop.xlane.xlu0 %2364
  %v2366 = vsel %vm77, %v2352, 0.0
  %2367 = vadd.xlane.f32.xlu0 %v2366
  %v2368 = vpop.xlane.xlu0 %2367
  %v2369 = vsel %vm77, %v2353, 0.0
  %2370 = vadd.xlane.f32.xlu0 %v2369
  %v2371 = vpop.xlane.xlu0 %2370
  %v2372 = vmul.f32 %v2356, %v96
  %v2373 = vmul.f32 %v2359, %v96
  %v2374 = vmul.f32 %v2362, %v96
  %v2375 = vmul.f32 %v2365, %v96
  %v2376 = vmul.f32 %v2368, %v96
  %v2377 = vmul.f32 %v2371, %v96
  %v2378 = vadd.f32 %v2372, 1e-12
  %v2379 = vadd.f32 %v2373, 1e-12
  %v2380 = vadd.f32 %v2374, 1e-12
  %v2381 = vadd.f32 %v2375, 1e-12
  %v2382 = vadd.f32 %v2376, 1e-12
  %v2383 = vadd.f32 %v2377, 1e-12
  %v2384 = vrsqrt.pop %v2378
  %v2385 = vrsqrt.pop %v2379
  %v2386 = vrsqrt.pop %v2380
  %v2387 = vrsqrt.pop %v2381
  %v2388 = vrsqrt.pop %v2382
  %v2389 = vrsqrt.pop %v2383
  %v2390 = vmul.f32 %v2342, %v2384
  %v2391 = vmul.f32 %v2343, %v2385
  %v2392 = vmul.f32 %v2344, %v2386
  %v2393 = vmul.f32 %v2345, %v2387
  %v2394 = vmul.f32 %v2346, %v2388
  %v2395 = vmul.f32 %v2347, %v2389
  %v2397 = vlaneseq
  %v2398 = vshrl.u32 %v2397, 7
  %v2399 = vsub.s32 0, %v2398
  %v2400 = vrot.slane %v227, %v2399
  %v2402 = vmul.f32 %v2390, %v2400
  %v2403 = vmul.f32 %v2391, %v2400
  %v2404 = vmul.f32 %v2392, %v2400
  %v2405 = vmul.f32 %v2393, %v2400
  %v2406 = vmul.f32 %v2394, %v2400
  %v2407 = vmul.f32 %v2395, %v2400
  %v2409 = vlaneseq
  %v2410 = vshrl.u32 %v2409, 7
  %v2411 = vsub.s32 0, %v2410
  %v2412 = vrot.slane %v228, %v2411
  %v2414 = vadd.f32 %v2402, %v2412
  %v2415 = vadd.f32 %v2403, %v2412
  %v2416 = vadd.f32 %v2404, %v2412
  %v2417 = vadd.f32 %v2405, %v2412
  %v2418 = vadd.f32 %v2406, %v2412
  %v2419 = vadd.f32 %v2407, %v2412
  %2420 = vst.msk [vmem:[%s17] sm:$0xff] %vm77, %v2414
  %2421 = vst.msk [vmem:[%s17 + $0x8] sm:$0xff] %vm77, %v2415
  %2422 = vst.msk [vmem:[%s17 + $0x10] sm:$0xff] %vm77, %v2416
  %2423 = vst.msk [vmem:[%s17 + $0x18] sm:$0xff] %vm77, %v2417
  %2424 = vst.msk [vmem:[%s17 + $0x20] sm:$0xff] %vm77, %v2418
  %2425 = vst.msk [vmem:[%s17 + $0x28] sm:$0xff] %vm77, %v2419
  // Predicated region
  $region70: #{_lambda_.3} parent=0 // pred_check
    _
  $region71: #{_lambda_.3} parent=0 // pred_check_branch
    %2427 = sbr.rel (0) target = $region73
  $region72: #{_lambda_.3} parent=0 // pred_region
    _
  $region73: #{_lambda_.3} parent=0 // pred_fallthru
    _
  // Predicated region
  $region74: #{_lambda_.3} parent=0 // pred_check
    _
  $region75: #{_lambda_.3} parent=0 // pred_check_branch
    %2429 = sbr.rel (0) target = $region77
  $region76: #{_lambda_.3} parent=0 // pred_region
    _
  $region77: #{_lambda_.3} parent=0 // pred_fallthru
    _

</llo_original>
